<compile_context>
chip_gen: v7x
topology: tpu7x:2x2x1
jax: 0.10.0
libtpu: 0.0.40
codegen_flags: <defaults>
</compile_context>

<pallas_src>
import functools

import jax
import jax.numpy as jnp
from jax.experimental import pallas as pl
from jax.experimental.pallas import tpu as pltpu

_VMEM = pl.BlockSpec(memory_space=pltpu.MemorySpace.VMEM)


# ---------------------------------------------------------------------------
# Fused Pallas kernel: mask + conv1 + conv3a + conv3 + conv4|conv5 + (x+1)^2
# ---------------------------------------------------------------------------
def _fused_nb_kernel(x5_ref, m_ref,
                     w1_ref, b1_ref, w3a_ref, b3a_ref,
                     w3_ref, b3_ref, w45_ref, b45_ref,
                     out_ref,
                     c0_ref, c1_ref, c2_ref, c3_ref,
                     *, H, W):
    HW = H * W

    def to_canvas(canvas_ref, val_hwc, pad):
        # 'same'-conv padding realized as a zero halo in VMEM scratch:
        # zero the canvas once, then write the valid center window.
        canvas_ref[...] = jnp.zeros(canvas_ref.shape, canvas_ref.dtype)
        canvas_ref[pl.ds(pad, H), pl.ds(pad, W), :] = val_hwc.astype(
            canvas_ref.dtype)

    def conv(canvas_ref, w_ref, b_ref, ksize):
        # im2col: build the patch matrix once, then ONE bf16 MXU matmul with
        # f32 accumulation per layer (no per-tap accumulator adds).
        xp = canvas_ref[...]                                # (H+2p, W+2p, Cin) f32
        cin = xp.shape[-1]
        cols = []
        for kh in range(ksize):                             # static tap loops
            for kw in range(ksize):
                cols.append(xp[kh:kh + H, kw:kw + W, :].reshape(HW, cin))
        patches = jnp.concatenate(cols, axis=-1)            # (HW, k*k*Cin)
        acc = jnp.dot(patches.astype(jnp.bfloat16), w_ref[...],
                      preferred_element_type=jnp.float32)   # MXU, f32 acc
        return acc + b_ref[...]                             # (HW, Cout) f32

    # mask fold (VPU work, free filler under the matmuls): x1 * (1 - mask)
    x5m = x5_ref[...] * (1.0 - m_ref[...])

    # conv1 (5x5, 5 -> 64) + relu
    to_canvas(c0_ref, x5m, 2)
    h = jnp.maximum(conv(c0_ref, w1_ref, b1_ref, 5), 0.0)

    # conv3a (5x5, 64 -> 64) + relu
    to_canvas(c1_ref, h.reshape(H, W, 64), 2)
    h = jnp.maximum(conv(c1_ref, w3a_ref, b3a_ref, 5), 0.0)

    # conv3 (3x3, 64 -> 32) + relu
    to_canvas(c2_ref, h.reshape(H, W, 64), 1)
    h = jnp.maximum(conv(c2_ref, w3_ref, b3_ref, 3), 0.0)

    # conv4 | conv5 fused (3x3, 32 -> 2), then torch.pow(x + 1, 2)
    to_canvas(c3_ref, h.reshape(H, W, 32), 1)
    h = conv(c3_ref, w45_ref, b45_ref, 3)                   # (HW, 2) f32
    out_ref[...] = (h + 1.0) * (h + 1.0)                    # [:,0]=x_mu, [:,1]=x_theta


def _fused_forward(x5_hwc, mask_hw1, params, *, H, W):
    kern = functools.partial(_fused_nb_kernel, H=H, W=W)
    return pl.pallas_call(
        kern,
        out_shape=jax.ShapeDtypeStruct((H * W, 2), jnp.float32),
        in_specs=[_VMEM] * 10,
        out_specs=_VMEM,
        scratch_shapes=[
            pltpu.VMEM((H + 4, W + 4, 5), jnp.float32),    # conv1 input canvas
            pltpu.VMEM((H + 4, W + 4, 64), jnp.float32),   # conv3a input canvas
            pltpu.VMEM((H + 2, W + 2, 64), jnp.float32),   # conv3 input canvas
            pltpu.VMEM((H + 2, W + 2, 32), jnp.float32),   # conv4/5 input canvas
        ],
        # Headroom above the v5e 16 MiB scoped default; total use here is ~3 MiB.
        compiler_params=pltpu.CompilerParams(vmem_limit_bytes=32 << 20),
    )(x5_hwc, mask_hw1,
      params["w1"], params["b1"], params["w3a"], params["b3a"],
      params["w3"], params["b3"], params["w45"], params["b45"])


# ---------------------------------------------------------------------------
# Deterministic parameter init (PyTorch Conv2d default-style uniform bounds)
# ---------------------------------------------------------------------------
def init_params(key):
    """Weights are stored im2col-ready: (KH*KW*Cin, Cout) bf16, rows ordered
    (kh, kw, cin) to match the kernel's patch-column order.
    NOTE: real PyTorch Conv2d weights are (Cout, Cin, KH, KW); transpose to
    (KH, KW, Cin, Cout) first, then reshape the same way."""
    def conv_init(k, kh, kw, cin, cout):
        k1, k2 = jax.random.split(k)
        bound = 1.0 / (cin * kh * kw) ** 0.5
        w = jax.random.uniform(k1, (kh, kw, cin, cout), jnp.float32, -bound, bound)
        b = jax.random.uniform(k2, (1, cout), jnp.float32, -bound, bound)
        return w, b

    keys = jax.random.split(key, 5)
    w1, b1 = conv_init(keys[0], 5, 5, 5, 64)       # conv1
    w3a, b3a = conv_init(keys[1], 5, 5, 64, 64)    # conv3a
    w3, b3 = conv_init(keys[2], 3, 3, 64, 32)      # conv3
    w4, b4 = conv_init(keys[3], 3, 3, 32, 1)       # conv4 (mu head)
    w5, b5 = conv_init(keys[4], 3, 3, 32, 1)       # conv5 (theta head)
    w45 = jnp.concatenate([w4, w5], axis=-1)       # fuse heads -> Cout = 2
    b45 = jnp.concatenate([b4, b5], axis=-1)

    def pack(w):   # (KH, KW, Cin, Cout) -> (KH*KW*Cin, Cout) bf16, im2col order
        kh, kw, cin, cout = w.shape
        return w.reshape(kh * kw * cin, cout).astype(jnp.bfloat16)

    return {"w1": pack(w1), "b1": b1, "w3a": pack(w3a), "b3a": b3a,
            "w3": pack(w3), "b3": b3, "w45": pack(w45), "b45": b45}


# ---------------------------------------------------------------------------
# Forward pass (side=False, round=False, include_pi=False, a=0)
# ---------------------------------------------------------------------------
def nb_forward(x_nchw, mask_nchw, params):
    X = x_nchw[0, 0].astype(jnp.float32)            # self.tn(x) -> (H, W)
    H, W = X.shape
    assert H == W, "channel stack of WxW reconstructions requires H == W"

    # TODO(synk): sklearn TruncatedSVD (randomized solver, n_iter=7, seed=42)
    # is replaced by an exact eigendecomposition of the Gram matrix X^T X
    # (only S and V are used); the top-k subspaces coincide and sign flips
    # cancel in v v^T. The module's reconstruction V_k^T diag(S_k) V_k is
    # built incrementally: recon_k = recon_{k-1} + s_k v_k v_k^T.
    gram = X.T @ X                                   # (W, W) symmetric PSD
    evals, evecs = jnp.linalg.eigh(gram)             # ascending
    s = jnp.sqrt(jnp.maximum(evals[::-1][:4], 0.0))  # top-4 singular values
    V = evecs[:, ::-1][:, :4]                        # top-4 right sing. vectors
    recons, acc = [], jnp.zeros((W, W), jnp.float32)
    for k in range(4):                               # x_np1 .. x_np4
        acc = acc + s[k] * jnp.outer(V[:, k], V[:, k])
        recons.append(acc)

    x5 = jnp.stack([X] + recons, axis=-1)            # (H, W, 5)
    mask_hw1 = mask_nchw[0, 0].astype(jnp.float32)[..., None]

    out = _fused_forward(x5, mask_hw1, params, H=H, W=W)     # (H*W, 2) f32
    # NCHW layout plumbing on the XLA side (kernel's only HBM store is 2 KB).
    return out.reshape(H, W, 2).transpose(2, 0, 1)[None]     # (1, 2, H, W)


if __name__ == "__main__":
    key = jax.random.PRNGKey(0)
    kx, km, kp = jax.random.split(key, 3)
    H = W = 16
    x = jax.random.uniform(kx, (1, 1, H, W), jnp.float32)
    mask = (jax.random.uniform(km, (1, 1, H, W)) > 0.5).astype(jnp.float32)
    params = init_params(kp)

    out = jax.jit(nb_forward)(x, mask, params)
    jax.block_until_ready(out)
    assert out.shape == (1, 2, H, W) and out.dtype == jnp.float32
    print("KERNEL_OK")
</pallas_src>

<mosaic_0001>
module attributes {stable_mosaic.version = 11 : i64} {
  func.func @_fused_nb_kernel(%arg0: memref<16x16x5xf32, #tpu.memory_space<vmem>>, %arg1: memref<16x16x1xf32, #tpu.memory_space<vmem>>, %arg2: memref<125x64xbf16, #tpu.memory_space<vmem>>, %arg3: memref<1x64xf32, #tpu.memory_space<vmem>>, %arg4: memref<1600x64xbf16, #tpu.memory_space<vmem>>, %arg5: memref<1x64xf32, #tpu.memory_space<vmem>>, %arg6: memref<576x32xbf16, #tpu.memory_space<vmem>>, %arg7: memref<1x32xf32, #tpu.memory_space<vmem>>, %arg8: memref<288x2xbf16, #tpu.memory_space<vmem>>, %arg9: memref<1x2xf32, #tpu.memory_space<vmem>>, %arg10: memref<256x2xf32, #tpu.memory_space<vmem>>, %arg11: memref<20x20x5xf32, #tpu.memory_space<vmem>>, %arg12: memref<20x20x64xf32, #tpu.memory_space<vmem>>, %arg13: memref<18x18x64xf32, #tpu.memory_space<vmem>>, %arg14: memref<18x18x32xf32, #tpu.memory_space<vmem>>) attributes {dimension_semantics = [], scalar_prefetch = 0 : i64, scratch_operands = 4 : i64, tpu.core_type = #tpu.core_type<tc>} {
    %c0 = arith.constant 0 : index
    %c0_0 = arith.constant 0 : index
    %c0_1 = arith.constant 0 : index
    %0 = vector.load %arg0[%c0, %c0_0, %c0_1] : memref<16x16x5xf32, #tpu.memory_space<vmem>>, vector<16x16x5xf32>
    %c0_2 = arith.constant 0 : index
    %c0_3 = arith.constant 0 : index
    %c0_4 = arith.constant 0 : index
    %1 = vector.load %arg1[%c0_2, %c0_3, %c0_4] : memref<16x16x1xf32, #tpu.memory_space<vmem>>, vector<16x16x1xf32>
    %cst = arith.constant 1.000000e+00 : f32
    %2 = vector.broadcast %cst : f32 to vector<16x16x1xf32>
    %3 = arith.subf %2, %1 : vector<16x16x1xf32>
    %4 = vector.broadcast %3 : vector<16x16x1xf32> to vector<16x16x5xf32>
    %5 = arith.mulf %0, %4 : vector<16x16x5xf32>
    %cst_5 = arith.constant 0.000000e+00 : f32
    %6 = vector.broadcast %cst_5 : f32 to vector<20x20x5xf32>
    %c0_6 = arith.constant 0 : index
    %c0_7 = arith.constant 0 : index
    %c0_8 = arith.constant 0 : index
    %7 = vector.load %arg11[%c0_6, %c0_7, %c0_8] : memref<20x20x5xf32, #tpu.memory_space<vmem>>, vector<20x20x5xf32>
    tpu.vector_store %arg11[%c0_6, %c0_7, %c0_8], %6 {strides = array<i32>} : memref<20x20x5xf32, #tpu.memory_space<vmem>>, vector<20x20x5xf32>,
    %c2 = arith.constant 2 : index
    %c2_9 = arith.constant 2 : index
    %c0_10 = arith.constant 0 : index
    %8 = vector.load %arg11[%c2, %c2_9, %c0_10] : memref<20x20x5xf32, #tpu.memory_space<vmem>>, vector<16x16x5xf32>
    tpu.vector_store %arg11[%c2, %c2_9, %c0_10], %5 {strides = array<i32>} : memref<20x20x5xf32, #tpu.memory_space<vmem>>, vector<16x16x5xf32>,
    %c0_11 = arith.constant 0 : index
    %c0_12 = arith.constant 0 : index
    %c0_13 = arith.constant 0 : index
    %9 = vector.load %arg11[%c0_11, %c0_12, %c0_13] : memref<20x20x5xf32, #tpu.memory_space<vmem>>, vector<20x20x5xf32>
    %10 = vector.extract_strided_slice %9 {offsets = [0, 0, 0], sizes = [16, 16, 5], strides = [1, 1, 1]} : vector<20x20x5xf32> to vector<16x16x5xf32>
    %11 = vector.shape_cast %10 : vector<16x16x5xf32> to vector<256x5xf32>
    %12 = vector.extract_strided_slice %9 {offsets = [0, 1, 0], sizes = [16, 16, 5], strides = [1, 1, 1]} : vector<20x20x5xf32> to vector<16x16x5xf32>
    %13 = vector.shape_cast %12 : vector<16x16x5xf32> to vector<256x5xf32>
    %14 = vector.extract_strided_slice %9 {offsets = [0, 2, 0], sizes = [16, 16, 5], strides = [1, 1, 1]} : vector<20x20x5xf32> to vector<16x16x5xf32>
    %15 = vector.shape_cast %14 : vector<16x16x5xf32> to vector<256x5xf32>
    %16 = vector.extract_strided_slice %9 {offsets = [0, 3, 0], sizes = [16, 16, 5], strides = [1, 1, 1]} : vector<20x20x5xf32> to vector<16x16x5xf32>
    %17 = vector.shape_cast %16 : vector<16x16x5xf32> to vector<256x5xf32>
    %18 = vector.extract_strided_slice %9 {offsets = [0, 4, 0], sizes = [16, 16, 5], strides = [1, 1, 1]} : vector<20x20x5xf32> to vector<16x16x5xf32>
    %19 = vector.shape_cast %18 : vector<16x16x5xf32> to vector<256x5xf32>
    %20 = vector.extract_strided_slice %9 {offsets = [1, 0, 0], sizes = [16, 16, 5], strides = [1, 1, 1]} : vector<20x20x5xf32> to vector<16x16x5xf32>
    %21 = vector.shape_cast %20 : vector<16x16x5xf32> to vector<256x5xf32>
    %22 = vector.extract_strided_slice %9 {offsets = [1, 1, 0], sizes = [16, 16, 5], strides = [1, 1, 1]} : vector<20x20x5xf32> to vector<16x16x5xf32>
    %23 = vector.shape_cast %22 : vector<16x16x5xf32> to vector<256x5xf32>
    %24 = vector.extract_strided_slice %9 {offsets = [1, 2, 0], sizes = [16, 16, 5], strides = [1, 1, 1]} : vector<20x20x5xf32> to vector<16x16x5xf32>
    %25 = vector.shape_cast %24 : vector<16x16x5xf32> to vector<256x5xf32>
    %26 = vector.extract_strided_slice %9 {offsets = [1, 3, 0], sizes = [16, 16, 5], strides = [1, 1, 1]} : vector<20x20x5xf32> to vector<16x16x5xf32>
    %27 = vector.shape_cast %26 : vector<16x16x5xf32> to vector<256x5xf32>
    %28 = vector.extract_strided_slice %9 {offsets = [1, 4, 0], sizes = [16, 16, 5], strides = [1, 1, 1]} : vector<20x20x5xf32> to vector<16x16x5xf32>
    %29 = vector.shape_cast %28 : vector<16x16x5xf32> to vector<256x5xf32>
    %30 = vector.extract_strided_slice %9 {offsets = [2, 0, 0], sizes = [16, 16, 5], strides = [1, 1, 1]} : vector<20x20x5xf32> to vector<16x16x5xf32>
    %31 = vector.shape_cast %30 : vector<16x16x5xf32> to vector<256x5xf32>
    %32 = vector.extract_strided_slice %9 {offsets = [2, 1, 0], sizes = [16, 16, 5], strides = [1, 1, 1]} : vector<20x20x5xf32> to vector<16x16x5xf32>
    %33 = vector.shape_cast %32 : vector<16x16x5xf32> to vector<256x5xf32>
    %34 = vector.extract_strided_slice %9 {offsets = [2, 2, 0], sizes = [16, 16, 5], strides = [1, 1, 1]} : vector<20x20x5xf32> to vector<16x16x5xf32>
    %35 = vector.shape_cast %34 : vector<16x16x5xf32> to vector<256x5xf32>
    %36 = vector.extract_strided_slice %9 {offsets = [2, 3, 0], sizes = [16, 16, 5], strides = [1, 1, 1]} : vector<20x20x5xf32> to vector<16x16x5xf32>
    %37 = vector.shape_cast %36 : vector<16x16x5xf32> to vector<256x5xf32>
    %38 = vector.extract_strided_slice %9 {offsets = [2, 4, 0], sizes = [16, 16, 5], strides = [1, 1, 1]} : vector<20x20x5xf32> to vector<16x16x5xf32>
    %39 = vector.shape_cast %38 : vector<16x16x5xf32> to vector<256x5xf32>
    %40 = vector.extract_strided_slice %9 {offsets = [3, 0, 0], sizes = [16, 16, 5], strides = [1, 1, 1]} : vector<20x20x5xf32> to vector<16x16x5xf32>
    %41 = vector.shape_cast %40 : vector<16x16x5xf32> to vector<256x5xf32>
    %42 = vector.extract_strided_slice %9 {offsets = [3, 1, 0], sizes = [16, 16, 5], strides = [1, 1, 1]} : vector<20x20x5xf32> to vector<16x16x5xf32>
    %43 = vector.shape_cast %42 : vector<16x16x5xf32> to vector<256x5xf32>
    %44 = vector.extract_strided_slice %9 {offsets = [3, 2, 0], sizes = [16, 16, 5], strides = [1, 1, 1]} : vector<20x20x5xf32> to vector<16x16x5xf32>
    %45 = vector.shape_cast %44 : vector<16x16x5xf32> to vector<256x5xf32>
    %46 = vector.extract_strided_slice %9 {offsets = [3, 3, 0], sizes = [16, 16, 5], strides = [1, 1, 1]} : vector<20x20x5xf32> to vector<16x16x5xf32>
    %47 = vector.shape_cast %46 : vector<16x16x5xf32> to vector<256x5xf32>
    %48 = vector.extract_strided_slice %9 {offsets = [3, 4, 0], sizes = [16, 16, 5], strides = [1, 1, 1]} : vector<20x20x5xf32> to vector<16x16x5xf32>
    %49 = vector.shape_cast %48 : vector<16x16x5xf32> to vector<256x5xf32>
    %50 = vector.extract_strided_slice %9 {offsets = [4, 0, 0], sizes = [16, 16, 5], strides = [1, 1, 1]} : vector<20x20x5xf32> to vector<16x16x5xf32>
    %51 = vector.shape_cast %50 : vector<16x16x5xf32> to vector<256x5xf32>
    %52 = vector.extract_strided_slice %9 {offsets = [4, 1, 0], sizes = [16, 16, 5], strides = [1, 1, 1]} : vector<20x20x5xf32> to vector<16x16x5xf32>
    %53 = vector.shape_cast %52 : vector<16x16x5xf32> to vector<256x5xf32>
    %54 = vector.extract_strided_slice %9 {offsets = [4, 2, 0], sizes = [16, 16, 5], strides = [1, 1, 1]} : vector<20x20x5xf32> to vector<16x16x5xf32>
    %55 = vector.shape_cast %54 : vector<16x16x5xf32> to vector<256x5xf32>
    %56 = vector.extract_strided_slice %9 {offsets = [4, 3, 0], sizes = [16, 16, 5], strides = [1, 1, 1]} : vector<20x20x5xf32> to vector<16x16x5xf32>
    %57 = vector.shape_cast %56 : vector<16x16x5xf32> to vector<256x5xf32>
    %58 = vector.extract_strided_slice %9 {offsets = [4, 4, 0], sizes = [16, 16, 5], strides = [1, 1, 1]} : vector<20x20x5xf32> to vector<16x16x5xf32>
    %59 = vector.shape_cast %58 : vector<16x16x5xf32> to vector<256x5xf32>
    %60 = tpu.concatenate %11, %13, %15, %17, %19, %21, %23, %25, %27, %29, %31, %33, %35, %37, %39, %41 in 1 : vector<256x5xf32>, vector<256x5xf32>, vector<256x5xf32>, vector<256x5xf32>, vector<256x5xf32>, vector<256x5xf32>, vector<256x5xf32>, vector<256x5xf32>, vector<256x5xf32>, vector<256x5xf32>, vector<256x5xf32>, vector<256x5xf32>, vector<256x5xf32>, vector<256x5xf32>, vector<256x5xf32>, vector<256x5xf32> -> vector<256x80xf32>
    %61 = tpu.concatenate %43, %45, %47, %49, %51, %53, %55, %57, %59 in 1 : vector<256x5xf32>, vector<256x5xf32>, vector<256x5xf32>, vector<256x5xf32>, vector<256x5xf32>, vector<256x5xf32>, vector<256x5xf32>, vector<256x5xf32>, vector<256x5xf32> -> vector<256x45xf32>
    %62 = tpu.concatenate %60, %61 in 1 : vector<256x80xf32>, vector<256x45xf32> -> vector<256x125xf32>
    %63 = arith.truncf %62 : vector<256x125xf32> to vector<256x125xbf16>
    %c0_14 = arith.constant 0 : index
    %c0_15 = arith.constant 0 : index
    %64 = vector.load %arg2[%c0_14, %c0_15] : memref<125x64xbf16, #tpu.memory_space<vmem>>, vector<125x64xbf16>
    %cst_16 = arith.constant dense<0.000000e+00> : vector<256x64xf32>
    %65 = tpu.matmul %63, %64, %cst_16 {dimension_numbers = #tpu.dot_dimension_numbers<[1], [0], [0], [1], [0, 0, 1, 1], [], []>} : vector<256x125xbf16>, vector<125x64xbf16>, vector<256x64xf32> -> vector<256x64xf32>
    %c0_17 = arith.constant 0 : index
    %c0_18 = arith.constant 0 : index
    %66 = vector.load %arg3[%c0_17, %c0_18] : memref<1x64xf32, #tpu.memory_space<vmem>>, vector<1x64xf32>
    %67 = vector.broadcast %66 : vector<1x64xf32> to vector<256x64xf32>
    %68 = arith.addf %65, %67 : vector<256x64xf32>
    %cst_19 = arith.constant 0.000000e+00 : f32
    %69 = vector.broadcast %cst_19 : f32 to vector<256x64xf32>
    %70 = arith.maximumf %68, %69 : vector<256x64xf32>
    %71 = vector.shape_cast %70 : vector<256x64xf32> to vector<16x16x64xf32>
    %cst_20 = arith.constant 0.000000e+00 : f32
    %72 = vector.broadcast %cst_20 : f32 to vector<20x20x64xf32>
    %c0_21 = arith.constant 0 : index
    %c0_22 = arith.constant 0 : index
    %c0_23 = arith.constant 0 : index
    %73 = vector.load %arg12[%c0_21, %c0_22, %c0_23] : memref<20x20x64xf32, #tpu.memory_space<vmem>>, vector<20x20x64xf32>
    tpu.vector_store %arg12[%c0_21, %c0_22, %c0_23], %72 {strides = array<i32>} : memref<20x20x64xf32, #tpu.memory_space<vmem>>, vector<20x20x64xf32>,
    %c2_24 = arith.constant 2 : index
    %c2_25 = arith.constant 2 : index
    %c0_26 = arith.constant 0 : index
    %74 = vector.load %arg12[%c2_24, %c2_25, %c0_26] : memref<20x20x64xf32, #tpu.memory_space<vmem>>, vector<16x16x64xf32>
    tpu.vector_store %arg12[%c2_24, %c2_25, %c0_26], %71 {strides = array<i32>} : memref<20x20x64xf32, #tpu.memory_space<vmem>>, vector<16x16x64xf32>,
    %c0_27 = arith.constant 0 : index
    %c0_28 = arith.constant 0 : index
    %c0_29 = arith.constant 0 : index
    %75 = vector.load %arg12[%c0_27, %c0_28, %c0_29] : memref<20x20x64xf32, #tpu.memory_space<vmem>>, vector<20x20x64xf32>
    %76 = vector.extract_strided_slice %75 {offsets = [0, 0, 0], sizes = [16, 16, 64], strides = [1, 1, 1]} : vector<20x20x64xf32> to vector<16x16x64xf32>
    %77 = vector.shape_cast %76 : vector<16x16x64xf32> to vector<256x64xf32>
    %78 = vector.extract_strided_slice %75 {offsets = [0, 1, 0], sizes = [16, 16, 64], strides = [1, 1, 1]} : vector<20x20x64xf32> to vector<16x16x64xf32>
    %79 = vector.shape_cast %78 : vector<16x16x64xf32> to vector<256x64xf32>
    %80 = vector.extract_strided_slice %75 {offsets = [0, 2, 0], sizes = [16, 16, 64], strides = [1, 1, 1]} : vector<20x20x64xf32> to vector<16x16x64xf32>
    %81 = vector.shape_cast %80 : vector<16x16x64xf32> to vector<256x64xf32>
    %82 = vector.extract_strided_slice %75 {offsets = [0, 3, 0], sizes = [16, 16, 64], strides = [1, 1, 1]} : vector<20x20x64xf32> to vector<16x16x64xf32>
    %83 = vector.shape_cast %82 : vector<16x16x64xf32> to vector<256x64xf32>
    %84 = vector.extract_strided_slice %75 {offsets = [0, 4, 0], sizes = [16, 16, 64], strides = [1, 1, 1]} : vector<20x20x64xf32> to vector<16x16x64xf32>
    %85 = vector.shape_cast %84 : vector<16x16x64xf32> to vector<256x64xf32>
    %86 = vector.extract_strided_slice %75 {offsets = [1, 0, 0], sizes = [16, 16, 64], strides = [1, 1, 1]} : vector<20x20x64xf32> to vector<16x16x64xf32>
    %87 = vector.shape_cast %86 : vector<16x16x64xf32> to vector<256x64xf32>
    %88 = vector.extract_strided_slice %75 {offsets = [1, 1, 0], sizes = [16, 16, 64], strides = [1, 1, 1]} : vector<20x20x64xf32> to vector<16x16x64xf32>
    %89 = vector.shape_cast %88 : vector<16x16x64xf32> to vector<256x64xf32>
    %90 = vector.extract_strided_slice %75 {offsets = [1, 2, 0], sizes = [16, 16, 64], strides = [1, 1, 1]} : vector<20x20x64xf32> to vector<16x16x64xf32>
    %91 = vector.shape_cast %90 : vector<16x16x64xf32> to vector<256x64xf32>
    %92 = vector.extract_strided_slice %75 {offsets = [1, 3, 0], sizes = [16, 16, 64], strides = [1, 1, 1]} : vector<20x20x64xf32> to vector<16x16x64xf32>
    %93 = vector.shape_cast %92 : vector<16x16x64xf32> to vector<256x64xf32>
    %94 = vector.extract_strided_slice %75 {offsets = [1, 4, 0], sizes = [16, 16, 64], strides = [1, 1, 1]} : vector<20x20x64xf32> to vector<16x16x64xf32>
    %95 = vector.shape_cast %94 : vector<16x16x64xf32> to vector<256x64xf32>
    %96 = vector.extract_strided_slice %75 {offsets = [2, 0, 0], sizes = [16, 16, 64], strides = [1, 1, 1]} : vector<20x20x64xf32> to vector<16x16x64xf32>
    %97 = vector.shape_cast %96 : vector<16x16x64xf32> to vector<256x64xf32>
    %98 = vector.extract_strided_slice %75 {offsets = [2, 1, 0], sizes = [16, 16, 64], strides = [1, 1, 1]} : vector<20x20x64xf32> to vector<16x16x64xf32>
    %99 = vector.shape_cast %98 : vector<16x16x64xf32> to vector<256x64xf32>
    %100 = vector.extract_strided_slice %75 {offsets = [2, 2, 0], sizes = [16, 16, 64], strides = [1, 1, 1]} : vector<20x20x64xf32> to vector<16x16x64xf32>
    %101 = vector.shape_cast %100 : vector<16x16x64xf32> to vector<256x64xf32>
    %102 = vector.extract_strided_slice %75 {offsets = [2, 3, 0], sizes = [16, 16, 64], strides = [1, 1, 1]} : vector<20x20x64xf32> to vector<16x16x64xf32>
    %103 = vector.shape_cast %102 : vector<16x16x64xf32> to vector<256x64xf32>
    %104 = vector.extract_strided_slice %75 {offsets = [2, 4, 0], sizes = [16, 16, 64], strides = [1, 1, 1]} : vector<20x20x64xf32> to vector<16x16x64xf32>
    %105 = vector.shape_cast %104 : vector<16x16x64xf32> to vector<256x64xf32>
    %106 = vector.extract_strided_slice %75 {offsets = [3, 0, 0], sizes = [16, 16, 64], strides = [1, 1, 1]} : vector<20x20x64xf32> to vector<16x16x64xf32>
    %107 = vector.shape_cast %106 : vector<16x16x64xf32> to vector<256x64xf32>
    %108 = vector.extract_strided_slice %75 {offsets = [3, 1, 0], sizes = [16, 16, 64], strides = [1, 1, 1]} : vector<20x20x64xf32> to vector<16x16x64xf32>
    %109 = vector.shape_cast %108 : vector<16x16x64xf32> to vector<256x64xf32>
    %110 = vector.extract_strided_slice %75 {offsets = [3, 2, 0], sizes = [16, 16, 64], strides = [1, 1, 1]} : vector<20x20x64xf32> to vector<16x16x64xf32>
    %111 = vector.shape_cast %110 : vector<16x16x64xf32> to vector<256x64xf32>
    %112 = vector.extract_strided_slice %75 {offsets = [3, 3, 0], sizes = [16, 16, 64], strides = [1, 1, 1]} : vector<20x20x64xf32> to vector<16x16x64xf32>
    %113 = vector.shape_cast %112 : vector<16x16x64xf32> to vector<256x64xf32>
    %114 = vector.extract_strided_slice %75 {offsets = [3, 4, 0], sizes = [16, 16, 64], strides = [1, 1, 1]} : vector<20x20x64xf32> to vector<16x16x64xf32>
    %115 = vector.shape_cast %114 : vector<16x16x64xf32> to vector<256x64xf32>
    %116 = vector.extract_strided_slice %75 {offsets = [4, 0, 0], sizes = [16, 16, 64], strides = [1, 1, 1]} : vector<20x20x64xf32> to vector<16x16x64xf32>
    %117 = vector.shape_cast %116 : vector<16x16x64xf32> to vector<256x64xf32>
    %118 = vector.extract_strided_slice %75 {offsets = [4, 1, 0], sizes = [16, 16, 64], strides = [1, 1, 1]} : vector<20x20x64xf32> to vector<16x16x64xf32>
    %119 = vector.shape_cast %118 : vector<16x16x64xf32> to vector<256x64xf32>
    %120 = vector.extract_strided_slice %75 {offsets = [4, 2, 0], sizes = [16, 16, 64], strides = [1, 1, 1]} : vector<20x20x64xf32> to vector<16x16x64xf32>
    %121 = vector.shape_cast %120 : vector<16x16x64xf32> to vector<256x64xf32>
    %122 = vector.extract_strided_slice %75 {offsets = [4, 3, 0], sizes = [16, 16, 64], strides = [1, 1, 1]} : vector<20x20x64xf32> to vector<16x16x64xf32>
    %123 = vector.shape_cast %122 : vector<16x16x64xf32> to vector<256x64xf32>
    %124 = vector.extract_strided_slice %75 {offsets = [4, 4, 0], sizes = [16, 16, 64], strides = [1, 1, 1]} : vector<20x20x64xf32> to vector<16x16x64xf32>
    %125 = vector.shape_cast %124 : vector<16x16x64xf32> to vector<256x64xf32>
    %126 = tpu.concatenate %77, %79, %81, %83, %85, %87, %89, %91, %93, %95, %97, %99, %101, %103, %105, %107 in 1 : vector<256x64xf32>, vector<256x64xf32>, vector<256x64xf32>, vector<256x64xf32>, vector<256x64xf32>, vector<256x64xf32>, vector<256x64xf32>, vector<256x64xf32>, vector<256x64xf32>, vector<256x64xf32>, vector<256x64xf32>, vector<256x64xf32>, vector<256x64xf32>, vector<256x64xf32>, vector<256x64xf32>, vector<256x64xf32> -> vector<256x1024xf32>
    %127 = tpu.concatenate %109, %111, %113, %115, %117, %119, %121, %123, %125 in 1 : vector<256x64xf32>, vector<256x64xf32>, vector<256x64xf32>, vector<256x64xf32>, vector<256x64xf32>, vector<256x64xf32>, vector<256x64xf32>, vector<256x64xf32>, vector<256x64xf32> -> vector<256x576xf32>
    %128 = tpu.concatenate %126, %127 in 1 : vector<256x1024xf32>, vector<256x576xf32> -> vector<256x1600xf32>
    %129 = arith.truncf %128 : vector<256x1600xf32> to vector<256x1600xbf16>
    %c0_30 = arith.constant 0 : index
    %c0_31 = arith.constant 0 : index
    %130 = vector.load %arg4[%c0_30, %c0_31] : memref<1600x64xbf16, #tpu.memory_space<vmem>>, vector<1600x64xbf16>
    %cst_32 = arith.constant dense<0.000000e+00> : vector<256x64xf32>
    %131 = tpu.matmul %129, %130, %cst_32 {dimension_numbers = #tpu.dot_dimension_numbers<[1], [0], [0], [1], [0, 0, 1, 1], [], []>} : vector<256x1600xbf16>, vector<1600x64xbf16>, vector<256x64xf32> -> vector<256x64xf32>
    %c0_33 = arith.constant 0 : index
    %c0_34 = arith.constant 0 : index
    %132 = vector.load %arg5[%c0_33, %c0_34] : memref<1x64xf32, #tpu.memory_space<vmem>>, vector<1x64xf32>
    %133 = vector.broadcast %132 : vector<1x64xf32> to vector<256x64xf32>
    %134 = arith.addf %131, %133 : vector<256x64xf32>
    %cst_35 = arith.constant 0.000000e+00 : f32
    %135 = vector.broadcast %cst_35 : f32 to vector<256x64xf32>
    %136 = arith.maximumf %134, %135 : vector<256x64xf32>
    %137 = vector.shape_cast %136 : vector<256x64xf32> to vector<16x16x64xf32>
    %cst_36 = arith.constant 0.000000e+00 : f32
    %138 = vector.broadcast %cst_36 : f32 to vector<18x18x64xf32>
    %c0_37 = arith.constant 0 : index
    %c0_38 = arith.constant 0 : index
    %c0_39 = arith.constant 0 : index
    %139 = vector.load %arg13[%c0_37, %c0_38, %c0_39] : memref<18x18x64xf32, #tpu.memory_space<vmem>>, vector<18x18x64xf32>
    tpu.vector_store %arg13[%c0_37, %c0_38, %c0_39], %138 {strides = array<i32>} : memref<18x18x64xf32, #tpu.memory_space<vmem>>, vector<18x18x64xf32>,
    %c1 = arith.constant 1 : index
    %c1_40 = arith.constant 1 : index
    %c0_41 = arith.constant 0 : index
    %140 = vector.load %arg13[%c1, %c1_40, %c0_41] : memref<18x18x64xf32, #tpu.memory_space<vmem>>, vector<16x16x64xf32>
    tpu.vector_store %arg13[%c1, %c1_40, %c0_41], %137 {strides = array<i32>} : memref<18x18x64xf32, #tpu.memory_space<vmem>>, vector<16x16x64xf32>,
    %c0_42 = arith.constant 0 : index
    %c0_43 = arith.constant 0 : index
    %c0_44 = arith.constant 0 : index
    %141 = vector.load %arg13[%c0_42, %c0_43, %c0_44] : memref<18x18x64xf32, #tpu.memory_space<vmem>>, vector<18x18x64xf32>
    %142 = vector.extract_strided_slice %141 {offsets = [0, 0, 0], sizes = [16, 16, 64], strides = [1, 1, 1]} : vector<18x18x64xf32> to vector<16x16x64xf32>
    %143 = vector.shape_cast %142 : vector<16x16x64xf32> to vector<256x64xf32>
    %144 = vector.extract_strided_slice %141 {offsets = [0, 1, 0], sizes = [16, 16, 64], strides = [1, 1, 1]} : vector<18x18x64xf32> to vector<16x16x64xf32>
    %145 = vector.shape_cast %144 : vector<16x16x64xf32> to vector<256x64xf32>
    %146 = vector.extract_strided_slice %141 {offsets = [0, 2, 0], sizes = [16, 16, 64], strides = [1, 1, 1]} : vector<18x18x64xf32> to vector<16x16x64xf32>
    %147 = vector.shape_cast %146 : vector<16x16x64xf32> to vector<256x64xf32>
    %148 = vector.extract_strided_slice %141 {offsets = [1, 0, 0], sizes = [16, 16, 64], strides = [1, 1, 1]} : vector<18x18x64xf32> to vector<16x16x64xf32>
    %149 = vector.shape_cast %148 : vector<16x16x64xf32> to vector<256x64xf32>
    %150 = vector.extract_strided_slice %141 {offsets = [1, 1, 0], sizes = [16, 16, 64], strides = [1, 1, 1]} : vector<18x18x64xf32> to vector<16x16x64xf32>
    %151 = vector.shape_cast %150 : vector<16x16x64xf32> to vector<256x64xf32>
    %152 = vector.extract_strided_slice %141 {offsets = [1, 2, 0], sizes = [16, 16, 64], strides = [1, 1, 1]} : vector<18x18x64xf32> to vector<16x16x64xf32>
    %153 = vector.shape_cast %152 : vector<16x16x64xf32> to vector<256x64xf32>
    %154 = vector.extract_strided_slice %141 {offsets = [2, 0, 0], sizes = [16, 16, 64], strides = [1, 1, 1]} : vector<18x18x64xf32> to vector<16x16x64xf32>
    %155 = vector.shape_cast %154 : vector<16x16x64xf32> to vector<256x64xf32>
    %156 = vector.extract_strided_slice %141 {offsets = [2, 1, 0], sizes = [16, 16, 64], strides = [1, 1, 1]} : vector<18x18x64xf32> to vector<16x16x64xf32>
    %157 = vector.shape_cast %156 : vector<16x16x64xf32> to vector<256x64xf32>
    %158 = vector.extract_strided_slice %141 {offsets = [2, 2, 0], sizes = [16, 16, 64], strides = [1, 1, 1]} : vector<18x18x64xf32> to vector<16x16x64xf32>
    %159 = vector.shape_cast %158 : vector<16x16x64xf32> to vector<256x64xf32>
    %160 = tpu.concatenate %143, %145, %147, %149, %151, %153, %155, %157, %159 in 1 : vector<256x64xf32>, vector<256x64xf32>, vector<256x64xf32>, vector<256x64xf32>, vector<256x64xf32>, vector<256x64xf32>, vector<256x64xf32>, vector<256x64xf32>, vector<256x64xf32> -> vector<256x576xf32>
    %161 = arith.truncf %160 : vector<256x576xf32> to vector<256x576xbf16>
    %c0_45 = arith.constant 0 : index
    %c0_46 = arith.constant 0 : index
    %162 = vector.load %arg6[%c0_45, %c0_46] : memref<576x32xbf16, #tpu.memory_space<vmem>>, vector<576x32xbf16>
    %cst_47 = arith.constant dense<0.000000e+00> : vector<256x32xf32>
    %163 = tpu.matmul %161, %162, %cst_47 {dimension_numbers = #tpu.dot_dimension_numbers<[1], [0], [0], [1], [0, 0, 1, 1], [], []>} : vector<256x576xbf16>, vector<576x32xbf16>, vector<256x32xf32> -> vector<256x32xf32>
    %c0_48 = arith.constant 0 : index
    %c0_49 = arith.constant 0 : index
    %164 = vector.load %arg7[%c0_48, %c0_49] : memref<1x32xf32, #tpu.memory_space<vmem>>, vector<1x32xf32>
    %165 = vector.broadcast %164 : vector<1x32xf32> to vector<256x32xf32>
    %166 = arith.addf %163, %165 : vector<256x32xf32>
    %cst_50 = arith.constant 0.000000e+00 : f32
    %167 = vector.broadcast %cst_50 : f32 to vector<256x32xf32>
    %168 = arith.maximumf %166, %167 : vector<256x32xf32>
    %169 = vector.shape_cast %168 : vector<256x32xf32> to vector<16x16x32xf32>
    %cst_51 = arith.constant 0.000000e+00 : f32
    %170 = vector.broadcast %cst_51 : f32 to vector<18x18x32xf32>
    %c0_52 = arith.constant 0 : index
    %c0_53 = arith.constant 0 : index
    %c0_54 = arith.constant 0 : index
    %171 = vector.load %arg14[%c0_52, %c0_53, %c0_54] : memref<18x18x32xf32, #tpu.memory_space<vmem>>, vector<18x18x32xf32>
    tpu.vector_store %arg14[%c0_52, %c0_53, %c0_54], %170 {strides = array<i32>} : memref<18x18x32xf32, #tpu.memory_space<vmem>>, vector<18x18x32xf32>,
    %c1_55 = arith.constant 1 : index
    %c1_56 = arith.constant 1 : index
    %c0_57 = arith.constant 0 : index
    %172 = vector.load %arg14[%c1_55, %c1_56, %c0_57] : memref<18x18x32xf32, #tpu.memory_space<vmem>>, vector<16x16x32xf32>
    tpu.vector_store %arg14[%c1_55, %c1_56, %c0_57], %169 {strides = array<i32>} : memref<18x18x32xf32, #tpu.memory_space<vmem>>, vector<16x16x32xf32>,
    %c0_58 = arith.constant 0 : index
    %c0_59 = arith.constant 0 : index
    %c0_60 = arith.constant 0 : index
    %173 = vector.load %arg14[%c0_58, %c0_59, %c0_60] : memref<18x18x32xf32, #tpu.memory_space<vmem>>, vector<18x18x32xf32>
    %174 = vector.extract_strided_slice %173 {offsets = [0, 0, 0], sizes = [16, 16, 32], strides = [1, 1, 1]} : vector<18x18x32xf32> to vector<16x16x32xf32>
    %175 = vector.shape_cast %174 : vector<16x16x32xf32> to vector<256x32xf32>
    %176 = vector.extract_strided_slice %173 {offsets = [0, 1, 0], sizes = [16, 16, 32], strides = [1, 1, 1]} : vector<18x18x32xf32> to vector<16x16x32xf32>
    %177 = vector.shape_cast %176 : vector<16x16x32xf32> to vector<256x32xf32>
    %178 = vector.extract_strided_slice %173 {offsets = [0, 2, 0], sizes = [16, 16, 32], strides = [1, 1, 1]} : vector<18x18x32xf32> to vector<16x16x32xf32>
    %179 = vector.shape_cast %178 : vector<16x16x32xf32> to vector<256x32xf32>
    %180 = vector.extract_strided_slice %173 {offsets = [1, 0, 0], sizes = [16, 16, 32], strides = [1, 1, 1]} : vector<18x18x32xf32> to vector<16x16x32xf32>
    %181 = vector.shape_cast %180 : vector<16x16x32xf32> to vector<256x32xf32>
    %182 = vector.extract_strided_slice %173 {offsets = [1, 1, 0], sizes = [16, 16, 32], strides = [1, 1, 1]} : vector<18x18x32xf32> to vector<16x16x32xf32>
    %183 = vector.shape_cast %182 : vector<16x16x32xf32> to vector<256x32xf32>
    %184 = vector.extract_strided_slice %173 {offsets = [1, 2, 0], sizes = [16, 16, 32], strides = [1, 1, 1]} : vector<18x18x32xf32> to vector<16x16x32xf32>
    %185 = vector.shape_cast %184 : vector<16x16x32xf32> to vector<256x32xf32>
    %186 = vector.extract_strided_slice %173 {offsets = [2, 0, 0], sizes = [16, 16, 32], strides = [1, 1, 1]} : vector<18x18x32xf32> to vector<16x16x32xf32>
    %187 = vector.shape_cast %186 : vector<16x16x32xf32> to vector<256x32xf32>
    %188 = vector.extract_strided_slice %173 {offsets = [2, 1, 0], sizes = [16, 16, 32], strides = [1, 1, 1]} : vector<18x18x32xf32> to vector<16x16x32xf32>
    %189 = vector.shape_cast %188 : vector<16x16x32xf32> to vector<256x32xf32>
    %190 = vector.extract_strided_slice %173 {offsets = [2, 2, 0], sizes = [16, 16, 32], strides = [1, 1, 1]} : vector<18x18x32xf32> to vector<16x16x32xf32>
    %191 = vector.shape_cast %190 : vector<16x16x32xf32> to vector<256x32xf32>
    %192 = tpu.concatenate %175, %177, %179, %181, %183, %185, %187, %189, %191 in 1 : vector<256x32xf32>, vector<256x32xf32>, vector<256x32xf32>, vector<256x32xf32>, vector<256x32xf32>, vector<256x32xf32>, vector<256x32xf32>, vector<256x32xf32>, vector<256x32xf32> -> vector<256x288xf32>
    %193 = arith.truncf %192 : vector<256x288xf32> to vector<256x288xbf16>
    %c0_61 = arith.constant 0 : index
    %c0_62 = arith.constant 0 : index
    %194 = vector.load %arg8[%c0_61, %c0_62] : memref<288x2xbf16, #tpu.memory_space<vmem>>, vector<288x2xbf16>
    %cst_63 = arith.constant dense<0.000000e+00> : vector<256x2xf32>
    %195 = tpu.matmul %193, %194, %cst_63 {dimension_numbers = #tpu.dot_dimension_numbers<[1], [0], [0], [1], [0, 0, 1, 1], [], []>} : vector<256x288xbf16>, vector<288x2xbf16>, vector<256x2xf32> -> vector<256x2xf32>
    %c0_64 = arith.constant 0 : index
    %c0_65 = arith.constant 0 : index
    %196 = vector.load %arg9[%c0_64, %c0_65] : memref<1x2xf32, #tpu.memory_space<vmem>>, vector<1x2xf32>
    %197 = vector.broadcast %196 : vector<1x2xf32> to vector<256x2xf32>
    %198 = arith.addf %195, %197 : vector<256x2xf32>
    %cst_66 = arith.constant 1.000000e+00 : f32
    %199 = vector.broadcast %cst_66 : f32 to vector<256x2xf32>
    %200 = arith.addf %198, %199 : vector<256x2xf32>
    %cst_67 = arith.constant 1.000000e+00 : f32
    %201 = vector.broadcast %cst_67 : f32 to vector<256x2xf32>
    %202 = arith.addf %198, %201 : vector<256x2xf32>
    %203 = arith.mulf %200, %202 : vector<256x2xf32>
    %c0_68 = arith.constant 0 : index
    %c0_69 = arith.constant 0 : index
    %204 = vector.load %arg10[%c0_68, %c0_69] : memref<256x2xf32, #tpu.memory_space<vmem>>, vector<256x2xf32>
    tpu.vector_store %arg10[%c0_68, %c0_69], %203 {strides = array<i32>} : memref<256x2xf32, #tpu.memory_space<vmem>>, vector<256x2xf32>,
    return
  }
}

</mosaic_0001>

<llo_original>
// kernel: custom-call.2
$region0: #{custom-call.2}
  %s0 = inlined_call_operand.vmem [shape: f32[8,8], index: 0, kind: input, shape index: {}]
  %s1 = inlined_call_operand.vmem [shape: f32[8,8], index: 1, kind: input, shape index: {}]
  %s2 = inlined_call_operand.vmem [shape: f32[8,8], index: 2, kind: input, shape index: {}]
  %s3 = inlined_call_operand.vmem [shape: f32[8,8], index: 3, kind: input, shape index: {}]
  %s4 = inlined_call_operand.vmem [shape: f32[8], index: 4, kind: output, shape index: {0}]
  %s5 = inlined_call_operand.vmem [shape: f32[8], index: 5, kind: output, shape index: {1}]
  %s6 = inlined_call_operand.vmem [shape: f32[8,8], index: 6, kind: output, shape index: {2}]
  %s7 = inlined_call_operand.vmem [shape: f32[8,8], index: 7, kind: output, shape index: {3}]
  %s8 = inlined_call_operand.vmem [shape: f32[8,8], index: 8, kind: output, shape index: {4}]
  %s9 = inlined_call_operand.vmem [shape: f32[8,8], index: 9, kind: output, shape index: {5}]
  %10 = xla_tuple %s4, %s5, %s6, %s7, %s8, %s9
  $region1: #{custom-call.2} parent=0
    #allocation0 [shape = 'u8[4096]{0}', space=vmem, size = 0x1000, scoped, tag = 'operand span for operand 0']
    #allocation1 [shape = 'u8[4096]{0}', space=vmem, size = 0x1000, scoped, tag = 'operand span for operand 1']
    #allocation2 [shape = 'u8[4096]{0}', space=vmem, size = 0x1000, scoped, tag = 'operand span for operand 2']
    #allocation3 [shape = 'u8[4096]{0}', space=vmem, size = 0x1000, scoped, tag = 'operand span for operand 3']
    #allocation4 [shape = 'u8[4096]{0}', space=vmem, size = 0x1000, scoped, tag = 'operand span for operand 4']
    #allocation5 [shape = 'u8[512]{0}', space=vmem, size = 0x400, scoped, tag = 'packed  for operand 4']
    #allocation6 [shape = 'u8[4096]{0}', space=vmem, size = 0x1000, scoped, tag = 'operand span for operand 5']
    #allocation7 [shape = 'u8[512]{0}', space=vmem, size = 0x400, scoped, tag = 'packed  for operand 5']
    #allocation8 [shape = 'u8[4096]{0}', space=vmem, size = 0x1000, scoped, tag = 'operand span for operand 6']
    #allocation9 [shape = 'u8[4096]{0}', space=vmem, size = 0x1000, scoped, tag = 'operand span for operand 7']
    #allocation10 [shape = 'u8[4096]{0}', space=vmem, size = 0x1000, scoped, tag = 'operand span for operand 8']
    #allocation11 [shape = 'u8[4096]{0}', space=vmem, size = 0x1000, scoped, tag = 'operand span for operand 9']
    #allocation12 [shape = 'f32[8,8]{1,0}', space=vmem, size = 0x1000, scoped, tag = 'a top-left matrix']
    #allocation13 [shape = 'f32[8,8]{1,0}', space=vmem, size = 0x1000, scoped, tag = 'a top-right matrix']
    #allocation14 [shape = 'f32[8,8]{1,0}', space=vmem, size = 0x1000, scoped, tag = 'a bottom-left matrix']
    #allocation15 [shape = 'f32[8,8]{1,0}', space=vmem, size = 0x1000, scoped, tag = 'a bottom-right matrix']
    %p12 = scmp.gt.s32.totalorder 8, 0
    // Predicated region
    $region2: #{custom-call.2} parent=1 // pred_check
      %p13 = pneg %p12
    $region3: #{custom-call.2} parent=1 // pred_check_branch
      %15 = sbr.rel (%p13) target = $region5
    $region4: #{custom-call.2} parent=1 // pred_region
      %s16 = sshra.s32 8, 3
      %p17 = scmp.gt.s32.totalorder %s16, 0
      // Predicated region
      $region6: #{custom-call.2} parent=4 // pred_check
        %p18 = pneg %p17
      $region7: #{custom-call.2} parent=4 // pred_check_branch
        %20 = sbr.rel (%p18) target = $region9
      $region8: #{custom-call.2} parent=4 // pred_region
        %s21 = ssub.s32 %s16, 1
        %s22 = smul.u32 %s21, 128
        %s23 = sshra.s32 %s22, 4
        %s24 = scalar_lea.vmem %s0, %s23
        %v25 = vld [vmem:[%s0] sm:$0xff]
        // While loop
        $region10: #{custom-call.2} parent=8 // loop_pre_header
          _
        $region11: #{custom-call.2} parent=8 // loop_header
          %s26 = sphi %s0, %s48
          %s27 = sphi [#allocation0], %s49
          %v28 = vphi %v25, %v50
          %s29 = ssub.s32 %s24, 64
          %p30 = scmp.gt.s32.totalorder %s26, %s29
        $region12: #{custom-call.2} parent=8 // loop_header_branch
          %32 = sbr.rel (%p30) target = $region16
        $region13: #{custom-call.2} parent=8 // loop_body
          %33 = vst [vmem:[%s27] sm:$0xff] %v28
          %v34 = vld [vmem:[%s26 + $0x8] sm:$0xff]
          %35 = vst [vmem:[%s27 + $0x8] sm:$0xff] %v34
          %v36 = vld [vmem:[%s26 + $0x10] sm:$0xff]
          %37 = vst [vmem:[%s27 + $0x10] sm:$0xff] %v36
          %v38 = vld [vmem:[%s26 + $0x18] sm:$0xff]
          %39 = vst [vmem:[%s27 + $0x18] sm:$0xff] %v38
          %v40 = vld [vmem:[%s26 + $0x20] sm:$0xff]
          %41 = vst [vmem:[%s27 + $0x20] sm:$0xff] %v40
          %v42 = vld [vmem:[%s26 + $0x28] sm:$0xff]
          %43 = vst [vmem:[%s27 + $0x28] sm:$0xff] %v42
          %v44 = vld [vmem:[%s26 + $0x30] sm:$0xff]
          %45 = vst [vmem:[%s27 + $0x30] sm:$0xff] %v44
          %v46 = vld [vmem:[%s26 + $0x38] sm:$0xff]
          %47 = vst [vmem:[%s27 + $0x38] sm:$0xff] %v46
        $region14: #{custom-call.2} parent=8 // loop_footer
          %s48 = scalar_lea.vmem %s26, 64
          %s49 = scalar_lea.vmem %s27, 64
          %v50 = vld [vmem:[%s26 + $0x40] sm:$0xff]
        $region15: #{custom-call.2} parent=8 // loop_footer_branch
          %51 = sbr.rel target = $region11
        $region16: #{custom-call.2} parent=8 // loop_exit
          _
        // While loop
        $region17: #{custom-call.2} parent=8 // loop_pre_header
          _
        $region18: #{custom-call.2} parent=8 // loop_header
          %s52 = sphi %s26, %s60
          %s53 = sphi %s27, %s61
          %v54 = vphi %v28, %v54
          %p55 = scmp.gt.s32.totalorder %s52, %s24
        $region19: #{custom-call.2} parent=8 // loop_header_branch
          %57 = sbr.rel (%p55) target = $region23
        $region20: #{custom-call.2} parent=8 // loop_body
          %v58 = vld [vmem:[%s52] sm:$0xff]
          %59 = vst [vmem:[%s53] sm:$0xff] %v58
        $region21: #{custom-call.2} parent=8 // loop_footer
          %s60 = scalar_lea.vmem %s52, 8
          %s61 = scalar_lea.vmem %s53, 8
        $region22: #{custom-call.2} parent=8 // loop_footer_branch
          %62 = sbr.rel target = $region18
        $region23: #{custom-call.2} parent=8 // loop_exit
          _
      $region9: #{custom-call.2} parent=4 // pred_fallthru
        _
      %s63 = sand.u32 8, 7
      %s64 = sshllo.u32 0, %s63
      %s65 = smul.u32 %s16, 128
      %s66 = sshra.s32 %s65, 4
      %s67 = scalar_lea.vmem [#allocation0], %s66
      %s68 = smul.u32 %s16, 128
      %s69 = sshra.s32 %s68, 4
      %s70 = scalar_lea.vmem %s0, %s69
      %v71 = vld [vmem:[%s70] sm:%s64]
      %72 = vst [vmem:[%s67] sm:%s64] %v71
    $region5: #{custom-call.2} parent=1 // pred_fallthru
      _
    %p74 = scmp.gt.s32.totalorder 8, 0
    // Predicated region
    $region24: #{custom-call.2} parent=1 // pred_check
      %p75 = pneg %p74
    $region25: #{custom-call.2} parent=1 // pred_check_branch
      %77 = sbr.rel (%p75) target = $region27
    $region26: #{custom-call.2} parent=1 // pred_region
      %s78 = sshra.s32 8, 3
      %p79 = scmp.gt.s32.totalorder %s78, 0
      // Predicated region
      $region28: #{custom-call.2} parent=26 // pred_check
        %p80 = pneg %p79
      $region29: #{custom-call.2} parent=26 // pred_check_branch
        %82 = sbr.rel (%p80) target = $region31
      $region30: #{custom-call.2} parent=26 // pred_region
        %s83 = ssub.s32 %s78, 1
        %s84 = smul.u32 %s83, 128
        %s85 = sshra.s32 %s84, 4
        %s86 = scalar_lea.vmem %s1, %s85
        %v87 = vld [vmem:[%s1] sm:$0xff]
        // While loop
        $region32: #{custom-call.2} parent=30 // loop_pre_header
          _
        $region33: #{custom-call.2} parent=30 // loop_header
          %s88 = sphi %s1, %s110
          %s89 = sphi [#allocation1], %s111
          %v90 = vphi %v87, %v112
          %s91 = ssub.s32 %s86, 64
          %p92 = scmp.gt.s32.totalorder %s88, %s91
        $region34: #{custom-call.2} parent=30 // loop_header_branch
          %94 = sbr.rel (%p92) target = $region38
        $region35: #{custom-call.2} parent=30 // loop_body
          %95 = vst [vmem:[%s89] sm:$0xff] %v90
          %v96 = vld [vmem:[%s88 + $0x8] sm:$0xff]
          %97 = vst [vmem:[%s89 + $0x8] sm:$0xff] %v96
          %v98 = vld [vmem:[%s88 + $0x10] sm:$0xff]
          %99 = vst [vmem:[%s89 + $0x10] sm:$0xff] %v98
          %v100 = vld [vmem:[%s88 + $0x18] sm:$0xff]
          %101 = vst [vmem:[%s89 + $0x18] sm:$0xff] %v100
          %v102 = vld [vmem:[%s88 + $0x20] sm:$0xff]
          %103 = vst [vmem:[%s89 + $0x20] sm:$0xff] %v102
          %v104 = vld [vmem:[%s88 + $0x28] sm:$0xff]
          %105 = vst [vmem:[%s89 + $0x28] sm:$0xff] %v104
          %v106 = vld [vmem:[%s88 + $0x30] sm:$0xff]
          %107 = vst [vmem:[%s89 + $0x30] sm:$0xff] %v106
          %v108 = vld [vmem:[%s88 + $0x38] sm:$0xff]
          %109 = vst [vmem:[%s89 + $0x38] sm:$0xff] %v108
        $region36: #{custom-call.2} parent=30 // loop_footer
          %s110 = scalar_lea.vmem %s88, 64
          %s111 = scalar_lea.vmem %s89, 64
          %v112 = vld [vmem:[%s88 + $0x40] sm:$0xff]
        $region37: #{custom-call.2} parent=30 // loop_footer_branch
          %113 = sbr.rel target = $region33
        $region38: #{custom-call.2} parent=30 // loop_exit
          _
        // While loop
        $region39: #{custom-call.2} parent=30 // loop_pre_header
          _
        $region40: #{custom-call.2} parent=30 // loop_header
          %s114 = sphi %s88, %s122
          %s115 = sphi %s89, %s123
          %v116 = vphi %v90, %v116
          %p117 = scmp.gt.s32.totalorder %s114, %s86
        $region41: #{custom-call.2} parent=30 // loop_header_branch
          %119 = sbr.rel (%p117) target = $region45
        $region42: #{custom-call.2} parent=30 // loop_body
          %v120 = vld [vmem:[%s114] sm:$0xff]
          %121 = vst [vmem:[%s115] sm:$0xff] %v120
        $region43: #{custom-call.2} parent=30 // loop_footer
          %s122 = scalar_lea.vmem %s114, 8
          %s123 = scalar_lea.vmem %s115, 8
        $region44: #{custom-call.2} parent=30 // loop_footer_branch
          %124 = sbr.rel target = $region40
        $region45: #{custom-call.2} parent=30 // loop_exit
          _
      $region31: #{custom-call.2} parent=26 // pred_fallthru
        _
      %s125 = sand.u32 8, 7
      %s126 = sshllo.u32 0, %s125
      %s127 = smul.u32 %s78, 128
      %s128 = sshra.s32 %s127, 4
      %s129 = scalar_lea.vmem [#allocation1], %s128
      %s130 = smul.u32 %s78, 128
      %s131 = sshra.s32 %s130, 4
      %s132 = scalar_lea.vmem %s1, %s131
      %v133 = vld [vmem:[%s132] sm:%s126]
      %134 = vst [vmem:[%s129] sm:%s126] %v133
    $region27: #{custom-call.2} parent=1 // pred_fallthru
      _
    %p136 = scmp.gt.s32.totalorder 8, 0
    // Predicated region
    $region46: #{custom-call.2} parent=1 // pred_check
      %p137 = pneg %p136
    $region47: #{custom-call.2} parent=1 // pred_check_branch
      %139 = sbr.rel (%p137) target = $region49
    $region48: #{custom-call.2} parent=1 // pred_region
      %s140 = sshra.s32 8, 3
      %p141 = scmp.gt.s32.totalorder %s140, 0
      // Predicated region
      $region50: #{custom-call.2} parent=48 // pred_check
        %p142 = pneg %p141
      $region51: #{custom-call.2} parent=48 // pred_check_branch
        %144 = sbr.rel (%p142) target = $region53
      $region52: #{custom-call.2} parent=48 // pred_region
        %s145 = ssub.s32 %s140, 1
        %s146 = smul.u32 %s145, 128
        %s147 = sshra.s32 %s146, 4
        %s148 = scalar_lea.vmem %s2, %s147
        %v149 = vld [vmem:[%s2] sm:$0xff]
        // While loop
        $region54: #{custom-call.2} parent=52 // loop_pre_header
          _
        $region55: #{custom-call.2} parent=52 // loop_header
          %s150 = sphi %s2, %s172
          %s151 = sphi [#allocation2], %s173
          %v152 = vphi %v149, %v174
          %s153 = ssub.s32 %s148, 64
          %p154 = scmp.gt.s32.totalorder %s150, %s153
        $region56: #{custom-call.2} parent=52 // loop_header_branch
          %156 = sbr.rel (%p154) target = $region60
        $region57: #{custom-call.2} parent=52 // loop_body
          %157 = vst [vmem:[%s151] sm:$0xff] %v152
          %v158 = vld [vmem:[%s150 + $0x8] sm:$0xff]
          %159 = vst [vmem:[%s151 + $0x8] sm:$0xff] %v158
          %v160 = vld [vmem:[%s150 + $0x10] sm:$0xff]
          %161 = vst [vmem:[%s151 + $0x10] sm:$0xff] %v160
          %v162 = vld [vmem:[%s150 + $0x18] sm:$0xff]
          %163 = vst [vmem:[%s151 + $0x18] sm:$0xff] %v162
          %v164 = vld [vmem:[%s150 + $0x20] sm:$0xff]
          %165 = vst [vmem:[%s151 + $0x20] sm:$0xff] %v164
          %v166 = vld [vmem:[%s150 + $0x28] sm:$0xff]
          %167 = vst [vmem:[%s151 + $0x28] sm:$0xff] %v166
          %v168 = vld [vmem:[%s150 + $0x30] sm:$0xff]
          %169 = vst [vmem:[%s151 + $0x30] sm:$0xff] %v168
          %v170 = vld [vmem:[%s150 + $0x38] sm:$0xff]
          %171 = vst [vmem:[%s151 + $0x38] sm:$0xff] %v170
        $region58: #{custom-call.2} parent=52 // loop_footer
          %s172 = scalar_lea.vmem %s150, 64
          %s173 = scalar_lea.vmem %s151, 64
          %v174 = vld [vmem:[%s150 + $0x40] sm:$0xff]
        $region59: #{custom-call.2} parent=52 // loop_footer_branch
          %175 = sbr.rel target = $region55
        $region60: #{custom-call.2} parent=52 // loop_exit
          _
        // While loop
        $region61: #{custom-call.2} parent=52 // loop_pre_header
          _
        $region62: #{custom-call.2} parent=52 // loop_header
          %s176 = sphi %s150, %s184
          %s177 = sphi %s151, %s185
          %v178 = vphi %v152, %v178
          %p179 = scmp.gt.s32.totalorder %s176, %s148
        $region63: #{custom-call.2} parent=52 // loop_header_branch
          %181 = sbr.rel (%p179) target = $region67
        $region64: #{custom-call.2} parent=52 // loop_body
          %v182 = vld [vmem:[%s176] sm:$0xff]
          %183 = vst [vmem:[%s177] sm:$0xff] %v182
        $region65: #{custom-call.2} parent=52 // loop_footer
          %s184 = scalar_lea.vmem %s176, 8
          %s185 = scalar_lea.vmem %s177, 8
        $region66: #{custom-call.2} parent=52 // loop_footer_branch
          %186 = sbr.rel target = $region62
        $region67: #{custom-call.2} parent=52 // loop_exit
          _
      $region53: #{custom-call.2} parent=48 // pred_fallthru
        _
      %s187 = sand.u32 8, 7
      %s188 = sshllo.u32 0, %s187
      %s189 = smul.u32 %s140, 128
      %s190 = sshra.s32 %s189, 4
      %s191 = scalar_lea.vmem [#allocation2], %s190
      %s192 = smul.u32 %s140, 128
      %s193 = sshra.s32 %s192, 4
      %s194 = scalar_lea.vmem %s2, %s193
      %v195 = vld [vmem:[%s194] sm:%s188]
      %196 = vst [vmem:[%s191] sm:%s188] %v195
    $region49: #{custom-call.2} parent=1 // pred_fallthru
      _
    %p198 = scmp.gt.s32.totalorder 8, 0
    // Predicated region
    $region68: #{custom-call.2} parent=1 // pred_check
      %p199 = pneg %p198
    $region69: #{custom-call.2} parent=1 // pred_check_branch
      %201 = sbr.rel (%p199) target = $region71
    $region70: #{custom-call.2} parent=1 // pred_region
      %s202 = sshra.s32 8, 3
      %p203 = scmp.gt.s32.totalorder %s202, 0
      // Predicated region
      $region72: #{custom-call.2} parent=70 // pred_check
        %p204 = pneg %p203
      $region73: #{custom-call.2} parent=70 // pred_check_branch
        %206 = sbr.rel (%p204) target = $region75
      $region74: #{custom-call.2} parent=70 // pred_region
        %s207 = ssub.s32 %s202, 1
        %s208 = smul.u32 %s207, 128
        %s209 = sshra.s32 %s208, 4
        %s210 = scalar_lea.vmem %s3, %s209
        %v211 = vld [vmem:[%s3] sm:$0xff]
        // While loop
        $region76: #{custom-call.2} parent=74 // loop_pre_header
          _
        $region77: #{custom-call.2} parent=74 // loop_header
          %s212 = sphi %s3, %s234
          %s213 = sphi [#allocation3], %s235
          %v214 = vphi %v211, %v236
          %s215 = ssub.s32 %s210, 64
          %p216 = scmp.gt.s32.totalorder %s212, %s215
        $region78: #{custom-call.2} parent=74 // loop_header_branch
          %218 = sbr.rel (%p216) target = $region82
        $region79: #{custom-call.2} parent=74 // loop_body
          %219 = vst [vmem:[%s213] sm:$0xff] %v214
          %v220 = vld [vmem:[%s212 + $0x8] sm:$0xff]
          %221 = vst [vmem:[%s213 + $0x8] sm:$0xff] %v220
          %v222 = vld [vmem:[%s212 + $0x10] sm:$0xff]
          %223 = vst [vmem:[%s213 + $0x10] sm:$0xff] %v222
          %v224 = vld [vmem:[%s212 + $0x18] sm:$0xff]
          %225 = vst [vmem:[%s213 + $0x18] sm:$0xff] %v224
          %v226 = vld [vmem:[%s212 + $0x20] sm:$0xff]
          %227 = vst [vmem:[%s213 + $0x20] sm:$0xff] %v226
          %v228 = vld [vmem:[%s212 + $0x28] sm:$0xff]
          %229 = vst [vmem:[%s213 + $0x28] sm:$0xff] %v228
          %v230 = vld [vmem:[%s212 + $0x30] sm:$0xff]
          %231 = vst [vmem:[%s213 + $0x30] sm:$0xff] %v230
          %v232 = vld [vmem:[%s212 + $0x38] sm:$0xff]
          %233 = vst [vmem:[%s213 + $0x38] sm:$0xff] %v232
        $region80: #{custom-call.2} parent=74 // loop_footer
          %s234 = scalar_lea.vmem %s212, 64
          %s235 = scalar_lea.vmem %s213, 64
          %v236 = vld [vmem:[%s212 + $0x40] sm:$0xff]
        $region81: #{custom-call.2} parent=74 // loop_footer_branch
          %237 = sbr.rel target = $region77
        $region82: #{custom-call.2} parent=74 // loop_exit
          _
        // While loop
        $region83: #{custom-call.2} parent=74 // loop_pre_header
          _
        $region84: #{custom-call.2} parent=74 // loop_header
          %s238 = sphi %s212, %s246
          %s239 = sphi %s213, %s247
          %v240 = vphi %v214, %v240
          %p241 = scmp.gt.s32.totalorder %s238, %s210
        $region85: #{custom-call.2} parent=74 // loop_header_branch
          %243 = sbr.rel (%p241) target = $region89
        $region86: #{custom-call.2} parent=74 // loop_body
          %v244 = vld [vmem:[%s238] sm:$0xff]
          %245 = vst [vmem:[%s239] sm:$0xff] %v244
        $region87: #{custom-call.2} parent=74 // loop_footer
          %s246 = scalar_lea.vmem %s238, 8
          %s247 = scalar_lea.vmem %s239, 8
        $region88: #{custom-call.2} parent=74 // loop_footer_branch
          %248 = sbr.rel target = $region84
        $region89: #{custom-call.2} parent=74 // loop_exit
          _
      $region75: #{custom-call.2} parent=70 // pred_fallthru
        _
      %s249 = sand.u32 8, 7
      %s250 = sshllo.u32 0, %s249
      %s251 = smul.u32 %s202, 128
      %s252 = sshra.s32 %s251, 4
      %s253 = scalar_lea.vmem [#allocation3], %s252
      %s254 = smul.u32 %s202, 128
      %s255 = sshra.s32 %s254, 4
      %s256 = scalar_lea.vmem %s3, %s255
      %v257 = vld [vmem:[%s256] sm:%s250]
      %258 = vst [vmem:[%s253] sm:%s250] %v257
    $region71: #{custom-call.2} parent=1 // pred_fallthru
      _
    %s259 = smov [#allocation12]
    %v260 = vld [vmem:[#allocation0] sm:$0xff]
    %261 = vst [vmem:[%s259] sm:$0xff] %v260
    %s262 = smov [#allocation13]
    %v263 = vld [vmem:[#allocation1] sm:$0xff]
    %264 = vst [vmem:[%s262] sm:$0xff] %v263
    %s265 = smov [#allocation14]
    %v266 = vld [vmem:[#allocation2] sm:$0xff]
    %267 = vst [vmem:[%s265] sm:$0xff] %v266
    %s268 = smov [#allocation15]
    %v269 = vld [vmem:[#allocation3] sm:$0xff]
    %270 = vst [vmem:[%s268] sm:$0xff] %v269
    %271 = vst [vmem:[#allocation8] sm:$0xff] 0.0
    %272 = vst [vmem:[#allocation9] sm:$0xff] 0.0
    %273 = vst [vmem:[#allocation10] sm:$0xff] 0.0
    %274 = vst [vmem:[#allocation11] sm:$0xff] 0.0
    %s275 = smov [#allocation8]
    %v276 = vlaneseq
    %v277 = vand.u32 %v276, 127
    %v278 = vmov %v277
    %v279 = vlaneseq
    %v280 = vshrl.u32 %v279, 7
    %v281 = vmov %v280
    %v282 = vld [vmem:[%s275] sm:$0xff]
    %vm285 = vcmp.eq.s32.totalorder %v281, %v278
    %v286 = vsel %vm285, 1.0, %v282
    %287 = vst [vmem:[%s275] sm:$0xff] %v286
    %s288 = smov [#allocation11]
    %v289 = vlaneseq
    %v290 = vand.u32 %v289, 127
    %v291 = vmov %v290
    %v292 = vlaneseq
    %v293 = vshrl.u32 %v292, 7
    %v294 = vmov %v293
    %v295 = vld [vmem:[%s288] sm:$0xff]
    %vm298 = vcmp.eq.s32.totalorder %v294, %v291
    %v299 = vsel %vm298, 1.0, %v295
    %300 = vst [vmem:[%s288] sm:$0xff] %v299
    // While loop
    $region90: #{custom-call.2} parent=1 // loop_pre_header
      _
    $region91: #{custom-call.2} parent=1 // loop_header
      %s302 = sphi 0, %s844
      %v303 = vlaneseq
      %v304 = vand.u32 %v303, 127
      %v305 = vmov %v304
      %v306 = vlaneseq
      %v307 = vshrl.u32 %v306, 7
      %v308 = vmov %v307
      %s309 = smov [#allocation12]
      %v310 = vlaneseq
      %v311 = vand.u32 %v310, 127
      %vm312 = vcmp.ge.s32.totalorder %v311, 0
      %vm313 = vcmp.lt.s32.totalorder %v311, 8
      %vm314 = vmand %vm312, %vm313
      %v315 = vld [vmem:[%s309] sm:$0xff]
      %v316 = vsel %vm314, %v315, 0.0
      %v317 = vmul.f32 %v316, %v316
      %vm320 = vcmp.eq.s32.totalorder %v308, %v305
      %v321 = vsel %vm320, 0.0, %v317
      %v322 = vlaneseq
      %v323 = vand.u32 %v322, 127
      %v324 = vmov %v323
      %v325 = vlaneseq
      %v326 = vshrl.u32 %v325, 7
      %v327 = vmov %v326
      %s328 = smov [#allocation13]
      %v329 = vlaneseq
      %v330 = vand.u32 %v329, 127
      %vm331 = vcmp.ge.s32.totalorder %v330, 0
      %vm332 = vcmp.lt.s32.totalorder %v330, 8
      %vm333 = vmand %vm331, %vm332
      %v334 = vld [vmem:[%s328] sm:$0xff]
      %v335 = vsel %vm333, %v334, 0.0
      %v336 = vmul.f32 %v335, %v335
      %v337 = vadd.f32 %v321, %v336
      %v338 = vadd.f32 %v317, %v336
      %v339 = vlaneseq
      %v340 = vand.u32 %v339, 127
      %v341 = vmov %v340
      %v342 = vlaneseq
      %v343 = vshrl.u32 %v342, 7
      %v344 = vmov %v343
      %s345 = smov [#allocation14]
      %v346 = vlaneseq
      %v347 = vand.u32 %v346, 127
      %vm348 = vcmp.ge.s32.totalorder %v347, 0
      %vm349 = vcmp.lt.s32.totalorder %v347, 8
      %vm350 = vmand %vm348, %vm349
      %v351 = vld [vmem:[%s345] sm:$0xff]
      %v352 = vsel %vm350, %v351, 0.0
      %v353 = vmul.f32 %v352, %v352
      %v354 = vadd.f32 %v337, %v353
      %v355 = vadd.f32 %v338, %v353
      %v356 = vlaneseq
      %v357 = vand.u32 %v356, 127
      %v358 = vmov %v357
      %v359 = vlaneseq
      %v360 = vshrl.u32 %v359, 7
      %v361 = vmov %v360
      %s362 = smov [#allocation15]
      %v363 = vlaneseq
      %v364 = vand.u32 %v363, 127
      %vm365 = vcmp.ge.s32.totalorder %v364, 0
      %vm366 = vcmp.lt.s32.totalorder %v364, 8
      %vm367 = vmand %vm365, %vm366
      %v368 = vld [vmem:[%s362] sm:$0xff]
      %v369 = vsel %vm367, %v368, 0.0
      %v370 = vmul.f32 %v369, %v369
      %vm373 = vcmp.eq.s32.totalorder %v361, %v358
      %v374 = vsel %vm373, 0.0, %v370
      %v375 = vadd.f32 %v354, %v374
      %v376 = vadd.f32 %v355, %v370
      %377 = vadd.xlane.f32.xlu0 %v376
      %v378 = vpop.xlane.xlu0 %377
      %v379 = vrot.slane %v378, 4
      %v380 = vadd.f32 %v378, %v379
      %v381 = vrot.slane %v380, 2
      %v382 = vadd.f32 %v380, %v381
      %v383 = vrot.slane %v382, 1
      %v384 = vadd.f32 %v382, %v383
      %385 = vadd.xlane.f32.xlu0 %v375
      %v386 = vpop.xlane.xlu0 %385
      %v387 = vrot.slane %v386, 4
      %v388 = vadd.f32 %v386, %v387
      %v389 = vrot.slane %v388, 2
      %v390 = vadd.f32 %v388, %v389
      %v391 = vrot.slane %v390, 1
      %v392 = vadd.f32 %v390, %v391
      %s393 = vtos %v392
      %s394 = vtos %v384
      %s395 = smul.f32 1e-10, %s394
      %p396 = scmp.le.f32.partialorder %s393, %s395
      %p397 = scmp.ge.s32.totalorder %s302, 15
      %p398 = por %p396, %p397
    $region92: #{custom-call.2} parent=1 // loop_header_branch
      %846 = sbr.rel (%p398) target = $region96
    $region93: #{custom-call.2} parent=1 // loop_body
      loop: start=0, step=1, limit=15
      $region97: #{custom-call.2} parent=93 // loop_pre_header
        _
      $region98: #{custom-call.2} parent=93 // loop_header
        %s400 = sphi 0, %s404
        %p401 = scmp.ge.s32.totalorder %s400, 15
      $region99: #{custom-call.2} parent=93 // loop_header_branch
        %403 = sbr.rel (%p401) target = $region103
      $region100: #{custom-call.2} parent=93 // loop_body
        #allocation16 [shape = 'f32[1024]{0}', space=vmem, size = 0x1000, scoped, tag = 'a_tl_diag vmem']
        #allocation17 [shape = 'f32[1024]{0}', space=vmem, size = 0x1000, scoped, tag = 'a_tr_diag vmem']
        #allocation18 [shape = 'f32[1024]{0}', space=vmem, size = 0x1000, scoped, tag = 'a_br_diag vmem']
        #allocation19 [shape = 'f32[1024]{0}', space=vmem, size = 0x1000, scoped, tag = 'rt1 vmem']
        #allocation20 [shape = 'f32[1024]{0}', space=vmem, size = 0x1000, scoped, tag = 'rt2 vmem']
        #allocation21 [shape = 'f32[1024]{0}', space=vmem, size = 0x1000, scoped, tag = 'c vmem']
        #allocation22 [shape = 'f32[1024]{0}', space=vmem, size = 0x1000, scoped, tag = 's vmem']
        #allocation23 [shape = 'f32[4096]{0}', space=vmem, size = 0x4000, scoped, tag = 'c broadcast']
        #allocation24 [shape = 'f32[4096]{0}', space=vmem, size = 0x4000, scoped, tag = 's broadcast']
        %s405 = smov [#allocation12]
        %s406 = smov [#allocation16]
        %v407 = vlaneseq
        %v408 = vand.u32 %v407, 127
        %v409 = vmov %v408
        %v410 = vlaneseq
        %v411 = vshrl.u32 %v410, 7
        %v412 = vmov %v411
        %v413 = vld [vmem:[%s405] sm:$0xff]
        %vm416 = vcmp.eq.s32.totalorder %v412, %v409
        %v417 = vsel %vm416, %v413, 0.0
        %v418 = vrot.slane %v417, 4
        %v419 = vadd.f32 %v417, %v418
        %v420 = vrot.slane %v419, 2
        %v421 = vadd.f32 %v419, %v420
        %v422 = vrot.slane %v421, 1
        %v423 = vadd.f32 %v421, %v422
        %424 = vst [vmem:[%s406] sm:$0x1] %v423
        %s425 = smov [#allocation13]
        %s426 = smov [#allocation17]
        %v427 = vlaneseq
        %v428 = vand.u32 %v427, 127
        %v429 = vmov %v428
        %v430 = vlaneseq
        %v431 = vshrl.u32 %v430, 7
        %v432 = vmov %v431
        %v433 = vld [vmem:[%s425] sm:$0xff]
        %vm436 = vcmp.eq.s32.totalorder %v432, %v429
        %v437 = vsel %vm436, %v433, 0.0
        %v438 = vrot.slane %v437, 4
        %v439 = vadd.f32 %v437, %v438
        %v440 = vrot.slane %v439, 2
        %v441 = vadd.f32 %v439, %v440
        %v442 = vrot.slane %v441, 1
        %v443 = vadd.f32 %v441, %v442
        %444 = vst [vmem:[%s426] sm:$0x1] %v443
        %s445 = smov [#allocation15]
        %s446 = smov [#allocation18]
        %v447 = vlaneseq
        %v448 = vand.u32 %v447, 127
        %v449 = vmov %v448
        %v450 = vlaneseq
        %v451 = vshrl.u32 %v450, 7
        %v452 = vmov %v451
        %v453 = vld [vmem:[%s445] sm:$0xff]
        %vm456 = vcmp.eq.s32.totalorder %v452, %v449
        %v457 = vsel %vm456, %v453, 0.0
        %v458 = vrot.slane %v457, 4
        %v459 = vadd.f32 %v457, %v458
        %v460 = vrot.slane %v459, 2
        %v461 = vadd.f32 %v459, %v460
        %v462 = vrot.slane %v461, 1
        %v463 = vadd.f32 %v461, %v462
        %464 = vst [vmem:[%s446] sm:$0x1] %v463
        %s465 = smov [#allocation21]
        %s466 = smov [#allocation22]
        %s467 = smov [#allocation16]
        %v468 = vld [vmem:[%s467] sm:$0xff]
        %s469 = smov [#allocation17]
        %v470 = vld [vmem:[%s469] sm:$0xff]
        %s471 = smov [#allocation18]
        %v472 = vld [vmem:[%s471] sm:$0xff]
        %v473 = vsub.f32 %v472, %v468
        %v474 = vmul.f32 2.0, %v470
        %v475 = vrcp.pop %v474
        %v476 = vmul.f32 %v473, %v475
        %vm477 = vcmp.ge.f32.partialorder %v476, 0.0
        %v478 = vmul.f32 %v476, %v476
        %v479 = vadd.f32 1.0, %v478
        %v480 = vrsqrt.pop %v479
        %v481 = vmul.f32 %v479, %v480
        %vm482 = vcmp.eq.f32.partialorder %v479, inf
        %v483 = vsel %vm482, %v479, %v481
        %vm484 = vcmp.eq.f32.partialorder %v479, 0.0
        %v485 = vand.u32 %v479, 2147483648
        %v486 = vsel %vm484, %v485, %v483
        %v487 = vxor.u32 %v486, 2147483648
        %v488 = vsel %vm477, %v486, %v487
        %v489 = vadd.f32 %v476, %v488
        %v490 = vrcp.pop %v489
        %v491 = vand.u32 2147483647, %v468
        %v492 = vand.u32 2147483647, %v470
        %v493 = vand.u32 2147483647, %v472
        %v494 = vmin.f32 %v491, %v493
        %v495 = vmul.f32 1.1920929e-08, %v494
        %vm496 = vcmp.le.f32.partialorder %v492, %v495
        %v497 = vsel %vm496, 0.0, %v490
        %v498 = vmul.f32 %v497, %v497
        %v499 = vadd.f32 1.0, %v498
        %v500 = vrsqrt.pop %v499
        %v501 = vmul.f32 %v497, %v500
        %v502 = vmul.f32 %v497, %v470
        %v503 = vsub.f32 %v468, %v502
        %v504 = vmul.f32 %v497, %v470
        %v505 = vadd.f32 %v472, %v504
        %s506 = smov [#allocation19]
        %507 = vst [vmem:[%s506] sm:$0xff] %v503
        %s508 = smov [#allocation20]
        %509 = vst [vmem:[%s508] sm:$0xff] %v505
        %s510 = smov %s465
        %511 = vst [vmem:[%s510] sm:$0xff] %v500
        %s512 = smov %s466
        %513 = vst [vmem:[%s512] sm:$0xff] %v501
        %s514 = smov [#allocation21]
        %v515 = vld [vmem:[%s514] ss:$0 sm:$0xff]
        %v516 = vlaneseq
        %v517 = vand.u32 %v516, 127
        %v518 = vmov %v517
        %v519 = vlaneseq
        %v520 = vshrl.u32 %v519, 7
        %v521 = vmov %v520
        %vm523 = vcmp.eq.s32.totalorder %v521, %v518
        %v524 = vsel %vm523, %v515, 0.0
        %525 = vadd.xlane.f32.xlu0 %v524
        %v526 = vpop.xlane.xlu0 %525
        %s527 = smov [#allocation23]
        %528 = vst [vmem:[%s527] sm:$0xff] %v526
        %s529 = smov [#allocation22]
        %v530 = vld [vmem:[%s529] ss:$0 sm:$0xff]
        %v531 = vlaneseq
        %v532 = vand.u32 %v531, 127
        %v533 = vmov %v532
        %v534 = vlaneseq
        %v535 = vshrl.u32 %v534, 7
        %v536 = vmov %v535
        %vm538 = vcmp.eq.s32.totalorder %v536, %v533
        %v539 = vsel %vm538, %v530, 0.0
        %540 = vadd.xlane.f32.xlu0 %v539
        %v541 = vpop.xlane.xlu0 %540
        %s542 = smov [#allocation24]
        %543 = vst [vmem:[%s542] sm:$0xff] %v541
        %s544 = smov [#allocation23]
        %v545 = vld [vmem:[%s544] sm:$0xff]
        %s546 = smov [#allocation24]
        %v547 = vld [vmem:[%s546] sm:$0xff]
        %s548 = smov [#allocation12]
        %s549 = smov [#allocation13]
        %s550 = smov [#allocation14]
        %s551 = smov [#allocation15]
        %v552 = vld [vmem:[%s548] sm:$0xff]
        %v553 = vld [vmem:[%s549] sm:$0xff]
        %v554 = vld [vmem:[%s550] sm:$0xff]
        %v555 = vld [vmem:[%s551] sm:$0xff]
        %v556 = vmul.f32 %v545, %v552
        %v557 = vmul.f32 %v547, %v554
        %v558 = vsub.f32 %v556, %v557
        %v559 = vmul.f32 %v545, %v553
        %v560 = vmul.f32 %v547, %v555
        %v561 = vsub.f32 %v559, %v560
        %v562 = vmul.f32 %v547, %v552
        %v563 = vmul.f32 %v545, %v554
        %v564 = vadd.f32 %v562, %v563
        %v565 = vmul.f32 %v547, %v553
        %v566 = vmul.f32 %v545, %v555
        %v567 = vadd.f32 %v565, %v566
        %568 = vst [vmem:[%s548] sm:$0xff] %v558
        %569 = vst [vmem:[%s549] sm:$0xff] %v561
        %570 = vst [vmem:[%s550] sm:$0xff] %v564
        %571 = vst [vmem:[%s551] sm:$0xff] %v567
        %s572 = smov [#allocation21]
        %v573 = vld [vmem:[%s572] ss:$0 sm:$0xff]
        %s574 = smov [#allocation22]
        %v575 = vld [vmem:[%s574] ss:$0 sm:$0xff]
        %s576 = smov [#allocation12]
        %s577 = smov [#allocation13]
        %s578 = smov [#allocation14]
        %s579 = smov [#allocation15]
        %v580 = vld [vmem:[%s576] sm:$0xff]
        %v581 = vld [vmem:[%s577] sm:$0xff]
        %v582 = vld [vmem:[%s578] sm:$0xff]
        %v583 = vld [vmem:[%s579] sm:$0xff]
        %v584 = vmul.f32 %v573, %v580
        %v585 = vmul.f32 %v575, %v581
        %v586 = vsub.f32 %v584, %v585
        %v587 = vmul.f32 %v575, %v580
        %v588 = vmul.f32 %v573, %v581
        %v589 = vadd.f32 %v587, %v588
        %v590 = vmul.f32 %v573, %v582
        %v591 = vmul.f32 %v575, %v583
        %v592 = vsub.f32 %v590, %v591
        %v593 = vmul.f32 %v575, %v582
        %v594 = vmul.f32 %v573, %v583
        %v595 = vadd.f32 %v593, %v594
        %596 = vst [vmem:[%s576] sm:$0xff] %v586
        %597 = vst [vmem:[%s577] sm:$0xff] %v589
        %598 = vst [vmem:[%s578] sm:$0xff] %v592
        %599 = vst [vmem:[%s579] sm:$0xff] %v595
        %s600 = smov [#allocation12]
        %s601 = smov [#allocation19]
        %v602 = vlaneseq
        %v603 = vand.u32 %v602, 127
        %v604 = vmov %v603
        %v605 = vlaneseq
        %v606 = vshrl.u32 %v605, 7
        %v607 = vmov %v606
        %v608 = vld [vmem:[%s601] ss:$0 sm:$0xff]
        %v609 = vld [vmem:[%s600] sm:$0xff]
        %vm612 = vcmp.eq.s32.totalorder %v607, %v604
        %v613 = vsel %vm612, %v608, %v609
        %614 = vst [vmem:[%s600] sm:$0xff] %v613
        %s615 = smov [#allocation13]
        %v616 = vlaneseq
        %v617 = vand.u32 %v616, 127
        %v618 = vmov %v617
        %v619 = vlaneseq
        %v620 = vshrl.u32 %v619, 7
        %v621 = vmov %v620
        %v622 = vld [vmem:[%s615] sm:$0xff]
        %vm625 = vcmp.eq.s32.totalorder %v621, %v618
        %v626 = vsel %vm625, 0.0, %v622
        %627 = vst [vmem:[%s615] sm:$0xff] %v626
        %s628 = smov [#allocation14]
        %v629 = vlaneseq
        %v630 = vand.u32 %v629, 127
        %v631 = vmov %v630
        %v632 = vlaneseq
        %v633 = vshrl.u32 %v632, 7
        %v634 = vmov %v633
        %v635 = vld [vmem:[%s628] sm:$0xff]
        %vm638 = vcmp.eq.s32.totalorder %v634, %v631
        %v639 = vsel %vm638, 0.0, %v635
        %640 = vst [vmem:[%s628] sm:$0xff] %v639
        %s641 = smov [#allocation15]
        %s642 = smov [#allocation20]
        %v643 = vlaneseq
        %v644 = vand.u32 %v643, 127
        %v645 = vmov %v644
        %v646 = vlaneseq
        %v647 = vshrl.u32 %v646, 7
        %v648 = vmov %v647
        %v649 = vld [vmem:[%s642] ss:$0 sm:$0xff]
        %v650 = vld [vmem:[%s641] sm:$0xff]
        %vm653 = vcmp.eq.s32.totalorder %v648, %v645
        %v654 = vsel %vm653, %v649, %v650
        %655 = vst [vmem:[%s641] sm:$0xff] %v654
        %s656 = smov [#allocation12]
        %s657 = smov [#allocation13]
        %v658 = vld [vmem:[%s657] sm:$0xff]
        %659 = vrot.lane.b32.xlu0 %v658, 1
        %v660 = vpop.permute.xlu0 %659
        %v661 = vld [vmem:[%s656] sm:$0xff]
        %v662 = vld [vmem:[%s656] sm:$0xff]
        %663 = vrot.lane.b32.xlu0 %v662, 1
        %v664 = vpop.permute.xlu0 %663
        %v665 = vlaneseq
        %v666 = vand.u32 %v665, 127
        %vm667 = vcmp.eq.s32.totalorder %v666, 0
        %v668 = vsel %vm667, %v662, %v664
        %v669 = vlaneseq
        %v670 = vand.u32 %v669, 127
        %vm671 = vcmp.eq.s32.totalorder %v670, 1
        %v672 = vsel %vm671, %v660, %v668
        %v673 = vlaneseq
        %v674 = vand.u32 %v673, 127
        %vm675 = vcmp.ge.s32.totalorder %v674, 0
        %vm676 = vcmp.lt.s32.totalorder %v674, 8
        %vm677 = vmand %vm675, %vm676
        %v678 = vsel %vm677, %v672, 0.0
        %v679 = vld [vmem:[%s657] sm:$0xff]
        %680 = vrot.lane.b32.xlu0 %v679, 127
        %v681 = vpop.permute.xlu0 %680
        %v682 = vlaneseq
        %v683 = vand.u32 %v682, 127
        %vm684 = vcmp.eq.s32.totalorder %v683, 7
        %v685 = vsel %vm684, %v661, %v681
        %686 = vst [vmem:[%s656] sm:$0xff] %v678
        %687 = vst [vmem:[%s657] sm:$0xff] %v685
        %s688 = smov [#allocation14]
        %s689 = smov [#allocation15]
        %v690 = vld [vmem:[%s689] sm:$0xff]
        %691 = vrot.lane.b32.xlu0 %v690, 1
        %v692 = vpop.permute.xlu0 %691
        %v693 = vld [vmem:[%s688] sm:$0xff]
        %v694 = vld [vmem:[%s688] sm:$0xff]
        %695 = vrot.lane.b32.xlu0 %v694, 1
        %v696 = vpop.permute.xlu0 %695
        %v697 = vlaneseq
        %v698 = vand.u32 %v697, 127
        %vm699 = vcmp.eq.s32.totalorder %v698, 0
        %v700 = vsel %vm699, %v694, %v696
        %v701 = vlaneseq
        %v702 = vand.u32 %v701, 127
        %vm703 = vcmp.eq.s32.totalorder %v702, 1
        %v704 = vsel %vm703, %v692, %v700
        %v705 = vlaneseq
        %v706 = vand.u32 %v705, 127
        %vm707 = vcmp.ge.s32.totalorder %v706, 0
        %vm708 = vcmp.lt.s32.totalorder %v706, 8
        %vm709 = vmand %vm707, %vm708
        %v710 = vsel %vm709, %v704, 0.0
        %v711 = vld [vmem:[%s689] sm:$0xff]
        %712 = vrot.lane.b32.xlu0 %v711, 127
        %v713 = vpop.permute.xlu0 %712
        %v714 = vlaneseq
        %v715 = vand.u32 %v714, 127
        %vm716 = vcmp.eq.s32.totalorder %v715, 7
        %v717 = vsel %vm716, %v693, %v713
        %718 = vst [vmem:[%s688] sm:$0xff] %v710
        %719 = vst [vmem:[%s689] sm:$0xff] %v717
        %s720 = smov [#allocation12]
        %s721 = smov [#allocation14]
        %v722 = vld [vmem:[%s720] ss:$0 sm:$0xff]
        %s724 = scalar_lea.vmem %s720, 4294967295
        %v725 = vld [vmem:[%s724] sm:$0xfe]
        %v726 = vlaneseq
        %v727 = vshrl.u32 %v726, 7
        %vm728 = vcmp.eq.s32.totalorder %v727, 0
        %v729 = vsel %vm728, %v722, %v725
        %s730 = scalar_lea.vmem %s720, 7
        %v731 = vld [vmem:[%s730] ss:$0 sm:$0xff]
        %732 = vst [vmem:[%s720] sm:$0xff] %v729
        %v733 = vld [vmem:[%s721] ss:$0 sm:$0xff]
        %s734 = scalar_lea.vmem %s720, 1
        %735 = vst [vmem:[%s734] sm:$0x1] %v733
        %s736 = scalar_lea.vmem %s721, 1
        %v737 = vld [vmem:[%s736] sm:$0x7f]
        %v738 = vlaneseq
        %v739 = vshrl.u32 %v738, 7
        %vm740 = vcmp.eq.s32.totalorder %v739, 7
        %v741 = vsel %vm740, %v731, %v737
        %v742 = vld [vmem:[%s721] ss:$0 sm:$0xff]
        %743 = vst [vmem:[%s721] sm:$0xff] %v741
        %s744 = smov [#allocation13]
        %s745 = smov [#allocation15]
        %v746 = vld [vmem:[%s744] ss:$0 sm:$0xff]
        %s748 = scalar_lea.vmem %s744, 4294967295
        %v749 = vld [vmem:[%s748] sm:$0xfe]
        %v750 = vlaneseq
        %v751 = vshrl.u32 %v750, 7
        %vm752 = vcmp.eq.s32.totalorder %v751, 0
        %v753 = vsel %vm752, %v746, %v749
        %s754 = scalar_lea.vmem %s744, 7
        %v755 = vld [vmem:[%s754] ss:$0 sm:$0xff]
        %756 = vst [vmem:[%s744] sm:$0xff] %v753
        %v757 = vld [vmem:[%s745] ss:$0 sm:$0xff]
        %s758 = scalar_lea.vmem %s744, 1
        %759 = vst [vmem:[%s758] sm:$0x1] %v757
        %s760 = scalar_lea.vmem %s745, 1
        %v761 = vld [vmem:[%s760] sm:$0x7f]
        %v762 = vlaneseq
        %v763 = vshrl.u32 %v762, 7
        %vm764 = vcmp.eq.s32.totalorder %v763, 7
        %v765 = vsel %vm764, %v755, %v761
        %v766 = vld [vmem:[%s745] ss:$0 sm:$0xff]
        %767 = vst [vmem:[%s745] sm:$0xff] %v765
        %s768 = smov [#allocation23]
        %v769 = vld [vmem:[%s768] sm:$0xff]
        %s770 = smov [#allocation24]
        %v771 = vld [vmem:[%s770] sm:$0xff]
        %s772 = smov [#allocation8]
        %s773 = smov [#allocation9]
        %s774 = smov [#allocation10]
        %s775 = smov [#allocation11]
        %v776 = vld [vmem:[%s772] sm:$0xff]
        %v777 = vld [vmem:[%s773] sm:$0xff]
        %v778 = vld [vmem:[%s774] sm:$0xff]
        %v779 = vld [vmem:[%s775] sm:$0xff]
        %v780 = vmul.f32 %v769, %v776
        %v781 = vmul.f32 %v771, %v778
        %v782 = vsub.f32 %v780, %v781
        %v783 = vmul.f32 %v769, %v777
        %v784 = vmul.f32 %v771, %v779
        %v785 = vsub.f32 %v783, %v784
        %v786 = vmul.f32 %v771, %v776
        %v787 = vmul.f32 %v769, %v778
        %v788 = vadd.f32 %v786, %v787
        %v789 = vmul.f32 %v771, %v777
        %v790 = vmul.f32 %v769, %v779
        %v791 = vadd.f32 %v789, %v790
        %792 = vst [vmem:[%s772] sm:$0xff] %v782
        %793 = vst [vmem:[%s773] sm:$0xff] %v785
        %794 = vst [vmem:[%s774] sm:$0xff] %v788
        %795 = vst [vmem:[%s775] sm:$0xff] %v791
        %s796 = smov [#allocation8]
        %s797 = smov [#allocation10]
        %v798 = vld [vmem:[%s796] ss:$0 sm:$0xff]
        %s800 = scalar_lea.vmem %s796, 4294967295
        %v801 = vld [vmem:[%s800] sm:$0xfe]
        %v802 = vlaneseq
        %v803 = vshrl.u32 %v802, 7
        %vm804 = vcmp.eq.s32.totalorder %v803, 0
        %v805 = vsel %vm804, %v798, %v801
        %s806 = scalar_lea.vmem %s796, 7
        %v807 = vld [vmem:[%s806] ss:$0 sm:$0xff]
        %808 = vst [vmem:[%s796] sm:$0xff] %v805
        %v809 = vld [vmem:[%s797] ss:$0 sm:$0xff]
        %s810 = scalar_lea.vmem %s796, 1
        %811 = vst [vmem:[%s810] sm:$0x1] %v809
        %s812 = scalar_lea.vmem %s797, 1
        %v813 = vld [vmem:[%s812] sm:$0x7f]
        %v814 = vlaneseq
        %v815 = vshrl.u32 %v814, 7
        %vm816 = vcmp.eq.s32.totalorder %v815, 7
        %v817 = vsel %vm816, %v807, %v813
        %v818 = vld [vmem:[%s797] ss:$0 sm:$0xff]
        %819 = vst [vmem:[%s797] sm:$0xff] %v817
        %s820 = smov [#allocation9]
        %s821 = smov [#allocation11]
        %v822 = vld [vmem:[%s820] ss:$0 sm:$0xff]
        %s824 = scalar_lea.vmem %s820, 4294967295
        %v825 = vld [vmem:[%s824] sm:$0xfe]
        %v826 = vlaneseq
        %v827 = vshrl.u32 %v826, 7
        %vm828 = vcmp.eq.s32.totalorder %v827, 0
        %v829 = vsel %vm828, %v822, %v825
        %s830 = scalar_lea.vmem %s820, 7
        %v831 = vld [vmem:[%s830] ss:$0 sm:$0xff]
        %832 = vst [vmem:[%s820] sm:$0xff] %v829
        %v833 = vld [vmem:[%s821] ss:$0 sm:$0xff]
        %s834 = scalar_lea.vmem %s820, 1
        %835 = vst [vmem:[%s834] sm:$0x1] %v833
        %s836 = scalar_lea.vmem %s821, 1
        %v837 = vld [vmem:[%s836] sm:$0x7f]
        %v838 = vlaneseq
        %v839 = vshrl.u32 %v838, 7
        %vm840 = vcmp.eq.s32.totalorder %v839, 7
        %v841 = vsel %vm840, %v831, %v837
        %v842 = vld [vmem:[%s821] ss:$0 sm:$0xff]
        %843 = vst [vmem:[%s821] sm:$0xff] %v841
      $region101: #{custom-call.2} parent=93 // loop_footer
        %s404 = sadd.s32 1, %s400
      $region102: #{custom-call.2} parent=93 // loop_footer_branch
        %399 = sbr.rel target = $region98
      $region103: #{custom-call.2} parent=93 // loop_exit
        _
      %s844 = sadd.s32 %s302, 1
    $region94: #{custom-call.2} parent=1 // loop_footer
      _
    $region95: #{custom-call.2} parent=1 // loop_footer_branch
      %301 = sbr.rel target = $region91
    $region96: #{custom-call.2} parent=1 // loop_exit
      _
    %s847 = smov [#allocation12]
    %s848 = smov [#allocation4]
    %v849 = vlaneseq
    %v850 = vand.u32 %v849, 127
    %v851 = vmov %v850
    %v852 = vlaneseq
    %v853 = vshrl.u32 %v852, 7
    %v854 = vmov %v853
    %v855 = vld [vmem:[%s847] sm:$0xff]
    %vm858 = vcmp.eq.s32.totalorder %v854, %v851
    %v859 = vsel %vm858, %v855, 0.0
    %v860 = vrot.slane %v859, 4
    %v861 = vadd.f32 %v859, %v860
    %v862 = vrot.slane %v861, 2
    %v863 = vadd.f32 %v861, %v862
    %v864 = vrot.slane %v863, 1
    %v865 = vadd.f32 %v863, %v864
    %866 = vst [vmem:[%s848] sm:$0x1] %v865
    %s867 = smov [#allocation15]
    %s868 = smov [#allocation6]
    %v869 = vlaneseq
    %v870 = vand.u32 %v869, 127
    %v871 = vmov %v870
    %v872 = vlaneseq
    %v873 = vshrl.u32 %v872, 7
    %v874 = vmov %v873
    %v875 = vld [vmem:[%s867] sm:$0xff]
    %vm878 = vcmp.eq.s32.totalorder %v874, %v871
    %v879 = vsel %vm878, %v875, 0.0
    %v880 = vrot.slane %v879, 4
    %v881 = vadd.f32 %v879, %v880
    %v882 = vrot.slane %v881, 2
    %v883 = vadd.f32 %v881, %v882
    %v884 = vrot.slane %v883, 1
    %v885 = vadd.f32 %v883, %v884
    %886 = vst [vmem:[%s868] sm:$0x1] %v885
    %s888 = sshllo.u32 0, 1
    %v890 = vld [vmem:[#allocation4] sm:%s888]
    %s891 = sshllo.u32 0, 1
    %892 = vst [vmem:[#allocation5] sm:%s891] %v890
    %s894 = sshllo.u32 0, 1
    %v896 = vld [vmem:[#allocation6] sm:%s894]
    %s897 = sshllo.u32 0, 1
    %898 = vst [vmem:[#allocation7] sm:%s897] %v896
    // Predicated region
    $region104: #{custom-call.2} parent=1 // pred_check
      _
    $region105: #{custom-call.2} parent=1 // pred_check_branch
      %900 = sbr.rel (0) target = $region107
    $region106: #{custom-call.2} parent=1 // pred_region
      %p902 = scmp.gt.s32.totalorder 1, 0
      // Predicated region
      $region108: #{custom-call.2} parent=106 // pred_check
        %p903 = pneg %p902
      $region109: #{custom-call.2} parent=106 // pred_check_branch
        %905 = sbr.rel (%p903) target = $region111
      $region110: #{custom-call.2} parent=106 // pred_region
        %s906 = sshra.s32 1, 3
        %p907 = scmp.gt.s32.totalorder %s906, 0
        // Predicated region
        $region112: #{custom-call.2} parent=110 // pred_check
          %p908 = pneg %p907
        $region113: #{custom-call.2} parent=110 // pred_check_branch
          %910 = sbr.rel (%p908) target = $region115
        $region114: #{custom-call.2} parent=110 // pred_region
          %s911 = ssub.s32 %s906, 1
          %s912 = smul.u32 %s911, 128
          %s913 = sshra.s32 %s912, 4
          %s914 = scalar_lea.vmem [#allocation5], %s913
          %v915 = vld [vmem:[#allocation5] sm:$0xff]
          // While loop
          $region116: #{custom-call.2} parent=114 // loop_pre_header
            _
          $region117: #{custom-call.2} parent=114 // loop_header
            %s916 = sphi [#allocation5], %s938
            %s917 = sphi %s4, %s939
            %v918 = vphi %v915, %v940
            %s919 = ssub.s32 %s914, 64
            %p920 = scmp.gt.s32.totalorder %s916, %s919
          $region118: #{custom-call.2} parent=114 // loop_header_branch
            %922 = sbr.rel (%p920) target = $region122
          $region119: #{custom-call.2} parent=114 // loop_body
            %923 = vst [vmem:[%s917] sm:$0xff] %v918
            %v924 = vld [vmem:[%s916 + $0x8] sm:$0xff]
            %925 = vst [vmem:[%s917 + $0x8] sm:$0xff] %v924
            %v926 = vld [vmem:[%s916 + $0x10] sm:$0xff]
            %927 = vst [vmem:[%s917 + $0x10] sm:$0xff] %v926
            %v928 = vld [vmem:[%s916 + $0x18] sm:$0xff]
            %929 = vst [vmem:[%s917 + $0x18] sm:$0xff] %v928
            %v930 = vld [vmem:[%s916 + $0x20] sm:$0xff]
            %931 = vst [vmem:[%s917 + $0x20] sm:$0xff] %v930
            %v932 = vld [vmem:[%s916 + $0x28] sm:$0xff]
            %933 = vst [vmem:[%s917 + $0x28] sm:$0xff] %v932
            %v934 = vld [vmem:[%s916 + $0x30] sm:$0xff]
            %935 = vst [vmem:[%s917 + $0x30] sm:$0xff] %v934
            %v936 = vld [vmem:[%s916 + $0x38] sm:$0xff]
            %937 = vst [vmem:[%s917 + $0x38] sm:$0xff] %v936
          $region120: #{custom-call.2} parent=114 // loop_footer
            %s938 = scalar_lea.vmem %s916, 64
            %s939 = scalar_lea.vmem %s917, 64
            %v940 = vld [vmem:[%s916 + $0x40] sm:$0xff]
          $region121: #{custom-call.2} parent=114 // loop_footer_branch
            %941 = sbr.rel target = $region117
          $region122: #{custom-call.2} parent=114 // loop_exit
            _
          // While loop
          $region123: #{custom-call.2} parent=114 // loop_pre_header
            _
          $region124: #{custom-call.2} parent=114 // loop_header
            %s942 = sphi %s916, %s950
            %s943 = sphi %s917, %s951
            %v944 = vphi %v918, %v944
            %p945 = scmp.gt.s32.totalorder %s942, %s914
          $region125: #{custom-call.2} parent=114 // loop_header_branch
            %947 = sbr.rel (%p945) target = $region129
          $region126: #{custom-call.2} parent=114 // loop_body
            %v948 = vld [vmem:[%s942] sm:$0xff]
            %949 = vst [vmem:[%s943] sm:$0xff] %v948
          $region127: #{custom-call.2} parent=114 // loop_footer
            %s950 = scalar_lea.vmem %s942, 8
            %s951 = scalar_lea.vmem %s943, 8
          $region128: #{custom-call.2} parent=114 // loop_footer_branch
            %952 = sbr.rel target = $region124
          $region129: #{custom-call.2} parent=114 // loop_exit
            _
        $region115: #{custom-call.2} parent=110 // pred_fallthru
          _
        %s953 = sand.u32 1, 7
        %s954 = sshllo.u32 0, %s953
        %s955 = smul.u32 %s906, 128
        %s956 = sshra.s32 %s955, 4
        %s957 = scalar_lea.vmem %s4, %s956
        %s958 = smul.u32 %s906, 128
        %s959 = sshra.s32 %s958, 4
        %s960 = scalar_lea.vmem [#allocation5], %s959
        %v961 = vld [vmem:[%s960] sm:%s954]
        %962 = vst [vmem:[%s957] sm:%s954] %v961
      $region111: #{custom-call.2} parent=106 // pred_fallthru
        _
    $region107: #{custom-call.2} parent=1 // pred_fallthru
      _
    // Predicated region
    $region130: #{custom-call.2} parent=1 // pred_check
      _
    $region131: #{custom-call.2} parent=1 // pred_check_branch
      %964 = sbr.rel (0) target = $region133
    $region132: #{custom-call.2} parent=1 // pred_region
      %p966 = scmp.gt.s32.totalorder 1, 0
      // Predicated region
      $region134: #{custom-call.2} parent=132 // pred_check
        %p967 = pneg %p966
      $region135: #{custom-call.2} parent=132 // pred_check_branch
        %969 = sbr.rel (%p967) target = $region137
      $region136: #{custom-call.2} parent=132 // pred_region
        %s970 = sshra.s32 1, 3
        %p971 = scmp.gt.s32.totalorder %s970, 0
        // Predicated region
        $region138: #{custom-call.2} parent=136 // pred_check
          %p972 = pneg %p971
        $region139: #{custom-call.2} parent=136 // pred_check_branch
          %974 = sbr.rel (%p972) target = $region141
        $region140: #{custom-call.2} parent=136 // pred_region
          %s975 = ssub.s32 %s970, 1
          %s976 = smul.u32 %s975, 128
          %s977 = sshra.s32 %s976, 4
          %s978 = scalar_lea.vmem [#allocation7], %s977
          %v979 = vld [vmem:[#allocation7] sm:$0xff]
          // While loop
          $region142: #{custom-call.2} parent=140 // loop_pre_header
            _
          $region143: #{custom-call.2} parent=140 // loop_header
            %s980 = sphi [#allocation7], %s1002
            %s981 = sphi %s5, %s1003
            %v982 = vphi %v979, %v1004
            %s983 = ssub.s32 %s978, 64
            %p984 = scmp.gt.s32.totalorder %s980, %s983
          $region144: #{custom-call.2} parent=140 // loop_header_branch
            %986 = sbr.rel (%p984) target = $region148
          $region145: #{custom-call.2} parent=140 // loop_body
            %987 = vst [vmem:[%s981] sm:$0xff] %v982
            %v988 = vld [vmem:[%s980 + $0x8] sm:$0xff]
            %989 = vst [vmem:[%s981 + $0x8] sm:$0xff] %v988
            %v990 = vld [vmem:[%s980 + $0x10] sm:$0xff]
            %991 = vst [vmem:[%s981 + $0x10] sm:$0xff] %v990
            %v992 = vld [vmem:[%s980 + $0x18] sm:$0xff]
            %993 = vst [vmem:[%s981 + $0x18] sm:$0xff] %v992
            %v994 = vld [vmem:[%s980 + $0x20] sm:$0xff]
            %995 = vst [vmem:[%s981 + $0x20] sm:$0xff] %v994
            %v996 = vld [vmem:[%s980 + $0x28] sm:$0xff]
            %997 = vst [vmem:[%s981 + $0x28] sm:$0xff] %v996
            %v998 = vld [vmem:[%s980 + $0x30] sm:$0xff]
            %999 = vst [vmem:[%s981 + $0x30] sm:$0xff] %v998
            %v1000 = vld [vmem:[%s980 + $0x38] sm:$0xff]
            %1001 = vst [vmem:[%s981 + $0x38] sm:$0xff] %v1000
          $region146: #{custom-call.2} parent=140 // loop_footer
            %s1002 = scalar_lea.vmem %s980, 64
            %s1003 = scalar_lea.vmem %s981, 64
            %v1004 = vld [vmem:[%s980 + $0x40] sm:$0xff]
          $region147: #{custom-call.2} parent=140 // loop_footer_branch
            %1005 = sbr.rel target = $region143
          $region148: #{custom-call.2} parent=140 // loop_exit
            _
          // While loop
          $region149: #{custom-call.2} parent=140 // loop_pre_header
            _
          $region150: #{custom-call.2} parent=140 // loop_header
            %s1006 = sphi %s980, %s1014
            %s1007 = sphi %s981, %s1015
            %v1008 = vphi %v982, %v1008
            %p1009 = scmp.gt.s32.totalorder %s1006, %s978
          $region151: #{custom-call.2} parent=140 // loop_header_branch
            %1011 = sbr.rel (%p1009) target = $region155
          $region152: #{custom-call.2} parent=140 // loop_body
            %v1012 = vld [vmem:[%s1006] sm:$0xff]
            %1013 = vst [vmem:[%s1007] sm:$0xff] %v1012
          $region153: #{custom-call.2} parent=140 // loop_footer
            %s1014 = scalar_lea.vmem %s1006, 8
            %s1015 = scalar_lea.vmem %s1007, 8
          $region154: #{custom-call.2} parent=140 // loop_footer_branch
            %1016 = sbr.rel target = $region150
          $region155: #{custom-call.2} parent=140 // loop_exit
            _
        $region141: #{custom-call.2} parent=136 // pred_fallthru
          _
        %s1017 = sand.u32 1, 7
        %s1018 = sshllo.u32 0, %s1017
        %s1019 = smul.u32 %s970, 128
        %s1020 = sshra.s32 %s1019, 4
        %s1021 = scalar_lea.vmem %s5, %s1020
        %s1022 = smul.u32 %s970, 128
        %s1023 = sshra.s32 %s1022, 4
        %s1024 = scalar_lea.vmem [#allocation7], %s1023
        %v1025 = vld [vmem:[%s1024] sm:%s1018]
        %1026 = vst [vmem:[%s1021] sm:%s1018] %v1025
      $region137: #{custom-call.2} parent=132 // pred_fallthru
        _
    $region133: #{custom-call.2} parent=1 // pred_fallthru
      _
    %p1028 = scmp.gt.s32.totalorder 8, 0
    // Predicated region
    $region156: #{custom-call.2} parent=1 // pred_check
      %p1029 = pneg %p1028
    $region157: #{custom-call.2} parent=1 // pred_check_branch
      %1031 = sbr.rel (%p1029) target = $region159
    $region158: #{custom-call.2} parent=1 // pred_region
      %s1032 = sshra.s32 8, 3
      %p1033 = scmp.gt.s32.totalorder %s1032, 0
      // Predicated region
      $region160: #{custom-call.2} parent=158 // pred_check
        %p1034 = pneg %p1033
      $region161: #{custom-call.2} parent=158 // pred_check_branch
        %1036 = sbr.rel (%p1034) target = $region163
      $region162: #{custom-call.2} parent=158 // pred_region
        %s1037 = ssub.s32 %s1032, 1
        %s1038 = smul.u32 %s1037, 128
        %s1039 = sshra.s32 %s1038, 4
        %s1040 = scalar_lea.vmem [#allocation8], %s1039
        %v1041 = vld [vmem:[#allocation8] sm:$0xff]
        // While loop
        $region164: #{custom-call.2} parent=162 // loop_pre_header
          _
        $region165: #{custom-call.2} parent=162 // loop_header
          %s1042 = sphi [#allocation8], %s1064
          %s1043 = sphi %s6, %s1065
          %v1044 = vphi %v1041, %v1066
          %s1045 = ssub.s32 %s1040, 64
          %p1046 = scmp.gt.s32.totalorder %s1042, %s1045
        $region166: #{custom-call.2} parent=162 // loop_header_branch
          %1048 = sbr.rel (%p1046) target = $region170
        $region167: #{custom-call.2} parent=162 // loop_body
          %1049 = vst [vmem:[%s1043] sm:$0xff] %v1044
          %v1050 = vld [vmem:[%s1042 + $0x8] sm:$0xff]
          %1051 = vst [vmem:[%s1043 + $0x8] sm:$0xff] %v1050
          %v1052 = vld [vmem:[%s1042 + $0x10] sm:$0xff]
          %1053 = vst [vmem:[%s1043 + $0x10] sm:$0xff] %v1052
          %v1054 = vld [vmem:[%s1042 + $0x18] sm:$0xff]
          %1055 = vst [vmem:[%s1043 + $0x18] sm:$0xff] %v1054
          %v1056 = vld [vmem:[%s1042 + $0x20] sm:$0xff]
          %1057 = vst [vmem:[%s1043 + $0x20] sm:$0xff] %v1056
          %v1058 = vld [vmem:[%s1042 + $0x28] sm:$0xff]
          %1059 = vst [vmem:[%s1043 + $0x28] sm:$0xff] %v1058
          %v1060 = vld [vmem:[%s1042 + $0x30] sm:$0xff]
          %1061 = vst [vmem:[%s1043 + $0x30] sm:$0xff] %v1060
          %v1062 = vld [vmem:[%s1042 + $0x38] sm:$0xff]
          %1063 = vst [vmem:[%s1043 + $0x38] sm:$0xff] %v1062
        $region168: #{custom-call.2} parent=162 // loop_footer
          %s1064 = scalar_lea.vmem %s1042, 64
          %s1065 = scalar_lea.vmem %s1043, 64
          %v1066 = vld [vmem:[%s1042 + $0x40] sm:$0xff]
        $region169: #{custom-call.2} parent=162 // loop_footer_branch
          %1067 = sbr.rel target = $region165
        $region170: #{custom-call.2} parent=162 // loop_exit
          _
        // While loop
        $region171: #{custom-call.2} parent=162 // loop_pre_header
          _
        $region172: #{custom-call.2} parent=162 // loop_header
          %s1068 = sphi %s1042, %s1076
          %s1069 = sphi %s1043, %s1077
          %v1070 = vphi %v1044, %v1070
          %p1071 = scmp.gt.s32.totalorder %s1068, %s1040
        $region173: #{custom-call.2} parent=162 // loop_header_branch
          %1073 = sbr.rel (%p1071) target = $region177
        $region174: #{custom-call.2} parent=162 // loop_body
          %v1074 = vld [vmem:[%s1068] sm:$0xff]
          %1075 = vst [vmem:[%s1069] sm:$0xff] %v1074
        $region175: #{custom-call.2} parent=162 // loop_footer
          %s1076 = scalar_lea.vmem %s1068, 8
          %s1077 = scalar_lea.vmem %s1069, 8
        $region176: #{custom-call.2} parent=162 // loop_footer_branch
          %1078 = sbr.rel target = $region172
        $region177: #{custom-call.2} parent=162 // loop_exit
          _
      $region163: #{custom-call.2} parent=158 // pred_fallthru
        _
      %s1079 = sand.u32 8, 7
      %s1080 = sshllo.u32 0, %s1079
      %s1081 = smul.u32 %s1032, 128
      %s1082 = sshra.s32 %s1081, 4
      %s1083 = scalar_lea.vmem %s6, %s1082
      %s1084 = smul.u32 %s1032, 128
      %s1085 = sshra.s32 %s1084, 4
      %s1086 = scalar_lea.vmem [#allocation8], %s1085
      %v1087 = vld [vmem:[%s1086] sm:%s1080]
      %1088 = vst [vmem:[%s1083] sm:%s1080] %v1087
    $region159: #{custom-call.2} parent=1 // pred_fallthru
      _
    %p1090 = scmp.gt.s32.totalorder 8, 0
    // Predicated region
    $region178: #{custom-call.2} parent=1 // pred_check
      %p1091 = pneg %p1090
    $region179: #{custom-call.2} parent=1 // pred_check_branch
      %1093 = sbr.rel (%p1091) target = $region181
    $region180: #{custom-call.2} parent=1 // pred_region
      %s1094 = sshra.s32 8, 3
      %p1095 = scmp.gt.s32.totalorder %s1094, 0
      // Predicated region
      $region182: #{custom-call.2} parent=180 // pred_check
        %p1096 = pneg %p1095
      $region183: #{custom-call.2} parent=180 // pred_check_branch
        %1098 = sbr.rel (%p1096) target = $region185
      $region184: #{custom-call.2} parent=180 // pred_region
        %s1099 = ssub.s32 %s1094, 1
        %s1100 = smul.u32 %s1099, 128
        %s1101 = sshra.s32 %s1100, 4
        %s1102 = scalar_lea.vmem [#allocation9], %s1101
        %v1103 = vld [vmem:[#allocation9] sm:$0xff]
        // While loop
        $region186: #{custom-call.2} parent=184 // loop_pre_header
          _
        $region187: #{custom-call.2} parent=184 // loop_header
          %s1104 = sphi [#allocation9], %s1126
          %s1105 = sphi %s7, %s1127
          %v1106 = vphi %v1103, %v1128
          %s1107 = ssub.s32 %s1102, 64
          %p1108 = scmp.gt.s32.totalorder %s1104, %s1107
        $region188: #{custom-call.2} parent=184 // loop_header_branch
          %1110 = sbr.rel (%p1108) target = $region192
        $region189: #{custom-call.2} parent=184 // loop_body
          %1111 = vst [vmem:[%s1105] sm:$0xff] %v1106
          %v1112 = vld [vmem:[%s1104 + $0x8] sm:$0xff]
          %1113 = vst [vmem:[%s1105 + $0x8] sm:$0xff] %v1112
          %v1114 = vld [vmem:[%s1104 + $0x10] sm:$0xff]
          %1115 = vst [vmem:[%s1105 + $0x10] sm:$0xff] %v1114
          %v1116 = vld [vmem:[%s1104 + $0x18] sm:$0xff]
          %1117 = vst [vmem:[%s1105 + $0x18] sm:$0xff] %v1116
          %v1118 = vld [vmem:[%s1104 + $0x20] sm:$0xff]
          %1119 = vst [vmem:[%s1105 + $0x20] sm:$0xff] %v1118
          %v1120 = vld [vmem:[%s1104 + $0x28] sm:$0xff]
          %1121 = vst [vmem:[%s1105 + $0x28] sm:$0xff] %v1120
          %v1122 = vld [vmem:[%s1104 + $0x30] sm:$0xff]
          %1123 = vst [vmem:[%s1105 + $0x30] sm:$0xff] %v1122
          %v1124 = vld [vmem:[%s1104 + $0x38] sm:$0xff]
          %1125 = vst [vmem:[%s1105 + $0x38] sm:$0xff] %v1124
        $region190: #{custom-call.2} parent=184 // loop_footer
          %s1126 = scalar_lea.vmem %s1104, 64
          %s1127 = scalar_lea.vmem %s1105, 64
          %v1128 = vld [vmem:[%s1104 + $0x40] sm:$0xff]
        $region191: #{custom-call.2} parent=184 // loop_footer_branch
          %1129 = sbr.rel target = $region187
        $region192: #{custom-call.2} parent=184 // loop_exit
          _
        // While loop
        $region193: #{custom-call.2} parent=184 // loop_pre_header
          _
        $region194: #{custom-call.2} parent=184 // loop_header
          %s1130 = sphi %s1104, %s1138
          %s1131 = sphi %s1105, %s1139
          %v1132 = vphi %v1106, %v1132
          %p1133 = scmp.gt.s32.totalorder %s1130, %s1102
        $region195: #{custom-call.2} parent=184 // loop_header_branch
          %1135 = sbr.rel (%p1133) target = $region199
        $region196: #{custom-call.2} parent=184 // loop_body
          %v1136 = vld [vmem:[%s1130] sm:$0xff]
          %1137 = vst [vmem:[%s1131] sm:$0xff] %v1136
        $region197: #{custom-call.2} parent=184 // loop_footer
          %s1138 = scalar_lea.vmem %s1130, 8
          %s1139 = scalar_lea.vmem %s1131, 8
        $region198: #{custom-call.2} parent=184 // loop_footer_branch
          %1140 = sbr.rel target = $region194
        $region199: #{custom-call.2} parent=184 // loop_exit
          _
      $region185: #{custom-call.2} parent=180 // pred_fallthru
        _
      %s1141 = sand.u32 8, 7
      %s1142 = sshllo.u32 0, %s1141
      %s1143 = smul.u32 %s1094, 128
      %s1144 = sshra.s32 %s1143, 4
      %s1145 = scalar_lea.vmem %s7, %s1144
      %s1146 = smul.u32 %s1094, 128
      %s1147 = sshra.s32 %s1146, 4
      %s1148 = scalar_lea.vmem [#allocation9], %s1147
      %v1149 = vld [vmem:[%s1148] sm:%s1142]
      %1150 = vst [vmem:[%s1145] sm:%s1142] %v1149
    $region181: #{custom-call.2} parent=1 // pred_fallthru
      _
    %p1152 = scmp.gt.s32.totalorder 8, 0
    // Predicated region
    $region200: #{custom-call.2} parent=1 // pred_check
      %p1153 = pneg %p1152
    $region201: #{custom-call.2} parent=1 // pred_check_branch
      %1155 = sbr.rel (%p1153) target = $region203
    $region202: #{custom-call.2} parent=1 // pred_region
      %s1156 = sshra.s32 8, 3
      %p1157 = scmp.gt.s32.totalorder %s1156, 0
      // Predicated region
      $region204: #{custom-call.2} parent=202 // pred_check
        %p1158 = pneg %p1157
      $region205: #{custom-call.2} parent=202 // pred_check_branch
        %1160 = sbr.rel (%p1158) target = $region207
      $region206: #{custom-call.2} parent=202 // pred_region
        %s1161 = ssub.s32 %s1156, 1
        %s1162 = smul.u32 %s1161, 128
        %s1163 = sshra.s32 %s1162, 4
        %s1164 = scalar_lea.vmem [#allocation10], %s1163
        %v1165 = vld [vmem:[#allocation10] sm:$0xff]
        // While loop
        $region208: #{custom-call.2} parent=206 // loop_pre_header
          _
        $region209: #{custom-call.2} parent=206 // loop_header
          %s1166 = sphi [#allocation10], %s1188
          %s1167 = sphi %s8, %s1189
          %v1168 = vphi %v1165, %v1190
          %s1169 = ssub.s32 %s1164, 64
          %p1170 = scmp.gt.s32.totalorder %s1166, %s1169
        $region210: #{custom-call.2} parent=206 // loop_header_branch
          %1172 = sbr.rel (%p1170) target = $region214
        $region211: #{custom-call.2} parent=206 // loop_body
          %1173 = vst [vmem:[%s1167] sm:$0xff] %v1168
          %v1174 = vld [vmem:[%s1166 + $0x8] sm:$0xff]
          %1175 = vst [vmem:[%s1167 + $0x8] sm:$0xff] %v1174
          %v1176 = vld [vmem:[%s1166 + $0x10] sm:$0xff]
          %1177 = vst [vmem:[%s1167 + $0x10] sm:$0xff] %v1176
          %v1178 = vld [vmem:[%s1166 + $0x18] sm:$0xff]
          %1179 = vst [vmem:[%s1167 + $0x18] sm:$0xff] %v1178
          %v1180 = vld [vmem:[%s1166 + $0x20] sm:$0xff]
          %1181 = vst [vmem:[%s1167 + $0x20] sm:$0xff] %v1180
          %v1182 = vld [vmem:[%s1166 + $0x28] sm:$0xff]
          %1183 = vst [vmem:[%s1167 + $0x28] sm:$0xff] %v1182
          %v1184 = vld [vmem:[%s1166 + $0x30] sm:$0xff]
          %1185 = vst [vmem:[%s1167 + $0x30] sm:$0xff] %v1184
          %v1186 = vld [vmem:[%s1166 + $0x38] sm:$0xff]
          %1187 = vst [vmem:[%s1167 + $0x38] sm:$0xff] %v1186
        $region212: #{custom-call.2} parent=206 // loop_footer
          %s1188 = scalar_lea.vmem %s1166, 64
          %s1189 = scalar_lea.vmem %s1167, 64
          %v1190 = vld [vmem:[%s1166 + $0x40] sm:$0xff]
        $region213: #{custom-call.2} parent=206 // loop_footer_branch
          %1191 = sbr.rel target = $region209
        $region214: #{custom-call.2} parent=206 // loop_exit
          _
        // While loop
        $region215: #{custom-call.2} parent=206 // loop_pre_header
          _
        $region216: #{custom-call.2} parent=206 // loop_header
          %s1192 = sphi %s1166, %s1200
          %s1193 = sphi %s1167, %s1201
          %v1194 = vphi %v1168, %v1194
          %p1195 = scmp.gt.s32.totalorder %s1192, %s1164
        $region217: #{custom-call.2} parent=206 // loop_header_branch
          %1197 = sbr.rel (%p1195) target = $region221
        $region218: #{custom-call.2} parent=206 // loop_body
          %v1198 = vld [vmem:[%s1192] sm:$0xff]
          %1199 = vst [vmem:[%s1193] sm:$0xff] %v1198
        $region219: #{custom-call.2} parent=206 // loop_footer
          %s1200 = scalar_lea.vmem %s1192, 8
          %s1201 = scalar_lea.vmem %s1193, 8
        $region220: #{custom-call.2} parent=206 // loop_footer_branch
          %1202 = sbr.rel target = $region216
        $region221: #{custom-call.2} parent=206 // loop_exit
          _
      $region207: #{custom-call.2} parent=202 // pred_fallthru
        _
      %s1203 = sand.u32 8, 7
      %s1204 = sshllo.u32 0, %s1203
      %s1205 = smul.u32 %s1156, 128
      %s1206 = sshra.s32 %s1205, 4
      %s1207 = scalar_lea.vmem %s8, %s1206
      %s1208 = smul.u32 %s1156, 128
      %s1209 = sshra.s32 %s1208, 4
      %s1210 = scalar_lea.vmem [#allocation10], %s1209
      %v1211 = vld [vmem:[%s1210] sm:%s1204]
      %1212 = vst [vmem:[%s1207] sm:%s1204] %v1211
    $region203: #{custom-call.2} parent=1 // pred_fallthru
      _
    %p1214 = scmp.gt.s32.totalorder 8, 0
    // Predicated region
    $region222: #{custom-call.2} parent=1 // pred_check
      %p1215 = pneg %p1214
    $region223: #{custom-call.2} parent=1 // pred_check_branch
      %1217 = sbr.rel (%p1215) target = $region225
    $region224: #{custom-call.2} parent=1 // pred_region
      %s1218 = sshra.s32 8, 3
      %p1219 = scmp.gt.s32.totalorder %s1218, 0
      // Predicated region
      $region226: #{custom-call.2} parent=224 // pred_check
        %p1220 = pneg %p1219
      $region227: #{custom-call.2} parent=224 // pred_check_branch
        %1222 = sbr.rel (%p1220) target = $region229
      $region228: #{custom-call.2} parent=224 // pred_region
        %s1223 = ssub.s32 %s1218, 1
        %s1224 = smul.u32 %s1223, 128
        %s1225 = sshra.s32 %s1224, 4
        %s1226 = scalar_lea.vmem [#allocation11], %s1225
        %v1227 = vld [vmem:[#allocation11] sm:$0xff]
        // While loop
        $region230: #{custom-call.2} parent=228 // loop_pre_header
          _
        $region231: #{custom-call.2} parent=228 // loop_header
          %s1228 = sphi [#allocation11], %s1250
          %s1229 = sphi %s9, %s1251
          %v1230 = vphi %v1227, %v1252
          %s1231 = ssub.s32 %s1226, 64
          %p1232 = scmp.gt.s32.totalorder %s1228, %s1231
        $region232: #{custom-call.2} parent=228 // loop_header_branch
          %1234 = sbr.rel (%p1232) target = $region236
        $region233: #{custom-call.2} parent=228 // loop_body
          %1235 = vst [vmem:[%s1229] sm:$0xff] %v1230
          %v1236 = vld [vmem:[%s1228 + $0x8] sm:$0xff]
          %1237 = vst [vmem:[%s1229 + $0x8] sm:$0xff] %v1236
          %v1238 = vld [vmem:[%s1228 + $0x10] sm:$0xff]
          %1239 = vst [vmem:[%s1229 + $0x10] sm:$0xff] %v1238
          %v1240 = vld [vmem:[%s1228 + $0x18] sm:$0xff]
          %1241 = vst [vmem:[%s1229 + $0x18] sm:$0xff] %v1240
          %v1242 = vld [vmem:[%s1228 + $0x20] sm:$0xff]
          %1243 = vst [vmem:[%s1229 + $0x20] sm:$0xff] %v1242
          %v1244 = vld [vmem:[%s1228 + $0x28] sm:$0xff]
          %1245 = vst [vmem:[%s1229 + $0x28] sm:$0xff] %v1244
          %v1246 = vld [vmem:[%s1228 + $0x30] sm:$0xff]
          %1247 = vst [vmem:[%s1229 + $0x30] sm:$0xff] %v1246
          %v1248 = vld [vmem:[%s1228 + $0x38] sm:$0xff]
          %1249 = vst [vmem:[%s1229 + $0x38] sm:$0xff] %v1248
        $region234: #{custom-call.2} parent=228 // loop_footer
          %s1250 = scalar_lea.vmem %s1228, 64
          %s1251 = scalar_lea.vmem %s1229, 64
          %v1252 = vld [vmem:[%s1228 + $0x40] sm:$0xff]
        $region235: #{custom-call.2} parent=228 // loop_footer_branch
          %1253 = sbr.rel target = $region231
        $region236: #{custom-call.2} parent=228 // loop_exit
          _
        // While loop
        $region237: #{custom-call.2} parent=228 // loop_pre_header
          _
        $region238: #{custom-call.2} parent=228 // loop_header
          %s1254 = sphi %s1228, %s1262
          %s1255 = sphi %s1229, %s1263
          %v1256 = vphi %v1230, %v1256
          %p1257 = scmp.gt.s32.totalorder %s1254, %s1226
        $region239: #{custom-call.2} parent=228 // loop_header_branch
          %1259 = sbr.rel (%p1257) target = $region243
        $region240: #{custom-call.2} parent=228 // loop_body
          %v1260 = vld [vmem:[%s1254] sm:$0xff]
          %1261 = vst [vmem:[%s1255] sm:$0xff] %v1260
        $region241: #{custom-call.2} parent=228 // loop_footer
          %s1262 = scalar_lea.vmem %s1254, 8
          %s1263 = scalar_lea.vmem %s1255, 8
        $region242: #{custom-call.2} parent=228 // loop_footer_branch
          %1264 = sbr.rel target = $region238
        $region243: #{custom-call.2} parent=228 // loop_exit
          _
      $region229: #{custom-call.2} parent=224 // pred_fallthru
        _
      %s1265 = sand.u32 8, 7
      %s1266 = sshllo.u32 0, %s1265
      %s1267 = smul.u32 %s1218, 128
      %s1268 = sshra.s32 %s1267, 4
      %s1269 = scalar_lea.vmem %s9, %s1268
      %s1270 = smul.u32 %s1218, 128
      %s1271 = sshra.s32 %s1270, 4
      %s1272 = scalar_lea.vmem [#allocation11], %s1271
      %v1273 = vld [vmem:[%s1272] sm:%s1266]
      %1274 = vst [vmem:[%s1269] sm:%s1266] %v1273
    $region225: #{custom-call.2} parent=1 // pred_fallthru
      _
    // Predicated region
    $region244: #{custom-call.2} parent=1 // pred_check
      _
    $region245: #{custom-call.2} parent=1 // pred_check_branch
      %1276 = sbr.rel (0) target = $region247
    $region246: #{custom-call.2} parent=1 // pred_region
      _
    $region247: #{custom-call.2} parent=1 // pred_fallthru
      _
    // Predicated region
    $region248: #{custom-call.2} parent=1 // pred_check
      _
    $region249: #{custom-call.2} parent=1 // pred_check_branch
      %1278 = sbr.rel (0) target = $region251
    $region250: #{custom-call.2} parent=1 // pred_region
      _
    $region251: #{custom-call.2} parent=1 // pred_fallthru
      _

// kernel: reverse
$region0: #{reverse}
  %s0 = inlined_call_operand.vmem [shape: f32[4], index: 0, kind: input, shape index: {}]
  %s1 = inlined_call_operand.vmem [shape: f32[4], index: 1, kind: output, shape index: {}]
  %v2 = vlaneseq
  %v3 = vsub.s32 3, %v2
  %4 = vset.pattern.permute.xlu0 %v3
  $region1: #{reverse} parent=0
    #allocation0 [shape = 'u8[8192]{0}', space=vmem, size = 0x2000, scoped, tag = 'operand span for operand 0']
    #allocation1 [shape = 'u8[1024]{0}', space=vmem, size = 0x400, scoped, tag = 'packed  for operand 0']
    #allocation2 [shape = 'u8[4096]{0}', space=vmem, size = 0x1000, scoped, tag = 'operand span for operand 1']
    #allocation3 [shape = 'u8[512]{0}', space=vmem, size = 0x400, scoped, tag = 'packed  for operand 1']
    %s5 = scalar_lea.vmem [#allocation1], 1
    // Predicated region
    $region2: #{reverse} parent=1 // pred_check
      _
    $region3: #{reverse} parent=1 // pred_check_branch
      %7 = sbr.rel (0) target = $region5
    $region4: #{reverse} parent=1 // pred_region
      // Predicated region
      $region6: #{reverse} parent=4 // pred_check
        _
      $region7: #{reverse} parent=4 // pred_check_branch
        %9 = sbr.rel target = $region9
      $region8: #{reverse} parent=4 // pred_region
        // Predicated region
        $region21: #{reverse} parent=8 // pred_check
          _
        $region22: #{reverse} parent=8 // pred_check_branch
          %24 = sbr.rel (0) target = $region24
        $region23: #{reverse} parent=8 // pred_region
          loop: start=0, step=1, limit=1
          $region25: #{reverse} parent=23 // loop_pre_header
            _
          $region26: #{reverse} parent=23 // loop_header
            %s27 = sphi 0, %s31
            %p28 = scmp.ge.s32.totalorder %s27, 1
            %s32 = sphi %s0, %s0
            %s33 = sphi %s5, %s5
          $region27: #{reverse} parent=23 // loop_header_branch
            %30 = sbr.rel (%p28) target = $region31
          $region28: #{reverse} parent=23 // loop_body
            %v34 = vld [vmem:[%s32] sm:$0x1]
            %35 = vst [vmem:[%s33] sm:$0x1] %v34
          $region29: #{reverse} parent=23 // loop_footer
            %s31 = sadd.s32 1, %s27
          $region30: #{reverse} parent=23 // loop_footer_branch
            %26 = sbr.rel target = $region26
          $region31: #{reverse} parent=23 // loop_exit
            _
        $region24: #{reverse} parent=8 // pred_fallthru
          _
      $region9: #{reverse} parent=4 // pred_fallthru
        _
      // Predicated region
      $region10: #{reverse} parent=4 // pred_check
        _
      $region11: #{reverse} parent=4 // pred_check_branch
        %11 = sbr.rel (0) target = $region13
      $region12: #{reverse} parent=4 // pred_region
        loop: start=0, step=1, limit=1
        $region14: #{reverse} parent=12 // loop_pre_header
          _
        $region15: #{reverse} parent=12 // loop_header
          %s14 = sphi 0, %s18
          %p15 = scmp.ge.s32.totalorder %s14, 1
          %s19 = sphi %s0, %s0
          %s20 = sphi %s5, %s5
        $region16: #{reverse} parent=12 // loop_header_branch
          %17 = sbr.rel (%p15) target = $region20
        $region17: #{reverse} parent=12 // loop_body
          %v21 = vld [vmem:[%s19] sm:$0x1]
          %22 = vst [vmem:[%s20] sm:$0x1] %v21
        $region18: #{reverse} parent=12 // loop_footer
          %s18 = sadd.s32 1, %s14
        $region19: #{reverse} parent=12 // loop_footer_branch
          %13 = sbr.rel target = $region15
        $region20: #{reverse} parent=12 // loop_exit
          _
      $region13: #{reverse} parent=4 // pred_fallthru
        _
    $region5: #{reverse} parent=1 // pred_fallthru
      _
    %36 = vnop
    %s38 = sshllo.u32 0, 1
    %s39 = scalar_lea.vmem [#allocation1], 1
    %v40 = vld [vmem:[%s39] sm:%s38]
    %s41 = scalar_lea.vmem [#allocation0], 8
    %42 = vst [vmem:[%s41] sm:%s38] %v40
    %v43 = vld [vmem:[#allocation1] sm:%s38]
    %44 = vst [vmem:[#allocation0] sm:%s38] %v43
    %s45 = scalar_lea.vmem [#allocation0], 7
    %v46 = vld [vmem:[%s45] ss:$-1 sm:$0xff]
    %v47 = vrot.slane %v46, 7
    %48 = vperm.xlu0 %4, %v47
    %v49 = vpop.permute.xlu0 %48
    %50 = vst [vmem:[#allocation2] sm:$0xff] %v49
    %s51 = scalar_lea.vmem [#allocation0], 8
    %s52 = scalar_lea.vmem %s51, 7 [#allocation0]
    %v53 = vld [vmem:[%s52] ss:$-1 sm:$0xff]
    %v54 = vrot.slane %v53, 7
    %55 = vperm.xlu0 %4, %v54
    %v56 = vpop.permute.xlu0 %55
    %v57 = vlaneseq
    %v58 = vshrl.u32 %v57, 7
    %vm59 = vcmp.lt.s32.totalorder %v58, 1
    %60 = vst.msk [vmem:[#allocation2] sm:$0xff] %vm59, %v56
    %s62 = sshllo.u32 0, 1
    %v64 = vld [vmem:[#allocation2] sm:%s62]
    %s65 = sshllo.u32 0, 1
    %66 = vst [vmem:[#allocation3] sm:%s65] %v64
    // Predicated region
    $region32: #{reverse} parent=1 // pred_check
      _
    $region33: #{reverse} parent=1 // pred_check_branch
      %68 = sbr.rel (0) target = $region35
    $region34: #{reverse} parent=1 // pred_region
      // Predicated region
      $region36: #{reverse} parent=34 // pred_check
        _
      $region37: #{reverse} parent=34 // pred_check_branch
        %70 = sbr.rel target = $region39
      $region38: #{reverse} parent=34 // pred_region
        // Predicated region
        $region51: #{reverse} parent=38 // pred_check
          _
        $region52: #{reverse} parent=38 // pred_check_branch
          %85 = sbr.rel (0) target = $region54
        $region53: #{reverse} parent=38 // pred_region
          loop: start=0, step=1, limit=1
          $region55: #{reverse} parent=53 // loop_pre_header
            _
          $region56: #{reverse} parent=53 // loop_header
            %s88 = sphi 0, %s92
            %p89 = scmp.ge.s32.totalorder %s88, 1
            %s93 = sphi [#allocation3], [#allocation3]
            %s94 = sphi %s1, %s1
          $region57: #{reverse} parent=53 // loop_header_branch
            %91 = sbr.rel (%p89) target = $region61
          $region58: #{reverse} parent=53 // loop_body
            %v95 = vld [vmem:[%s93] sm:$0x1]
            %96 = vst [vmem:[%s94] sm:$0x1] %v95
          $region59: #{reverse} parent=53 // loop_footer
            %s92 = sadd.s32 1, %s88
          $region60: #{reverse} parent=53 // loop_footer_branch
            %87 = sbr.rel target = $region56
          $region61: #{reverse} parent=53 // loop_exit
            _
        $region54: #{reverse} parent=38 // pred_fallthru
          _
      $region39: #{reverse} parent=34 // pred_fallthru
        _
      // Predicated region
      $region40: #{reverse} parent=34 // pred_check
        _
      $region41: #{reverse} parent=34 // pred_check_branch
        %72 = sbr.rel (0) target = $region43
      $region42: #{reverse} parent=34 // pred_region
        loop: start=0, step=1, limit=1
        $region44: #{reverse} parent=42 // loop_pre_header
          _
        $region45: #{reverse} parent=42 // loop_header
          %s75 = sphi 0, %s79
          %p76 = scmp.ge.s32.totalorder %s75, 1
          %s80 = sphi [#allocation3], [#allocation3]
          %s81 = sphi %s1, %s1
        $region46: #{reverse} parent=42 // loop_header_branch
          %78 = sbr.rel (%p76) target = $region50
        $region47: #{reverse} parent=42 // loop_body
          %v82 = vld [vmem:[%s80] sm:$0x1]
          %83 = vst [vmem:[%s81] sm:$0x1] %v82
        $region48: #{reverse} parent=42 // loop_footer
          %s79 = sadd.s32 1, %s75
        $region49: #{reverse} parent=42 // loop_footer_branch
          %74 = sbr.rel target = $region45
        $region50: #{reverse} parent=42 // loop_exit
          _
      $region43: #{reverse} parent=34 // pred_fallthru
        _
    $region35: #{reverse} parent=1 // pred_fallthru
      _
    %97 = vnop

// kernel: nb_forward.1
$region0: #{nb_forward.1}
  #allocation0 [shape = 'u32[]', space=smem, size = 0x4, offset = 0x4, fixed_abs, tag = 'smem constant byte address 0x4 - core index']
  #allocation1 [shape = 'u32[144,128]{1,0:T(1,128)}', space=vmem, size = 0x12000, scoped, tag = 'internal scratch']
  #allocation2 [shape = 'f32[20,20,5]{2,1,0:T(8,128)}', space=vmem, size = 0x3c000, scoped, tag = 'scratch operand']
  #allocation3 [shape = 'f32[20,20,64]{2,1,0:T(8,128)}', space=vmem, size = 0x3c000, scoped, tag = 'scratch operand']
  #allocation4 [shape = 'f32[18,18,64]{2,1,0:T(8,128)}', space=vmem, size = 0x36000, scoped, tag = 'scratch operand']
  #allocation5 [shape = 'f32[18,18,32]{2,1,0:T(8,128)}', space=vmem, size = 0x36000, scoped, tag = 'scratch operand']
  %s0 = inlined_call_operand.vmem [shape: f32[16,16,5], index: 0, kind: input, shape index: {}]
  %s1 = inlined_call_operand.vmem [shape: f32[16,16,1], index: 1, kind: input, shape index: {}]
  %s2 = inlined_call_operand.vmem [shape: bf16[125,64], index: 2, kind: input, shape index: {}]
  %s3 = inlined_call_operand.vmem [shape: f32[1,64], index: 3, kind: input, shape index: {}]
  %s4 = inlined_call_operand.vmem [shape: bf16[1600,64], index: 4, kind: input, shape index: {}]
  %s5 = inlined_call_operand.vmem [shape: f32[1,64], index: 5, kind: input, shape index: {}]
  %s6 = inlined_call_operand.vmem [shape: bf16[576,32], index: 6, kind: input, shape index: {}]
  %s7 = inlined_call_operand.vmem [shape: f32[1,32], index: 7, kind: input, shape index: {}]
  %s8 = inlined_call_operand.vmem [shape: bf16[288,2], index: 8, kind: input, shape index: {}]
  %s9 = inlined_call_operand.vmem [shape: f32[1,2], index: 9, kind: input, shape index: {}]
  %s10 = inlined_call_operand.vmem [shape: f32[256,2], index: 10, kind: output, shape index: {}]
  %s11 = sld [smem:[#allocation0]]
  $region50: #{nb_forward.1} parent=0
    _
  %s13 = ssub.s32 1, %s11
  %s14 = scalar_select 0, %s13, %s11
  // Predicated region
  $region2: #{nb_forward.1} parent=0 // pred_check
    _
  $region3: #{nb_forward.1} parent=0 // pred_check_branch
    %16 = sbr.rel (0) target = $region5
  $region4: #{nb_forward.1} parent=0 // pred_region
    _
  $region5: #{nb_forward.1} parent=0 // pred_fallthru
    _
  // Predicated region
  $region6: #{nb_forward.1} parent=0 // pred_check
    _
  $region7: #{nb_forward.1} parent=0 // pred_check_branch
    %18 = sbr.rel (0) target = $region9
  $region8: #{nb_forward.1} parent=0 // pred_region
    _
  $region9: #{nb_forward.1} parent=0 // pred_fallthru
    _
  // Predicated region
  $region10: #{nb_forward.1} parent=0 // pred_check
    _
  $region11: #{nb_forward.1} parent=0 // pred_check_branch
    %20 = sbr.rel (0) target = $region13
  $region12: #{nb_forward.1} parent=0 // pred_region
    _
  $region13: #{nb_forward.1} parent=0 // pred_fallthru
    _
  // Predicated region
  $region14: #{nb_forward.1} parent=0 // pred_check
    _
  $region15: #{nb_forward.1} parent=0 // pred_check_branch
    %22 = sbr.rel (0) target = $region17
  $region16: #{nb_forward.1} parent=0 // pred_region
    _
  $region17: #{nb_forward.1} parent=0 // pred_fallthru
    _
  // Predicated region
  $region18: #{nb_forward.1} parent=0 // pred_check
    _
  $region19: #{nb_forward.1} parent=0 // pred_check_branch
    %24 = sbr.rel (0) target = $region21
  $region20: #{nb_forward.1} parent=0 // pred_region
    _
  $region21: #{nb_forward.1} parent=0 // pred_fallthru
    _
  // Predicated region
  $region22: #{nb_forward.1} parent=0 // pred_check
    _
  $region23: #{nb_forward.1} parent=0 // pred_check_branch
    %26 = sbr.rel (0) target = $region25
  $region24: #{nb_forward.1} parent=0 // pred_region
    _
  $region25: #{nb_forward.1} parent=0 // pred_fallthru
    _
  // Predicated region
  $region26: #{nb_forward.1} parent=0 // pred_check
    _
  $region27: #{nb_forward.1} parent=0 // pred_check_branch
    %28 = sbr.rel (0) target = $region29
  $region28: #{nb_forward.1} parent=0 // pred_region
    _
  $region29: #{nb_forward.1} parent=0 // pred_fallthru
    _
  // Predicated region
  $region30: #{nb_forward.1} parent=0 // pred_check
    _
  $region31: #{nb_forward.1} parent=0 // pred_check_branch
    %30 = sbr.rel (0) target = $region33
  $region32: #{nb_forward.1} parent=0 // pred_region
    _
  $region33: #{nb_forward.1} parent=0 // pred_fallthru
    _
  // Predicated region
  $region34: #{nb_forward.1} parent=0 // pred_check
    _
  $region35: #{nb_forward.1} parent=0 // pred_check_branch
    %32 = sbr.rel (0) target = $region37
  $region36: #{nb_forward.1} parent=0 // pred_region
    _
  $region37: #{nb_forward.1} parent=0 // pred_fallthru
    _
  // Predicated region
  $region38: #{nb_forward.1} parent=0 // pred_check
    _
  $region39: #{nb_forward.1} parent=0 // pred_check_branch
    %34 = sbr.rel (0) target = $region41
  $region40: #{nb_forward.1} parent=0 // pred_region
    _
  $region41: #{nb_forward.1} parent=0 // pred_fallthru
    _
  %v36 = vld [vmem:[%s0] sm:$0xff]
  %v37 = vld [vmem:[%s0 + $0x8] sm:$0xff]
  %v38 = vld [vmem:[%s0 + $0x10] sm:$0xff]
  %v39 = vld [vmem:[%s0 + $0x18] sm:$0xff]
  %v40 = vld [vmem:[%s0 + $0x20] sm:$0xff]
  %v41 = vld [vmem:[%s0 + $0x28] sm:$0xff]
  %v42 = vld [vmem:[%s0 + $0x30] sm:$0xff]
  %v43 = vld [vmem:[%s0 + $0x38] sm:$0xff]
  %v44 = vld [vmem:[%s0 + $0x40] sm:$0xff]
  %v45 = vld [vmem:[%s0 + $0x48] sm:$0xff]
  %v46 = vld [vmem:[%s0 + $0x50] sm:$0xff]
  %v47 = vld [vmem:[%s0 + $0x58] sm:$0xff]
  %v48 = vld [vmem:[%s0 + $0x60] sm:$0xff]
  %v49 = vld [vmem:[%s0 + $0x68] sm:$0xff]
  %v50 = vld [vmem:[%s0 + $0x70] sm:$0xff]
  %v51 = vld [vmem:[%s0 + $0x78] sm:$0xff]
  %v52 = vld [vmem:[%s0 + $0x80] sm:$0xff]
  %v53 = vld [vmem:[%s0 + $0x88] sm:$0xff]
  %v54 = vld [vmem:[%s0 + $0x90] sm:$0xff]
  %v55 = vld [vmem:[%s0 + $0x98] sm:$0xff]
  %v56 = vld [vmem:[%s0 + $0xa0] sm:$0xff]
  %v57 = vld [vmem:[%s0 + $0xa8] sm:$0xff]
  %v58 = vld [vmem:[%s0 + $0xb0] sm:$0xff]
  %v59 = vld [vmem:[%s0 + $0xb8] sm:$0xff]
  %v60 = vld [vmem:[%s0 + $0xc0] sm:$0xff]
  %v61 = vld [vmem:[%s0 + $0xc8] sm:$0xff]
  %v62 = vld [vmem:[%s0 + $0xd0] sm:$0xff]
  %v63 = vld [vmem:[%s0 + $0xd8] sm:$0xff]
  %v64 = vld [vmem:[%s0 + $0xe0] sm:$0xff]
  %v65 = vld [vmem:[%s0 + $0xe8] sm:$0xff]
  %v66 = vld [vmem:[%s0 + $0xf0] sm:$0xff]
  %v67 = vld [vmem:[%s0 + $0xf8] sm:$0xff]
  %v68 = vld [vmem:[%s1] sm:$0xff]
  %v69 = vld [vmem:[%s1 + $0x8] sm:$0xff]
  %v70 = vld [vmem:[%s1 + $0x10] sm:$0xff]
  %v71 = vld [vmem:[%s1 + $0x18] sm:$0xff]
  %v72 = vld [vmem:[%s1 + $0x20] sm:$0xff]
  %v73 = vld [vmem:[%s1 + $0x28] sm:$0xff]
  %v74 = vld [vmem:[%s1 + $0x30] sm:$0xff]
  %v75 = vld [vmem:[%s1 + $0x38] sm:$0xff]
  %v76 = vld [vmem:[%s1 + $0x40] sm:$0xff]
  %v77 = vld [vmem:[%s1 + $0x48] sm:$0xff]
  %v78 = vld [vmem:[%s1 + $0x50] sm:$0xff]
  %v79 = vld [vmem:[%s1 + $0x58] sm:$0xff]
  %v80 = vld [vmem:[%s1 + $0x60] sm:$0xff]
  %v81 = vld [vmem:[%s1 + $0x68] sm:$0xff]
  %v82 = vld [vmem:[%s1 + $0x70] sm:$0xff]
  %v83 = vld [vmem:[%s1 + $0x78] sm:$0xff]
  %v84 = vld [vmem:[%s1 + $0x80] sm:$0xff]
  %v85 = vld [vmem:[%s1 + $0x88] sm:$0xff]
  %v86 = vld [vmem:[%s1 + $0x90] sm:$0xff]
  %v87 = vld [vmem:[%s1 + $0x98] sm:$0xff]
  %v88 = vld [vmem:[%s1 + $0xa0] sm:$0xff]
  %v89 = vld [vmem:[%s1 + $0xa8] sm:$0xff]
  %v90 = vld [vmem:[%s1 + $0xb0] sm:$0xff]
  %v91 = vld [vmem:[%s1 + $0xb8] sm:$0xff]
  %v92 = vld [vmem:[%s1 + $0xc0] sm:$0xff]
  %v93 = vld [vmem:[%s1 + $0xc8] sm:$0xff]
  %v94 = vld [vmem:[%s1 + $0xd0] sm:$0xff]
  %v95 = vld [vmem:[%s1 + $0xd8] sm:$0xff]
  %v96 = vld [vmem:[%s1 + $0xe0] sm:$0xff]
  %v97 = vld [vmem:[%s1 + $0xe8] sm:$0xff]
  %v98 = vld [vmem:[%s1 + $0xf0] sm:$0xff]
  %v99 = vld [vmem:[%s1 + $0xf8] sm:$0xff]
  %v100 = vsub.f32 1.0, %v68
  %v101 = vsub.f32 1.0, %v69
  %v102 = vsub.f32 1.0, %v70
  %v103 = vsub.f32 1.0, %v71
  %v104 = vsub.f32 1.0, %v72
  %v105 = vsub.f32 1.0, %v73
  %v106 = vsub.f32 1.0, %v74
  %v107 = vsub.f32 1.0, %v75
  %v108 = vsub.f32 1.0, %v76
  %v109 = vsub.f32 1.0, %v77
  %v110 = vsub.f32 1.0, %v78
  %v111 = vsub.f32 1.0, %v79
  %v112 = vsub.f32 1.0, %v80
  %v113 = vsub.f32 1.0, %v81
  %v114 = vsub.f32 1.0, %v82
  %v115 = vsub.f32 1.0, %v83
  %v116 = vsub.f32 1.0, %v84
  %v117 = vsub.f32 1.0, %v85
  %v118 = vsub.f32 1.0, %v86
  %v119 = vsub.f32 1.0, %v87
  %v120 = vsub.f32 1.0, %v88
  %v121 = vsub.f32 1.0, %v89
  %v122 = vsub.f32 1.0, %v90
  %v123 = vsub.f32 1.0, %v91
  %v124 = vsub.f32 1.0, %v92
  %v125 = vsub.f32 1.0, %v93
  %v126 = vsub.f32 1.0, %v94
  %v127 = vsub.f32 1.0, %v95
  %v128 = vsub.f32 1.0, %v96
  %v129 = vsub.f32 1.0, %v97
  %v130 = vsub.f32 1.0, %v98
  %v131 = vsub.f32 1.0, %v99
  %133 = vset.pattern.permute.xlu0 0
  %134 = vperm.xlu0 %133, %v100
  %v135 = vpop.permute.xlu0 %134
  %138 = vset.pattern.permute.xlu0 0
  %139 = vperm.xlu0 %138, %v101
  %v140 = vpop.permute.xlu0 %139
  %143 = vset.pattern.permute.xlu0 0
  %144 = vperm.xlu0 %143, %v102
  %v145 = vpop.permute.xlu0 %144
  %148 = vset.pattern.permute.xlu0 0
  %149 = vperm.xlu0 %148, %v103
  %v150 = vpop.permute.xlu0 %149
  %153 = vset.pattern.permute.xlu0 0
  %154 = vperm.xlu0 %153, %v104
  %v155 = vpop.permute.xlu0 %154
  %158 = vset.pattern.permute.xlu0 0
  %159 = vperm.xlu0 %158, %v105
  %v160 = vpop.permute.xlu0 %159
  %163 = vset.pattern.permute.xlu0 0
  %164 = vperm.xlu0 %163, %v106
  %v165 = vpop.permute.xlu0 %164
  %168 = vset.pattern.permute.xlu0 0
  %169 = vperm.xlu0 %168, %v107
  %v170 = vpop.permute.xlu0 %169
  %173 = vset.pattern.permute.xlu0 0
  %174 = vperm.xlu0 %173, %v108
  %v175 = vpop.permute.xlu0 %174
  %178 = vset.pattern.permute.xlu0 0
  %179 = vperm.xlu0 %178, %v109
  %v180 = vpop.permute.xlu0 %179
  %183 = vset.pattern.permute.xlu0 0
  %184 = vperm.xlu0 %183, %v110
  %v185 = vpop.permute.xlu0 %184
  %188 = vset.pattern.permute.xlu0 0
  %189 = vperm.xlu0 %188, %v111
  %v190 = vpop.permute.xlu0 %189
  %193 = vset.pattern.permute.xlu0 0
  %194 = vperm.xlu0 %193, %v112
  %v195 = vpop.permute.xlu0 %194
  %198 = vset.pattern.permute.xlu0 0
  %199 = vperm.xlu0 %198, %v113
  %v200 = vpop.permute.xlu0 %199
  %203 = vset.pattern.permute.xlu0 0
  %204 = vperm.xlu0 %203, %v114
  %v205 = vpop.permute.xlu0 %204
  %208 = vset.pattern.permute.xlu0 0
  %209 = vperm.xlu0 %208, %v115
  %v210 = vpop.permute.xlu0 %209
  %213 = vset.pattern.permute.xlu0 0
  %214 = vperm.xlu0 %213, %v116
  %v215 = vpop.permute.xlu0 %214
  %218 = vset.pattern.permute.xlu0 0
  %219 = vperm.xlu0 %218, %v117
  %v220 = vpop.permute.xlu0 %219
  %223 = vset.pattern.permute.xlu0 0
  %224 = vperm.xlu0 %223, %v118
  %v225 = vpop.permute.xlu0 %224
  %228 = vset.pattern.permute.xlu0 0
  %229 = vperm.xlu0 %228, %v119
  %v230 = vpop.permute.xlu0 %229
  %233 = vset.pattern.permute.xlu0 0
  %234 = vperm.xlu0 %233, %v120
  %v235 = vpop.permute.xlu0 %234
  %238 = vset.pattern.permute.xlu0 0
  %239 = vperm.xlu0 %238, %v121
  %v240 = vpop.permute.xlu0 %239
  %243 = vset.pattern.permute.xlu0 0
  %244 = vperm.xlu0 %243, %v122
  %v245 = vpop.permute.xlu0 %244
  %248 = vset.pattern.permute.xlu0 0
  %249 = vperm.xlu0 %248, %v123
  %v250 = vpop.permute.xlu0 %249
  %253 = vset.pattern.permute.xlu0 0
  %254 = vperm.xlu0 %253, %v124
  %v255 = vpop.permute.xlu0 %254
  %258 = vset.pattern.permute.xlu0 0
  %259 = vperm.xlu0 %258, %v125
  %v260 = vpop.permute.xlu0 %259
  %263 = vset.pattern.permute.xlu0 0
  %264 = vperm.xlu0 %263, %v126
  %v265 = vpop.permute.xlu0 %264
  %268 = vset.pattern.permute.xlu0 0
  %269 = vperm.xlu0 %268, %v127
  %v270 = vpop.permute.xlu0 %269
  %273 = vset.pattern.permute.xlu0 0
  %274 = vperm.xlu0 %273, %v128
  %v275 = vpop.permute.xlu0 %274
  %278 = vset.pattern.permute.xlu0 0
  %279 = vperm.xlu0 %278, %v129
  %v280 = vpop.permute.xlu0 %279
  %283 = vset.pattern.permute.xlu0 0
  %284 = vperm.xlu0 %283, %v130
  %v285 = vpop.permute.xlu0 %284
  %288 = vset.pattern.permute.xlu0 0
  %289 = vperm.xlu0 %288, %v131
  %v290 = vpop.permute.xlu0 %289
  %v292 = vmul.f32 %v36, %v135
  %v293 = vmul.f32 %v37, %v140
  %v294 = vmul.f32 %v38, %v145
  %v295 = vmul.f32 %v39, %v150
  %v296 = vmul.f32 %v40, %v155
  %v297 = vmul.f32 %v41, %v160
  %v298 = vmul.f32 %v42, %v165
  %v299 = vmul.f32 %v43, %v170
  %v300 = vmul.f32 %v44, %v175
  %v301 = vmul.f32 %v45, %v180
  %v302 = vmul.f32 %v46, %v185
  %v303 = vmul.f32 %v47, %v190
  %v304 = vmul.f32 %v48, %v195
  %v305 = vmul.f32 %v49, %v200
  %v306 = vmul.f32 %v50, %v205
  %v307 = vmul.f32 %v51, %v210
  %v308 = vmul.f32 %v52, %v215
  %v309 = vmul.f32 %v53, %v220
  %v310 = vmul.f32 %v54, %v225
  %v311 = vmul.f32 %v55, %v230
  %v312 = vmul.f32 %v56, %v235
  %v313 = vmul.f32 %v57, %v240
  %v314 = vmul.f32 %v58, %v245
  %v315 = vmul.f32 %v59, %v250
  %v316 = vmul.f32 %v60, %v255
  %v317 = vmul.f32 %v61, %v260
  %v318 = vmul.f32 %v62, %v265
  %v319 = vmul.f32 %v63, %v270
  %v320 = vmul.f32 %v64, %v275
  %v321 = vmul.f32 %v65, %v280
  %v322 = vmul.f32 %v66, %v285
  %v323 = vmul.f32 %v67, %v290
  %vm324 = vcmask 39936
  %325 = vst.msk [vmem:[#allocation2] sm:$0xff] %vm324, 0.0
  %326 = vst.msk [vmem:[#allocation2 + $0x8] sm:$0xff] %vm324, 0.0
  %vm327 = vcmask 35840
  %328 = vst.msk [vmem:[#allocation2 + $0x10] sm:$0xf] %vm327, 0.0
  %329 = vst.msk [vmem:[#allocation2 + $0x18] sm:$0xff] %vm324, 0.0
  %330 = vst.msk [vmem:[#allocation2 + $0x20] sm:$0xff] %vm324, 0.0
  %331 = vst.msk [vmem:[#allocation2 + $0x28] sm:$0xf] %vm327, 0.0
  %332 = vst.msk [vmem:[#allocation2 + $0x30] sm:$0xff] %vm324, 0.0
  %333 = vst.msk [vmem:[#allocation2 + $0x38] sm:$0xff] %vm324, 0.0
  %334 = vst.msk [vmem:[#allocation2 + $0x40] sm:$0xf] %vm327, 0.0
  %335 = vst.msk [vmem:[#allocation2 + $0x48] sm:$0xff] %vm324, 0.0
  %336 = vst.msk [vmem:[#allocation2 + $0x50] sm:$0xff] %vm324, 0.0
  %337 = vst.msk [vmem:[#allocation2 + $0x58] sm:$0xf] %vm327, 0.0
  %338 = vst.msk [vmem:[#allocation2 + $0x60] sm:$0xff] %vm324, 0.0
  %339 = vst.msk [vmem:[#allocation2 + $0x68] sm:$0xff] %vm324, 0.0
  %340 = vst.msk [vmem:[#allocation2 + $0x70] sm:$0xf] %vm327, 0.0
  %341 = vst.msk [vmem:[#allocation2 + $0x78] sm:$0xff] %vm324, 0.0
  %342 = vst.msk [vmem:[#allocation2 + $0x80] sm:$0xff] %vm324, 0.0
  %343 = vst.msk [vmem:[#allocation2 + $0x88] sm:$0xf] %vm327, 0.0
  %344 = vst.msk [vmem:[#allocation2 + $0x90] sm:$0xff] %vm324, 0.0
  %345 = vst.msk [vmem:[#allocation2 + $0x98] sm:$0xff] %vm324, 0.0
  %346 = vst.msk [vmem:[#allocation2 + $0xa0] sm:$0xf] %vm327, 0.0
  %347 = vst.msk [vmem:[#allocation2 + $0xa8] sm:$0xff] %vm324, 0.0
  %348 = vst.msk [vmem:[#allocation2 + $0xb0] sm:$0xff] %vm324, 0.0
  %349 = vst.msk [vmem:[#allocation2 + $0xb8] sm:$0xf] %vm327, 0.0
  %350 = vst.msk [vmem:[#allocation2 + $0xc0] sm:$0xff] %vm324, 0.0
  %351 = vst.msk [vmem:[#allocation2 + $0xc8] sm:$0xff] %vm324, 0.0
  %352 = vst.msk [vmem:[#allocation2 + $0xd0] sm:$0xf] %vm327, 0.0
  %353 = vst.msk [vmem:[#allocation2 + $0xd8] sm:$0xff] %vm324, 0.0
  %354 = vst.msk [vmem:[#allocation2 + $0xe0] sm:$0xff] %vm324, 0.0
  %355 = vst.msk [vmem:[#allocation2 + $0xe8] sm:$0xf] %vm327, 0.0
  %356 = vst.msk [vmem:[#allocation2 + $0xf0] sm:$0xff] %vm324, 0.0
  %357 = vst.msk [vmem:[#allocation2 + $0xf8] sm:$0xff] %vm324, 0.0
  %358 = vst.msk [vmem:[#allocation2 + $0x100] sm:$0xf] %vm327, 0.0
  %359 = vst.msk [vmem:[#allocation2 + $0x108] sm:$0xff] %vm324, 0.0
  %360 = vst.msk [vmem:[#allocation2 + $0x110] sm:$0xff] %vm324, 0.0
  %361 = vst.msk [vmem:[#allocation2 + $0x118] sm:$0xf] %vm327, 0.0
  %362 = vst.msk [vmem:[#allocation2 + $0x120] sm:$0xff] %vm324, 0.0
  %363 = vst.msk [vmem:[#allocation2 + $0x128] sm:$0xff] %vm324, 0.0
  %364 = vst.msk [vmem:[#allocation2 + $0x130] sm:$0xf] %vm327, 0.0
  %365 = vst.msk [vmem:[#allocation2 + $0x138] sm:$0xff] %vm324, 0.0
  %366 = vst.msk [vmem:[#allocation2 + $0x140] sm:$0xff] %vm324, 0.0
  %367 = vst.msk [vmem:[#allocation2 + $0x148] sm:$0xf] %vm327, 0.0
  %368 = vst.msk [vmem:[#allocation2 + $0x150] sm:$0xff] %vm324, 0.0
  %369 = vst.msk [vmem:[#allocation2 + $0x158] sm:$0xff] %vm324, 0.0
  %370 = vst.msk [vmem:[#allocation2 + $0x160] sm:$0xf] %vm327, 0.0
  %371 = vst.msk [vmem:[#allocation2 + $0x168] sm:$0xff] %vm324, 0.0
  %372 = vst.msk [vmem:[#allocation2 + $0x170] sm:$0xff] %vm324, 0.0
  %373 = vst.msk [vmem:[#allocation2 + $0x178] sm:$0xf] %vm327, 0.0
  %374 = vst.msk [vmem:[#allocation2 + $0x180] sm:$0xff] %vm324, 0.0
  %375 = vst.msk [vmem:[#allocation2 + $0x188] sm:$0xff] %vm324, 0.0
  %376 = vst.msk [vmem:[#allocation2 + $0x190] sm:$0xf] %vm327, 0.0
  %377 = vst.msk [vmem:[#allocation2 + $0x198] sm:$0xff] %vm324, 0.0
  %378 = vst.msk [vmem:[#allocation2 + $0x1a0] sm:$0xff] %vm324, 0.0
  %379 = vst.msk [vmem:[#allocation2 + $0x1a8] sm:$0xf] %vm327, 0.0
  %380 = vst.msk [vmem:[#allocation2 + $0x1b0] sm:$0xff] %vm324, 0.0
  %381 = vst.msk [vmem:[#allocation2 + $0x1b8] sm:$0xff] %vm324, 0.0
  %382 = vst.msk [vmem:[#allocation2 + $0x1c0] sm:$0xf] %vm327, 0.0
  %383 = vst.msk [vmem:[#allocation2 + $0x1c8] sm:$0xff] %vm324, 0.0
  %384 = vst.msk [vmem:[#allocation2 + $0x1d0] sm:$0xff] %vm324, 0.0
  %385 = vst.msk [vmem:[#allocation2 + $0x1d8] sm:$0xf] %vm327, 0.0
  %s386 = scalar_lea.vmem [#allocation2], 48
  %387 = vst.msk [vmem:[%s386 + $0x2] sm:$0xff] %vm324, %v292
  %388 = vst.msk [vmem:[%s386 + $0xa] sm:$0xff] %vm324, %v293
  %389 = vst.msk [vmem:[%s386 + $0x1a] sm:$0xff] %vm324, %v294
  %390 = vst.msk [vmem:[%s386 + $0x22] sm:$0xff] %vm324, %v295
  %391 = vst.msk [vmem:[%s386 + $0x32] sm:$0xff] %vm324, %v296
  %392 = vst.msk [vmem:[%s386 + $0x3a] sm:$0xff] %vm324, %v297
  %393 = vst.msk [vmem:[%s386 + $0x4a] sm:$0xff] %vm324, %v298
  %394 = vst.msk [vmem:[%s386 + $0x52] sm:$0xff] %vm324, %v299
  %395 = vst.msk [vmem:[%s386 + $0x62] sm:$0xff] %vm324, %v300
  %396 = vst.msk [vmem:[%s386 + $0x6a] sm:$0xff] %vm324, %v301
  %397 = vst.msk [vmem:[%s386 + $0x7a] sm:$0xff] %vm324, %v302
  %398 = vst.msk [vmem:[%s386 + $0x82] sm:$0xff] %vm324, %v303
  %399 = vst.msk [vmem:[%s386 + $0x92] sm:$0xff] %vm324, %v304
  %400 = vst.msk [vmem:[%s386 + $0x9a] sm:$0xff] %vm324, %v305
  %401 = vst.msk [vmem:[%s386 + $0xaa] sm:$0xff] %vm324, %v306
  %402 = vst.msk [vmem:[%s386 + $0xb2] sm:$0xff] %vm324, %v307
  %403 = vst.msk [vmem:[%s386 + $0xc2] sm:$0xff] %vm324, %v308
  %404 = vst.msk [vmem:[%s386 + $0xca] sm:$0xff] %vm324, %v309
  %405 = vst.msk [vmem:[%s386 + $0xda] sm:$0xff] %vm324, %v310
  %406 = vst.msk [vmem:[%s386 + $0xe2] sm:$0xff] %vm324, %v311
  %407 = vst.msk [vmem:[%s386 + $0xf2] sm:$0xff] %vm324, %v312
  %408 = vst.msk [vmem:[%s386 + $0xfa] sm:$0xff] %vm324, %v313
  %409 = vst.msk [vmem:[%s386 + $0x10a] sm:$0xff] %vm324, %v314
  %410 = vst.msk [vmem:[%s386 + $0x112] sm:$0xff] %vm324, %v315
  %411 = vst.msk [vmem:[%s386 + $0x122] sm:$0xff] %vm324, %v316
  %412 = vst.msk [vmem:[%s386 + $0x12a] sm:$0xff] %vm324, %v317
  %413 = vst.msk [vmem:[%s386 + $0x13a] sm:$0xff] %vm324, %v318
  %414 = vst.msk [vmem:[%s386 + $0x142] sm:$0xff] %vm324, %v319
  %415 = vst.msk [vmem:[%s386 + $0x152] sm:$0xff] %vm324, %v320
  %416 = vst.msk [vmem:[%s386 + $0x15a] sm:$0xff] %vm324, %v321
  %417 = vst.msk [vmem:[%s386 + $0x16a] sm:$0xff] %vm324, %v322
  %418 = vst.msk [vmem:[%s386 + $0x172] sm:$0xff] %vm324, %v323
  %v419 = vld [vmem:[#allocation2] sm:$0xff]
  %v420 = vld [vmem:[#allocation2 + $0x8] sm:$0xff]
  %v421 = vld [vmem:[#allocation2 + $0x10] sm:$0xf]
  %v422 = vld [vmem:[#allocation2 + $0x18] sm:$0xff]
  %v423 = vld [vmem:[#allocation2 + $0x20] sm:$0xff]
  %v424 = vld [vmem:[#allocation2 + $0x28] sm:$0xf]
  %v425 = vld [vmem:[#allocation2 + $0x30] sm:$0xff]
  %v426 = vld [vmem:[#allocation2 + $0x38] sm:$0xff]
  %v427 = vld [vmem:[#allocation2 + $0x40] sm:$0xf]
  %v428 = vld [vmem:[#allocation2 + $0x48] sm:$0xff]
  %v429 = vld [vmem:[#allocation2 + $0x50] sm:$0xff]
  %v430 = vld [vmem:[#allocation2 + $0x58] sm:$0xf]
  %v431 = vld [vmem:[#allocation2 + $0x60] sm:$0xff]
  %v432 = vld [vmem:[#allocation2 + $0x68] sm:$0xff]
  %v433 = vld [vmem:[#allocation2 + $0x70] sm:$0xf]
  %v434 = vld [vmem:[#allocation2 + $0x78] sm:$0xff]
  %v435 = vld [vmem:[#allocation2 + $0x80] sm:$0xff]
  %v436 = vld [vmem:[#allocation2 + $0x88] sm:$0xf]
  %v437 = vld [vmem:[#allocation2 + $0x90] sm:$0xff]
  %v438 = vld [vmem:[#allocation2 + $0x98] sm:$0xff]
  %v439 = vld [vmem:[#allocation2 + $0xa0] sm:$0xf]
  %v440 = vld [vmem:[#allocation2 + $0xa8] sm:$0xff]
  %v441 = vld [vmem:[#allocation2 + $0xb0] sm:$0xff]
  %v442 = vld [vmem:[#allocation2 + $0xb8] sm:$0xf]
  %v443 = vld [vmem:[#allocation2 + $0xc0] sm:$0xff]
  %v444 = vld [vmem:[#allocation2 + $0xc8] sm:$0xff]
  %v445 = vld [vmem:[#allocation2 + $0xd0] sm:$0xf]
  %v446 = vld [vmem:[#allocation2 + $0xd8] sm:$0xff]
  %v447 = vld [vmem:[#allocation2 + $0xe0] sm:$0xff]
  %v448 = vld [vmem:[#allocation2 + $0xe8] sm:$0xf]
  %v449 = vld [vmem:[#allocation2 + $0xf0] sm:$0xff]
  %v450 = vld [vmem:[#allocation2 + $0xf8] sm:$0xff]
  %v451 = vld [vmem:[#allocation2 + $0x100] sm:$0xf]
  %v452 = vld [vmem:[#allocation2 + $0x108] sm:$0xff]
  %v453 = vld [vmem:[#allocation2 + $0x110] sm:$0xff]
  %v454 = vld [vmem:[#allocation2 + $0x118] sm:$0xf]
  %v455 = vld [vmem:[#allocation2 + $0x120] sm:$0xff]
  %v456 = vld [vmem:[#allocation2 + $0x128] sm:$0xff]
  %v457 = vld [vmem:[#allocation2 + $0x130] sm:$0xf]
  %v458 = vld [vmem:[#allocation2 + $0x138] sm:$0xff]
  %v459 = vld [vmem:[#allocation2 + $0x140] sm:$0xff]
  %v460 = vld [vmem:[#allocation2 + $0x148] sm:$0xf]
  %v461 = vld [vmem:[#allocation2 + $0x150] sm:$0xff]
  %v462 = vld [vmem:[#allocation2 + $0x158] sm:$0xff]
  %v463 = vld [vmem:[#allocation2 + $0x160] sm:$0xf]
  %v464 = vld [vmem:[#allocation2 + $0x168] sm:$0xff]
  %v465 = vld [vmem:[#allocation2 + $0x170] sm:$0xff]
  %v466 = vld [vmem:[#allocation2 + $0x178] sm:$0xf]
  %v467 = vld [vmem:[#allocation2 + $0x180] sm:$0xff]
  %v468 = vld [vmem:[#allocation2 + $0x188] sm:$0xff]
  %v469 = vld [vmem:[#allocation2 + $0x190] sm:$0xf]
  %v470 = vld [vmem:[#allocation2 + $0x198] sm:$0xff]
  %v471 = vld [vmem:[#allocation2 + $0x1a0] sm:$0xff]
  %v472 = vld [vmem:[#allocation2 + $0x1a8] sm:$0xf]
  %v473 = vld [vmem:[#allocation2 + $0x1b0] sm:$0xff]
  %v474 = vld [vmem:[#allocation2 + $0x1b8] sm:$0xff]
  %v475 = vld [vmem:[#allocation2 + $0x1c0] sm:$0xf]
  %v476 = vld [vmem:[#allocation2 + $0x1c8] sm:$0xff]
  %v477 = vld [vmem:[#allocation2 + $0x1d0] sm:$0xff]
  %v478 = vld [vmem:[#allocation2 + $0x1d8] sm:$0xf]
  %vm527 = vcmask 1046528
  %v528 = vrot.slane %v419, 1
  %v529 = vrot.slane %v420, 1
  %v530 = vsel %vm527, %v528, %v529
  %v531 = vrot.slane %v421, 1
  %v532 = vsel %vm527, %v529, %v531
  %v533 = vrot.slane %v422, 1
  %v534 = vrot.slane %v423, 1
  %v535 = vsel %vm527, %v533, %v534
  %v536 = vrot.slane %v424, 1
  %v537 = vsel %vm527, %v534, %v536
  %v538 = vrot.slane %v425, 1
  %v539 = vrot.slane %v426, 1
  %v540 = vsel %vm527, %v538, %v539
  %v541 = vrot.slane %v427, 1
  %v542 = vsel %vm527, %v539, %v541
  %v543 = vrot.slane %v428, 1
  %v544 = vrot.slane %v429, 1
  %v545 = vsel %vm527, %v543, %v544
  %v546 = vrot.slane %v430, 1
  %v547 = vsel %vm527, %v544, %v546
  %v548 = vrot.slane %v431, 1
  %v549 = vrot.slane %v432, 1
  %v550 = vsel %vm527, %v548, %v549
  %v551 = vrot.slane %v433, 1
  %v552 = vsel %vm527, %v549, %v551
  %v553 = vrot.slane %v434, 1
  %v554 = vrot.slane %v435, 1
  %v555 = vsel %vm527, %v553, %v554
  %v556 = vrot.slane %v436, 1
  %v557 = vsel %vm527, %v554, %v556
  %v558 = vrot.slane %v437, 1
  %v559 = vrot.slane %v438, 1
  %v560 = vsel %vm527, %v558, %v559
  %v561 = vrot.slane %v439, 1
  %v562 = vsel %vm527, %v559, %v561
  %v563 = vrot.slane %v440, 1
  %v564 = vrot.slane %v441, 1
  %v565 = vsel %vm527, %v563, %v564
  %v566 = vrot.slane %v442, 1
  %v567 = vsel %vm527, %v564, %v566
  %v568 = vrot.slane %v443, 1
  %v569 = vrot.slane %v444, 1
  %v570 = vsel %vm527, %v568, %v569
  %v571 = vrot.slane %v445, 1
  %v572 = vsel %vm527, %v569, %v571
  %v573 = vrot.slane %v446, 1
  %v574 = vrot.slane %v447, 1
  %v575 = vsel %vm527, %v573, %v574
  %v576 = vrot.slane %v448, 1
  %v577 = vsel %vm527, %v574, %v576
  %v578 = vrot.slane %v449, 1
  %v579 = vrot.slane %v450, 1
  %v580 = vsel %vm527, %v578, %v579
  %v581 = vrot.slane %v451, 1
  %v582 = vsel %vm527, %v579, %v581
  %v583 = vrot.slane %v452, 1
  %v584 = vrot.slane %v453, 1
  %v585 = vsel %vm527, %v583, %v584
  %v586 = vrot.slane %v454, 1
  %v587 = vsel %vm527, %v584, %v586
  %v588 = vrot.slane %v455, 1
  %v589 = vrot.slane %v456, 1
  %v590 = vsel %vm527, %v588, %v589
  %v591 = vrot.slane %v457, 1
  %v592 = vsel %vm527, %v589, %v591
  %v593 = vrot.slane %v458, 1
  %v594 = vrot.slane %v459, 1
  %v595 = vsel %vm527, %v593, %v594
  %v596 = vrot.slane %v460, 1
  %v597 = vsel %vm527, %v594, %v596
  %v598 = vrot.slane %v461, 1
  %v599 = vrot.slane %v462, 1
  %v600 = vsel %vm527, %v598, %v599
  %v601 = vrot.slane %v463, 1
  %v602 = vsel %vm527, %v599, %v601
  %v603 = vrot.slane %v464, 1
  %v604 = vrot.slane %v465, 1
  %v605 = vsel %vm527, %v603, %v604
  %v606 = vrot.slane %v466, 1
  %v607 = vsel %vm527, %v604, %v606
  %vm608 = vcmask 1045504
  %v609 = vrot.slane %v419, 2
  %v610 = vrot.slane %v420, 2
  %v611 = vsel %vm608, %v609, %v610
  %v612 = vrot.slane %v421, 2
  %v613 = vsel %vm608, %v610, %v612
  %v614 = vrot.slane %v422, 2
  %v615 = vrot.slane %v423, 2
  %v616 = vsel %vm608, %v614, %v615
  %v617 = vrot.slane %v424, 2
  %v618 = vsel %vm608, %v615, %v617
  %v619 = vrot.slane %v425, 2
  %v620 = vrot.slane %v426, 2
  %v621 = vsel %vm608, %v619, %v620
  %v622 = vrot.slane %v427, 2
  %v623 = vsel %vm608, %v620, %v622
  %v624 = vrot.slane %v428, 2
  %v625 = vrot.slane %v429, 2
  %v626 = vsel %vm608, %v624, %v625
  %v627 = vrot.slane %v430, 2
  %v628 = vsel %vm608, %v625, %v627
  %v629 = vrot.slane %v431, 2
  %v630 = vrot.slane %v432, 2
  %v631 = vsel %vm608, %v629, %v630
  %v632 = vrot.slane %v433, 2
  %v633 = vsel %vm608, %v630, %v632
  %v634 = vrot.slane %v434, 2
  %v635 = vrot.slane %v435, 2
  %v636 = vsel %vm608, %v634, %v635
  %v637 = vrot.slane %v436, 2
  %v638 = vsel %vm608, %v635, %v637
  %v639 = vrot.slane %v437, 2
  %v640 = vrot.slane %v438, 2
  %v641 = vsel %vm608, %v639, %v640
  %v642 = vrot.slane %v439, 2
  %v643 = vsel %vm608, %v640, %v642
  %v644 = vrot.slane %v440, 2
  %v645 = vrot.slane %v441, 2
  %v646 = vsel %vm608, %v644, %v645
  %v647 = vrot.slane %v442, 2
  %v648 = vsel %vm608, %v645, %v647
  %v649 = vrot.slane %v443, 2
  %v650 = vrot.slane %v444, 2
  %v651 = vsel %vm608, %v649, %v650
  %v652 = vrot.slane %v445, 2
  %v653 = vsel %vm608, %v650, %v652
  %v654 = vrot.slane %v446, 2
  %v655 = vrot.slane %v447, 2
  %v656 = vsel %vm608, %v654, %v655
  %v657 = vrot.slane %v448, 2
  %v658 = vsel %vm608, %v655, %v657
  %v659 = vrot.slane %v449, 2
  %v660 = vrot.slane %v450, 2
  %v661 = vsel %vm608, %v659, %v660
  %v662 = vrot.slane %v451, 2
  %v663 = vsel %vm608, %v660, %v662
  %v664 = vrot.slane %v452, 2
  %v665 = vrot.slane %v453, 2
  %v666 = vsel %vm608, %v664, %v665
  %v667 = vrot.slane %v454, 2
  %v668 = vsel %vm608, %v665, %v667
  %v669 = vrot.slane %v455, 2
  %v670 = vrot.slane %v456, 2
  %v671 = vsel %vm608, %v669, %v670
  %v672 = vrot.slane %v457, 2
  %v673 = vsel %vm608, %v670, %v672
  %v674 = vrot.slane %v458, 2
  %v675 = vrot.slane %v459, 2
  %v676 = vsel %vm608, %v674, %v675
  %v677 = vrot.slane %v460, 2
  %v678 = vsel %vm608, %v675, %v677
  %v679 = vrot.slane %v461, 2
  %v680 = vrot.slane %v462, 2
  %v681 = vsel %vm608, %v679, %v680
  %v682 = vrot.slane %v463, 2
  %v683 = vsel %vm608, %v680, %v682
  %v684 = vrot.slane %v464, 2
  %v685 = vrot.slane %v465, 2
  %v686 = vsel %vm608, %v684, %v685
  %v687 = vrot.slane %v466, 2
  %v688 = vsel %vm608, %v685, %v687
  %vm689 = vcmask 1044480
  %v690 = vrot.slane %v419, 3
  %v691 = vrot.slane %v420, 3
  %v692 = vsel %vm689, %v690, %v691
  %v693 = vrot.slane %v421, 3
  %v694 = vsel %vm689, %v691, %v693
  %v695 = vrot.slane %v422, 3
  %v696 = vrot.slane %v423, 3
  %v697 = vsel %vm689, %v695, %v696
  %v698 = vrot.slane %v424, 3
  %v699 = vsel %vm689, %v696, %v698
  %v700 = vrot.slane %v425, 3
  %v701 = vrot.slane %v426, 3
  %v702 = vsel %vm689, %v700, %v701
  %v703 = vrot.slane %v427, 3
  %v704 = vsel %vm689, %v701, %v703
  %v705 = vrot.slane %v428, 3
  %v706 = vrot.slane %v429, 3
  %v707 = vsel %vm689, %v705, %v706
  %v708 = vrot.slane %v430, 3
  %v709 = vsel %vm689, %v706, %v708
  %v710 = vrot.slane %v431, 3
  %v711 = vrot.slane %v432, 3
  %v712 = vsel %vm689, %v710, %v711
  %v713 = vrot.slane %v433, 3
  %v714 = vsel %vm689, %v711, %v713
  %v715 = vrot.slane %v434, 3
  %v716 = vrot.slane %v435, 3
  %v717 = vsel %vm689, %v715, %v716
  %v718 = vrot.slane %v436, 3
  %v719 = vsel %vm689, %v716, %v718
  %v720 = vrot.slane %v437, 3
  %v721 = vrot.slane %v438, 3
  %v722 = vsel %vm689, %v720, %v721
  %v723 = vrot.slane %v439, 3
  %v724 = vsel %vm689, %v721, %v723
  %v725 = vrot.slane %v440, 3
  %v726 = vrot.slane %v441, 3
  %v727 = vsel %vm689, %v725, %v726
  %v728 = vrot.slane %v442, 3
  %v729 = vsel %vm689, %v726, %v728
  %v730 = vrot.slane %v443, 3
  %v731 = vrot.slane %v444, 3
  %v732 = vsel %vm689, %v730, %v731
  %v733 = vrot.slane %v445, 3
  %v734 = vsel %vm689, %v731, %v733
  %v735 = vrot.slane %v446, 3
  %v736 = vrot.slane %v447, 3
  %v737 = vsel %vm689, %v735, %v736
  %v738 = vrot.slane %v448, 3
  %v739 = vsel %vm689, %v736, %v738
  %v740 = vrot.slane %v449, 3
  %v741 = vrot.slane %v450, 3
  %v742 = vsel %vm689, %v740, %v741
  %v743 = vrot.slane %v451, 3
  %v744 = vsel %vm689, %v741, %v743
  %v745 = vrot.slane %v452, 3
  %v746 = vrot.slane %v453, 3
  %v747 = vsel %vm689, %v745, %v746
  %v748 = vrot.slane %v454, 3
  %v749 = vsel %vm689, %v746, %v748
  %v750 = vrot.slane %v455, 3
  %v751 = vrot.slane %v456, 3
  %v752 = vsel %vm689, %v750, %v751
  %v753 = vrot.slane %v457, 3
  %v754 = vsel %vm689, %v751, %v753
  %v755 = vrot.slane %v458, 3
  %v756 = vrot.slane %v459, 3
  %v757 = vsel %vm689, %v755, %v756
  %v758 = vrot.slane %v460, 3
  %v759 = vsel %vm689, %v756, %v758
  %v760 = vrot.slane %v461, 3
  %v761 = vrot.slane %v462, 3
  %v762 = vsel %vm689, %v760, %v761
  %v763 = vrot.slane %v463, 3
  %v764 = vsel %vm689, %v761, %v763
  %v765 = vrot.slane %v464, 3
  %v766 = vrot.slane %v465, 3
  %v767 = vsel %vm689, %v765, %v766
  %v768 = vrot.slane %v466, 3
  %v769 = vsel %vm689, %v766, %v768
  %vm770 = vcmask 1043456
  %v771 = vrot.slane %v419, 4
  %v772 = vrot.slane %v420, 4
  %v773 = vsel %vm770, %v771, %v772
  %v774 = vrot.slane %v421, 4
  %v775 = vsel %vm770, %v772, %v774
  %v776 = vrot.slane %v422, 4
  %v777 = vrot.slane %v423, 4
  %v778 = vsel %vm770, %v776, %v777
  %v779 = vrot.slane %v424, 4
  %v780 = vsel %vm770, %v777, %v779
  %v781 = vrot.slane %v425, 4
  %v782 = vrot.slane %v426, 4
  %v783 = vsel %vm770, %v781, %v782
  %v784 = vrot.slane %v427, 4
  %v785 = vsel %vm770, %v782, %v784
  %v786 = vrot.slane %v428, 4
  %v787 = vrot.slane %v429, 4
  %v788 = vsel %vm770, %v786, %v787
  %v789 = vrot.slane %v430, 4
  %v790 = vsel %vm770, %v787, %v789
  %v791 = vrot.slane %v431, 4
  %v792 = vrot.slane %v432, 4
  %v793 = vsel %vm770, %v791, %v792
  %v794 = vrot.slane %v433, 4
  %v795 = vsel %vm770, %v792, %v794
  %v796 = vrot.slane %v434, 4
  %v797 = vrot.slane %v435, 4
  %v798 = vsel %vm770, %v796, %v797
  %v799 = vrot.slane %v436, 4
  %v800 = vsel %vm770, %v797, %v799
  %v801 = vrot.slane %v437, 4
  %v802 = vrot.slane %v438, 4
  %v803 = vsel %vm770, %v801, %v802
  %v804 = vrot.slane %v439, 4
  %v805 = vsel %vm770, %v802, %v804
  %v806 = vrot.slane %v440, 4
  %v807 = vrot.slane %v441, 4
  %v808 = vsel %vm770, %v806, %v807
  %v809 = vrot.slane %v442, 4
  %v810 = vsel %vm770, %v807, %v809
  %v811 = vrot.slane %v443, 4
  %v812 = vrot.slane %v444, 4
  %v813 = vsel %vm770, %v811, %v812
  %v814 = vrot.slane %v445, 4
  %v815 = vsel %vm770, %v812, %v814
  %v816 = vrot.slane %v446, 4
  %v817 = vrot.slane %v447, 4
  %v818 = vsel %vm770, %v816, %v817
  %v819 = vrot.slane %v448, 4
  %v820 = vsel %vm770, %v817, %v819
  %v821 = vrot.slane %v449, 4
  %v822 = vrot.slane %v450, 4
  %v823 = vsel %vm770, %v821, %v822
  %v824 = vrot.slane %v451, 4
  %v825 = vsel %vm770, %v822, %v824
  %v826 = vrot.slane %v452, 4
  %v827 = vrot.slane %v453, 4
  %v828 = vsel %vm770, %v826, %v827
  %v829 = vrot.slane %v454, 4
  %v830 = vsel %vm770, %v827, %v829
  %v831 = vrot.slane %v455, 4
  %v832 = vrot.slane %v456, 4
  %v833 = vsel %vm770, %v831, %v832
  %v834 = vrot.slane %v457, 4
  %v835 = vsel %vm770, %v832, %v834
  %v836 = vrot.slane %v458, 4
  %v837 = vrot.slane %v459, 4
  %v838 = vsel %vm770, %v836, %v837
  %v839 = vrot.slane %v460, 4
  %v840 = vsel %vm770, %v837, %v839
  %v841 = vrot.slane %v461, 4
  %v842 = vrot.slane %v462, 4
  %v843 = vsel %vm770, %v841, %v842
  %v844 = vrot.slane %v463, 4
  %v845 = vsel %vm770, %v842, %v844
  %v846 = vrot.slane %v464, 4
  %v847 = vrot.slane %v465, 4
  %v848 = vsel %vm770, %v846, %v847
  %v849 = vrot.slane %v466, 4
  %v850 = vsel %vm770, %v847, %v849
  %v854 = vrot.slane %v467, 1
  %v855 = vrot.slane %v468, 1
  %v856 = vsel %vm527, %v854, %v855
  %v857 = vrot.slane %v469, 1
  %v858 = vsel %vm527, %v855, %v857
  %v859 = vrot.slane %v467, 2
  %v860 = vrot.slane %v468, 2
  %v861 = vsel %vm608, %v859, %v860
  %v862 = vrot.slane %v469, 2
  %v863 = vsel %vm608, %v860, %v862
  %v864 = vrot.slane %v467, 3
  %v865 = vrot.slane %v468, 3
  %v866 = vsel %vm689, %v864, %v865
  %v867 = vrot.slane %v469, 3
  %v868 = vsel %vm689, %v865, %v867
  %v869 = vrot.slane %v467, 4
  %v870 = vrot.slane %v468, 4
  %v871 = vsel %vm770, %v869, %v870
  %v872 = vrot.slane %v469, 4
  %v873 = vsel %vm770, %v870, %v872
  %v877 = vrot.slane %v470, 1
  %v878 = vrot.slane %v471, 1
  %v879 = vsel %vm527, %v877, %v878
  %v880 = vrot.slane %v472, 1
  %v881 = vsel %vm527, %v878, %v880
  %v882 = vrot.slane %v470, 2
  %v883 = vrot.slane %v471, 2
  %v884 = vsel %vm608, %v882, %v883
  %v885 = vrot.slane %v472, 2
  %v886 = vsel %vm608, %v883, %v885
  %v887 = vrot.slane %v470, 3
  %v888 = vrot.slane %v471, 3
  %v889 = vsel %vm689, %v887, %v888
  %v890 = vrot.slane %v472, 3
  %v891 = vsel %vm689, %v888, %v890
  %v892 = vrot.slane %v470, 4
  %v893 = vrot.slane %v471, 4
  %v894 = vsel %vm770, %v892, %v893
  %v895 = vrot.slane %v472, 4
  %v896 = vsel %vm770, %v893, %v895
  %v900 = vrot.slane %v473, 1
  %v901 = vrot.slane %v474, 1
  %v902 = vsel %vm527, %v900, %v901
  %v903 = vrot.slane %v475, 1
  %v904 = vsel %vm527, %v901, %v903
  %v937 = vrot.slane %v473, 2
  %v938 = vrot.slane %v474, 2
  %v939 = vsel %vm608, %v937, %v938
  %v940 = vrot.slane %v475, 2
  %v941 = vsel %vm608, %v938, %v940
  %v942 = vrot.slane %v473, 3
  %v943 = vrot.slane %v474, 3
  %v944 = vsel %vm689, %v942, %v943
  %v945 = vrot.slane %v475, 3
  %v946 = vsel %vm689, %v943, %v945
  %v947 = vrot.slane %v473, 4
  %v948 = vrot.slane %v474, 4
  %v949 = vsel %vm770, %v947, %v948
  %v950 = vrot.slane %v475, 4
  %v951 = vsel %vm770, %v948, %v950
  %v955 = vrot.slane %v476, 1
  %v956 = vrot.slane %v477, 1
  %v957 = vsel %vm527, %v955, %v956
  %v958 = vrot.slane %v478, 1
  %v959 = vsel %vm527, %v956, %v958
  %v960 = vrot.slane %v476, 2
  %v961 = vrot.slane %v477, 2
  %v962 = vsel %vm608, %v960, %v961
  %v963 = vrot.slane %v478, 2
  %v964 = vsel %vm608, %v961, %v963
  %v965 = vrot.slane %v476, 3
  %v966 = vrot.slane %v477, 3
  %v967 = vsel %vm689, %v965, %v966
  %v968 = vrot.slane %v478, 3
  %v969 = vsel %vm689, %v966, %v968
  %v970 = vrot.slane %v476, 4
  %v971 = vrot.slane %v477, 4
  %v972 = vsel %vm770, %v970, %v971
  %v973 = vrot.slane %v478, 4
  %v974 = vsel %vm770, %v971, %v973
  %975 = vrot.lane.b32.xlu0 %v530, 5
  %v976 = vpop.permute.xlu0 %975
  %977 = vrot.lane.b32.xlu0 %v532, 5
  %v978 = vpop.permute.xlu0 %977
  %979 = vrot.lane.b32.xlu0 %v535, 5
  %v980 = vpop.permute.xlu0 %979
  %981 = vrot.lane.b32.xlu0 %v537, 5
  %v982 = vpop.permute.xlu0 %981
  %983 = vrot.lane.b32.xlu0 %v540, 5
  %v984 = vpop.permute.xlu0 %983
  %985 = vrot.lane.b32.xlu0 %v542, 5
  %v986 = vpop.permute.xlu0 %985
  %987 = vrot.lane.b32.xlu0 %v545, 5
  %v988 = vpop.permute.xlu0 %987
  %989 = vrot.lane.b32.xlu0 %v547, 5
  %v990 = vpop.permute.xlu0 %989
  %991 = vrot.lane.b32.xlu0 %v550, 5
  %v992 = vpop.permute.xlu0 %991
  %993 = vrot.lane.b32.xlu0 %v552, 5
  %v994 = vpop.permute.xlu0 %993
  %995 = vrot.lane.b32.xlu0 %v555, 5
  %v996 = vpop.permute.xlu0 %995
  %997 = vrot.lane.b32.xlu0 %v557, 5
  %v998 = vpop.permute.xlu0 %997
  %999 = vrot.lane.b32.xlu0 %v560, 5
  %v1000 = vpop.permute.xlu0 %999
  %1001 = vrot.lane.b32.xlu0 %v562, 5
  %v1002 = vpop.permute.xlu0 %1001
  %1003 = vrot.lane.b32.xlu0 %v565, 5
  %v1004 = vpop.permute.xlu0 %1003
  %1005 = vrot.lane.b32.xlu0 %v567, 5
  %v1006 = vpop.permute.xlu0 %1005
  %1007 = vrot.lane.b32.xlu0 %v570, 5
  %v1008 = vpop.permute.xlu0 %1007
  %1009 = vrot.lane.b32.xlu0 %v572, 5
  %v1010 = vpop.permute.xlu0 %1009
  %1011 = vrot.lane.b32.xlu0 %v575, 5
  %v1012 = vpop.permute.xlu0 %1011
  %1013 = vrot.lane.b32.xlu0 %v577, 5
  %v1014 = vpop.permute.xlu0 %1013
  %1015 = vrot.lane.b32.xlu0 %v580, 5
  %v1016 = vpop.permute.xlu0 %1015
  %1017 = vrot.lane.b32.xlu0 %v582, 5
  %v1018 = vpop.permute.xlu0 %1017
  %1019 = vrot.lane.b32.xlu0 %v585, 5
  %v1020 = vpop.permute.xlu0 %1019
  %1021 = vrot.lane.b32.xlu0 %v587, 5
  %v1022 = vpop.permute.xlu0 %1021
  %1023 = vrot.lane.b32.xlu0 %v590, 5
  %v1024 = vpop.permute.xlu0 %1023
  %1025 = vrot.lane.b32.xlu0 %v592, 5
  %v1026 = vpop.permute.xlu0 %1025
  %1027 = vrot.lane.b32.xlu0 %v595, 5
  %v1028 = vpop.permute.xlu0 %1027
  %1029 = vrot.lane.b32.xlu0 %v597, 5
  %v1030 = vpop.permute.xlu0 %1029
  %1031 = vrot.lane.b32.xlu0 %v600, 5
  %v1032 = vpop.permute.xlu0 %1031
  %1033 = vrot.lane.b32.xlu0 %v602, 5
  %v1034 = vpop.permute.xlu0 %1033
  %1035 = vrot.lane.b32.xlu0 %v605, 5
  %v1036 = vpop.permute.xlu0 %1035
  %1037 = vrot.lane.b32.xlu0 %v607, 5
  %v1038 = vpop.permute.xlu0 %1037
  %1071 = vrot.lane.b32.xlu0 %v611, 10
  %v1072 = vpop.permute.xlu0 %1071
  %1073 = vrot.lane.b32.xlu0 %v613, 10
  %v1074 = vpop.permute.xlu0 %1073
  %1075 = vrot.lane.b32.xlu0 %v616, 10
  %v1076 = vpop.permute.xlu0 %1075
  %1077 = vrot.lane.b32.xlu0 %v618, 10
  %v1078 = vpop.permute.xlu0 %1077
  %1079 = vrot.lane.b32.xlu0 %v621, 10
  %v1080 = vpop.permute.xlu0 %1079
  %1081 = vrot.lane.b32.xlu0 %v623, 10
  %v1082 = vpop.permute.xlu0 %1081
  %1083 = vrot.lane.b32.xlu0 %v626, 10
  %v1084 = vpop.permute.xlu0 %1083
  %1085 = vrot.lane.b32.xlu0 %v628, 10
  %v1086 = vpop.permute.xlu0 %1085
  %1087 = vrot.lane.b32.xlu0 %v631, 10
  %v1088 = vpop.permute.xlu0 %1087
  %1089 = vrot.lane.b32.xlu0 %v633, 10
  %v1090 = vpop.permute.xlu0 %1089
  %1091 = vrot.lane.b32.xlu0 %v636, 10
  %v1092 = vpop.permute.xlu0 %1091
  %1093 = vrot.lane.b32.xlu0 %v638, 10
  %v1094 = vpop.permute.xlu0 %1093
  %1095 = vrot.lane.b32.xlu0 %v641, 10
  %v1096 = vpop.permute.xlu0 %1095
  %1097 = vrot.lane.b32.xlu0 %v643, 10
  %v1098 = vpop.permute.xlu0 %1097
  %1099 = vrot.lane.b32.xlu0 %v646, 10
  %v1100 = vpop.permute.xlu0 %1099
  %1101 = vrot.lane.b32.xlu0 %v648, 10
  %v1102 = vpop.permute.xlu0 %1101
  %1103 = vrot.lane.b32.xlu0 %v651, 10
  %v1104 = vpop.permute.xlu0 %1103
  %1105 = vrot.lane.b32.xlu0 %v653, 10
  %v1106 = vpop.permute.xlu0 %1105
  %1107 = vrot.lane.b32.xlu0 %v656, 10
  %v1108 = vpop.permute.xlu0 %1107
  %1109 = vrot.lane.b32.xlu0 %v658, 10
  %v1110 = vpop.permute.xlu0 %1109
  %1111 = vrot.lane.b32.xlu0 %v661, 10
  %v1112 = vpop.permute.xlu0 %1111
  %1113 = vrot.lane.b32.xlu0 %v663, 10
  %v1114 = vpop.permute.xlu0 %1113
  %1115 = vrot.lane.b32.xlu0 %v666, 10
  %v1116 = vpop.permute.xlu0 %1115
  %1117 = vrot.lane.b32.xlu0 %v668, 10
  %v1118 = vpop.permute.xlu0 %1117
  %1119 = vrot.lane.b32.xlu0 %v671, 10
  %v1120 = vpop.permute.xlu0 %1119
  %1121 = vrot.lane.b32.xlu0 %v673, 10
  %v1122 = vpop.permute.xlu0 %1121
  %1123 = vrot.lane.b32.xlu0 %v676, 10
  %v1124 = vpop.permute.xlu0 %1123
  %1125 = vrot.lane.b32.xlu0 %v678, 10
  %v1126 = vpop.permute.xlu0 %1125
  %1127 = vrot.lane.b32.xlu0 %v681, 10
  %v1128 = vpop.permute.xlu0 %1127
  %1129 = vrot.lane.b32.xlu0 %v683, 10
  %v1130 = vpop.permute.xlu0 %1129
  %1131 = vrot.lane.b32.xlu0 %v686, 10
  %v1132 = vpop.permute.xlu0 %1131
  %1133 = vrot.lane.b32.xlu0 %v688, 10
  %v1134 = vpop.permute.xlu0 %1133
  %1167 = vrot.lane.b32.xlu0 %v692, 15
  %v1168 = vpop.permute.xlu0 %1167
  %1169 = vrot.lane.b32.xlu0 %v694, 15
  %v1170 = vpop.permute.xlu0 %1169
  %1171 = vrot.lane.b32.xlu0 %v697, 15
  %v1172 = vpop.permute.xlu0 %1171
  %1173 = vrot.lane.b32.xlu0 %v699, 15
  %v1174 = vpop.permute.xlu0 %1173
  %1175 = vrot.lane.b32.xlu0 %v702, 15
  %v1176 = vpop.permute.xlu0 %1175
  %1177 = vrot.lane.b32.xlu0 %v704, 15
  %v1178 = vpop.permute.xlu0 %1177
  %1179 = vrot.lane.b32.xlu0 %v707, 15
  %v1180 = vpop.permute.xlu0 %1179
  %1181 = vrot.lane.b32.xlu0 %v709, 15
  %v1182 = vpop.permute.xlu0 %1181
  %1183 = vrot.lane.b32.xlu0 %v712, 15
  %v1184 = vpop.permute.xlu0 %1183
  %1185 = vrot.lane.b32.xlu0 %v714, 15
  %v1186 = vpop.permute.xlu0 %1185
  %1187 = vrot.lane.b32.xlu0 %v717, 15
  %v1188 = vpop.permute.xlu0 %1187
  %1189 = vrot.lane.b32.xlu0 %v719, 15
  %v1190 = vpop.permute.xlu0 %1189
  %1191 = vrot.lane.b32.xlu0 %v722, 15
  %v1192 = vpop.permute.xlu0 %1191
  %1193 = vrot.lane.b32.xlu0 %v724, 15
  %v1194 = vpop.permute.xlu0 %1193
  %1195 = vrot.lane.b32.xlu0 %v727, 15
  %v1196 = vpop.permute.xlu0 %1195
  %1197 = vrot.lane.b32.xlu0 %v729, 15
  %v1198 = vpop.permute.xlu0 %1197
  %1199 = vrot.lane.b32.xlu0 %v732, 15
  %v1200 = vpop.permute.xlu0 %1199
  %1201 = vrot.lane.b32.xlu0 %v734, 15
  %v1202 = vpop.permute.xlu0 %1201
  %1203 = vrot.lane.b32.xlu0 %v737, 15
  %v1204 = vpop.permute.xlu0 %1203
  %1205 = vrot.lane.b32.xlu0 %v739, 15
  %v1206 = vpop.permute.xlu0 %1205
  %1207 = vrot.lane.b32.xlu0 %v742, 15
  %v1208 = vpop.permute.xlu0 %1207
  %1209 = vrot.lane.b32.xlu0 %v744, 15
  %v1210 = vpop.permute.xlu0 %1209
  %1211 = vrot.lane.b32.xlu0 %v747, 15
  %v1212 = vpop.permute.xlu0 %1211
  %1213 = vrot.lane.b32.xlu0 %v749, 15
  %v1214 = vpop.permute.xlu0 %1213
  %1215 = vrot.lane.b32.xlu0 %v752, 15
  %v1216 = vpop.permute.xlu0 %1215
  %1217 = vrot.lane.b32.xlu0 %v754, 15
  %v1218 = vpop.permute.xlu0 %1217
  %1219 = vrot.lane.b32.xlu0 %v757, 15
  %v1220 = vpop.permute.xlu0 %1219
  %1221 = vrot.lane.b32.xlu0 %v759, 15
  %v1222 = vpop.permute.xlu0 %1221
  %1223 = vrot.lane.b32.xlu0 %v762, 15
  %v1224 = vpop.permute.xlu0 %1223
  %1225 = vrot.lane.b32.xlu0 %v764, 15
  %v1226 = vpop.permute.xlu0 %1225
  %1227 = vrot.lane.b32.xlu0 %v767, 15
  %v1228 = vpop.permute.xlu0 %1227
  %1229 = vrot.lane.b32.xlu0 %v769, 15
  %v1230 = vpop.permute.xlu0 %1229
  %1263 = vrot.lane.b32.xlu0 %v773, 20
  %v1264 = vpop.permute.xlu0 %1263
  %1265 = vrot.lane.b32.xlu0 %v775, 20
  %v1266 = vpop.permute.xlu0 %1265
  %1267 = vrot.lane.b32.xlu0 %v778, 20
  %v1268 = vpop.permute.xlu0 %1267
  %1269 = vrot.lane.b32.xlu0 %v780, 20
  %v1270 = vpop.permute.xlu0 %1269
  %1271 = vrot.lane.b32.xlu0 %v783, 20
  %v1272 = vpop.permute.xlu0 %1271
  %1273 = vrot.lane.b32.xlu0 %v785, 20
  %v1274 = vpop.permute.xlu0 %1273
  %1275 = vrot.lane.b32.xlu0 %v788, 20
  %v1276 = vpop.permute.xlu0 %1275
  %1277 = vrot.lane.b32.xlu0 %v790, 20
  %v1278 = vpop.permute.xlu0 %1277
  %1279 = vrot.lane.b32.xlu0 %v793, 20
  %v1280 = vpop.permute.xlu0 %1279
  %1281 = vrot.lane.b32.xlu0 %v795, 20
  %v1282 = vpop.permute.xlu0 %1281
  %1283 = vrot.lane.b32.xlu0 %v798, 20
  %v1284 = vpop.permute.xlu0 %1283
  %1285 = vrot.lane.b32.xlu0 %v800, 20
  %v1286 = vpop.permute.xlu0 %1285
  %1287 = vrot.lane.b32.xlu0 %v803, 20
  %v1288 = vpop.permute.xlu0 %1287
  %1289 = vrot.lane.b32.xlu0 %v805, 20
  %v1290 = vpop.permute.xlu0 %1289
  %1291 = vrot.lane.b32.xlu0 %v808, 20
  %v1292 = vpop.permute.xlu0 %1291
  %1293 = vrot.lane.b32.xlu0 %v810, 20
  %v1294 = vpop.permute.xlu0 %1293
  %1295 = vrot.lane.b32.xlu0 %v813, 20
  %v1296 = vpop.permute.xlu0 %1295
  %1297 = vrot.lane.b32.xlu0 %v815, 20
  %v1298 = vpop.permute.xlu0 %1297
  %1299 = vrot.lane.b32.xlu0 %v818, 20
  %v1300 = vpop.permute.xlu0 %1299
  %1301 = vrot.lane.b32.xlu0 %v820, 20
  %v1302 = vpop.permute.xlu0 %1301
  %1303 = vrot.lane.b32.xlu0 %v823, 20
  %v1304 = vpop.permute.xlu0 %1303
  %1305 = vrot.lane.b32.xlu0 %v825, 20
  %v1306 = vpop.permute.xlu0 %1305
  %1307 = vrot.lane.b32.xlu0 %v828, 20
  %v1308 = vpop.permute.xlu0 %1307
  %1309 = vrot.lane.b32.xlu0 %v830, 20
  %v1310 = vpop.permute.xlu0 %1309
  %1311 = vrot.lane.b32.xlu0 %v833, 20
  %v1312 = vpop.permute.xlu0 %1311
  %1313 = vrot.lane.b32.xlu0 %v835, 20
  %v1314 = vpop.permute.xlu0 %1313
  %1315 = vrot.lane.b32.xlu0 %v838, 20
  %v1316 = vpop.permute.xlu0 %1315
  %1317 = vrot.lane.b32.xlu0 %v840, 20
  %v1318 = vpop.permute.xlu0 %1317
  %1319 = vrot.lane.b32.xlu0 %v843, 20
  %v1320 = vpop.permute.xlu0 %1319
  %1321 = vrot.lane.b32.xlu0 %v845, 20
  %v1322 = vpop.permute.xlu0 %1321
  %1323 = vrot.lane.b32.xlu0 %v848, 20
  %v1324 = vpop.permute.xlu0 %1323
  %1325 = vrot.lane.b32.xlu0 %v850, 20
  %v1326 = vpop.permute.xlu0 %1325
  %1359 = vrot.lane.b32.xlu0 %v422, 25
  %v1360 = vpop.permute.xlu0 %1359
  %1361 = vrot.lane.b32.xlu0 %v423, 25
  %v1362 = vpop.permute.xlu0 %1361
  %1363 = vrot.lane.b32.xlu0 %v425, 25
  %v1364 = vpop.permute.xlu0 %1363
  %1365 = vrot.lane.b32.xlu0 %v426, 25
  %v1366 = vpop.permute.xlu0 %1365
  %1367 = vrot.lane.b32.xlu0 %v428, 25
  %v1368 = vpop.permute.xlu0 %1367
  %1369 = vrot.lane.b32.xlu0 %v429, 25
  %v1370 = vpop.permute.xlu0 %1369
  %1371 = vrot.lane.b32.xlu0 %v431, 25
  %v1372 = vpop.permute.xlu0 %1371
  %1373 = vrot.lane.b32.xlu0 %v432, 25
  %v1374 = vpop.permute.xlu0 %1373
  %1375 = vrot.lane.b32.xlu0 %v434, 25
  %v1376 = vpop.permute.xlu0 %1375
  %1377 = vrot.lane.b32.xlu0 %v435, 25
  %v1378 = vpop.permute.xlu0 %1377
  %1379 = vrot.lane.b32.xlu0 %v437, 25
  %v1380 = vpop.permute.xlu0 %1379
  %1381 = vrot.lane.b32.xlu0 %v438, 25
  %v1382 = vpop.permute.xlu0 %1381
  %1383 = vrot.lane.b32.xlu0 %v440, 25
  %v1384 = vpop.permute.xlu0 %1383
  %1385 = vrot.lane.b32.xlu0 %v441, 25
  %v1386 = vpop.permute.xlu0 %1385
  %1387 = vrot.lane.b32.xlu0 %v443, 25
  %v1388 = vpop.permute.xlu0 %1387
  %1389 = vrot.lane.b32.xlu0 %v444, 25
  %v1390 = vpop.permute.xlu0 %1389
  %1391 = vrot.lane.b32.xlu0 %v446, 25
  %v1392 = vpop.permute.xlu0 %1391
  %1393 = vrot.lane.b32.xlu0 %v447, 25
  %v1394 = vpop.permute.xlu0 %1393
  %1395 = vrot.lane.b32.xlu0 %v449, 25
  %v1396 = vpop.permute.xlu0 %1395
  %1397 = vrot.lane.b32.xlu0 %v450, 25
  %v1398 = vpop.permute.xlu0 %1397
  %1399 = vrot.lane.b32.xlu0 %v452, 25
  %v1400 = vpop.permute.xlu0 %1399
  %1401 = vrot.lane.b32.xlu0 %v453, 25
  %v1402 = vpop.permute.xlu0 %1401
  %1403 = vrot.lane.b32.xlu0 %v455, 25
  %v1404 = vpop.permute.xlu0 %1403
  %1405 = vrot.lane.b32.xlu0 %v456, 25
  %v1406 = vpop.permute.xlu0 %1405
  %1407 = vrot.lane.b32.xlu0 %v458, 25
  %v1408 = vpop.permute.xlu0 %1407
  %1409 = vrot.lane.b32.xlu0 %v459, 25
  %v1410 = vpop.permute.xlu0 %1409
  %1411 = vrot.lane.b32.xlu0 %v461, 25
  %v1412 = vpop.permute.xlu0 %1411
  %1413 = vrot.lane.b32.xlu0 %v462, 25
  %v1414 = vpop.permute.xlu0 %1413
  %1415 = vrot.lane.b32.xlu0 %v464, 25
  %v1416 = vpop.permute.xlu0 %1415
  %1417 = vrot.lane.b32.xlu0 %v465, 25
  %v1418 = vpop.permute.xlu0 %1417
  %1419 = vrot.lane.b32.xlu0 %v467, 25
  %v1420 = vpop.permute.xlu0 %1419
  %1421 = vrot.lane.b32.xlu0 %v468, 25
  %v1422 = vpop.permute.xlu0 %1421
  %1455 = vrot.lane.b32.xlu0 %v535, 30
  %v1456 = vpop.permute.xlu0 %1455
  %1457 = vrot.lane.b32.xlu0 %v537, 30
  %v1458 = vpop.permute.xlu0 %1457
  %1459 = vrot.lane.b32.xlu0 %v540, 30
  %v1460 = vpop.permute.xlu0 %1459
  %1461 = vrot.lane.b32.xlu0 %v542, 30
  %v1462 = vpop.permute.xlu0 %1461
  %1463 = vrot.lane.b32.xlu0 %v545, 30
  %v1464 = vpop.permute.xlu0 %1463
  %1465 = vrot.lane.b32.xlu0 %v547, 30
  %v1466 = vpop.permute.xlu0 %1465
  %1467 = vrot.lane.b32.xlu0 %v550, 30
  %v1468 = vpop.permute.xlu0 %1467
  %1469 = vrot.lane.b32.xlu0 %v552, 30
  %v1470 = vpop.permute.xlu0 %1469
  %1471 = vrot.lane.b32.xlu0 %v555, 30
  %v1472 = vpop.permute.xlu0 %1471
  %1473 = vrot.lane.b32.xlu0 %v557, 30
  %v1474 = vpop.permute.xlu0 %1473
  %1475 = vrot.lane.b32.xlu0 %v560, 30
  %v1476 = vpop.permute.xlu0 %1475
  %1477 = vrot.lane.b32.xlu0 %v562, 30
  %v1478 = vpop.permute.xlu0 %1477
  %1479 = vrot.lane.b32.xlu0 %v565, 30
  %v1480 = vpop.permute.xlu0 %1479
  %1481 = vrot.lane.b32.xlu0 %v567, 30
  %v1482 = vpop.permute.xlu0 %1481
  %1483 = vrot.lane.b32.xlu0 %v570, 30
  %v1484 = vpop.permute.xlu0 %1483
  %1485 = vrot.lane.b32.xlu0 %v572, 30
  %v1486 = vpop.permute.xlu0 %1485
  %1487 = vrot.lane.b32.xlu0 %v575, 30
  %v1488 = vpop.permute.xlu0 %1487
  %1489 = vrot.lane.b32.xlu0 %v577, 30
  %v1490 = vpop.permute.xlu0 %1489
  %1491 = vrot.lane.b32.xlu0 %v580, 30
  %v1492 = vpop.permute.xlu0 %1491
  %1493 = vrot.lane.b32.xlu0 %v582, 30
  %v1494 = vpop.permute.xlu0 %1493
  %1495 = vrot.lane.b32.xlu0 %v585, 30
  %v1496 = vpop.permute.xlu0 %1495
  %1497 = vrot.lane.b32.xlu0 %v587, 30
  %v1498 = vpop.permute.xlu0 %1497
  %1499 = vrot.lane.b32.xlu0 %v590, 30
  %v1500 = vpop.permute.xlu0 %1499
  %1501 = vrot.lane.b32.xlu0 %v592, 30
  %v1502 = vpop.permute.xlu0 %1501
  %1503 = vrot.lane.b32.xlu0 %v595, 30
  %v1504 = vpop.permute.xlu0 %1503
  %1505 = vrot.lane.b32.xlu0 %v597, 30
  %v1506 = vpop.permute.xlu0 %1505
  %1507 = vrot.lane.b32.xlu0 %v600, 30
  %v1508 = vpop.permute.xlu0 %1507
  %1509 = vrot.lane.b32.xlu0 %v602, 30
  %v1510 = vpop.permute.xlu0 %1509
  %1511 = vrot.lane.b32.xlu0 %v605, 30
  %v1512 = vpop.permute.xlu0 %1511
  %1513 = vrot.lane.b32.xlu0 %v607, 30
  %v1514 = vpop.permute.xlu0 %1513
  %1515 = vrot.lane.b32.xlu0 %v856, 30
  %v1516 = vpop.permute.xlu0 %1515
  %1517 = vrot.lane.b32.xlu0 %v858, 30
  %v1518 = vpop.permute.xlu0 %1517
  %1551 = vrot.lane.b32.xlu0 %v616, 35
  %v1552 = vpop.permute.xlu0 %1551
  %1553 = vrot.lane.b32.xlu0 %v618, 35
  %v1554 = vpop.permute.xlu0 %1553
  %1555 = vrot.lane.b32.xlu0 %v621, 35
  %v1556 = vpop.permute.xlu0 %1555
  %1557 = vrot.lane.b32.xlu0 %v623, 35
  %v1558 = vpop.permute.xlu0 %1557
  %1559 = vrot.lane.b32.xlu0 %v626, 35
  %v1560 = vpop.permute.xlu0 %1559
  %1561 = vrot.lane.b32.xlu0 %v628, 35
  %v1562 = vpop.permute.xlu0 %1561
  %1563 = vrot.lane.b32.xlu0 %v631, 35
  %v1564 = vpop.permute.xlu0 %1563
  %1565 = vrot.lane.b32.xlu0 %v633, 35
  %v1566 = vpop.permute.xlu0 %1565
  %1567 = vrot.lane.b32.xlu0 %v636, 35
  %v1568 = vpop.permute.xlu0 %1567
  %1569 = vrot.lane.b32.xlu0 %v638, 35
  %v1570 = vpop.permute.xlu0 %1569
  %1571 = vrot.lane.b32.xlu0 %v641, 35
  %v1572 = vpop.permute.xlu0 %1571
  %1573 = vrot.lane.b32.xlu0 %v643, 35
  %v1574 = vpop.permute.xlu0 %1573
  %1575 = vrot.lane.b32.xlu0 %v646, 35
  %v1576 = vpop.permute.xlu0 %1575
  %1577 = vrot.lane.b32.xlu0 %v648, 35
  %v1578 = vpop.permute.xlu0 %1577
  %1579 = vrot.lane.b32.xlu0 %v651, 35
  %v1580 = vpop.permute.xlu0 %1579
  %1581 = vrot.lane.b32.xlu0 %v653, 35
  %v1582 = vpop.permute.xlu0 %1581
  %1583 = vrot.lane.b32.xlu0 %v656, 35
  %v1584 = vpop.permute.xlu0 %1583
  %1585 = vrot.lane.b32.xlu0 %v658, 35
  %v1586 = vpop.permute.xlu0 %1585
  %1587 = vrot.lane.b32.xlu0 %v661, 35
  %v1588 = vpop.permute.xlu0 %1587
  %1589 = vrot.lane.b32.xlu0 %v663, 35
  %v1590 = vpop.permute.xlu0 %1589
  %1591 = vrot.lane.b32.xlu0 %v666, 35
  %v1592 = vpop.permute.xlu0 %1591
  %1593 = vrot.lane.b32.xlu0 %v668, 35
  %v1594 = vpop.permute.xlu0 %1593
  %1595 = vrot.lane.b32.xlu0 %v671, 35
  %v1596 = vpop.permute.xlu0 %1595
  %1597 = vrot.lane.b32.xlu0 %v673, 35
  %v1598 = vpop.permute.xlu0 %1597
  %1599 = vrot.lane.b32.xlu0 %v676, 35
  %v1600 = vpop.permute.xlu0 %1599
  %1601 = vrot.lane.b32.xlu0 %v678, 35
  %v1602 = vpop.permute.xlu0 %1601
  %1603 = vrot.lane.b32.xlu0 %v681, 35
  %v1604 = vpop.permute.xlu0 %1603
  %1605 = vrot.lane.b32.xlu0 %v683, 35
  %v1606 = vpop.permute.xlu0 %1605
  %1607 = vrot.lane.b32.xlu0 %v686, 35
  %v1608 = vpop.permute.xlu0 %1607
  %1609 = vrot.lane.b32.xlu0 %v688, 35
  %v1610 = vpop.permute.xlu0 %1609
  %1611 = vrot.lane.b32.xlu0 %v861, 35
  %v1612 = vpop.permute.xlu0 %1611
  %1613 = vrot.lane.b32.xlu0 %v863, 35
  %v1614 = vpop.permute.xlu0 %1613
  %1647 = vrot.lane.b32.xlu0 %v697, 40
  %v1648 = vpop.permute.xlu0 %1647
  %1649 = vrot.lane.b32.xlu0 %v699, 40
  %v1650 = vpop.permute.xlu0 %1649
  %1651 = vrot.lane.b32.xlu0 %v702, 40
  %v1652 = vpop.permute.xlu0 %1651
  %1653 = vrot.lane.b32.xlu0 %v704, 40
  %v1654 = vpop.permute.xlu0 %1653
  %1655 = vrot.lane.b32.xlu0 %v707, 40
  %v1656 = vpop.permute.xlu0 %1655
  %1657 = vrot.lane.b32.xlu0 %v709, 40
  %v1658 = vpop.permute.xlu0 %1657
  %1659 = vrot.lane.b32.xlu0 %v712, 40
  %v1660 = vpop.permute.xlu0 %1659
  %1661 = vrot.lane.b32.xlu0 %v714, 40
  %v1662 = vpop.permute.xlu0 %1661
  %1663 = vrot.lane.b32.xlu0 %v717, 40
  %v1664 = vpop.permute.xlu0 %1663
  %1665 = vrot.lane.b32.xlu0 %v719, 40
  %v1666 = vpop.permute.xlu0 %1665
  %1667 = vrot.lane.b32.xlu0 %v722, 40
  %v1668 = vpop.permute.xlu0 %1667
  %1669 = vrot.lane.b32.xlu0 %v724, 40
  %v1670 = vpop.permute.xlu0 %1669
  %1671 = vrot.lane.b32.xlu0 %v727, 40
  %v1672 = vpop.permute.xlu0 %1671
  %1673 = vrot.lane.b32.xlu0 %v729, 40
  %v1674 = vpop.permute.xlu0 %1673
  %1675 = vrot.lane.b32.xlu0 %v732, 40
  %v1676 = vpop.permute.xlu0 %1675
  %1677 = vrot.lane.b32.xlu0 %v734, 40
  %v1678 = vpop.permute.xlu0 %1677
  %1679 = vrot.lane.b32.xlu0 %v737, 40
  %v1680 = vpop.permute.xlu0 %1679
  %1681 = vrot.lane.b32.xlu0 %v739, 40
  %v1682 = vpop.permute.xlu0 %1681
  %1683 = vrot.lane.b32.xlu0 %v742, 40
  %v1684 = vpop.permute.xlu0 %1683
  %1685 = vrot.lane.b32.xlu0 %v744, 40
  %v1686 = vpop.permute.xlu0 %1685
  %1687 = vrot.lane.b32.xlu0 %v747, 40
  %v1688 = vpop.permute.xlu0 %1687
  %1689 = vrot.lane.b32.xlu0 %v749, 40
  %v1690 = vpop.permute.xlu0 %1689
  %1691 = vrot.lane.b32.xlu0 %v752, 40
  %v1692 = vpop.permute.xlu0 %1691
  %1693 = vrot.lane.b32.xlu0 %v754, 40
  %v1694 = vpop.permute.xlu0 %1693
  %1695 = vrot.lane.b32.xlu0 %v757, 40
  %v1696 = vpop.permute.xlu0 %1695
  %1697 = vrot.lane.b32.xlu0 %v759, 40
  %v1698 = vpop.permute.xlu0 %1697
  %1699 = vrot.lane.b32.xlu0 %v762, 40
  %v1700 = vpop.permute.xlu0 %1699
  %1701 = vrot.lane.b32.xlu0 %v764, 40
  %v1702 = vpop.permute.xlu0 %1701
  %1703 = vrot.lane.b32.xlu0 %v767, 40
  %v1704 = vpop.permute.xlu0 %1703
  %1705 = vrot.lane.b32.xlu0 %v769, 40
  %v1706 = vpop.permute.xlu0 %1705
  %1707 = vrot.lane.b32.xlu0 %v866, 40
  %v1708 = vpop.permute.xlu0 %1707
  %1709 = vrot.lane.b32.xlu0 %v868, 40
  %v1710 = vpop.permute.xlu0 %1709
  %1743 = vrot.lane.b32.xlu0 %v778, 45
  %v1744 = vpop.permute.xlu0 %1743
  %1745 = vrot.lane.b32.xlu0 %v780, 45
  %v1746 = vpop.permute.xlu0 %1745
  %1747 = vrot.lane.b32.xlu0 %v783, 45
  %v1748 = vpop.permute.xlu0 %1747
  %1749 = vrot.lane.b32.xlu0 %v785, 45
  %v1750 = vpop.permute.xlu0 %1749
  %1751 = vrot.lane.b32.xlu0 %v788, 45
  %v1752 = vpop.permute.xlu0 %1751
  %1753 = vrot.lane.b32.xlu0 %v790, 45
  %v1754 = vpop.permute.xlu0 %1753
  %1755 = vrot.lane.b32.xlu0 %v793, 45
  %v1756 = vpop.permute.xlu0 %1755
  %1757 = vrot.lane.b32.xlu0 %v795, 45
  %v1758 = vpop.permute.xlu0 %1757
  %1759 = vrot.lane.b32.xlu0 %v798, 45
  %v1760 = vpop.permute.xlu0 %1759
  %1761 = vrot.lane.b32.xlu0 %v800, 45
  %v1762 = vpop.permute.xlu0 %1761
  %1763 = vrot.lane.b32.xlu0 %v803, 45
  %v1764 = vpop.permute.xlu0 %1763
  %1765 = vrot.lane.b32.xlu0 %v805, 45
  %v1766 = vpop.permute.xlu0 %1765
  %1767 = vrot.lane.b32.xlu0 %v808, 45
  %v1768 = vpop.permute.xlu0 %1767
  %1769 = vrot.lane.b32.xlu0 %v810, 45
  %v1770 = vpop.permute.xlu0 %1769
  %1771 = vrot.lane.b32.xlu0 %v813, 45
  %v1772 = vpop.permute.xlu0 %1771
  %1773 = vrot.lane.b32.xlu0 %v815, 45
  %v1774 = vpop.permute.xlu0 %1773
  %1775 = vrot.lane.b32.xlu0 %v818, 45
  %v1776 = vpop.permute.xlu0 %1775
  %1777 = vrot.lane.b32.xlu0 %v820, 45
  %v1778 = vpop.permute.xlu0 %1777
  %1779 = vrot.lane.b32.xlu0 %v823, 45
  %v1780 = vpop.permute.xlu0 %1779
  %1781 = vrot.lane.b32.xlu0 %v825, 45
  %v1782 = vpop.permute.xlu0 %1781
  %1783 = vrot.lane.b32.xlu0 %v828, 45
  %v1784 = vpop.permute.xlu0 %1783
  %1785 = vrot.lane.b32.xlu0 %v830, 45
  %v1786 = vpop.permute.xlu0 %1785
  %1787 = vrot.lane.b32.xlu0 %v833, 45
  %v1788 = vpop.permute.xlu0 %1787
  %1789 = vrot.lane.b32.xlu0 %v835, 45
  %v1790 = vpop.permute.xlu0 %1789
  %1791 = vrot.lane.b32.xlu0 %v838, 45
  %v1792 = vpop.permute.xlu0 %1791
  %1793 = vrot.lane.b32.xlu0 %v840, 45
  %v1794 = vpop.permute.xlu0 %1793
  %1795 = vrot.lane.b32.xlu0 %v843, 45
  %v1796 = vpop.permute.xlu0 %1795
  %1797 = vrot.lane.b32.xlu0 %v845, 45
  %v1798 = vpop.permute.xlu0 %1797
  %1799 = vrot.lane.b32.xlu0 %v848, 45
  %v1800 = vpop.permute.xlu0 %1799
  %1801 = vrot.lane.b32.xlu0 %v850, 45
  %v1802 = vpop.permute.xlu0 %1801
  %1803 = vrot.lane.b32.xlu0 %v871, 45
  %v1804 = vpop.permute.xlu0 %1803
  %1805 = vrot.lane.b32.xlu0 %v873, 45
  %v1806 = vpop.permute.xlu0 %1805
  %1839 = vrot.lane.b32.xlu0 %v425, 50
  %v1840 = vpop.permute.xlu0 %1839
  %1841 = vrot.lane.b32.xlu0 %v426, 50
  %v1842 = vpop.permute.xlu0 %1841
  %1843 = vrot.lane.b32.xlu0 %v428, 50
  %v1844 = vpop.permute.xlu0 %1843
  %1845 = vrot.lane.b32.xlu0 %v429, 50
  %v1846 = vpop.permute.xlu0 %1845
  %1847 = vrot.lane.b32.xlu0 %v431, 50
  %v1848 = vpop.permute.xlu0 %1847
  %1849 = vrot.lane.b32.xlu0 %v432, 50
  %v1850 = vpop.permute.xlu0 %1849
  %1851 = vrot.lane.b32.xlu0 %v434, 50
  %v1852 = vpop.permute.xlu0 %1851
  %1853 = vrot.lane.b32.xlu0 %v435, 50
  %v1854 = vpop.permute.xlu0 %1853
  %1855 = vrot.lane.b32.xlu0 %v437, 50
  %v1856 = vpop.permute.xlu0 %1855
  %1857 = vrot.lane.b32.xlu0 %v438, 50
  %v1858 = vpop.permute.xlu0 %1857
  %1859 = vrot.lane.b32.xlu0 %v440, 50
  %v1860 = vpop.permute.xlu0 %1859
  %1861 = vrot.lane.b32.xlu0 %v441, 50
  %v1862 = vpop.permute.xlu0 %1861
  %1863 = vrot.lane.b32.xlu0 %v443, 50
  %v1864 = vpop.permute.xlu0 %1863
  %1865 = vrot.lane.b32.xlu0 %v444, 50
  %v1866 = vpop.permute.xlu0 %1865
  %1867 = vrot.lane.b32.xlu0 %v446, 50
  %v1868 = vpop.permute.xlu0 %1867
  %1869 = vrot.lane.b32.xlu0 %v447, 50
  %v1870 = vpop.permute.xlu0 %1869
  %1871 = vrot.lane.b32.xlu0 %v449, 50
  %v1872 = vpop.permute.xlu0 %1871
  %1873 = vrot.lane.b32.xlu0 %v450, 50
  %v1874 = vpop.permute.xlu0 %1873
  %1875 = vrot.lane.b32.xlu0 %v452, 50
  %v1876 = vpop.permute.xlu0 %1875
  %1877 = vrot.lane.b32.xlu0 %v453, 50
  %v1878 = vpop.permute.xlu0 %1877
  %1879 = vrot.lane.b32.xlu0 %v455, 50
  %v1880 = vpop.permute.xlu0 %1879
  %1881 = vrot.lane.b32.xlu0 %v456, 50
  %v1882 = vpop.permute.xlu0 %1881
  %1883 = vrot.lane.b32.xlu0 %v458, 50
  %v1884 = vpop.permute.xlu0 %1883
  %1885 = vrot.lane.b32.xlu0 %v459, 50
  %v1886 = vpop.permute.xlu0 %1885
  %1887 = vrot.lane.b32.xlu0 %v461, 50
  %v1888 = vpop.permute.xlu0 %1887
  %1889 = vrot.lane.b32.xlu0 %v462, 50
  %v1890 = vpop.permute.xlu0 %1889
  %1891 = vrot.lane.b32.xlu0 %v464, 50
  %v1892 = vpop.permute.xlu0 %1891
  %1893 = vrot.lane.b32.xlu0 %v465, 50
  %v1894 = vpop.permute.xlu0 %1893
  %1895 = vrot.lane.b32.xlu0 %v467, 50
  %v1896 = vpop.permute.xlu0 %1895
  %1897 = vrot.lane.b32.xlu0 %v468, 50
  %v1898 = vpop.permute.xlu0 %1897
  %1899 = vrot.lane.b32.xlu0 %v470, 50
  %v1900 = vpop.permute.xlu0 %1899
  %1901 = vrot.lane.b32.xlu0 %v471, 50
  %v1902 = vpop.permute.xlu0 %1901
  %1935 = vrot.lane.b32.xlu0 %v540, 55
  %v1936 = vpop.permute.xlu0 %1935
  %1937 = vrot.lane.b32.xlu0 %v542, 55
  %v1938 = vpop.permute.xlu0 %1937
  %1939 = vrot.lane.b32.xlu0 %v545, 55
  %v1940 = vpop.permute.xlu0 %1939
  %1941 = vrot.lane.b32.xlu0 %v547, 55
  %v1942 = vpop.permute.xlu0 %1941
  %1943 = vrot.lane.b32.xlu0 %v550, 55
  %v1944 = vpop.permute.xlu0 %1943
  %1945 = vrot.lane.b32.xlu0 %v552, 55
  %v1946 = vpop.permute.xlu0 %1945
  %1947 = vrot.lane.b32.xlu0 %v555, 55
  %v1948 = vpop.permute.xlu0 %1947
  %1949 = vrot.lane.b32.xlu0 %v557, 55
  %v1950 = vpop.permute.xlu0 %1949
  %1951 = vrot.lane.b32.xlu0 %v560, 55
  %v1952 = vpop.permute.xlu0 %1951
  %1953 = vrot.lane.b32.xlu0 %v562, 55
  %v1954 = vpop.permute.xlu0 %1953
  %1955 = vrot.lane.b32.xlu0 %v565, 55
  %v1956 = vpop.permute.xlu0 %1955
  %1957 = vrot.lane.b32.xlu0 %v567, 55
  %v1958 = vpop.permute.xlu0 %1957
  %1959 = vrot.lane.b32.xlu0 %v570, 55
  %v1960 = vpop.permute.xlu0 %1959
  %1961 = vrot.lane.b32.xlu0 %v572, 55
  %v1962 = vpop.permute.xlu0 %1961
  %1963 = vrot.lane.b32.xlu0 %v575, 55
  %v1964 = vpop.permute.xlu0 %1963
  %1965 = vrot.lane.b32.xlu0 %v577, 55
  %v1966 = vpop.permute.xlu0 %1965
  %1967 = vrot.lane.b32.xlu0 %v580, 55
  %v1968 = vpop.permute.xlu0 %1967
  %1969 = vrot.lane.b32.xlu0 %v582, 55
  %v1970 = vpop.permute.xlu0 %1969
  %1971 = vrot.lane.b32.xlu0 %v585, 55
  %v1972 = vpop.permute.xlu0 %1971
  %1973 = vrot.lane.b32.xlu0 %v587, 55
  %v1974 = vpop.permute.xlu0 %1973
  %1975 = vrot.lane.b32.xlu0 %v590, 55
  %v1976 = vpop.permute.xlu0 %1975
  %1977 = vrot.lane.b32.xlu0 %v592, 55
  %v1978 = vpop.permute.xlu0 %1977
  %1979 = vrot.lane.b32.xlu0 %v595, 55
  %v1980 = vpop.permute.xlu0 %1979
  %1981 = vrot.lane.b32.xlu0 %v597, 55
  %v1982 = vpop.permute.xlu0 %1981
  %1983 = vrot.lane.b32.xlu0 %v600, 55
  %v1984 = vpop.permute.xlu0 %1983
  %1985 = vrot.lane.b32.xlu0 %v602, 55
  %v1986 = vpop.permute.xlu0 %1985
  %1987 = vrot.lane.b32.xlu0 %v605, 55
  %v1988 = vpop.permute.xlu0 %1987
  %1989 = vrot.lane.b32.xlu0 %v607, 55
  %v1990 = vpop.permute.xlu0 %1989
  %1991 = vrot.lane.b32.xlu0 %v856, 55
  %v1992 = vpop.permute.xlu0 %1991
  %1993 = vrot.lane.b32.xlu0 %v858, 55
  %v1994 = vpop.permute.xlu0 %1993
  %1995 = vrot.lane.b32.xlu0 %v879, 55
  %v1996 = vpop.permute.xlu0 %1995
  %1997 = vrot.lane.b32.xlu0 %v881, 55
  %v1998 = vpop.permute.xlu0 %1997
  %2031 = vrot.lane.b32.xlu0 %v621, 60
  %v2032 = vpop.permute.xlu0 %2031
  %2033 = vrot.lane.b32.xlu0 %v623, 60
  %v2034 = vpop.permute.xlu0 %2033
  %2035 = vrot.lane.b32.xlu0 %v626, 60
  %v2036 = vpop.permute.xlu0 %2035
  %2037 = vrot.lane.b32.xlu0 %v628, 60
  %v2038 = vpop.permute.xlu0 %2037
  %2039 = vrot.lane.b32.xlu0 %v631, 60
  %v2040 = vpop.permute.xlu0 %2039
  %2041 = vrot.lane.b32.xlu0 %v633, 60
  %v2042 = vpop.permute.xlu0 %2041
  %2043 = vrot.lane.b32.xlu0 %v636, 60
  %v2044 = vpop.permute.xlu0 %2043
  %2045 = vrot.lane.b32.xlu0 %v638, 60
  %v2046 = vpop.permute.xlu0 %2045
  %2047 = vrot.lane.b32.xlu0 %v641, 60
  %v2048 = vpop.permute.xlu0 %2047
  %2049 = vrot.lane.b32.xlu0 %v643, 60
  %v2050 = vpop.permute.xlu0 %2049
  %2051 = vrot.lane.b32.xlu0 %v646, 60
  %v2052 = vpop.permute.xlu0 %2051
  %2053 = vrot.lane.b32.xlu0 %v648, 60
  %v2054 = vpop.permute.xlu0 %2053
  %2055 = vrot.lane.b32.xlu0 %v651, 60
  %v2056 = vpop.permute.xlu0 %2055
  %2057 = vrot.lane.b32.xlu0 %v653, 60
  %v2058 = vpop.permute.xlu0 %2057
  %2059 = vrot.lane.b32.xlu0 %v656, 60
  %v2060 = vpop.permute.xlu0 %2059
  %2061 = vrot.lane.b32.xlu0 %v658, 60
  %v2062 = vpop.permute.xlu0 %2061
  %2063 = vrot.lane.b32.xlu0 %v661, 60
  %v2064 = vpop.permute.xlu0 %2063
  %2065 = vrot.lane.b32.xlu0 %v663, 60
  %v2066 = vpop.permute.xlu0 %2065
  %2067 = vrot.lane.b32.xlu0 %v666, 60
  %v2068 = vpop.permute.xlu0 %2067
  %2069 = vrot.lane.b32.xlu0 %v668, 60
  %v2070 = vpop.permute.xlu0 %2069
  %2071 = vrot.lane.b32.xlu0 %v671, 60
  %v2072 = vpop.permute.xlu0 %2071
  %2073 = vrot.lane.b32.xlu0 %v673, 60
  %v2074 = vpop.permute.xlu0 %2073
  %2075 = vrot.lane.b32.xlu0 %v676, 60
  %v2076 = vpop.permute.xlu0 %2075
  %2077 = vrot.lane.b32.xlu0 %v678, 60
  %v2078 = vpop.permute.xlu0 %2077
  %2079 = vrot.lane.b32.xlu0 %v681, 60
  %v2080 = vpop.permute.xlu0 %2079
  %2081 = vrot.lane.b32.xlu0 %v683, 60
  %v2082 = vpop.permute.xlu0 %2081
  %2083 = vrot.lane.b32.xlu0 %v686, 60
  %v2084 = vpop.permute.xlu0 %2083
  %2085 = vrot.lane.b32.xlu0 %v688, 60
  %v2086 = vpop.permute.xlu0 %2085
  %2087 = vrot.lane.b32.xlu0 %v861, 60
  %v2088 = vpop.permute.xlu0 %2087
  %2089 = vrot.lane.b32.xlu0 %v863, 60
  %v2090 = vpop.permute.xlu0 %2089
  %2091 = vrot.lane.b32.xlu0 %v884, 60
  %v2092 = vpop.permute.xlu0 %2091
  %2093 = vrot.lane.b32.xlu0 %v886, 60
  %v2094 = vpop.permute.xlu0 %2093
  %2127 = vrot.lane.b32.xlu0 %v702, 65
  %v2128 = vpop.permute.xlu0 %2127
  %2129 = vrot.lane.b32.xlu0 %v704, 65
  %v2130 = vpop.permute.xlu0 %2129
  %2131 = vrot.lane.b32.xlu0 %v707, 65
  %v2132 = vpop.permute.xlu0 %2131
  %2133 = vrot.lane.b32.xlu0 %v709, 65
  %v2134 = vpop.permute.xlu0 %2133
  %2135 = vrot.lane.b32.xlu0 %v712, 65
  %v2136 = vpop.permute.xlu0 %2135
  %2137 = vrot.lane.b32.xlu0 %v714, 65
  %v2138 = vpop.permute.xlu0 %2137
  %2139 = vrot.lane.b32.xlu0 %v717, 65
  %v2140 = vpop.permute.xlu0 %2139
  %2141 = vrot.lane.b32.xlu0 %v719, 65
  %v2142 = vpop.permute.xlu0 %2141
  %2143 = vrot.lane.b32.xlu0 %v722, 65
  %v2144 = vpop.permute.xlu0 %2143
  %2145 = vrot.lane.b32.xlu0 %v724, 65
  %v2146 = vpop.permute.xlu0 %2145
  %2147 = vrot.lane.b32.xlu0 %v727, 65
  %v2148 = vpop.permute.xlu0 %2147
  %2149 = vrot.lane.b32.xlu0 %v729, 65
  %v2150 = vpop.permute.xlu0 %2149
  %2151 = vrot.lane.b32.xlu0 %v732, 65
  %v2152 = vpop.permute.xlu0 %2151
  %2153 = vrot.lane.b32.xlu0 %v734, 65
  %v2154 = vpop.permute.xlu0 %2153
  %2155 = vrot.lane.b32.xlu0 %v737, 65
  %v2156 = vpop.permute.xlu0 %2155
  %2157 = vrot.lane.b32.xlu0 %v739, 65
  %v2158 = vpop.permute.xlu0 %2157
  %2159 = vrot.lane.b32.xlu0 %v742, 65
  %v2160 = vpop.permute.xlu0 %2159
  %2161 = vrot.lane.b32.xlu0 %v744, 65
  %v2162 = vpop.permute.xlu0 %2161
  %2163 = vrot.lane.b32.xlu0 %v747, 65
  %v2164 = vpop.permute.xlu0 %2163
  %2165 = vrot.lane.b32.xlu0 %v749, 65
  %v2166 = vpop.permute.xlu0 %2165
  %2167 = vrot.lane.b32.xlu0 %v752, 65
  %v2168 = vpop.permute.xlu0 %2167
  %2169 = vrot.lane.b32.xlu0 %v754, 65
  %v2170 = vpop.permute.xlu0 %2169
  %2171 = vrot.lane.b32.xlu0 %v757, 65
  %v2172 = vpop.permute.xlu0 %2171
  %2173 = vrot.lane.b32.xlu0 %v759, 65
  %v2174 = vpop.permute.xlu0 %2173
  %2175 = vrot.lane.b32.xlu0 %v762, 65
  %v2176 = vpop.permute.xlu0 %2175
  %2177 = vrot.lane.b32.xlu0 %v764, 65
  %v2178 = vpop.permute.xlu0 %2177
  %2179 = vrot.lane.b32.xlu0 %v767, 65
  %v2180 = vpop.permute.xlu0 %2179
  %2181 = vrot.lane.b32.xlu0 %v769, 65
  %v2182 = vpop.permute.xlu0 %2181
  %2183 = vrot.lane.b32.xlu0 %v866, 65
  %v2184 = vpop.permute.xlu0 %2183
  %2185 = vrot.lane.b32.xlu0 %v868, 65
  %v2186 = vpop.permute.xlu0 %2185
  %2187 = vrot.lane.b32.xlu0 %v889, 65
  %v2188 = vpop.permute.xlu0 %2187
  %2189 = vrot.lane.b32.xlu0 %v891, 65
  %v2190 = vpop.permute.xlu0 %2189
  %2223 = vrot.lane.b32.xlu0 %v783, 70
  %v2224 = vpop.permute.xlu0 %2223
  %2225 = vrot.lane.b32.xlu0 %v785, 70
  %v2226 = vpop.permute.xlu0 %2225
  %2227 = vrot.lane.b32.xlu0 %v788, 70
  %v2228 = vpop.permute.xlu0 %2227
  %2229 = vrot.lane.b32.xlu0 %v790, 70
  %v2230 = vpop.permute.xlu0 %2229
  %2231 = vrot.lane.b32.xlu0 %v793, 70
  %v2232 = vpop.permute.xlu0 %2231
  %2233 = vrot.lane.b32.xlu0 %v795, 70
  %v2234 = vpop.permute.xlu0 %2233
  %2235 = vrot.lane.b32.xlu0 %v798, 70
  %v2236 = vpop.permute.xlu0 %2235
  %2237 = vrot.lane.b32.xlu0 %v800, 70
  %v2238 = vpop.permute.xlu0 %2237
  %2239 = vrot.lane.b32.xlu0 %v803, 70
  %v2240 = vpop.permute.xlu0 %2239
  %2241 = vrot.lane.b32.xlu0 %v805, 70
  %v2242 = vpop.permute.xlu0 %2241
  %2243 = vrot.lane.b32.xlu0 %v808, 70
  %v2244 = vpop.permute.xlu0 %2243
  %2245 = vrot.lane.b32.xlu0 %v810, 70
  %v2246 = vpop.permute.xlu0 %2245
  %2247 = vrot.lane.b32.xlu0 %v813, 70
  %v2248 = vpop.permute.xlu0 %2247
  %2249 = vrot.lane.b32.xlu0 %v815, 70
  %v2250 = vpop.permute.xlu0 %2249
  %2251 = vrot.lane.b32.xlu0 %v818, 70
  %v2252 = vpop.permute.xlu0 %2251
  %2253 = vrot.lane.b32.xlu0 %v820, 70
  %v2254 = vpop.permute.xlu0 %2253
  %2255 = vrot.lane.b32.xlu0 %v823, 70
  %v2256 = vpop.permute.xlu0 %2255
  %2257 = vrot.lane.b32.xlu0 %v825, 70
  %v2258 = vpop.permute.xlu0 %2257
  %2259 = vrot.lane.b32.xlu0 %v828, 70
  %v2260 = vpop.permute.xlu0 %2259
  %2261 = vrot.lane.b32.xlu0 %v830, 70
  %v2262 = vpop.permute.xlu0 %2261
  %2263 = vrot.lane.b32.xlu0 %v833, 70
  %v2264 = vpop.permute.xlu0 %2263
  %2265 = vrot.lane.b32.xlu0 %v835, 70
  %v2266 = vpop.permute.xlu0 %2265
  %2267 = vrot.lane.b32.xlu0 %v838, 70
  %v2268 = vpop.permute.xlu0 %2267
  %2269 = vrot.lane.b32.xlu0 %v840, 70
  %v2270 = vpop.permute.xlu0 %2269
  %2271 = vrot.lane.b32.xlu0 %v843, 70
  %v2272 = vpop.permute.xlu0 %2271
  %2273 = vrot.lane.b32.xlu0 %v845, 70
  %v2274 = vpop.permute.xlu0 %2273
  %2275 = vrot.lane.b32.xlu0 %v848, 70
  %v2276 = vpop.permute.xlu0 %2275
  %2277 = vrot.lane.b32.xlu0 %v850, 70
  %v2278 = vpop.permute.xlu0 %2277
  %2279 = vrot.lane.b32.xlu0 %v871, 70
  %v2280 = vpop.permute.xlu0 %2279
  %2281 = vrot.lane.b32.xlu0 %v873, 70
  %v2282 = vpop.permute.xlu0 %2281
  %2283 = vrot.lane.b32.xlu0 %v894, 70
  %v2284 = vpop.permute.xlu0 %2283
  %2285 = vrot.lane.b32.xlu0 %v896, 70
  %v2286 = vpop.permute.xlu0 %2285
  %2319 = vrot.lane.b32.xlu0 %v428, 75
  %v2320 = vpop.permute.xlu0 %2319
  %2321 = vrot.lane.b32.xlu0 %v429, 75
  %v2322 = vpop.permute.xlu0 %2321
  %2323 = vrot.lane.b32.xlu0 %v431, 75
  %v2324 = vpop.permute.xlu0 %2323
  %2325 = vrot.lane.b32.xlu0 %v432, 75
  %v2326 = vpop.permute.xlu0 %2325
  %2327 = vrot.lane.b32.xlu0 %v434, 75
  %v2328 = vpop.permute.xlu0 %2327
  %2329 = vrot.lane.b32.xlu0 %v435, 75
  %v2330 = vpop.permute.xlu0 %2329
  %2331 = vrot.lane.b32.xlu0 %v437, 75
  %v2332 = vpop.permute.xlu0 %2331
  %2333 = vrot.lane.b32.xlu0 %v438, 75
  %v2334 = vpop.permute.xlu0 %2333
  %2335 = vrot.lane.b32.xlu0 %v440, 75
  %v2336 = vpop.permute.xlu0 %2335
  %2337 = vrot.lane.b32.xlu0 %v441, 75
  %v2338 = vpop.permute.xlu0 %2337
  %2339 = vrot.lane.b32.xlu0 %v443, 75
  %v2340 = vpop.permute.xlu0 %2339
  %2341 = vrot.lane.b32.xlu0 %v444, 75
  %v2342 = vpop.permute.xlu0 %2341
  %2343 = vrot.lane.b32.xlu0 %v446, 75
  %v2344 = vpop.permute.xlu0 %2343
  %2345 = vrot.lane.b32.xlu0 %v447, 75
  %v2346 = vpop.permute.xlu0 %2345
  %2347 = vrot.lane.b32.xlu0 %v449, 75
  %v2348 = vpop.permute.xlu0 %2347
  %2349 = vrot.lane.b32.xlu0 %v450, 75
  %v2350 = vpop.permute.xlu0 %2349
  %2351 = vrot.lane.b32.xlu0 %v452, 75
  %v2352 = vpop.permute.xlu0 %2351
  %2353 = vrot.lane.b32.xlu0 %v453, 75
  %v2354 = vpop.permute.xlu0 %2353
  %2355 = vrot.lane.b32.xlu0 %v455, 75
  %v2356 = vpop.permute.xlu0 %2355
  %2357 = vrot.lane.b32.xlu0 %v456, 75
  %v2358 = vpop.permute.xlu0 %2357
  %2359 = vrot.lane.b32.xlu0 %v458, 75
  %v2360 = vpop.permute.xlu0 %2359
  %2361 = vrot.lane.b32.xlu0 %v459, 75
  %v2362 = vpop.permute.xlu0 %2361
  %2363 = vrot.lane.b32.xlu0 %v461, 75
  %v2364 = vpop.permute.xlu0 %2363
  %2365 = vrot.lane.b32.xlu0 %v462, 75
  %v2366 = vpop.permute.xlu0 %2365
  %2367 = vrot.lane.b32.xlu0 %v464, 75
  %v2368 = vpop.permute.xlu0 %2367
  %2369 = vrot.lane.b32.xlu0 %v465, 75
  %v2370 = vpop.permute.xlu0 %2369
  %2371 = vrot.lane.b32.xlu0 %v467, 75
  %v2372 = vpop.permute.xlu0 %2371
  %2373 = vrot.lane.b32.xlu0 %v468, 75
  %v2374 = vpop.permute.xlu0 %2373
  %2375 = vrot.lane.b32.xlu0 %v470, 75
  %v2376 = vpop.permute.xlu0 %2375
  %2377 = vrot.lane.b32.xlu0 %v471, 75
  %v2378 = vpop.permute.xlu0 %2377
  %2379 = vrot.lane.b32.xlu0 %v473, 75
  %v2380 = vpop.permute.xlu0 %2379
  %2381 = vrot.lane.b32.xlu0 %v474, 75
  %v2382 = vpop.permute.xlu0 %2381
  %v2415 = vsel %vm324, %v419, %v976
  %v2416 = vsel %vm324, %v420, %v978
  %v2417 = vsel %vm324, %v422, %v980
  %v2418 = vsel %vm324, %v423, %v982
  %v2419 = vsel %vm324, %v425, %v984
  %v2420 = vsel %vm324, %v426, %v986
  %v2421 = vsel %vm324, %v428, %v988
  %v2422 = vsel %vm324, %v429, %v990
  %v2423 = vsel %vm324, %v431, %v992
  %v2424 = vsel %vm324, %v432, %v994
  %v2425 = vsel %vm324, %v434, %v996
  %v2426 = vsel %vm324, %v435, %v998
  %v2427 = vsel %vm324, %v437, %v1000
  %v2428 = vsel %vm324, %v438, %v1002
  %v2429 = vsel %vm324, %v440, %v1004
  %v2430 = vsel %vm324, %v441, %v1006
  %v2431 = vsel %vm324, %v443, %v1008
  %v2432 = vsel %vm324, %v444, %v1010
  %v2433 = vsel %vm324, %v446, %v1012
  %v2434 = vsel %vm324, %v447, %v1014
  %v2435 = vsel %vm324, %v449, %v1016
  %v2436 = vsel %vm324, %v450, %v1018
  %v2437 = vsel %vm324, %v452, %v1020
  %v2438 = vsel %vm324, %v453, %v1022
  %v2439 = vsel %vm324, %v455, %v1024
  %v2440 = vsel %vm324, %v456, %v1026
  %v2441 = vsel %vm324, %v458, %v1028
  %v2442 = vsel %vm324, %v459, %v1030
  %v2443 = vsel %vm324, %v461, %v1032
  %v2444 = vsel %vm324, %v462, %v1034
  %v2445 = vsel %vm324, %v464, %v1036
  %v2446 = vsel %vm324, %v465, %v1038
  %vm2447 = vcmask 80896
  %v2448 = vsel %vm2447, %v2415, %v1072
  %v2449 = vsel %vm2447, %v2416, %v1074
  %v2450 = vsel %vm2447, %v2417, %v1076
  %v2451 = vsel %vm2447, %v2418, %v1078
  %v2452 = vsel %vm2447, %v2419, %v1080
  %v2453 = vsel %vm2447, %v2420, %v1082
  %v2454 = vsel %vm2447, %v2421, %v1084
  %v2455 = vsel %vm2447, %v2422, %v1086
  %v2456 = vsel %vm2447, %v2423, %v1088
  %v2457 = vsel %vm2447, %v2424, %v1090
  %v2458 = vsel %vm2447, %v2425, %v1092
  %v2459 = vsel %vm2447, %v2426, %v1094
  %v2460 = vsel %vm2447, %v2427, %v1096
  %v2461 = vsel %vm2447, %v2428, %v1098
  %v2462 = vsel %vm2447, %v2429, %v1100
  %v2463 = vsel %vm2447, %v2430, %v1102
  %v2464 = vsel %vm2447, %v2431, %v1104
  %v2465 = vsel %vm2447, %v2432, %v1106
  %v2466 = vsel %vm2447, %v2433, %v1108
  %v2467 = vsel %vm2447, %v2434, %v1110
  %v2468 = vsel %vm2447, %v2435, %v1112
  %v2469 = vsel %vm2447, %v2436, %v1114
  %v2470 = vsel %vm2447, %v2437, %v1116
  %v2471 = vsel %vm2447, %v2438, %v1118
  %v2472 = vsel %vm2447, %v2439, %v1120
  %v2473 = vsel %vm2447, %v2440, %v1122
  %v2474 = vsel %vm2447, %v2441, %v1124
  %v2475 = vsel %vm2447, %v2442, %v1126
  %v2476 = vsel %vm2447, %v2443, %v1128
  %v2477 = vsel %vm2447, %v2444, %v1130
  %v2478 = vsel %vm2447, %v2445, %v1132
  %v2479 = vsel %vm2447, %v2446, %v1134
  %vm2480 = vcmask 121856
  %v2481 = vsel %vm2480, %v2448, %v1168
  %v2482 = vsel %vm2480, %v2449, %v1170
  %v2483 = vsel %vm2480, %v2450, %v1172
  %v2484 = vsel %vm2480, %v2451, %v1174
  %v2485 = vsel %vm2480, %v2452, %v1176
  %v2486 = vsel %vm2480, %v2453, %v1178
  %v2487 = vsel %vm2480, %v2454, %v1180
  %v2488 = vsel %vm2480, %v2455, %v1182
  %v2489 = vsel %vm2480, %v2456, %v1184
  %v2490 = vsel %vm2480, %v2457, %v1186
  %v2491 = vsel %vm2480, %v2458, %v1188
  %v2492 = vsel %vm2480, %v2459, %v1190
  %v2493 = vsel %vm2480, %v2460, %v1192
  %v2494 = vsel %vm2480, %v2461, %v1194
  %v2495 = vsel %vm2480, %v2462, %v1196
  %v2496 = vsel %vm2480, %v2463, %v1198
  %v2497 = vsel %vm2480, %v2464, %v1200
  %v2498 = vsel %vm2480, %v2465, %v1202
  %v2499 = vsel %vm2480, %v2466, %v1204
  %v2500 = vsel %vm2480, %v2467, %v1206
  %v2501 = vsel %vm2480, %v2468, %v1208
  %v2502 = vsel %vm2480, %v2469, %v1210
  %v2503 = vsel %vm2480, %v2470, %v1212
  %v2504 = vsel %vm2480, %v2471, %v1214
  %v2505 = vsel %vm2480, %v2472, %v1216
  %v2506 = vsel %vm2480, %v2473, %v1218
  %v2507 = vsel %vm2480, %v2474, %v1220
  %v2508 = vsel %vm2480, %v2475, %v1222
  %v2509 = vsel %vm2480, %v2476, %v1224
  %v2510 = vsel %vm2480, %v2477, %v1226
  %v2511 = vsel %vm2480, %v2478, %v1228
  %v2512 = vsel %vm2480, %v2479, %v1230
  %vm2513 = vcmask 162816
  %v2514 = vsel %vm2513, %v2481, %v1264
  %v2515 = vsel %vm2513, %v2482, %v1266
  %v2516 = vsel %vm2513, %v2483, %v1268
  %v2517 = vsel %vm2513, %v2484, %v1270
  %v2518 = vsel %vm2513, %v2485, %v1272
  %v2519 = vsel %vm2513, %v2486, %v1274
  %v2520 = vsel %vm2513, %v2487, %v1276
  %v2521 = vsel %vm2513, %v2488, %v1278
  %v2522 = vsel %vm2513, %v2489, %v1280
  %v2523 = vsel %vm2513, %v2490, %v1282
  %v2524 = vsel %vm2513, %v2491, %v1284
  %v2525 = vsel %vm2513, %v2492, %v1286
  %v2526 = vsel %vm2513, %v2493, %v1288
  %v2527 = vsel %vm2513, %v2494, %v1290
  %v2528 = vsel %vm2513, %v2495, %v1292
  %v2529 = vsel %vm2513, %v2496, %v1294
  %v2530 = vsel %vm2513, %v2497, %v1296
  %v2531 = vsel %vm2513, %v2498, %v1298
  %v2532 = vsel %vm2513, %v2499, %v1300
  %v2533 = vsel %vm2513, %v2500, %v1302
  %v2534 = vsel %vm2513, %v2501, %v1304
  %v2535 = vsel %vm2513, %v2502, %v1306
  %v2536 = vsel %vm2513, %v2503, %v1308
  %v2537 = vsel %vm2513, %v2504, %v1310
  %v2538 = vsel %vm2513, %v2505, %v1312
  %v2539 = vsel %vm2513, %v2506, %v1314
  %v2540 = vsel %vm2513, %v2507, %v1316
  %v2541 = vsel %vm2513, %v2508, %v1318
  %v2542 = vsel %vm2513, %v2509, %v1320
  %v2543 = vsel %vm2513, %v2510, %v1322
  %v2544 = vsel %vm2513, %v2511, %v1324
  %v2545 = vsel %vm2513, %v2512, %v1326
  %vm2546 = vcmask 203776
  %v2547 = vsel %vm2546, %v2514, %v1360
  %v2548 = vsel %vm2546, %v2515, %v1362
  %v2549 = vsel %vm2546, %v2516, %v1364
  %v2550 = vsel %vm2546, %v2517, %v1366
  %v2551 = vsel %vm2546, %v2518, %v1368
  %v2552 = vsel %vm2546, %v2519, %v1370
  %v2553 = vsel %vm2546, %v2520, %v1372
  %v2554 = vsel %vm2546, %v2521, %v1374
  %v2555 = vsel %vm2546, %v2522, %v1376
  %v2556 = vsel %vm2546, %v2523, %v1378
  %v2557 = vsel %vm2546, %v2524, %v1380
  %v2558 = vsel %vm2546, %v2525, %v1382
  %v2559 = vsel %vm2546, %v2526, %v1384
  %v2560 = vsel %vm2546, %v2527, %v1386
  %v2561 = vsel %vm2546, %v2528, %v1388
  %v2562 = vsel %vm2546, %v2529, %v1390
  %v2563 = vsel %vm2546, %v2530, %v1392
  %v2564 = vsel %vm2546, %v2531, %v1394
  %v2565 = vsel %vm2546, %v2532, %v1396
  %v2566 = vsel %vm2546, %v2533, %v1398
  %v2567 = vsel %vm2546, %v2534, %v1400
  %v2568 = vsel %vm2546, %v2535, %v1402
  %v2569 = vsel %vm2546, %v2536, %v1404
  %v2570 = vsel %vm2546, %v2537, %v1406
  %v2571 = vsel %vm2546, %v2538, %v1408
  %v2572 = vsel %vm2546, %v2539, %v1410
  %v2573 = vsel %vm2546, %v2540, %v1412
  %v2574 = vsel %vm2546, %v2541, %v1414
  %v2575 = vsel %vm2546, %v2542, %v1416
  %v2576 = vsel %vm2546, %v2543, %v1418
  %v2577 = vsel %vm2546, %v2544, %v1420
  %v2578 = vsel %vm2546, %v2545, %v1422
  %vm2579 = vcmask 244736
  %v2580 = vsel %vm2579, %v2547, %v1456
  %v2581 = vsel %vm2579, %v2548, %v1458
  %v2582 = vsel %vm2579, %v2549, %v1460
  %v2583 = vsel %vm2579, %v2550, %v1462
  %v2584 = vsel %vm2579, %v2551, %v1464
  %v2585 = vsel %vm2579, %v2552, %v1466
  %v2586 = vsel %vm2579, %v2553, %v1468
  %v2587 = vsel %vm2579, %v2554, %v1470
  %v2588 = vsel %vm2579, %v2555, %v1472
  %v2589 = vsel %vm2579, %v2556, %v1474
  %v2590 = vsel %vm2579, %v2557, %v1476
  %v2591 = vsel %vm2579, %v2558, %v1478
  %v2592 = vsel %vm2579, %v2559, %v1480
  %v2593 = vsel %vm2579, %v2560, %v1482
  %v2594 = vsel %vm2579, %v2561, %v1484
  %v2595 = vsel %vm2579, %v2562, %v1486
  %v2596 = vsel %vm2579, %v2563, %v1488
  %v2597 = vsel %vm2579, %v2564, %v1490
  %v2598 = vsel %vm2579, %v2565, %v1492
  %v2599 = vsel %vm2579, %v2566, %v1494
  %v2600 = vsel %vm2579, %v2567, %v1496
  %v2601 = vsel %vm2579, %v2568, %v1498
  %v2602 = vsel %vm2579, %v2569, %v1500
  %v2603 = vsel %vm2579, %v2570, %v1502
  %v2604 = vsel %vm2579, %v2571, %v1504
  %v2605 = vsel %vm2579, %v2572, %v1506
  %v2606 = vsel %vm2579, %v2573, %v1508
  %v2607 = vsel %vm2579, %v2574, %v1510
  %v2608 = vsel %vm2579, %v2575, %v1512
  %v2609 = vsel %vm2579, %v2576, %v1514
  %v2610 = vsel %vm2579, %v2577, %v1516
  %v2611 = vsel %vm2579, %v2578, %v1518
  %vm2612 = vcmask 285696
  %v2613 = vsel %vm2612, %v2580, %v1552
  %v2614 = vsel %vm2612, %v2581, %v1554
  %v2615 = vsel %vm2612, %v2582, %v1556
  %v2616 = vsel %vm2612, %v2583, %v1558
  %v2617 = vsel %vm2612, %v2584, %v1560
  %v2618 = vsel %vm2612, %v2585, %v1562
  %v2619 = vsel %vm2612, %v2586, %v1564
  %v2620 = vsel %vm2612, %v2587, %v1566
  %v2621 = vsel %vm2612, %v2588, %v1568
  %v2622 = vsel %vm2612, %v2589, %v1570
  %v2623 = vsel %vm2612, %v2590, %v1572
  %v2624 = vsel %vm2612, %v2591, %v1574
  %v2625 = vsel %vm2612, %v2592, %v1576
  %v2626 = vsel %vm2612, %v2593, %v1578
  %v2627 = vsel %vm2612, %v2594, %v1580
  %v2628 = vsel %vm2612, %v2595, %v1582
  %v2629 = vsel %vm2612, %v2596, %v1584
  %v2630 = vsel %vm2612, %v2597, %v1586
  %v2631 = vsel %vm2612, %v2598, %v1588
  %v2632 = vsel %vm2612, %v2599, %v1590
  %v2633 = vsel %vm2612, %v2600, %v1592
  %v2634 = vsel %vm2612, %v2601, %v1594
  %v2635 = vsel %vm2612, %v2602, %v1596
  %v2636 = vsel %vm2612, %v2603, %v1598
  %v2637 = vsel %vm2612, %v2604, %v1600
  %v2638 = vsel %vm2612, %v2605, %v1602
  %v2639 = vsel %vm2612, %v2606, %v1604
  %v2640 = vsel %vm2612, %v2607, %v1606
  %v2641 = vsel %vm2612, %v2608, %v1608
  %v2642 = vsel %vm2612, %v2609, %v1610
  %v2643 = vsel %vm2612, %v2610, %v1612
  %v2644 = vsel %vm2612, %v2611, %v1614
  %vm2645 = vcmask 326656
  %v2646 = vsel %vm2645, %v2613, %v1648
  %v2647 = vsel %vm2645, %v2614, %v1650
  %v2648 = vsel %vm2645, %v2615, %v1652
  %v2649 = vsel %vm2645, %v2616, %v1654
  %v2650 = vsel %vm2645, %v2617, %v1656
  %v2651 = vsel %vm2645, %v2618, %v1658
  %v2652 = vsel %vm2645, %v2619, %v1660
  %v2653 = vsel %vm2645, %v2620, %v1662
  %v2654 = vsel %vm2645, %v2621, %v1664
  %v2655 = vsel %vm2645, %v2622, %v1666
  %v2656 = vsel %vm2645, %v2623, %v1668
  %v2657 = vsel %vm2645, %v2624, %v1670
  %v2658 = vsel %vm2645, %v2625, %v1672
  %v2659 = vsel %vm2645, %v2626, %v1674
  %v2660 = vsel %vm2645, %v2627, %v1676
  %v2661 = vsel %vm2645, %v2628, %v1678
  %v2662 = vsel %vm2645, %v2629, %v1680
  %v2663 = vsel %vm2645, %v2630, %v1682
  %v2664 = vsel %vm2645, %v2631, %v1684
  %v2665 = vsel %vm2645, %v2632, %v1686
  %v2666 = vsel %vm2645, %v2633, %v1688
  %v2667 = vsel %vm2645, %v2634, %v1690
  %v2668 = vsel %vm2645, %v2635, %v1692
  %v2669 = vsel %vm2645, %v2636, %v1694
  %v2670 = vsel %vm2645, %v2637, %v1696
  %v2671 = vsel %vm2645, %v2638, %v1698
  %v2672 = vsel %vm2645, %v2639, %v1700
  %v2673 = vsel %vm2645, %v2640, %v1702
  %v2674 = vsel %vm2645, %v2641, %v1704
  %v2675 = vsel %vm2645, %v2642, %v1706
  %v2676 = vsel %vm2645, %v2643, %v1708
  %v2677 = vsel %vm2645, %v2644, %v1710
  %vm2678 = vcmask 367616
  %v2679 = vsel %vm2678, %v2646, %v1744
  %v2680 = vsel %vm2678, %v2647, %v1746
  %v2681 = vsel %vm2678, %v2648, %v1748
  %v2682 = vsel %vm2678, %v2649, %v1750
  %v2683 = vsel %vm2678, %v2650, %v1752
  %v2684 = vsel %vm2678, %v2651, %v1754
  %v2685 = vsel %vm2678, %v2652, %v1756
  %v2686 = vsel %vm2678, %v2653, %v1758
  %v2687 = vsel %vm2678, %v2654, %v1760
  %v2688 = vsel %vm2678, %v2655, %v1762
  %v2689 = vsel %vm2678, %v2656, %v1764
  %v2690 = vsel %vm2678, %v2657, %v1766
  %v2691 = vsel %vm2678, %v2658, %v1768
  %v2692 = vsel %vm2678, %v2659, %v1770
  %v2693 = vsel %vm2678, %v2660, %v1772
  %v2694 = vsel %vm2678, %v2661, %v1774
  %v2695 = vsel %vm2678, %v2662, %v1776
  %v2696 = vsel %vm2678, %v2663, %v1778
  %v2697 = vsel %vm2678, %v2664, %v1780
  %v2698 = vsel %vm2678, %v2665, %v1782
  %v2699 = vsel %vm2678, %v2666, %v1784
  %v2700 = vsel %vm2678, %v2667, %v1786
  %v2701 = vsel %vm2678, %v2668, %v1788
  %v2702 = vsel %vm2678, %v2669, %v1790
  %v2703 = vsel %vm2678, %v2670, %v1792
  %v2704 = vsel %vm2678, %v2671, %v1794
  %v2705 = vsel %vm2678, %v2672, %v1796
  %v2706 = vsel %vm2678, %v2673, %v1798
  %v2707 = vsel %vm2678, %v2674, %v1800
  %v2708 = vsel %vm2678, %v2675, %v1802
  %v2709 = vsel %vm2678, %v2676, %v1804
  %v2710 = vsel %vm2678, %v2677, %v1806
  %vm2711 = vcmask 408576
  %v2712 = vsel %vm2711, %v2679, %v1840
  %v2713 = vsel %vm2711, %v2680, %v1842
  %v2714 = vsel %vm2711, %v2681, %v1844
  %v2715 = vsel %vm2711, %v2682, %v1846
  %v2716 = vsel %vm2711, %v2683, %v1848
  %v2717 = vsel %vm2711, %v2684, %v1850
  %v2718 = vsel %vm2711, %v2685, %v1852
  %v2719 = vsel %vm2711, %v2686, %v1854
  %v2720 = vsel %vm2711, %v2687, %v1856
  %v2721 = vsel %vm2711, %v2688, %v1858
  %v2722 = vsel %vm2711, %v2689, %v1860
  %v2723 = vsel %vm2711, %v2690, %v1862
  %v2724 = vsel %vm2711, %v2691, %v1864
  %v2725 = vsel %vm2711, %v2692, %v1866
  %v2726 = vsel %vm2711, %v2693, %v1868
  %v2727 = vsel %vm2711, %v2694, %v1870
  %v2728 = vsel %vm2711, %v2695, %v1872
  %v2729 = vsel %vm2711, %v2696, %v1874
  %v2730 = vsel %vm2711, %v2697, %v1876
  %v2731 = vsel %vm2711, %v2698, %v1878
  %v2732 = vsel %vm2711, %v2699, %v1880
  %v2733 = vsel %vm2711, %v2700, %v1882
  %v2734 = vsel %vm2711, %v2701, %v1884
  %v2735 = vsel %vm2711, %v2702, %v1886
  %v2736 = vsel %vm2711, %v2703, %v1888
  %v2737 = vsel %vm2711, %v2704, %v1890
  %v2738 = vsel %vm2711, %v2705, %v1892
  %v2739 = vsel %vm2711, %v2706, %v1894
  %v2740 = vsel %vm2711, %v2707, %v1896
  %v2741 = vsel %vm2711, %v2708, %v1898
  %v2742 = vsel %vm2711, %v2709, %v1900
  %v2743 = vsel %vm2711, %v2710, %v1902
  %vm2744 = vcmask 449536
  %v2745 = vsel %vm2744, %v2712, %v1936
  %v2746 = vsel %vm2744, %v2713, %v1938
  %v2747 = vsel %vm2744, %v2714, %v1940
  %v2748 = vsel %vm2744, %v2715, %v1942
  %v2749 = vsel %vm2744, %v2716, %v1944
  %v2750 = vsel %vm2744, %v2717, %v1946
  %v2751 = vsel %vm2744, %v2718, %v1948
  %v2752 = vsel %vm2744, %v2719, %v1950
  %v2753 = vsel %vm2744, %v2720, %v1952
  %v2754 = vsel %vm2744, %v2721, %v1954
  %v2755 = vsel %vm2744, %v2722, %v1956
  %v2756 = vsel %vm2744, %v2723, %v1958
  %v2757 = vsel %vm2744, %v2724, %v1960
  %v2758 = vsel %vm2744, %v2725, %v1962
  %v2759 = vsel %vm2744, %v2726, %v1964
  %v2760 = vsel %vm2744, %v2727, %v1966
  %v2761 = vsel %vm2744, %v2728, %v1968
  %v2762 = vsel %vm2744, %v2729, %v1970
  %v2763 = vsel %vm2744, %v2730, %v1972
  %v2764 = vsel %vm2744, %v2731, %v1974
  %v2765 = vsel %vm2744, %v2732, %v1976
  %v2766 = vsel %vm2744, %v2733, %v1978
  %v2767 = vsel %vm2744, %v2734, %v1980
  %v2768 = vsel %vm2744, %v2735, %v1982
  %v2769 = vsel %vm2744, %v2736, %v1984
  %v2770 = vsel %vm2744, %v2737, %v1986
  %v2771 = vsel %vm2744, %v2738, %v1988
  %v2772 = vsel %vm2744, %v2739, %v1990
  %v2773 = vsel %vm2744, %v2740, %v1992
  %v2774 = vsel %vm2744, %v2741, %v1994
  %v2775 = vsel %vm2744, %v2742, %v1996
  %v2776 = vsel %vm2744, %v2743, %v1998
  %vm2777 = vcmask 490496
  %v2778 = vsel %vm2777, %v2745, %v2032
  %v2779 = vsel %vm2777, %v2746, %v2034
  %v2780 = vsel %vm2777, %v2747, %v2036
  %v2781 = vsel %vm2777, %v2748, %v2038
  %v2782 = vsel %vm2777, %v2749, %v2040
  %v2783 = vsel %vm2777, %v2750, %v2042
  %v2784 = vsel %vm2777, %v2751, %v2044
  %v2785 = vsel %vm2777, %v2752, %v2046
  %v2786 = vsel %vm2777, %v2753, %v2048
  %v2787 = vsel %vm2777, %v2754, %v2050
  %v2788 = vsel %vm2777, %v2755, %v2052
  %v2789 = vsel %vm2777, %v2756, %v2054
  %v2790 = vsel %vm2777, %v2757, %v2056
  %v2791 = vsel %vm2777, %v2758, %v2058
  %v2792 = vsel %vm2777, %v2759, %v2060
  %v2793 = vsel %vm2777, %v2760, %v2062
  %v2794 = vsel %vm2777, %v2761, %v2064
  %v2795 = vsel %vm2777, %v2762, %v2066
  %v2796 = vsel %vm2777, %v2763, %v2068
  %v2797 = vsel %vm2777, %v2764, %v2070
  %v2798 = vsel %vm2777, %v2765, %v2072
  %v2799 = vsel %vm2777, %v2766, %v2074
  %v2800 = vsel %vm2777, %v2767, %v2076
  %v2801 = vsel %vm2777, %v2768, %v2078
  %v2802 = vsel %vm2777, %v2769, %v2080
  %v2803 = vsel %vm2777, %v2770, %v2082
  %v2804 = vsel %vm2777, %v2771, %v2084
  %v2805 = vsel %vm2777, %v2772, %v2086
  %v2806 = vsel %vm2777, %v2773, %v2088
  %v2807 = vsel %vm2777, %v2774, %v2090
  %v2808 = vsel %vm2777, %v2775, %v2092
  %v2809 = vsel %vm2777, %v2776, %v2094
  %vm2810 = vcmask 531456
  %v2811 = vsel %vm2810, %v2778, %v2128
  %v2812 = vsel %vm2810, %v2779, %v2130
  %v2813 = vsel %vm2810, %v2780, %v2132
  %v2814 = vsel %vm2810, %v2781, %v2134
  %v2815 = vsel %vm2810, %v2782, %v2136
  %v2816 = vsel %vm2810, %v2783, %v2138
  %v2817 = vsel %vm2810, %v2784, %v2140
  %v2818 = vsel %vm2810, %v2785, %v2142
  %v2819 = vsel %vm2810, %v2786, %v2144
  %v2820 = vsel %vm2810, %v2787, %v2146
  %v2821 = vsel %vm2810, %v2788, %v2148
  %v2822 = vsel %vm2810, %v2789, %v2150
  %v2823 = vsel %vm2810, %v2790, %v2152
  %v2824 = vsel %vm2810, %v2791, %v2154
  %v2825 = vsel %vm2810, %v2792, %v2156
  %v2826 = vsel %vm2810, %v2793, %v2158
  %v2827 = vsel %vm2810, %v2794, %v2160
  %v2828 = vsel %vm2810, %v2795, %v2162
  %v2829 = vsel %vm2810, %v2796, %v2164
  %v2830 = vsel %vm2810, %v2797, %v2166
  %v2831 = vsel %vm2810, %v2798, %v2168
  %v2832 = vsel %vm2810, %v2799, %v2170
  %v2833 = vsel %vm2810, %v2800, %v2172
  %v2834 = vsel %vm2810, %v2801, %v2174
  %v2835 = vsel %vm2810, %v2802, %v2176
  %v2836 = vsel %vm2810, %v2803, %v2178
  %v2837 = vsel %vm2810, %v2804, %v2180
  %v2838 = vsel %vm2810, %v2805, %v2182
  %v2839 = vsel %vm2810, %v2806, %v2184
  %v2840 = vsel %vm2810, %v2807, %v2186
  %v2841 = vsel %vm2810, %v2808, %v2188
  %v2842 = vsel %vm2810, %v2809, %v2190
  %vm2843 = vcmask 572416
  %v2844 = vsel %vm2843, %v2811, %v2224
  %v2845 = vsel %vm2843, %v2812, %v2226
  %v2846 = vsel %vm2843, %v2813, %v2228
  %v2847 = vsel %vm2843, %v2814, %v2230
  %v2848 = vsel %vm2843, %v2815, %v2232
  %v2849 = vsel %vm2843, %v2816, %v2234
  %v2850 = vsel %vm2843, %v2817, %v2236
  %v2851 = vsel %vm2843, %v2818, %v2238
  %v2852 = vsel %vm2843, %v2819, %v2240
  %v2853 = vsel %vm2843, %v2820, %v2242
  %v2854 = vsel %vm2843, %v2821, %v2244
  %v2855 = vsel %vm2843, %v2822, %v2246
  %v2856 = vsel %vm2843, %v2823, %v2248
  %v2857 = vsel %vm2843, %v2824, %v2250
  %v2858 = vsel %vm2843, %v2825, %v2252
  %v2859 = vsel %vm2843, %v2826, %v2254
  %v2860 = vsel %vm2843, %v2827, %v2256
  %v2861 = vsel %vm2843, %v2828, %v2258
  %v2862 = vsel %vm2843, %v2829, %v2260
  %v2863 = vsel %vm2843, %v2830, %v2262
  %v2864 = vsel %vm2843, %v2831, %v2264
  %v2865 = vsel %vm2843, %v2832, %v2266
  %v2866 = vsel %vm2843, %v2833, %v2268
  %v2867 = vsel %vm2843, %v2834, %v2270
  %v2868 = vsel %vm2843, %v2835, %v2272
  %v2869 = vsel %vm2843, %v2836, %v2274
  %v2870 = vsel %vm2843, %v2837, %v2276
  %v2871 = vsel %vm2843, %v2838, %v2278
  %v2872 = vsel %vm2843, %v2839, %v2280
  %v2873 = vsel %vm2843, %v2840, %v2282
  %v2874 = vsel %vm2843, %v2841, %v2284
  %v2875 = vsel %vm2843, %v2842, %v2286
  %vm2876 = vcmask 613376
  %v2877 = vsel %vm2876, %v2844, %v2320
  %v2878 = vsel %vm2876, %v2845, %v2322
  %v2879 = vsel %vm2876, %v2846, %v2324
  %v2880 = vsel %vm2876, %v2847, %v2326
  %v2881 = vsel %vm2876, %v2848, %v2328
  %v2882 = vsel %vm2876, %v2849, %v2330
  %v2883 = vsel %vm2876, %v2850, %v2332
  %v2884 = vsel %vm2876, %v2851, %v2334
  %v2885 = vsel %vm2876, %v2852, %v2336
  %v2886 = vsel %vm2876, %v2853, %v2338
  %v2887 = vsel %vm2876, %v2854, %v2340
  %v2888 = vsel %vm2876, %v2855, %v2342
  %v2889 = vsel %vm2876, %v2856, %v2344
  %v2890 = vsel %vm2876, %v2857, %v2346
  %v2891 = vsel %vm2876, %v2858, %v2348
  %v2892 = vsel %vm2876, %v2859, %v2350
  %v2893 = vsel %vm2876, %v2860, %v2352
  %v2894 = vsel %vm2876, %v2861, %v2354
  %v2895 = vsel %vm2876, %v2862, %v2356
  %v2896 = vsel %vm2876, %v2863, %v2358
  %v2897 = vsel %vm2876, %v2864, %v2360
  %v2898 = vsel %vm2876, %v2865, %v2362
  %v2899 = vsel %vm2876, %v2866, %v2364
  %v2900 = vsel %vm2876, %v2867, %v2366
  %v2901 = vsel %vm2876, %v2868, %v2368
  %v2902 = vsel %vm2876, %v2869, %v2370
  %v2903 = vsel %vm2876, %v2870, %v2372
  %v2904 = vsel %vm2876, %v2871, %v2374
  %v2905 = vsel %vm2876, %v2872, %v2376
  %v2906 = vsel %vm2876, %v2873, %v2378
  %v2907 = vsel %vm2876, %v2874, %v2380
  %v2908 = vsel %vm2876, %v2875, %v2382
  %2909 = vrot.lane.b32.xlu0 %v626, 5
  %v2910 = vpop.permute.xlu0 %2909
  %2911 = vrot.lane.b32.xlu0 %v628, 5
  %v2912 = vpop.permute.xlu0 %2911
  %2913 = vrot.lane.b32.xlu0 %v631, 5
  %v2914 = vpop.permute.xlu0 %2913
  %2915 = vrot.lane.b32.xlu0 %v633, 5
  %v2916 = vpop.permute.xlu0 %2915
  %2917 = vrot.lane.b32.xlu0 %v636, 5
  %v2918 = vpop.permute.xlu0 %2917
  %2919 = vrot.lane.b32.xlu0 %v638, 5
  %v2920 = vpop.permute.xlu0 %2919
  %2921 = vrot.lane.b32.xlu0 %v641, 5
  %v2922 = vpop.permute.xlu0 %2921
  %2923 = vrot.lane.b32.xlu0 %v643, 5
  %v2924 = vpop.permute.xlu0 %2923
  %2925 = vrot.lane.b32.xlu0 %v646, 5
  %v2926 = vpop.permute.xlu0 %2925
  %2927 = vrot.lane.b32.xlu0 %v648, 5
  %v2928 = vpop.permute.xlu0 %2927
  %2929 = vrot.lane.b32.xlu0 %v651, 5
  %v2930 = vpop.permute.xlu0 %2929
  %2931 = vrot.lane.b32.xlu0 %v653, 5
  %v2932 = vpop.permute.xlu0 %2931
  %2933 = vrot.lane.b32.xlu0 %v656, 5
  %v2934 = vpop.permute.xlu0 %2933
  %2935 = vrot.lane.b32.xlu0 %v658, 5
  %v2936 = vpop.permute.xlu0 %2935
  %2937 = vrot.lane.b32.xlu0 %v661, 5
  %v2938 = vpop.permute.xlu0 %2937
  %2939 = vrot.lane.b32.xlu0 %v663, 5
  %v2940 = vpop.permute.xlu0 %2939
  %2941 = vrot.lane.b32.xlu0 %v666, 5
  %v2942 = vpop.permute.xlu0 %2941
  %2943 = vrot.lane.b32.xlu0 %v668, 5
  %v2944 = vpop.permute.xlu0 %2943
  %2945 = vrot.lane.b32.xlu0 %v671, 5
  %v2946 = vpop.permute.xlu0 %2945
  %2947 = vrot.lane.b32.xlu0 %v673, 5
  %v2948 = vpop.permute.xlu0 %2947
  %2949 = vrot.lane.b32.xlu0 %v676, 5
  %v2950 = vpop.permute.xlu0 %2949
  %2951 = vrot.lane.b32.xlu0 %v678, 5
  %v2952 = vpop.permute.xlu0 %2951
  %2953 = vrot.lane.b32.xlu0 %v681, 5
  %v2954 = vpop.permute.xlu0 %2953
  %2955 = vrot.lane.b32.xlu0 %v683, 5
  %v2956 = vpop.permute.xlu0 %2955
  %2957 = vrot.lane.b32.xlu0 %v686, 5
  %v2958 = vpop.permute.xlu0 %2957
  %2959 = vrot.lane.b32.xlu0 %v688, 5
  %v2960 = vpop.permute.xlu0 %2959
  %2961 = vrot.lane.b32.xlu0 %v861, 5
  %v2962 = vpop.permute.xlu0 %2961
  %2963 = vrot.lane.b32.xlu0 %v863, 5
  %v2964 = vpop.permute.xlu0 %2963
  %2965 = vrot.lane.b32.xlu0 %v884, 5
  %v2966 = vpop.permute.xlu0 %2965
  %2967 = vrot.lane.b32.xlu0 %v886, 5
  %v2968 = vpop.permute.xlu0 %2967
  %2969 = vrot.lane.b32.xlu0 %v939, 5
  %v2970 = vpop.permute.xlu0 %2969
  %2971 = vrot.lane.b32.xlu0 %v941, 5
  %v2972 = vpop.permute.xlu0 %2971
  %3005 = vrot.lane.b32.xlu0 %v707, 10
  %v3006 = vpop.permute.xlu0 %3005
  %3007 = vrot.lane.b32.xlu0 %v709, 10
  %v3008 = vpop.permute.xlu0 %3007
  %3009 = vrot.lane.b32.xlu0 %v712, 10
  %v3010 = vpop.permute.xlu0 %3009
  %3011 = vrot.lane.b32.xlu0 %v714, 10
  %v3012 = vpop.permute.xlu0 %3011
  %3013 = vrot.lane.b32.xlu0 %v717, 10
  %v3014 = vpop.permute.xlu0 %3013
  %3015 = vrot.lane.b32.xlu0 %v719, 10
  %v3016 = vpop.permute.xlu0 %3015
  %3017 = vrot.lane.b32.xlu0 %v722, 10
  %v3018 = vpop.permute.xlu0 %3017
  %3019 = vrot.lane.b32.xlu0 %v724, 10
  %v3020 = vpop.permute.xlu0 %3019
  %3021 = vrot.lane.b32.xlu0 %v727, 10
  %v3022 = vpop.permute.xlu0 %3021
  %3023 = vrot.lane.b32.xlu0 %v729, 10
  %v3024 = vpop.permute.xlu0 %3023
  %3025 = vrot.lane.b32.xlu0 %v732, 10
  %v3026 = vpop.permute.xlu0 %3025
  %3027 = vrot.lane.b32.xlu0 %v734, 10
  %v3028 = vpop.permute.xlu0 %3027
  %3029 = vrot.lane.b32.xlu0 %v737, 10
  %v3030 = vpop.permute.xlu0 %3029
  %3031 = vrot.lane.b32.xlu0 %v739, 10
  %v3032 = vpop.permute.xlu0 %3031
  %3033 = vrot.lane.b32.xlu0 %v742, 10
  %v3034 = vpop.permute.xlu0 %3033
  %3035 = vrot.lane.b32.xlu0 %v744, 10
  %v3036 = vpop.permute.xlu0 %3035
  %3037 = vrot.lane.b32.xlu0 %v747, 10
  %v3038 = vpop.permute.xlu0 %3037
  %3039 = vrot.lane.b32.xlu0 %v749, 10
  %v3040 = vpop.permute.xlu0 %3039
  %3041 = vrot.lane.b32.xlu0 %v752, 10
  %v3042 = vpop.permute.xlu0 %3041
  %3043 = vrot.lane.b32.xlu0 %v754, 10
  %v3044 = vpop.permute.xlu0 %3043
  %3045 = vrot.lane.b32.xlu0 %v757, 10
  %v3046 = vpop.permute.xlu0 %3045
  %3047 = vrot.lane.b32.xlu0 %v759, 10
  %v3048 = vpop.permute.xlu0 %3047
  %3049 = vrot.lane.b32.xlu0 %v762, 10
  %v3050 = vpop.permute.xlu0 %3049
  %3051 = vrot.lane.b32.xlu0 %v764, 10
  %v3052 = vpop.permute.xlu0 %3051
  %3053 = vrot.lane.b32.xlu0 %v767, 10
  %v3054 = vpop.permute.xlu0 %3053
  %3055 = vrot.lane.b32.xlu0 %v769, 10
  %v3056 = vpop.permute.xlu0 %3055
  %3057 = vrot.lane.b32.xlu0 %v866, 10
  %v3058 = vpop.permute.xlu0 %3057
  %3059 = vrot.lane.b32.xlu0 %v868, 10
  %v3060 = vpop.permute.xlu0 %3059
  %3061 = vrot.lane.b32.xlu0 %v889, 10
  %v3062 = vpop.permute.xlu0 %3061
  %3063 = vrot.lane.b32.xlu0 %v891, 10
  %v3064 = vpop.permute.xlu0 %3063
  %3065 = vrot.lane.b32.xlu0 %v944, 10
  %v3066 = vpop.permute.xlu0 %3065
  %3067 = vrot.lane.b32.xlu0 %v946, 10
  %v3068 = vpop.permute.xlu0 %3067
  %3101 = vrot.lane.b32.xlu0 %v788, 15
  %v3102 = vpop.permute.xlu0 %3101
  %3103 = vrot.lane.b32.xlu0 %v790, 15
  %v3104 = vpop.permute.xlu0 %3103
  %3105 = vrot.lane.b32.xlu0 %v793, 15
  %v3106 = vpop.permute.xlu0 %3105
  %3107 = vrot.lane.b32.xlu0 %v795, 15
  %v3108 = vpop.permute.xlu0 %3107
  %3109 = vrot.lane.b32.xlu0 %v798, 15
  %v3110 = vpop.permute.xlu0 %3109
  %3111 = vrot.lane.b32.xlu0 %v800, 15
  %v3112 = vpop.permute.xlu0 %3111
  %3113 = vrot.lane.b32.xlu0 %v803, 15
  %v3114 = vpop.permute.xlu0 %3113
  %3115 = vrot.lane.b32.xlu0 %v805, 15
  %v3116 = vpop.permute.xlu0 %3115
  %3117 = vrot.lane.b32.xlu0 %v808, 15
  %v3118 = vpop.permute.xlu0 %3117
  %3119 = vrot.lane.b32.xlu0 %v810, 15
  %v3120 = vpop.permute.xlu0 %3119
  %3121 = vrot.lane.b32.xlu0 %v813, 15
  %v3122 = vpop.permute.xlu0 %3121
  %3123 = vrot.lane.b32.xlu0 %v815, 15
  %v3124 = vpop.permute.xlu0 %3123
  %3125 = vrot.lane.b32.xlu0 %v818, 15
  %v3126 = vpop.permute.xlu0 %3125
  %3127 = vrot.lane.b32.xlu0 %v820, 15
  %v3128 = vpop.permute.xlu0 %3127
  %3129 = vrot.lane.b32.xlu0 %v823, 15
  %v3130 = vpop.permute.xlu0 %3129
  %3131 = vrot.lane.b32.xlu0 %v825, 15
  %v3132 = vpop.permute.xlu0 %3131
  %3133 = vrot.lane.b32.xlu0 %v828, 15
  %v3134 = vpop.permute.xlu0 %3133
  %3135 = vrot.lane.b32.xlu0 %v830, 15
  %v3136 = vpop.permute.xlu0 %3135
  %3137 = vrot.lane.b32.xlu0 %v833, 15
  %v3138 = vpop.permute.xlu0 %3137
  %3139 = vrot.lane.b32.xlu0 %v835, 15
  %v3140 = vpop.permute.xlu0 %3139
  %3141 = vrot.lane.b32.xlu0 %v838, 15
  %v3142 = vpop.permute.xlu0 %3141
  %3143 = vrot.lane.b32.xlu0 %v840, 15
  %v3144 = vpop.permute.xlu0 %3143
  %3145 = vrot.lane.b32.xlu0 %v843, 15
  %v3146 = vpop.permute.xlu0 %3145
  %3147 = vrot.lane.b32.xlu0 %v845, 15
  %v3148 = vpop.permute.xlu0 %3147
  %3149 = vrot.lane.b32.xlu0 %v848, 15
  %v3150 = vpop.permute.xlu0 %3149
  %3151 = vrot.lane.b32.xlu0 %v850, 15
  %v3152 = vpop.permute.xlu0 %3151
  %3153 = vrot.lane.b32.xlu0 %v871, 15
  %v3154 = vpop.permute.xlu0 %3153
  %3155 = vrot.lane.b32.xlu0 %v873, 15
  %v3156 = vpop.permute.xlu0 %3155
  %3157 = vrot.lane.b32.xlu0 %v894, 15
  %v3158 = vpop.permute.xlu0 %3157
  %3159 = vrot.lane.b32.xlu0 %v896, 15
  %v3160 = vpop.permute.xlu0 %3159
  %3161 = vrot.lane.b32.xlu0 %v949, 15
  %v3162 = vpop.permute.xlu0 %3161
  %3163 = vrot.lane.b32.xlu0 %v951, 15
  %v3164 = vpop.permute.xlu0 %3163
  %3197 = vrot.lane.b32.xlu0 %v431, 20
  %v3198 = vpop.permute.xlu0 %3197
  %3199 = vrot.lane.b32.xlu0 %v432, 20
  %v3200 = vpop.permute.xlu0 %3199
  %3201 = vrot.lane.b32.xlu0 %v434, 20
  %v3202 = vpop.permute.xlu0 %3201
  %3203 = vrot.lane.b32.xlu0 %v435, 20
  %v3204 = vpop.permute.xlu0 %3203
  %3205 = vrot.lane.b32.xlu0 %v437, 20
  %v3206 = vpop.permute.xlu0 %3205
  %3207 = vrot.lane.b32.xlu0 %v438, 20
  %v3208 = vpop.permute.xlu0 %3207
  %3209 = vrot.lane.b32.xlu0 %v440, 20
  %v3210 = vpop.permute.xlu0 %3209
  %3211 = vrot.lane.b32.xlu0 %v441, 20
  %v3212 = vpop.permute.xlu0 %3211
  %3213 = vrot.lane.b32.xlu0 %v443, 20
  %v3214 = vpop.permute.xlu0 %3213
  %3215 = vrot.lane.b32.xlu0 %v444, 20
  %v3216 = vpop.permute.xlu0 %3215
  %3217 = vrot.lane.b32.xlu0 %v446, 20
  %v3218 = vpop.permute.xlu0 %3217
  %3219 = vrot.lane.b32.xlu0 %v447, 20
  %v3220 = vpop.permute.xlu0 %3219
  %3221 = vrot.lane.b32.xlu0 %v449, 20
  %v3222 = vpop.permute.xlu0 %3221
  %3223 = vrot.lane.b32.xlu0 %v450, 20
  %v3224 = vpop.permute.xlu0 %3223
  %3225 = vrot.lane.b32.xlu0 %v452, 20
  %v3226 = vpop.permute.xlu0 %3225
  %3227 = vrot.lane.b32.xlu0 %v453, 20
  %v3228 = vpop.permute.xlu0 %3227
  %3229 = vrot.lane.b32.xlu0 %v455, 20
  %v3230 = vpop.permute.xlu0 %3229
  %3231 = vrot.lane.b32.xlu0 %v456, 20
  %v3232 = vpop.permute.xlu0 %3231
  %3233 = vrot.lane.b32.xlu0 %v458, 20
  %v3234 = vpop.permute.xlu0 %3233
  %3235 = vrot.lane.b32.xlu0 %v459, 20
  %v3236 = vpop.permute.xlu0 %3235
  %3237 = vrot.lane.b32.xlu0 %v461, 20
  %v3238 = vpop.permute.xlu0 %3237
  %3239 = vrot.lane.b32.xlu0 %v462, 20
  %v3240 = vpop.permute.xlu0 %3239
  %3241 = vrot.lane.b32.xlu0 %v464, 20
  %v3242 = vpop.permute.xlu0 %3241
  %3243 = vrot.lane.b32.xlu0 %v465, 20
  %v3244 = vpop.permute.xlu0 %3243
  %3245 = vrot.lane.b32.xlu0 %v467, 20
  %v3246 = vpop.permute.xlu0 %3245
  %3247 = vrot.lane.b32.xlu0 %v468, 20
  %v3248 = vpop.permute.xlu0 %3247
  %3249 = vrot.lane.b32.xlu0 %v470, 20
  %v3250 = vpop.permute.xlu0 %3249
  %3251 = vrot.lane.b32.xlu0 %v471, 20
  %v3252 = vpop.permute.xlu0 %3251
  %3253 = vrot.lane.b32.xlu0 %v473, 20
  %v3254 = vpop.permute.xlu0 %3253
  %3255 = vrot.lane.b32.xlu0 %v474, 20
  %v3256 = vpop.permute.xlu0 %3255
  %3257 = vrot.lane.b32.xlu0 %v476, 20
  %v3258 = vpop.permute.xlu0 %3257
  %3259 = vrot.lane.b32.xlu0 %v477, 20
  %v3260 = vpop.permute.xlu0 %3259
  %3293 = vrot.lane.b32.xlu0 %v550, 25
  %v3294 = vpop.permute.xlu0 %3293
  %3295 = vrot.lane.b32.xlu0 %v552, 25
  %v3296 = vpop.permute.xlu0 %3295
  %3297 = vrot.lane.b32.xlu0 %v555, 25
  %v3298 = vpop.permute.xlu0 %3297
  %3299 = vrot.lane.b32.xlu0 %v557, 25
  %v3300 = vpop.permute.xlu0 %3299
  %3301 = vrot.lane.b32.xlu0 %v560, 25
  %v3302 = vpop.permute.xlu0 %3301
  %3303 = vrot.lane.b32.xlu0 %v562, 25
  %v3304 = vpop.permute.xlu0 %3303
  %3305 = vrot.lane.b32.xlu0 %v565, 25
  %v3306 = vpop.permute.xlu0 %3305
  %3307 = vrot.lane.b32.xlu0 %v567, 25
  %v3308 = vpop.permute.xlu0 %3307
  %3309 = vrot.lane.b32.xlu0 %v570, 25
  %v3310 = vpop.permute.xlu0 %3309
  %3311 = vrot.lane.b32.xlu0 %v572, 25
  %v3312 = vpop.permute.xlu0 %3311
  %3313 = vrot.lane.b32.xlu0 %v575, 25
  %v3314 = vpop.permute.xlu0 %3313
  %3315 = vrot.lane.b32.xlu0 %v577, 25
  %v3316 = vpop.permute.xlu0 %3315
  %3317 = vrot.lane.b32.xlu0 %v580, 25
  %v3318 = vpop.permute.xlu0 %3317
  %3319 = vrot.lane.b32.xlu0 %v582, 25
  %v3320 = vpop.permute.xlu0 %3319
  %3321 = vrot.lane.b32.xlu0 %v585, 25
  %v3322 = vpop.permute.xlu0 %3321
  %3323 = vrot.lane.b32.xlu0 %v587, 25
  %v3324 = vpop.permute.xlu0 %3323
  %3325 = vrot.lane.b32.xlu0 %v590, 25
  %v3326 = vpop.permute.xlu0 %3325
  %3327 = vrot.lane.b32.xlu0 %v592, 25
  %v3328 = vpop.permute.xlu0 %3327
  %3329 = vrot.lane.b32.xlu0 %v595, 25
  %v3330 = vpop.permute.xlu0 %3329
  %3331 = vrot.lane.b32.xlu0 %v597, 25
  %v3332 = vpop.permute.xlu0 %3331
  %3333 = vrot.lane.b32.xlu0 %v600, 25
  %v3334 = vpop.permute.xlu0 %3333
  %3335 = vrot.lane.b32.xlu0 %v602, 25
  %v3336 = vpop.permute.xlu0 %3335
  %3337 = vrot.lane.b32.xlu0 %v605, 25
  %v3338 = vpop.permute.xlu0 %3337
  %3339 = vrot.lane.b32.xlu0 %v607, 25
  %v3340 = vpop.permute.xlu0 %3339
  %3341 = vrot.lane.b32.xlu0 %v856, 25
  %v3342 = vpop.permute.xlu0 %3341
  %3343 = vrot.lane.b32.xlu0 %v858, 25
  %v3344 = vpop.permute.xlu0 %3343
  %3345 = vrot.lane.b32.xlu0 %v879, 25
  %v3346 = vpop.permute.xlu0 %3345
  %3347 = vrot.lane.b32.xlu0 %v881, 25
  %v3348 = vpop.permute.xlu0 %3347
  %3349 = vrot.lane.b32.xlu0 %v902, 25
  %v3350 = vpop.permute.xlu0 %3349
  %3351 = vrot.lane.b32.xlu0 %v904, 25
  %v3352 = vpop.permute.xlu0 %3351
  %3353 = vrot.lane.b32.xlu0 %v957, 25
  %v3354 = vpop.permute.xlu0 %3353
  %3355 = vrot.lane.b32.xlu0 %v959, 25
  %v3356 = vpop.permute.xlu0 %3355
  %3389 = vrot.lane.b32.xlu0 %v631, 30
  %v3390 = vpop.permute.xlu0 %3389
  %3391 = vrot.lane.b32.xlu0 %v633, 30
  %v3392 = vpop.permute.xlu0 %3391
  %3393 = vrot.lane.b32.xlu0 %v636, 30
  %v3394 = vpop.permute.xlu0 %3393
  %3395 = vrot.lane.b32.xlu0 %v638, 30
  %v3396 = vpop.permute.xlu0 %3395
  %3397 = vrot.lane.b32.xlu0 %v641, 30
  %v3398 = vpop.permute.xlu0 %3397
  %3399 = vrot.lane.b32.xlu0 %v643, 30
  %v3400 = vpop.permute.xlu0 %3399
  %3401 = vrot.lane.b32.xlu0 %v646, 30
  %v3402 = vpop.permute.xlu0 %3401
  %3403 = vrot.lane.b32.xlu0 %v648, 30
  %v3404 = vpop.permute.xlu0 %3403
  %3405 = vrot.lane.b32.xlu0 %v651, 30
  %v3406 = vpop.permute.xlu0 %3405
  %3407 = vrot.lane.b32.xlu0 %v653, 30
  %v3408 = vpop.permute.xlu0 %3407
  %3409 = vrot.lane.b32.xlu0 %v656, 30
  %v3410 = vpop.permute.xlu0 %3409
  %3411 = vrot.lane.b32.xlu0 %v658, 30
  %v3412 = vpop.permute.xlu0 %3411
  %3413 = vrot.lane.b32.xlu0 %v661, 30
  %v3414 = vpop.permute.xlu0 %3413
  %3415 = vrot.lane.b32.xlu0 %v663, 30
  %v3416 = vpop.permute.xlu0 %3415
  %3417 = vrot.lane.b32.xlu0 %v666, 30
  %v3418 = vpop.permute.xlu0 %3417
  %3419 = vrot.lane.b32.xlu0 %v668, 30
  %v3420 = vpop.permute.xlu0 %3419
  %3421 = vrot.lane.b32.xlu0 %v671, 30
  %v3422 = vpop.permute.xlu0 %3421
  %3423 = vrot.lane.b32.xlu0 %v673, 30
  %v3424 = vpop.permute.xlu0 %3423
  %3425 = vrot.lane.b32.xlu0 %v676, 30
  %v3426 = vpop.permute.xlu0 %3425
  %3427 = vrot.lane.b32.xlu0 %v678, 30
  %v3428 = vpop.permute.xlu0 %3427
  %3429 = vrot.lane.b32.xlu0 %v681, 30
  %v3430 = vpop.permute.xlu0 %3429
  %3431 = vrot.lane.b32.xlu0 %v683, 30
  %v3432 = vpop.permute.xlu0 %3431
  %3433 = vrot.lane.b32.xlu0 %v686, 30
  %v3434 = vpop.permute.xlu0 %3433
  %3435 = vrot.lane.b32.xlu0 %v688, 30
  %v3436 = vpop.permute.xlu0 %3435
  %3437 = vrot.lane.b32.xlu0 %v861, 30
  %v3438 = vpop.permute.xlu0 %3437
  %3439 = vrot.lane.b32.xlu0 %v863, 30
  %v3440 = vpop.permute.xlu0 %3439
  %3441 = vrot.lane.b32.xlu0 %v884, 30
  %v3442 = vpop.permute.xlu0 %3441
  %3443 = vrot.lane.b32.xlu0 %v886, 30
  %v3444 = vpop.permute.xlu0 %3443
  %3445 = vrot.lane.b32.xlu0 %v939, 30
  %v3446 = vpop.permute.xlu0 %3445
  %3447 = vrot.lane.b32.xlu0 %v941, 30
  %v3448 = vpop.permute.xlu0 %3447
  %3449 = vrot.lane.b32.xlu0 %v962, 30
  %v3450 = vpop.permute.xlu0 %3449
  %3451 = vrot.lane.b32.xlu0 %v964, 30
  %v3452 = vpop.permute.xlu0 %3451
  %3485 = vrot.lane.b32.xlu0 %v712, 35
  %v3486 = vpop.permute.xlu0 %3485
  %3487 = vrot.lane.b32.xlu0 %v714, 35
  %v3488 = vpop.permute.xlu0 %3487
  %3489 = vrot.lane.b32.xlu0 %v717, 35
  %v3490 = vpop.permute.xlu0 %3489
  %3491 = vrot.lane.b32.xlu0 %v719, 35
  %v3492 = vpop.permute.xlu0 %3491
  %3493 = vrot.lane.b32.xlu0 %v722, 35
  %v3494 = vpop.permute.xlu0 %3493
  %3495 = vrot.lane.b32.xlu0 %v724, 35
  %v3496 = vpop.permute.xlu0 %3495
  %3497 = vrot.lane.b32.xlu0 %v727, 35
  %v3498 = vpop.permute.xlu0 %3497
  %3499 = vrot.lane.b32.xlu0 %v729, 35
  %v3500 = vpop.permute.xlu0 %3499
  %3501 = vrot.lane.b32.xlu0 %v732, 35
  %v3502 = vpop.permute.xlu0 %3501
  %3503 = vrot.lane.b32.xlu0 %v734, 35
  %v3504 = vpop.permute.xlu0 %3503
  %3505 = vrot.lane.b32.xlu0 %v737, 35
  %v3506 = vpop.permute.xlu0 %3505
  %3507 = vrot.lane.b32.xlu0 %v739, 35
  %v3508 = vpop.permute.xlu0 %3507
  %3509 = vrot.lane.b32.xlu0 %v742, 35
  %v3510 = vpop.permute.xlu0 %3509
  %3511 = vrot.lane.b32.xlu0 %v744, 35
  %v3512 = vpop.permute.xlu0 %3511
  %3513 = vrot.lane.b32.xlu0 %v747, 35
  %v3514 = vpop.permute.xlu0 %3513
  %3515 = vrot.lane.b32.xlu0 %v749, 35
  %v3516 = vpop.permute.xlu0 %3515
  %3517 = vrot.lane.b32.xlu0 %v752, 35
  %v3518 = vpop.permute.xlu0 %3517
  %3519 = vrot.lane.b32.xlu0 %v754, 35
  %v3520 = vpop.permute.xlu0 %3519
  %3521 = vrot.lane.b32.xlu0 %v757, 35
  %v3522 = vpop.permute.xlu0 %3521
  %3523 = vrot.lane.b32.xlu0 %v759, 35
  %v3524 = vpop.permute.xlu0 %3523
  %3525 = vrot.lane.b32.xlu0 %v762, 35
  %v3526 = vpop.permute.xlu0 %3525
  %3527 = vrot.lane.b32.xlu0 %v764, 35
  %v3528 = vpop.permute.xlu0 %3527
  %3529 = vrot.lane.b32.xlu0 %v767, 35
  %v3530 = vpop.permute.xlu0 %3529
  %3531 = vrot.lane.b32.xlu0 %v769, 35
  %v3532 = vpop.permute.xlu0 %3531
  %3533 = vrot.lane.b32.xlu0 %v866, 35
  %v3534 = vpop.permute.xlu0 %3533
  %3535 = vrot.lane.b32.xlu0 %v868, 35
  %v3536 = vpop.permute.xlu0 %3535
  %3537 = vrot.lane.b32.xlu0 %v889, 35
  %v3538 = vpop.permute.xlu0 %3537
  %3539 = vrot.lane.b32.xlu0 %v891, 35
  %v3540 = vpop.permute.xlu0 %3539
  %3541 = vrot.lane.b32.xlu0 %v944, 35
  %v3542 = vpop.permute.xlu0 %3541
  %3543 = vrot.lane.b32.xlu0 %v946, 35
  %v3544 = vpop.permute.xlu0 %3543
  %3545 = vrot.lane.b32.xlu0 %v967, 35
  %v3546 = vpop.permute.xlu0 %3545
  %3547 = vrot.lane.b32.xlu0 %v969, 35
  %v3548 = vpop.permute.xlu0 %3547
  %3581 = vrot.lane.b32.xlu0 %v793, 40
  %v3582 = vpop.permute.xlu0 %3581
  %3583 = vrot.lane.b32.xlu0 %v795, 40
  %v3584 = vpop.permute.xlu0 %3583
  %3585 = vrot.lane.b32.xlu0 %v798, 40
  %v3586 = vpop.permute.xlu0 %3585
  %3587 = vrot.lane.b32.xlu0 %v800, 40
  %v3588 = vpop.permute.xlu0 %3587
  %3589 = vrot.lane.b32.xlu0 %v803, 40
  %v3590 = vpop.permute.xlu0 %3589
  %3591 = vrot.lane.b32.xlu0 %v805, 40
  %v3592 = vpop.permute.xlu0 %3591
  %3593 = vrot.lane.b32.xlu0 %v808, 40
  %v3594 = vpop.permute.xlu0 %3593
  %3595 = vrot.lane.b32.xlu0 %v810, 40
  %v3596 = vpop.permute.xlu0 %3595
  %3597 = vrot.lane.b32.xlu0 %v813, 40
  %v3598 = vpop.permute.xlu0 %3597
  %3599 = vrot.lane.b32.xlu0 %v815, 40
  %v3600 = vpop.permute.xlu0 %3599
  %3601 = vrot.lane.b32.xlu0 %v818, 40
  %v3602 = vpop.permute.xlu0 %3601
  %3603 = vrot.lane.b32.xlu0 %v820, 40
  %v3604 = vpop.permute.xlu0 %3603
  %3605 = vrot.lane.b32.xlu0 %v823, 40
  %v3606 = vpop.permute.xlu0 %3605
  %3607 = vrot.lane.b32.xlu0 %v825, 40
  %v3608 = vpop.permute.xlu0 %3607
  %3609 = vrot.lane.b32.xlu0 %v828, 40
  %v3610 = vpop.permute.xlu0 %3609
  %3611 = vrot.lane.b32.xlu0 %v830, 40
  %v3612 = vpop.permute.xlu0 %3611
  %3613 = vrot.lane.b32.xlu0 %v833, 40
  %v3614 = vpop.permute.xlu0 %3613
  %3615 = vrot.lane.b32.xlu0 %v835, 40
  %v3616 = vpop.permute.xlu0 %3615
  %3617 = vrot.lane.b32.xlu0 %v838, 40
  %v3618 = vpop.permute.xlu0 %3617
  %3619 = vrot.lane.b32.xlu0 %v840, 40
  %v3620 = vpop.permute.xlu0 %3619
  %3621 = vrot.lane.b32.xlu0 %v843, 40
  %v3622 = vpop.permute.xlu0 %3621
  %3623 = vrot.lane.b32.xlu0 %v845, 40
  %v3624 = vpop.permute.xlu0 %3623
  %3625 = vrot.lane.b32.xlu0 %v848, 40
  %v3626 = vpop.permute.xlu0 %3625
  %3627 = vrot.lane.b32.xlu0 %v850, 40
  %v3628 = vpop.permute.xlu0 %3627
  %3629 = vrot.lane.b32.xlu0 %v871, 40
  %v3630 = vpop.permute.xlu0 %3629
  %3631 = vrot.lane.b32.xlu0 %v873, 40
  %v3632 = vpop.permute.xlu0 %3631
  %3633 = vrot.lane.b32.xlu0 %v894, 40
  %v3634 = vpop.permute.xlu0 %3633
  %3635 = vrot.lane.b32.xlu0 %v896, 40
  %v3636 = vpop.permute.xlu0 %3635
  %3637 = vrot.lane.b32.xlu0 %v949, 40
  %v3638 = vpop.permute.xlu0 %3637
  %3639 = vrot.lane.b32.xlu0 %v951, 40
  %v3640 = vpop.permute.xlu0 %3639
  %3641 = vrot.lane.b32.xlu0 %v972, 40
  %v3642 = vpop.permute.xlu0 %3641
  %3643 = vrot.lane.b32.xlu0 %v974, 40
  %v3644 = vpop.permute.xlu0 %3643
  %v3677 = vsel %vm324, %v545, %v2910
  %v3678 = vsel %vm324, %v547, %v2912
  %v3679 = vsel %vm324, %v550, %v2914
  %v3680 = vsel %vm324, %v552, %v2916
  %v3681 = vsel %vm324, %v555, %v2918
  %v3682 = vsel %vm324, %v557, %v2920
  %v3683 = vsel %vm324, %v560, %v2922
  %v3684 = vsel %vm324, %v562, %v2924
  %v3685 = vsel %vm324, %v565, %v2926
  %v3686 = vsel %vm324, %v567, %v2928
  %v3687 = vsel %vm324, %v570, %v2930
  %v3688 = vsel %vm324, %v572, %v2932
  %v3689 = vsel %vm324, %v575, %v2934
  %v3690 = vsel %vm324, %v577, %v2936
  %v3691 = vsel %vm324, %v580, %v2938
  %v3692 = vsel %vm324, %v582, %v2940
  %v3693 = vsel %vm324, %v585, %v2942
  %v3694 = vsel %vm324, %v587, %v2944
  %v3695 = vsel %vm324, %v590, %v2946
  %v3696 = vsel %vm324, %v592, %v2948
  %v3697 = vsel %vm324, %v595, %v2950
  %v3698 = vsel %vm324, %v597, %v2952
  %v3699 = vsel %vm324, %v600, %v2954
  %v3700 = vsel %vm324, %v602, %v2956
  %v3701 = vsel %vm324, %v605, %v2958
  %v3702 = vsel %vm324, %v607, %v2960
  %v3703 = vsel %vm324, %v856, %v2962
  %v3704 = vsel %vm324, %v858, %v2964
  %v3705 = vsel %vm324, %v879, %v2966
  %v3706 = vsel %vm324, %v881, %v2968
  %v3707 = vsel %vm324, %v902, %v2970
  %v3708 = vsel %vm324, %v904, %v2972
  %v3709 = vsel %vm2447, %v3677, %v3006
  %v3710 = vsel %vm2447, %v3678, %v3008
  %v3711 = vsel %vm2447, %v3679, %v3010
  %v3712 = vsel %vm2447, %v3680, %v3012
  %v3713 = vsel %vm2447, %v3681, %v3014
  %v3714 = vsel %vm2447, %v3682, %v3016
  %v3715 = vsel %vm2447, %v3683, %v3018
  %v3716 = vsel %vm2447, %v3684, %v3020
  %v3717 = vsel %vm2447, %v3685, %v3022
  %v3718 = vsel %vm2447, %v3686, %v3024
  %v3719 = vsel %vm2447, %v3687, %v3026
  %v3720 = vsel %vm2447, %v3688, %v3028
  %v3721 = vsel %vm2447, %v3689, %v3030
  %v3722 = vsel %vm2447, %v3690, %v3032
  %v3723 = vsel %vm2447, %v3691, %v3034
  %v3724 = vsel %vm2447, %v3692, %v3036
  %v3725 = vsel %vm2447, %v3693, %v3038
  %v3726 = vsel %vm2447, %v3694, %v3040
  %v3727 = vsel %vm2447, %v3695, %v3042
  %v3728 = vsel %vm2447, %v3696, %v3044
  %v3729 = vsel %vm2447, %v3697, %v3046
  %v3730 = vsel %vm2447, %v3698, %v3048
  %v3731 = vsel %vm2447, %v3699, %v3050
  %v3732 = vsel %vm2447, %v3700, %v3052
  %v3733 = vsel %vm2447, %v3701, %v3054
  %v3734 = vsel %vm2447, %v3702, %v3056
  %v3735 = vsel %vm2447, %v3703, %v3058
  %v3736 = vsel %vm2447, %v3704, %v3060
  %v3737 = vsel %vm2447, %v3705, %v3062
  %v3738 = vsel %vm2447, %v3706, %v3064
  %v3739 = vsel %vm2447, %v3707, %v3066
  %v3740 = vsel %vm2447, %v3708, %v3068
  %v3741 = vsel %vm2480, %v3709, %v3102
  %v3742 = vsel %vm2480, %v3710, %v3104
  %v3743 = vsel %vm2480, %v3711, %v3106
  %v3744 = vsel %vm2480, %v3712, %v3108
  %v3745 = vsel %vm2480, %v3713, %v3110
  %v3746 = vsel %vm2480, %v3714, %v3112
  %v3747 = vsel %vm2480, %v3715, %v3114
  %v3748 = vsel %vm2480, %v3716, %v3116
  %v3749 = vsel %vm2480, %v3717, %v3118
  %v3750 = vsel %vm2480, %v3718, %v3120
  %v3751 = vsel %vm2480, %v3719, %v3122
  %v3752 = vsel %vm2480, %v3720, %v3124
  %v3753 = vsel %vm2480, %v3721, %v3126
  %v3754 = vsel %vm2480, %v3722, %v3128
  %v3755 = vsel %vm2480, %v3723, %v3130
  %v3756 = vsel %vm2480, %v3724, %v3132
  %v3757 = vsel %vm2480, %v3725, %v3134
  %v3758 = vsel %vm2480, %v3726, %v3136
  %v3759 = vsel %vm2480, %v3727, %v3138
  %v3760 = vsel %vm2480, %v3728, %v3140
  %v3761 = vsel %vm2480, %v3729, %v3142
  %v3762 = vsel %vm2480, %v3730, %v3144
  %v3763 = vsel %vm2480, %v3731, %v3146
  %v3764 = vsel %vm2480, %v3732, %v3148
  %v3765 = vsel %vm2480, %v3733, %v3150
  %v3766 = vsel %vm2480, %v3734, %v3152
  %v3767 = vsel %vm2480, %v3735, %v3154
  %v3768 = vsel %vm2480, %v3736, %v3156
  %v3769 = vsel %vm2480, %v3737, %v3158
  %v3770 = vsel %vm2480, %v3738, %v3160
  %v3771 = vsel %vm2480, %v3739, %v3162
  %v3772 = vsel %vm2480, %v3740, %v3164
  %v3773 = vsel %vm2513, %v3741, %v3198
  %v3774 = vsel %vm2513, %v3742, %v3200
  %v3775 = vsel %vm2513, %v3743, %v3202
  %v3776 = vsel %vm2513, %v3744, %v3204
  %v3777 = vsel %vm2513, %v3745, %v3206
  %v3778 = vsel %vm2513, %v3746, %v3208
  %v3779 = vsel %vm2513, %v3747, %v3210
  %v3780 = vsel %vm2513, %v3748, %v3212
  %v3781 = vsel %vm2513, %v3749, %v3214
  %v3782 = vsel %vm2513, %v3750, %v3216
  %v3783 = vsel %vm2513, %v3751, %v3218
  %v3784 = vsel %vm2513, %v3752, %v3220
  %v3785 = vsel %vm2513, %v3753, %v3222
  %v3786 = vsel %vm2513, %v3754, %v3224
  %v3787 = vsel %vm2513, %v3755, %v3226
  %v3788 = vsel %vm2513, %v3756, %v3228
  %v3789 = vsel %vm2513, %v3757, %v3230
  %v3790 = vsel %vm2513, %v3758, %v3232
  %v3791 = vsel %vm2513, %v3759, %v3234
  %v3792 = vsel %vm2513, %v3760, %v3236
  %v3793 = vsel %vm2513, %v3761, %v3238
  %v3794 = vsel %vm2513, %v3762, %v3240
  %v3795 = vsel %vm2513, %v3763, %v3242
  %v3796 = vsel %vm2513, %v3764, %v3244
  %v3797 = vsel %vm2513, %v3765, %v3246
  %v3798 = vsel %vm2513, %v3766, %v3248
  %v3799 = vsel %vm2513, %v3767, %v3250
  %v3800 = vsel %vm2513, %v3768, %v3252
  %v3801 = vsel %vm2513, %v3769, %v3254
  %v3802 = vsel %vm2513, %v3770, %v3256
  %v3803 = vsel %vm2513, %v3771, %v3258
  %v3804 = vsel %vm2513, %v3772, %v3260
  %v3805 = vsel %vm2546, %v3773, %v3294
  %v3806 = vsel %vm2546, %v3774, %v3296
  %v3807 = vsel %vm2546, %v3775, %v3298
  %v3808 = vsel %vm2546, %v3776, %v3300
  %v3809 = vsel %vm2546, %v3777, %v3302
  %v3810 = vsel %vm2546, %v3778, %v3304
  %v3811 = vsel %vm2546, %v3779, %v3306
  %v3812 = vsel %vm2546, %v3780, %v3308
  %v3813 = vsel %vm2546, %v3781, %v3310
  %v3814 = vsel %vm2546, %v3782, %v3312
  %v3815 = vsel %vm2546, %v3783, %v3314
  %v3816 = vsel %vm2546, %v3784, %v3316
  %v3817 = vsel %vm2546, %v3785, %v3318
  %v3818 = vsel %vm2546, %v3786, %v3320
  %v3819 = vsel %vm2546, %v3787, %v3322
  %v3820 = vsel %vm2546, %v3788, %v3324
  %v3821 = vsel %vm2546, %v3789, %v3326
  %v3822 = vsel %vm2546, %v3790, %v3328
  %v3823 = vsel %vm2546, %v3791, %v3330
  %v3824 = vsel %vm2546, %v3792, %v3332
  %v3825 = vsel %vm2546, %v3793, %v3334
  %v3826 = vsel %vm2546, %v3794, %v3336
  %v3827 = vsel %vm2546, %v3795, %v3338
  %v3828 = vsel %vm2546, %v3796, %v3340
  %v3829 = vsel %vm2546, %v3797, %v3342
  %v3830 = vsel %vm2546, %v3798, %v3344
  %v3831 = vsel %vm2546, %v3799, %v3346
  %v3832 = vsel %vm2546, %v3800, %v3348
  %v3833 = vsel %vm2546, %v3801, %v3350
  %v3834 = vsel %vm2546, %v3802, %v3352
  %v3835 = vsel %vm2546, %v3803, %v3354
  %v3836 = vsel %vm2546, %v3804, %v3356
  %v3837 = vsel %vm2579, %v3805, %v3390
  %v3838 = vsel %vm2579, %v3806, %v3392
  %v3839 = vsel %vm2579, %v3807, %v3394
  %v3840 = vsel %vm2579, %v3808, %v3396
  %v3841 = vsel %vm2579, %v3809, %v3398
  %v3842 = vsel %vm2579, %v3810, %v3400
  %v3843 = vsel %vm2579, %v3811, %v3402
  %v3844 = vsel %vm2579, %v3812, %v3404
  %v3845 = vsel %vm2579, %v3813, %v3406
  %v3846 = vsel %vm2579, %v3814, %v3408
  %v3847 = vsel %vm2579, %v3815, %v3410
  %v3848 = vsel %vm2579, %v3816, %v3412
  %v3849 = vsel %vm2579, %v3817, %v3414
  %v3850 = vsel %vm2579, %v3818, %v3416
  %v3851 = vsel %vm2579, %v3819, %v3418
  %v3852 = vsel %vm2579, %v3820, %v3420
  %v3853 = vsel %vm2579, %v3821, %v3422
  %v3854 = vsel %vm2579, %v3822, %v3424
  %v3855 = vsel %vm2579, %v3823, %v3426
  %v3856 = vsel %vm2579, %v3824, %v3428
  %v3857 = vsel %vm2579, %v3825, %v3430
  %v3858 = vsel %vm2579, %v3826, %v3432
  %v3859 = vsel %vm2579, %v3827, %v3434
  %v3860 = vsel %vm2579, %v3828, %v3436
  %v3861 = vsel %vm2579, %v3829, %v3438
  %v3862 = vsel %vm2579, %v3830, %v3440
  %v3863 = vsel %vm2579, %v3831, %v3442
  %v3864 = vsel %vm2579, %v3832, %v3444
  %v3865 = vsel %vm2579, %v3833, %v3446
  %v3866 = vsel %vm2579, %v3834, %v3448
  %v3867 = vsel %vm2579, %v3835, %v3450
  %v3868 = vsel %vm2579, %v3836, %v3452
  %v3869 = vsel %vm2612, %v3837, %v3486
  %v3870 = vsel %vm2612, %v3838, %v3488
  %v3871 = vsel %vm2612, %v3839, %v3490
  %v3872 = vsel %vm2612, %v3840, %v3492
  %v3873 = vsel %vm2612, %v3841, %v3494
  %v3874 = vsel %vm2612, %v3842, %v3496
  %v3875 = vsel %vm2612, %v3843, %v3498
  %v3876 = vsel %vm2612, %v3844, %v3500
  %v3877 = vsel %vm2612, %v3845, %v3502
  %v3878 = vsel %vm2612, %v3846, %v3504
  %v3879 = vsel %vm2612, %v3847, %v3506
  %v3880 = vsel %vm2612, %v3848, %v3508
  %v3881 = vsel %vm2612, %v3849, %v3510
  %v3882 = vsel %vm2612, %v3850, %v3512
  %v3883 = vsel %vm2612, %v3851, %v3514
  %v3884 = vsel %vm2612, %v3852, %v3516
  %v3885 = vsel %vm2612, %v3853, %v3518
  %v3886 = vsel %vm2612, %v3854, %v3520
  %v3887 = vsel %vm2612, %v3855, %v3522
  %v3888 = vsel %vm2612, %v3856, %v3524
  %v3889 = vsel %vm2612, %v3857, %v3526
  %v3890 = vsel %vm2612, %v3858, %v3528
  %v3891 = vsel %vm2612, %v3859, %v3530
  %v3892 = vsel %vm2612, %v3860, %v3532
  %v3893 = vsel %vm2612, %v3861, %v3534
  %v3894 = vsel %vm2612, %v3862, %v3536
  %v3895 = vsel %vm2612, %v3863, %v3538
  %v3896 = vsel %vm2612, %v3864, %v3540
  %v3897 = vsel %vm2612, %v3865, %v3542
  %v3898 = vsel %vm2612, %v3866, %v3544
  %v3899 = vsel %vm2612, %v3867, %v3546
  %v3900 = vsel %vm2612, %v3868, %v3548
  %v3901 = vsel %vm2645, %v3869, %v3582
  %v3902 = vsel %vm2645, %v3870, %v3584
  %v3903 = vsel %vm2645, %v3871, %v3586
  %v3904 = vsel %vm2645, %v3872, %v3588
  %v3905 = vsel %vm2645, %v3873, %v3590
  %v3906 = vsel %vm2645, %v3874, %v3592
  %v3907 = vsel %vm2645, %v3875, %v3594
  %v3908 = vsel %vm2645, %v3876, %v3596
  %v3909 = vsel %vm2645, %v3877, %v3598
  %v3910 = vsel %vm2645, %v3878, %v3600
  %v3911 = vsel %vm2645, %v3879, %v3602
  %v3912 = vsel %vm2645, %v3880, %v3604
  %v3913 = vsel %vm2645, %v3881, %v3606
  %v3914 = vsel %vm2645, %v3882, %v3608
  %v3915 = vsel %vm2645, %v3883, %v3610
  %v3916 = vsel %vm2645, %v3884, %v3612
  %v3917 = vsel %vm2645, %v3885, %v3614
  %v3918 = vsel %vm2645, %v3886, %v3616
  %v3919 = vsel %vm2645, %v3887, %v3618
  %v3920 = vsel %vm2645, %v3888, %v3620
  %v3921 = vsel %vm2645, %v3889, %v3622
  %v3922 = vsel %vm2645, %v3890, %v3624
  %v3923 = vsel %vm2645, %v3891, %v3626
  %v3924 = vsel %vm2645, %v3892, %v3628
  %v3925 = vsel %vm2645, %v3893, %v3630
  %v3926 = vsel %vm2645, %v3894, %v3632
  %v3927 = vsel %vm2645, %v3895, %v3634
  %v3928 = vsel %vm2645, %v3896, %v3636
  %v3929 = vsel %vm2645, %v3897, %v3638
  %v3930 = vsel %vm2645, %v3898, %v3640
  %v3931 = vsel %vm2645, %v3899, %v3642
  %v3932 = vsel %vm2645, %v3900, %v3644
  %3965 = vrot.lane.b32.xlu0 %v3901, 80
  %v3966 = vpop.permute.xlu0 %3965
  %3967 = vrot.lane.b32.xlu0 %v3902, 80
  %v3968 = vpop.permute.xlu0 %3967
  %3969 = vrot.lane.b32.xlu0 %v3903, 80
  %v3970 = vpop.permute.xlu0 %3969
  %3971 = vrot.lane.b32.xlu0 %v3904, 80
  %v3972 = vpop.permute.xlu0 %3971
  %3973 = vrot.lane.b32.xlu0 %v3905, 80
  %v3974 = vpop.permute.xlu0 %3973
  %3975 = vrot.lane.b32.xlu0 %v3906, 80
  %v3976 = vpop.permute.xlu0 %3975
  %3977 = vrot.lane.b32.xlu0 %v3907, 80
  %v3978 = vpop.permute.xlu0 %3977
  %3979 = vrot.lane.b32.xlu0 %v3908, 80
  %v3980 = vpop.permute.xlu0 %3979
  %3981 = vrot.lane.b32.xlu0 %v3909, 80
  %v3982 = vpop.permute.xlu0 %3981
  %3983 = vrot.lane.b32.xlu0 %v3910, 80
  %v3984 = vpop.permute.xlu0 %3983
  %3985 = vrot.lane.b32.xlu0 %v3911, 80
  %v3986 = vpop.permute.xlu0 %3985
  %3987 = vrot.lane.b32.xlu0 %v3912, 80
  %v3988 = vpop.permute.xlu0 %3987
  %3989 = vrot.lane.b32.xlu0 %v3913, 80
  %v3990 = vpop.permute.xlu0 %3989
  %3991 = vrot.lane.b32.xlu0 %v3914, 80
  %v3992 = vpop.permute.xlu0 %3991
  %3993 = vrot.lane.b32.xlu0 %v3915, 80
  %v3994 = vpop.permute.xlu0 %3993
  %3995 = vrot.lane.b32.xlu0 %v3916, 80
  %v3996 = vpop.permute.xlu0 %3995
  %3997 = vrot.lane.b32.xlu0 %v3917, 80
  %v3998 = vpop.permute.xlu0 %3997
  %3999 = vrot.lane.b32.xlu0 %v3918, 80
  %v4000 = vpop.permute.xlu0 %3999
  %4001 = vrot.lane.b32.xlu0 %v3919, 80
  %v4002 = vpop.permute.xlu0 %4001
  %4003 = vrot.lane.b32.xlu0 %v3920, 80
  %v4004 = vpop.permute.xlu0 %4003
  %4005 = vrot.lane.b32.xlu0 %v3921, 80
  %v4006 = vpop.permute.xlu0 %4005
  %4007 = vrot.lane.b32.xlu0 %v3922, 80
  %v4008 = vpop.permute.xlu0 %4007
  %4009 = vrot.lane.b32.xlu0 %v3923, 80
  %v4010 = vpop.permute.xlu0 %4009
  %4011 = vrot.lane.b32.xlu0 %v3924, 80
  %v4012 = vpop.permute.xlu0 %4011
  %4013 = vrot.lane.b32.xlu0 %v3925, 80
  %v4014 = vpop.permute.xlu0 %4013
  %4015 = vrot.lane.b32.xlu0 %v3926, 80
  %v4016 = vpop.permute.xlu0 %4015
  %4017 = vrot.lane.b32.xlu0 %v3927, 80
  %v4018 = vpop.permute.xlu0 %4017
  %4019 = vrot.lane.b32.xlu0 %v3928, 80
  %v4020 = vpop.permute.xlu0 %4019
  %4021 = vrot.lane.b32.xlu0 %v3929, 80
  %v4022 = vpop.permute.xlu0 %4021
  %4023 = vrot.lane.b32.xlu0 %v3930, 80
  %v4024 = vpop.permute.xlu0 %4023
  %4025 = vrot.lane.b32.xlu0 %v3931, 80
  %v4026 = vpop.permute.xlu0 %4025
  %4027 = vrot.lane.b32.xlu0 %v3932, 80
  %v4028 = vpop.permute.xlu0 %4027
  %vm4061 = vcmask 654336
  %v4062 = vsel %vm4061, %v2877, %v3966
  %v4063 = vsel %vm4061, %v2878, %v3968
  %v4064 = vsel %vm4061, %v2879, %v3970
  %v4065 = vsel %vm4061, %v2880, %v3972
  %v4066 = vsel %vm4061, %v2881, %v3974
  %v4067 = vsel %vm4061, %v2882, %v3976
  %v4068 = vsel %vm4061, %v2883, %v3978
  %v4069 = vsel %vm4061, %v2884, %v3980
  %v4070 = vsel %vm4061, %v2885, %v3982
  %v4071 = vsel %vm4061, %v2886, %v3984
  %v4072 = vsel %vm4061, %v2887, %v3986
  %v4073 = vsel %vm4061, %v2888, %v3988
  %v4074 = vsel %vm4061, %v2889, %v3990
  %v4075 = vsel %vm4061, %v2890, %v3992
  %v4076 = vsel %vm4061, %v2891, %v3994
  %v4077 = vsel %vm4061, %v2892, %v3996
  %v4078 = vsel %vm4061, %v2893, %v3998
  %v4079 = vsel %vm4061, %v2894, %v4000
  %v4080 = vsel %vm4061, %v2895, %v4002
  %v4081 = vsel %vm4061, %v2896, %v4004
  %v4082 = vsel %vm4061, %v2897, %v4006
  %v4083 = vsel %vm4061, %v2898, %v4008
  %v4084 = vsel %vm4061, %v2899, %v4010
  %v4085 = vsel %vm4061, %v2900, %v4012
  %v4086 = vsel %vm4061, %v2901, %v4014
  %v4087 = vsel %vm4061, %v2902, %v4016
  %v4088 = vsel %vm4061, %v2903, %v4018
  %v4089 = vsel %vm4061, %v2904, %v4020
  %v4090 = vsel %vm4061, %v2905, %v4022
  %v4091 = vsel %vm4061, %v2906, %v4024
  %v4092 = vsel %vm4061, %v2907, %v4026
  %v4093 = vsel %vm4061, %v2908, %v4028
  %v4094 = vpack.c.bf16 %v4063, %v4062
  %v4095 = vpack.c.bf16 %v4065, %v4064
  %v4096 = vpack.c.bf16 %v4067, %v4066
  %v4097 = vpack.c.bf16 %v4069, %v4068
  %v4098 = vpack.c.bf16 %v4071, %v4070
  %v4099 = vpack.c.bf16 %v4073, %v4072
  %v4100 = vpack.c.bf16 %v4075, %v4074
  %v4101 = vpack.c.bf16 %v4077, %v4076
  %v4102 = vpack.c.bf16 %v4079, %v4078
  %v4103 = vpack.c.bf16 %v4081, %v4080
  %v4104 = vpack.c.bf16 %v4083, %v4082
  %v4105 = vpack.c.bf16 %v4085, %v4084
  %v4106 = vpack.c.bf16 %v4087, %v4086
  %v4107 = vpack.c.bf16 %v4089, %v4088
  %v4108 = vpack.c.bf16 %v4091, %v4090
  %v4109 = vpack.c.bf16 %v4093, %v4092
  %v4110 = vld [vmem:[%s2] sm:$0xf]
  %v4111 = vld [vmem:[%s2 + $0x4] sm:$0xf]
  %v4112 = vld [vmem:[%s2 + $0x8] sm:$0xf]
  %v4113 = vld [vmem:[%s2 + $0xc] sm:$0xf]
  %v4114 = vld [vmem:[%s2 + $0x10] sm:$0xf]
  %v4115 = vld [vmem:[%s2 + $0x14] sm:$0xf]
  %v4116 = vld [vmem:[%s2 + $0x18] sm:$0xf]
  %v4117 = vld [vmem:[%s2 + $0x1c] sm:$0xf]
  %v4118 = vld [vmem:[%s2 + $0x20] sm:$0xf]
  %v4119 = vld [vmem:[%s2 + $0x24] sm:$0xf]
  %v4120 = vld [vmem:[%s2 + $0x28] sm:$0xf]
  %v4121 = vld [vmem:[%s2 + $0x2c] sm:$0xf]
  %v4122 = vld [vmem:[%s2 + $0x30] sm:$0xf]
  %v4123 = vld [vmem:[%s2 + $0x34] sm:$0xf]
  %v4124 = vld [vmem:[%s2 + $0x38] sm:$0xf]
  %v4125 = vld [vmem:[%s2 + $0x3c] sm:$0x7]
  %v4126 = vld [vmem:[%s3] sm:$0x1]
  %v4128 = vlaneseq
  %v4129 = vshrl.u32 %v4128, 7
  %v4130 = vsub.s32 0, %v4129
  %v4131 = vrot.slane %v4126, %v4130
  %v4149 = vunpack.c.l.b16 %v4110
  %v4150 = vunpack.c.l.b16 %v4111
  %v4151 = vunpack.c.l.b16 %v4112
  %v4152 = vunpack.c.l.b16 %v4113
  %v4153 = vunpack.c.l.b16 %v4114
  %v4154 = vunpack.c.l.b16 %v4115
  %v4155 = vunpack.c.l.b16 %v4116
  %v4156 = vunpack.c.l.b16 %v4117
  %v4157 = vunpack.c.l.b16 %v4118
  %v4158 = vunpack.c.l.b16 %v4119
  %v4159 = vunpack.c.l.b16 %v4120
  %v4160 = vunpack.c.l.b16 %v4121
  %v4161 = vunpack.c.l.b16 %v4122
  %v4162 = vunpack.c.l.b16 %v4123
  %v4163 = vunpack.c.l.b16 %v4124
  %v4164 = vunpack.c.l.b16 %v4125
  %v4165 = vpack.c.b16 %v4150, %v4149
  %v4166 = vpack.c.b16 %v4152, %v4151
  %v4167 = vpack.c.b16 %v4154, %v4153
  %v4168 = vpack.c.b16 %v4156, %v4155
  %v4169 = vpack.c.b16 %v4158, %v4157
  %v4170 = vpack.c.b16 %v4160, %v4159
  %v4171 = vpack.c.b16 %v4162, %v4161
  %v4172 = vpack.c.b16 %v4164, %v4163
  %vm4180 = vcmask 1022976
  %v4182 = vsel %vm4180, %v4094, 0
  %v4185 = vsel %vm4180, %v4095, 0
  %v4188 = vsel %vm4180, %v4096, 0
  %v4191 = vsel %vm4180, %v4097, 0
  %v4194 = vsel %vm4180, %v4098, 0
  %v4197 = vsel %vm4180, %v4099, 0
  %v4200 = vsel %vm4180, %v4100, 0
  %v4203 = vsel %vm4180, %v4101, 0
  %v4206 = vsel %vm4180, %v4102, 0
  %v4209 = vsel %vm4180, %v4103, 0
  %v4212 = vsel %vm4180, %v4104, 0
  %v4215 = vsel %vm4180, %v4105, 0
  %v4218 = vsel %vm4180, %v4106, 0
  %v4221 = vsel %vm4180, %v4107, 0
  %v4224 = vsel %vm4180, %v4108, 0
  %v4227 = vsel %vm4180, %v4109, 0
  %v4229 = vsel %vm608, 4294967295, 65535
  %v4230 = vsel %vm527, %v4229, 0
  %v4232 = vand.u32 %v4172, %v4230
  %4234 = vmatprep.subr.bf16.mxu0 0
  %4235 = vmatpush1.bf16.msra.mxu0 %v4165
  %4236 = vmatprep.subr.bf16.mxu0 0
  %4237 = vmatpush1.bf16.msra.mxu0 %v4166
  %4238 = vmatprep.subr.bf16.mxu0 0
  %4239 = vmatpush1.bf16.msra.mxu0 %v4167
  %4240 = vmatprep.subr.bf16.mxu0 0
  %4241 = vmatpush1.bf16.msra.mxu0 %v4168
  %4242 = vmatprep.subr.bf16.mxu0 0
  %4243 = vmatpush1.bf16.msra.mxu0 %v4169
  %4244 = vmatprep.subr.bf16.mxu0 0
  %4245 = vmatpush1.bf16.msra.mxu0 %v4170
  %4246 = vmatprep.subr.bf16.mxu0 0
  %4247 = vmatpush1.bf16.msra.mxu0 %v4171
  %4248 = vmatprep.subr.bf16.mxu0 0
  %4249 = vmatpush1.bf16.msra.mxu0 %v4232
  %4250 = vmatprep.subr.bf16.mxu0 0
  %4251 = vmatpush1.bf16.msra.mxu0 0
  %4252 = vmatprep.subr.bf16.mxu0 0
  %4253 = vmatpush1.bf16.msra.mxu0 0
  %4254 = vmatprep.subr.bf16.mxu0 0
  %4255 = vmatpush1.bf16.msra.mxu0 0
  %4256 = vmatprep.subr.bf16.mxu0 0
  %4257 = vmatpush1.bf16.msra.mxu0 0
  %4258 = vmatprep.subr.bf16.mxu0 0
  %4259 = vmatpush1.bf16.msra.mxu0 0
  %4260 = vmatprep.subr.bf16.mxu0 0
  %4261 = vmatpush1.bf16.msra.mxu0 0
  %4262 = vmatprep.subr.bf16.mxu0 0
  %4263 = vmatpush1.bf16.msra.mxu0 0
  %4264 = vmatprep.subr.bf16.mxu0 0
  %4265 = vmatpush1.bf16.msra.mxu0 0
  %4266 = vmatprep.mubr.bf16.mxu0 0
  %4267 = vmatmul.mubr.bf16.gmra.mrb[0].mxu0 %v4182
  %v4268 = vpop.f32.mrb[0].mxu0
  %v4269 = vadd.f32 %v4131, %v4268
  %v4270 = vpop.f32.mrb[0].mxu0
  %v4271 = vpop.f32.mrb[0].mxu0
  %v4272 = vadd.f32 %v4131, %v4271
  %v4273 = vpop.f32.mrb[0].mxu0
  %4274 = vmatprep.mubr.bf16.mxu0 0
  %4275 = vmatmul.mubr.bf16.gmra.mrb[0].mxu0 %v4185
  %v4276 = vpop.f32.mrb[0].mxu0
  %v4277 = vadd.f32 %v4131, %v4276
  %v4278 = vpop.f32.mrb[0].mxu0
  %v4279 = vpop.f32.mrb[0].mxu0
  %v4280 = vadd.f32 %v4131, %v4279
  %v4281 = vpop.f32.mrb[0].mxu0
  %4282 = vmatprep.mubr.bf16.mxu0 0
  %4283 = vmatmul.mubr.bf16.gmra.mrb[0].mxu0 %v4188
  %v4284 = vpop.f32.mrb[0].mxu0
  %v4285 = vadd.f32 %v4131, %v4284
  %v4286 = vpop.f32.mrb[0].mxu0
  %v4287 = vpop.f32.mrb[0].mxu0
  %v4288 = vadd.f32 %v4131, %v4287
  %v4289 = vpop.f32.mrb[0].mxu0
  %4290 = vmatprep.mubr.bf16.mxu0 0
  %4291 = vmatmul.mubr.bf16.gmra.mrb[0].mxu0 %v4191
  %v4292 = vpop.f32.mrb[0].mxu0
  %v4293 = vadd.f32 %v4131, %v4292
  %v4294 = vpop.f32.mrb[0].mxu0
  %v4295 = vpop.f32.mrb[0].mxu0
  %v4296 = vadd.f32 %v4131, %v4295
  %v4297 = vpop.f32.mrb[0].mxu0
  %4298 = vmatprep.mubr.bf16.mxu0 0
  %4299 = vmatmul.mubr.bf16.gmra.mrb[0].mxu0 %v4194
  %v4300 = vpop.f32.mrb[0].mxu0
  %v4301 = vadd.f32 %v4131, %v4300
  %v4302 = vpop.f32.mrb[0].mxu0
  %v4303 = vpop.f32.mrb[0].mxu0
  %v4304 = vadd.f32 %v4131, %v4303
  %v4305 = vpop.f32.mrb[0].mxu0
  %4306 = vmatprep.mubr.bf16.mxu0 0
  %4307 = vmatmul.mubr.bf16.gmra.mrb[0].mxu0 %v4197
  %v4308 = vpop.f32.mrb[0].mxu0
  %v4309 = vadd.f32 %v4131, %v4308
  %v4310 = vpop.f32.mrb[0].mxu0
  %v4311 = vpop.f32.mrb[0].mxu0
  %v4312 = vadd.f32 %v4131, %v4311
  %v4313 = vpop.f32.mrb[0].mxu0
  %4314 = vmatprep.mubr.bf16.mxu0 0
  %4315 = vmatmul.mubr.bf16.gmra.mrb[0].mxu0 %v4200
  %v4316 = vpop.f32.mrb[0].mxu0
  %v4317 = vadd.f32 %v4131, %v4316
  %v4318 = vpop.f32.mrb[0].mxu0
  %v4319 = vpop.f32.mrb[0].mxu0
  %v4320 = vadd.f32 %v4131, %v4319
  %v4321 = vpop.f32.mrb[0].mxu0
  %4322 = vmatprep.mubr.bf16.mxu0 0
  %4323 = vmatmul.mubr.bf16.gmra.mrb[0].mxu0 %v4203
  %v4324 = vpop.f32.mrb[0].mxu0
  %v4325 = vadd.f32 %v4131, %v4324
  %v4326 = vpop.f32.mrb[0].mxu0
  %v4327 = vpop.f32.mrb[0].mxu0
  %v4328 = vadd.f32 %v4131, %v4327
  %v4329 = vpop.f32.mrb[0].mxu0
  %4330 = vmatprep.mubr.bf16.mxu0 0
  %4331 = vmatmul.mubr.bf16.gmra.mrb[0].mxu0 %v4206
  %v4332 = vpop.f32.mrb[0].mxu0
  %v4333 = vadd.f32 %v4131, %v4332
  %v4334 = vpop.f32.mrb[0].mxu0
  %v4335 = vpop.f32.mrb[0].mxu0
  %v4336 = vadd.f32 %v4131, %v4335
  %v4337 = vpop.f32.mrb[0].mxu0
  %4338 = vmatprep.mubr.bf16.mxu0 0
  %4339 = vmatmul.mubr.bf16.gmra.mrb[0].mxu0 %v4209
  %v4340 = vpop.f32.mrb[0].mxu0
  %v4341 = vadd.f32 %v4131, %v4340
  %v4342 = vpop.f32.mrb[0].mxu0
  %v4343 = vpop.f32.mrb[0].mxu0
  %v4344 = vadd.f32 %v4131, %v4343
  %v4345 = vpop.f32.mrb[0].mxu0
  %4346 = vmatprep.mubr.bf16.mxu0 0
  %4347 = vmatmul.mubr.bf16.gmra.mrb[0].mxu0 %v4212
  %v4348 = vpop.f32.mrb[0].mxu0
  %v4349 = vadd.f32 %v4131, %v4348
  %v4350 = vpop.f32.mrb[0].mxu0
  %v4351 = vpop.f32.mrb[0].mxu0
  %v4352 = vadd.f32 %v4131, %v4351
  %v4353 = vpop.f32.mrb[0].mxu0
  %4354 = vmatprep.mubr.bf16.mxu0 0
  %4355 = vmatmul.mubr.bf16.gmra.mrb[0].mxu0 %v4215
  %v4356 = vpop.f32.mrb[0].mxu0
  %v4357 = vadd.f32 %v4131, %v4356
  %v4358 = vpop.f32.mrb[0].mxu0
  %v4359 = vpop.f32.mrb[0].mxu0
  %v4360 = vadd.f32 %v4131, %v4359
  %v4361 = vpop.f32.mrb[0].mxu0
  %4362 = vmatprep.mubr.bf16.mxu0 0
  %4363 = vmatmul.mubr.bf16.gmra.mrb[0].mxu0 %v4218
  %v4364 = vpop.f32.mrb[0].mxu0
  %v4365 = vadd.f32 %v4131, %v4364
  %v4366 = vpop.f32.mrb[0].mxu0
  %v4367 = vpop.f32.mrb[0].mxu0
  %v4368 = vadd.f32 %v4131, %v4367
  %v4369 = vpop.f32.mrb[0].mxu0
  %4370 = vmatprep.mubr.bf16.mxu0 0
  %4371 = vmatmul.mubr.bf16.gmra.mrb[0].mxu0 %v4221
  %v4372 = vpop.f32.mrb[0].mxu0
  %v4373 = vadd.f32 %v4131, %v4372
  %v4374 = vpop.f32.mrb[0].mxu0
  %v4375 = vpop.f32.mrb[0].mxu0
  %v4376 = vadd.f32 %v4131, %v4375
  %v4377 = vpop.f32.mrb[0].mxu0
  %4378 = vmatprep.mubr.bf16.mxu0 0
  %4379 = vmatmul.mubr.bf16.gmra.mrb[0].mxu0 %v4224
  %v4380 = vpop.f32.mrb[0].mxu0
  %v4381 = vadd.f32 %v4131, %v4380
  %v4382 = vpop.f32.mrb[0].mxu0
  %v4383 = vpop.f32.mrb[0].mxu0
  %v4384 = vadd.f32 %v4131, %v4383
  %v4385 = vpop.f32.mrb[0].mxu0
  %4386 = vmatprep.mubr.bf16.mxu0 0
  %4387 = vmatmul.mubr.bf16.gmra.mrb[0].mxu0 %v4227
  %v4388 = vpop.f32.mrb[0].mxu0
  %v4389 = vadd.f32 %v4131, %v4388
  %v4390 = vpop.f32.mrb[0].mxu0
  %v4391 = vpop.f32.mrb[0].mxu0
  %v4392 = vadd.f32 %v4131, %v4391
  %v4393 = vpop.f32.mrb[0].mxu0
  %4394 = vdwg.mxu0
  %v4395 = vmax.f32 %v4269, 0.0
  %v4396 = vmax.f32 %v4272, 0.0
  %v4397 = vmax.f32 %v4277, 0.0
  %v4398 = vmax.f32 %v4280, 0.0
  %v4399 = vmax.f32 %v4285, 0.0
  %v4400 = vmax.f32 %v4288, 0.0
  %v4401 = vmax.f32 %v4293, 0.0
  %v4402 = vmax.f32 %v4296, 0.0
  %v4403 = vmax.f32 %v4301, 0.0
  %v4404 = vmax.f32 %v4304, 0.0
  %v4405 = vmax.f32 %v4309, 0.0
  %v4406 = vmax.f32 %v4312, 0.0
  %v4407 = vmax.f32 %v4317, 0.0
  %v4408 = vmax.f32 %v4320, 0.0
  %v4409 = vmax.f32 %v4325, 0.0
  %v4410 = vmax.f32 %v4328, 0.0
  %v4411 = vmax.f32 %v4333, 0.0
  %v4412 = vmax.f32 %v4336, 0.0
  %v4413 = vmax.f32 %v4341, 0.0
  %v4414 = vmax.f32 %v4344, 0.0
  %v4415 = vmax.f32 %v4349, 0.0
  %v4416 = vmax.f32 %v4352, 0.0
  %v4417 = vmax.f32 %v4357, 0.0
  %v4418 = vmax.f32 %v4360, 0.0
  %v4419 = vmax.f32 %v4365, 0.0
  %v4420 = vmax.f32 %v4368, 0.0
  %v4421 = vmax.f32 %v4373, 0.0
  %v4422 = vmax.f32 %v4376, 0.0
  %v4423 = vmax.f32 %v4381, 0.0
  %v4424 = vmax.f32 %v4384, 0.0
  %v4425 = vmax.f32 %v4389, 0.0
  %v4426 = vmax.f32 %v4392, 0.0
  %vm4427 = vcmask 523264
  %4428 = vst.msk [vmem:[#allocation3] sm:$0xff] %vm4427, 0.0
  %4429 = vst.msk [vmem:[#allocation3 + $0x8] sm:$0xff] %vm4427, 0.0
  %vm4430 = vcmask 519168
  %4431 = vst.msk [vmem:[#allocation3 + $0x10] sm:$0xf] %vm4430, 0.0
  %4432 = vst.msk [vmem:[#allocation3 + $0x18] sm:$0xff] %vm4427, 0.0
  %4433 = vst.msk [vmem:[#allocation3 + $0x20] sm:$0xff] %vm4427, 0.0
  %4434 = vst.msk [vmem:[#allocation3 + $0x28] sm:$0xf] %vm4430, 0.0
  %4435 = vst.msk [vmem:[#allocation3 + $0x30] sm:$0xff] %vm4427, 0.0
  %4436 = vst.msk [vmem:[#allocation3 + $0x38] sm:$0xff] %vm4427, 0.0
  %4437 = vst.msk [vmem:[#allocation3 + $0x40] sm:$0xf] %vm4430, 0.0
  %4438 = vst.msk [vmem:[#allocation3 + $0x48] sm:$0xff] %vm4427, 0.0
  %4439 = vst.msk [vmem:[#allocation3 + $0x50] sm:$0xff] %vm4427, 0.0
  %4440 = vst.msk [vmem:[#allocation3 + $0x58] sm:$0xf] %vm4430, 0.0
  %4441 = vst.msk [vmem:[#allocation3 + $0x60] sm:$0xff] %vm4427, 0.0
  %4442 = vst.msk [vmem:[#allocation3 + $0x68] sm:$0xff] %vm4427, 0.0
  %4443 = vst.msk [vmem:[#allocation3 + $0x70] sm:$0xf] %vm4430, 0.0
  %4444 = vst.msk [vmem:[#allocation3 + $0x78] sm:$0xff] %vm4427, 0.0
  %4445 = vst.msk [vmem:[#allocation3 + $0x80] sm:$0xff] %vm4427, 0.0
  %4446 = vst.msk [vmem:[#allocation3 + $0x88] sm:$0xf] %vm4430, 0.0
  %4447 = vst.msk [vmem:[#allocation3 + $0x90] sm:$0xff] %vm4427, 0.0
  %4448 = vst.msk [vmem:[#allocation3 + $0x98] sm:$0xff] %vm4427, 0.0
  %4449 = vst.msk [vmem:[#allocation3 + $0xa0] sm:$0xf] %vm4430, 0.0
  %4450 = vst.msk [vmem:[#allocation3 + $0xa8] sm:$0xff] %vm4427, 0.0
  %4451 = vst.msk [vmem:[#allocation3 + $0xb0] sm:$0xff] %vm4427, 0.0
  %4452 = vst.msk [vmem:[#allocation3 + $0xb8] sm:$0xf] %vm4430, 0.0
  %4453 = vst.msk [vmem:[#allocation3 + $0xc0] sm:$0xff] %vm4427, 0.0
  %4454 = vst.msk [vmem:[#allocation3 + $0xc8] sm:$0xff] %vm4427, 0.0
  %4455 = vst.msk [vmem:[#allocation3 + $0xd0] sm:$0xf] %vm4430, 0.0
  %4456 = vst.msk [vmem:[#allocation3 + $0xd8] sm:$0xff] %vm4427, 0.0
  %4457 = vst.msk [vmem:[#allocation3 + $0xe0] sm:$0xff] %vm4427, 0.0
  %4458 = vst.msk [vmem:[#allocation3 + $0xe8] sm:$0xf] %vm4430, 0.0
  %4459 = vst.msk [vmem:[#allocation3 + $0xf0] sm:$0xff] %vm4427, 0.0
  %4460 = vst.msk [vmem:[#allocation3 + $0xf8] sm:$0xff] %vm4427, 0.0
  %4461 = vst.msk [vmem:[#allocation3 + $0x100] sm:$0xf] %vm4430, 0.0
  %4462 = vst.msk [vmem:[#allocation3 + $0x108] sm:$0xff] %vm4427, 0.0
  %4463 = vst.msk [vmem:[#allocation3 + $0x110] sm:$0xff] %vm4427, 0.0
  %4464 = vst.msk [vmem:[#allocation3 + $0x118] sm:$0xf] %vm4430, 0.0
  %4465 = vst.msk [vmem:[#allocation3 + $0x120] sm:$0xff] %vm4427, 0.0
  %4466 = vst.msk [vmem:[#allocation3 + $0x128] sm:$0xff] %vm4427, 0.0
  %4467 = vst.msk [vmem:[#allocation3 + $0x130] sm:$0xf] %vm4430, 0.0
  %4468 = vst.msk [vmem:[#allocation3 + $0x138] sm:$0xff] %vm4427, 0.0
  %4469 = vst.msk [vmem:[#allocation3 + $0x140] sm:$0xff] %vm4427, 0.0
  %4470 = vst.msk [vmem:[#allocation3 + $0x148] sm:$0xf] %vm4430, 0.0
  %4471 = vst.msk [vmem:[#allocation3 + $0x150] sm:$0xff] %vm4427, 0.0
  %4472 = vst.msk [vmem:[#allocation3 + $0x158] sm:$0xff] %vm4427, 0.0
  %4473 = vst.msk [vmem:[#allocation3 + $0x160] sm:$0xf] %vm4430, 0.0
  %4474 = vst.msk [vmem:[#allocation3 + $0x168] sm:$0xff] %vm4427, 0.0
  %4475 = vst.msk [vmem:[#allocation3 + $0x170] sm:$0xff] %vm4427, 0.0
  %4476 = vst.msk [vmem:[#allocation3 + $0x178] sm:$0xf] %vm4430, 0.0
  %4477 = vst.msk [vmem:[#allocation3 + $0x180] sm:$0xff] %vm4427, 0.0
  %4478 = vst.msk [vmem:[#allocation3 + $0x188] sm:$0xff] %vm4427, 0.0
  %4479 = vst.msk [vmem:[#allocation3 + $0x190] sm:$0xf] %vm4430, 0.0
  %4480 = vst.msk [vmem:[#allocation3 + $0x198] sm:$0xff] %vm4427, 0.0
  %4481 = vst.msk [vmem:[#allocation3 + $0x1a0] sm:$0xff] %vm4427, 0.0
  %4482 = vst.msk [vmem:[#allocation3 + $0x1a8] sm:$0xf] %vm4430, 0.0
  %4483 = vst.msk [vmem:[#allocation3 + $0x1b0] sm:$0xff] %vm4427, 0.0
  %4484 = vst.msk [vmem:[#allocation3 + $0x1b8] sm:$0xff] %vm4427, 0.0
  %4485 = vst.msk [vmem:[#allocation3 + $0x1c0] sm:$0xf] %vm4430, 0.0
  %4486 = vst.msk [vmem:[#allocation3 + $0x1c8] sm:$0xff] %vm4427, 0.0
  %4487 = vst.msk [vmem:[#allocation3 + $0x1d0] sm:$0xff] %vm4427, 0.0
  %4488 = vst.msk [vmem:[#allocation3 + $0x1d8] sm:$0xf] %vm4430, 0.0
  %s4489 = scalar_lea.vmem [#allocation3], 48
  %4490 = vst.msk [vmem:[%s4489 + $0x2] sm:$0xff] %vm4427, %v4395
  %4491 = vst.msk [vmem:[%s4489 + $0xa] sm:$0xff] %vm4427, %v4396
  %4492 = vst.msk [vmem:[%s4489 + $0x1a] sm:$0xff] %vm4427, %v4397
  %4493 = vst.msk [vmem:[%s4489 + $0x22] sm:$0xff] %vm4427, %v4398
  %4494 = vst.msk [vmem:[%s4489 + $0x32] sm:$0xff] %vm4427, %v4399
  %4495 = vst.msk [vmem:[%s4489 + $0x3a] sm:$0xff] %vm4427, %v4400
  %4496 = vst.msk [vmem:[%s4489 + $0x4a] sm:$0xff] %vm4427, %v4401
  %4497 = vst.msk [vmem:[%s4489 + $0x52] sm:$0xff] %vm4427, %v4402
  %4498 = vst.msk [vmem:[%s4489 + $0x62] sm:$0xff] %vm4427, %v4403
  %4499 = vst.msk [vmem:[%s4489 + $0x6a] sm:$0xff] %vm4427, %v4404
  %4500 = vst.msk [vmem:[%s4489 + $0x7a] sm:$0xff] %vm4427, %v4405
  %4501 = vst.msk [vmem:[%s4489 + $0x82] sm:$0xff] %vm4427, %v4406
  %4502 = vst.msk [vmem:[%s4489 + $0x92] sm:$0xff] %vm4427, %v4407
  %4503 = vst.msk [vmem:[%s4489 + $0x9a] sm:$0xff] %vm4427, %v4408
  %4504 = vst.msk [vmem:[%s4489 + $0xaa] sm:$0xff] %vm4427, %v4409
  %4505 = vst.msk [vmem:[%s4489 + $0xb2] sm:$0xff] %vm4427, %v4410
  %4506 = vst.msk [vmem:[%s4489 + $0xc2] sm:$0xff] %vm4427, %v4411
  %4507 = vst.msk [vmem:[%s4489 + $0xca] sm:$0xff] %vm4427, %v4412
  %4508 = vst.msk [vmem:[%s4489 + $0xda] sm:$0xff] %vm4427, %v4413
  %4509 = vst.msk [vmem:[%s4489 + $0xe2] sm:$0xff] %vm4427, %v4414
  %4510 = vst.msk [vmem:[%s4489 + $0xf2] sm:$0xff] %vm4427, %v4415
  %4511 = vst.msk [vmem:[%s4489 + $0xfa] sm:$0xff] %vm4427, %v4416
  %4512 = vst.msk [vmem:[%s4489 + $0x10a] sm:$0xff] %vm4427, %v4417
  %4513 = vst.msk [vmem:[%s4489 + $0x112] sm:$0xff] %vm4427, %v4418
  %4514 = vst.msk [vmem:[%s4489 + $0x122] sm:$0xff] %vm4427, %v4419
  %4515 = vst.msk [vmem:[%s4489 + $0x12a] sm:$0xff] %vm4427, %v4420
  %4516 = vst.msk [vmem:[%s4489 + $0x13a] sm:$0xff] %vm4427, %v4421
  %4517 = vst.msk [vmem:[%s4489 + $0x142] sm:$0xff] %vm4427, %v4422
  %4518 = vst.msk [vmem:[%s4489 + $0x152] sm:$0xff] %vm4427, %v4423
  %4519 = vst.msk [vmem:[%s4489 + $0x15a] sm:$0xff] %vm4427, %v4424
  %4520 = vst.msk [vmem:[%s4489 + $0x16a] sm:$0xff] %vm4427, %v4425
  %4521 = vst.msk [vmem:[%s4489 + $0x172] sm:$0xff] %vm4427, %v4426
  %v4522 = vld [vmem:[#allocation3] sm:$0xff]
  %v4523 = vld [vmem:[#allocation3 + $0x8] sm:$0xff]
  %v4524 = vld [vmem:[#allocation3 + $0x10] sm:$0xf]
  %v4525 = vld [vmem:[#allocation3 + $0x18] sm:$0xff]
  %v4526 = vld [vmem:[#allocation3 + $0x20] sm:$0xff]
  %v4527 = vld [vmem:[#allocation3 + $0x28] sm:$0xf]
  %v4528 = vld [vmem:[#allocation3 + $0x30] sm:$0xff]
  %v4529 = vld [vmem:[#allocation3 + $0x38] sm:$0xff]
  %v4530 = vld [vmem:[#allocation3 + $0x40] sm:$0xf]
  %v4531 = vld [vmem:[#allocation3 + $0x48] sm:$0xff]
  %v4532 = vld [vmem:[#allocation3 + $0x50] sm:$0xff]
  %v4533 = vld [vmem:[#allocation3 + $0x58] sm:$0xf]
  %v4534 = vld [vmem:[#allocation3 + $0x60] sm:$0xff]
  %v4535 = vld [vmem:[#allocation3 + $0x68] sm:$0xff]
  %v4536 = vld [vmem:[#allocation3 + $0x70] sm:$0xf]
  %v4537 = vld [vmem:[#allocation3 + $0x78] sm:$0xff]
  %v4538 = vld [vmem:[#allocation3 + $0x80] sm:$0xff]
  %v4539 = vld [vmem:[#allocation3 + $0x88] sm:$0xf]
  %v4540 = vld [vmem:[#allocation3 + $0x90] sm:$0xff]
  %v4541 = vld [vmem:[#allocation3 + $0x98] sm:$0xff]
  %v4542 = vld [vmem:[#allocation3 + $0xa0] sm:$0xf]
  %v4543 = vld [vmem:[#allocation3 + $0xa8] sm:$0xff]
  %v4544 = vld [vmem:[#allocation3 + $0xb0] sm:$0xff]
  %v4545 = vld [vmem:[#allocation3 + $0xb8] sm:$0xf]
  %v4546 = vld [vmem:[#allocation3 + $0xc0] sm:$0xff]
  %v4547 = vld [vmem:[#allocation3 + $0xc8] sm:$0xff]
  %v4548 = vld [vmem:[#allocation3 + $0xd0] sm:$0xf]
  %v4549 = vld [vmem:[#allocation3 + $0xd8] sm:$0xff]
  %v4550 = vld [vmem:[#allocation3 + $0xe0] sm:$0xff]
  %v4551 = vld [vmem:[#allocation3 + $0xe8] sm:$0xf]
  %v4552 = vld [vmem:[#allocation3 + $0xf0] sm:$0xff]
  %v4553 = vld [vmem:[#allocation3 + $0xf8] sm:$0xff]
  %v4554 = vld [vmem:[#allocation3 + $0x100] sm:$0xf]
  %v4555 = vld [vmem:[#allocation3 + $0x108] sm:$0xff]
  %v4556 = vld [vmem:[#allocation3 + $0x110] sm:$0xff]
  %v4557 = vld [vmem:[#allocation3 + $0x118] sm:$0xf]
  %v4558 = vld [vmem:[#allocation3 + $0x120] sm:$0xff]
  %v4559 = vld [vmem:[#allocation3 + $0x128] sm:$0xff]
  %v4560 = vld [vmem:[#allocation3 + $0x130] sm:$0xf]
  %v4561 = vld [vmem:[#allocation3 + $0x138] sm:$0xff]
  %v4562 = vld [vmem:[#allocation3 + $0x140] sm:$0xff]
  %v4563 = vld [vmem:[#allocation3 + $0x148] sm:$0xf]
  %v4564 = vld [vmem:[#allocation3 + $0x150] sm:$0xff]
  %v4565 = vld [vmem:[#allocation3 + $0x158] sm:$0xff]
  %v4566 = vld [vmem:[#allocation3 + $0x160] sm:$0xf]
  %v4567 = vld [vmem:[#allocation3 + $0x168] sm:$0xff]
  %v4568 = vld [vmem:[#allocation3 + $0x170] sm:$0xff]
  %v4569 = vld [vmem:[#allocation3 + $0x178] sm:$0xf]
  %v4570 = vld [vmem:[#allocation3 + $0x180] sm:$0xff]
  %v4571 = vld [vmem:[#allocation3 + $0x188] sm:$0xff]
  %v4572 = vld [vmem:[#allocation3 + $0x190] sm:$0xf]
  %v4573 = vld [vmem:[#allocation3 + $0x198] sm:$0xff]
  %v4574 = vld [vmem:[#allocation3 + $0x1a0] sm:$0xff]
  %v4575 = vld [vmem:[#allocation3 + $0x1a8] sm:$0xf]
  %v4576 = vld [vmem:[#allocation3 + $0x1b0] sm:$0xff]
  %v4577 = vld [vmem:[#allocation3 + $0x1b8] sm:$0xff]
  %v4578 = vld [vmem:[#allocation3 + $0x1c0] sm:$0xf]
  %v4579 = vld [vmem:[#allocation3 + $0x1c8] sm:$0xff]
  %v4580 = vld [vmem:[#allocation3 + $0x1d0] sm:$0xff]
  %v4581 = vld [vmem:[#allocation3 + $0x1d8] sm:$0xf]
  %v4630 = vrot.slane %v4522, 1
  %v4631 = vrot.slane %v4523, 1
  %v4632 = vsel %vm527, %v4630, %v4631
  %v4633 = vrot.slane %v4524, 1
  %v4634 = vsel %vm527, %v4631, %v4633
  %v4635 = vrot.slane %v4525, 1
  %v4636 = vrot.slane %v4526, 1
  %v4637 = vsel %vm527, %v4635, %v4636
  %v4638 = vrot.slane %v4527, 1
  %v4639 = vsel %vm527, %v4636, %v4638
  %v4640 = vrot.slane %v4528, 1
  %v4641 = vrot.slane %v4529, 1
  %v4642 = vsel %vm527, %v4640, %v4641
  %v4643 = vrot.slane %v4530, 1
  %v4644 = vsel %vm527, %v4641, %v4643
  %v4645 = vrot.slane %v4531, 1
  %v4646 = vrot.slane %v4532, 1
  %v4647 = vsel %vm527, %v4645, %v4646
  %v4648 = vrot.slane %v4533, 1
  %v4649 = vsel %vm527, %v4646, %v4648
  %v4650 = vrot.slane %v4534, 1
  %v4651 = vrot.slane %v4535, 1
  %v4652 = vsel %vm527, %v4650, %v4651
  %v4653 = vrot.slane %v4536, 1
  %v4654 = vsel %vm527, %v4651, %v4653
  %v4655 = vrot.slane %v4537, 1
  %v4656 = vrot.slane %v4538, 1
  %v4657 = vsel %vm527, %v4655, %v4656
  %v4658 = vrot.slane %v4539, 1
  %v4659 = vsel %vm527, %v4656, %v4658
  %v4660 = vrot.slane %v4540, 1
  %v4661 = vrot.slane %v4541, 1
  %v4662 = vsel %vm527, %v4660, %v4661
  %v4663 = vrot.slane %v4542, 1
  %v4664 = vsel %vm527, %v4661, %v4663
  %v4665 = vrot.slane %v4543, 1
  %v4666 = vrot.slane %v4544, 1
  %v4667 = vsel %vm527, %v4665, %v4666
  %v4668 = vrot.slane %v4545, 1
  %v4669 = vsel %vm527, %v4666, %v4668
  %v4670 = vrot.slane %v4546, 1
  %v4671 = vrot.slane %v4547, 1
  %v4672 = vsel %vm527, %v4670, %v4671
  %v4673 = vrot.slane %v4548, 1
  %v4674 = vsel %vm527, %v4671, %v4673
  %v4675 = vrot.slane %v4549, 1
  %v4676 = vrot.slane %v4550, 1
  %v4677 = vsel %vm527, %v4675, %v4676
  %v4678 = vrot.slane %v4551, 1
  %v4679 = vsel %vm527, %v4676, %v4678
  %v4680 = vrot.slane %v4552, 1
  %v4681 = vrot.slane %v4553, 1
  %v4682 = vsel %vm527, %v4680, %v4681
  %v4683 = vrot.slane %v4554, 1
  %v4684 = vsel %vm527, %v4681, %v4683
  %v4685 = vrot.slane %v4555, 1
  %v4686 = vrot.slane %v4556, 1
  %v4687 = vsel %vm527, %v4685, %v4686
  %v4688 = vrot.slane %v4557, 1
  %v4689 = vsel %vm527, %v4686, %v4688
  %v4690 = vrot.slane %v4558, 1
  %v4691 = vrot.slane %v4559, 1
  %v4692 = vsel %vm527, %v4690, %v4691
  %v4693 = vrot.slane %v4560, 1
  %v4694 = vsel %vm527, %v4691, %v4693
  %v4695 = vrot.slane %v4561, 1
  %v4696 = vrot.slane %v4562, 1
  %v4697 = vsel %vm527, %v4695, %v4696
  %v4698 = vrot.slane %v4563, 1
  %v4699 = vsel %vm527, %v4696, %v4698
  %v4700 = vrot.slane %v4564, 1
  %v4701 = vrot.slane %v4565, 1
  %v4702 = vsel %vm527, %v4700, %v4701
  %v4703 = vrot.slane %v4566, 1
  %v4704 = vsel %vm527, %v4701, %v4703
  %v4705 = vrot.slane %v4567, 1
  %v4706 = vrot.slane %v4568, 1
  %v4707 = vsel %vm527, %v4705, %v4706
  %v4708 = vrot.slane %v4569, 1
  %v4709 = vsel %vm527, %v4706, %v4708
  %v4710 = vrot.slane %v4522, 2
  %v4711 = vrot.slane %v4523, 2
  %v4712 = vsel %vm608, %v4710, %v4711
  %v4713 = vrot.slane %v4524, 2
  %v4714 = vsel %vm608, %v4711, %v4713
  %v4715 = vrot.slane %v4525, 2
  %v4716 = vrot.slane %v4526, 2
  %v4717 = vsel %vm608, %v4715, %v4716
  %v4718 = vrot.slane %v4527, 2
  %v4719 = vsel %vm608, %v4716, %v4718
  %v4720 = vrot.slane %v4528, 2
  %v4721 = vrot.slane %v4529, 2
  %v4722 = vsel %vm608, %v4720, %v4721
  %v4723 = vrot.slane %v4530, 2
  %v4724 = vsel %vm608, %v4721, %v4723
  %v4725 = vrot.slane %v4531, 2
  %v4726 = vrot.slane %v4532, 2
  %v4727 = vsel %vm608, %v4725, %v4726
  %v4728 = vrot.slane %v4533, 2
  %v4729 = vsel %vm608, %v4726, %v4728
  %v4730 = vrot.slane %v4534, 2
  %v4731 = vrot.slane %v4535, 2
  %v4732 = vsel %vm608, %v4730, %v4731
  %v4733 = vrot.slane %v4536, 2
  %v4734 = vsel %vm608, %v4731, %v4733
  %v4735 = vrot.slane %v4537, 2
  %v4736 = vrot.slane %v4538, 2
  %v4737 = vsel %vm608, %v4735, %v4736
  %v4738 = vrot.slane %v4539, 2
  %v4739 = vsel %vm608, %v4736, %v4738
  %v4740 = vrot.slane %v4540, 2
  %v4741 = vrot.slane %v4541, 2
  %v4742 = vsel %vm608, %v4740, %v4741
  %v4743 = vrot.slane %v4542, 2
  %v4744 = vsel %vm608, %v4741, %v4743
  %v4745 = vrot.slane %v4543, 2
  %v4746 = vrot.slane %v4544, 2
  %v4747 = vsel %vm608, %v4745, %v4746
  %v4748 = vrot.slane %v4545, 2
  %v4749 = vsel %vm608, %v4746, %v4748
  %v4750 = vrot.slane %v4546, 2
  %v4751 = vrot.slane %v4547, 2
  %v4752 = vsel %vm608, %v4750, %v4751
  %v4753 = vrot.slane %v4548, 2
  %v4754 = vsel %vm608, %v4751, %v4753
  %v4755 = vrot.slane %v4549, 2
  %v4756 = vrot.slane %v4550, 2
  %v4757 = vsel %vm608, %v4755, %v4756
  %v4758 = vrot.slane %v4551, 2
  %v4759 = vsel %vm608, %v4756, %v4758
  %v4760 = vrot.slane %v4552, 2
  %v4761 = vrot.slane %v4553, 2
  %v4762 = vsel %vm608, %v4760, %v4761
  %v4763 = vrot.slane %v4554, 2
  %v4764 = vsel %vm608, %v4761, %v4763
  %v4765 = vrot.slane %v4555, 2
  %v4766 = vrot.slane %v4556, 2
  %v4767 = vsel %vm608, %v4765, %v4766
  %v4768 = vrot.slane %v4557, 2
  %v4769 = vsel %vm608, %v4766, %v4768
  %v4770 = vrot.slane %v4558, 2
  %v4771 = vrot.slane %v4559, 2
  %v4772 = vsel %vm608, %v4770, %v4771
  %v4773 = vrot.slane %v4560, 2
  %v4774 = vsel %vm608, %v4771, %v4773
  %v4775 = vrot.slane %v4561, 2
  %v4776 = vrot.slane %v4562, 2
  %v4777 = vsel %vm608, %v4775, %v4776
  %v4778 = vrot.slane %v4563, 2
  %v4779 = vsel %vm608, %v4776, %v4778
  %v4780 = vrot.slane %v4564, 2
  %v4781 = vrot.slane %v4565, 2
  %v4782 = vsel %vm608, %v4780, %v4781
  %v4783 = vrot.slane %v4566, 2
  %v4784 = vsel %vm608, %v4781, %v4783
  %v4785 = vrot.slane %v4567, 2
  %v4786 = vrot.slane %v4568, 2
  %v4787 = vsel %vm608, %v4785, %v4786
  %v4788 = vrot.slane %v4569, 2
  %v4789 = vsel %vm608, %v4786, %v4788
  %v4822 = vrot.slane %v4522, 3
  %v4823 = vrot.slane %v4523, 3
  %v4824 = vsel %vm689, %v4822, %v4823
  %v4825 = vrot.slane %v4524, 3
  %v4826 = vsel %vm689, %v4823, %v4825
  %v4827 = vrot.slane %v4525, 3
  %v4828 = vrot.slane %v4526, 3
  %v4829 = vsel %vm689, %v4827, %v4828
  %v4830 = vrot.slane %v4527, 3
  %v4831 = vsel %vm689, %v4828, %v4830
  %v4832 = vrot.slane %v4528, 3
  %v4833 = vrot.slane %v4529, 3
  %v4834 = vsel %vm689, %v4832, %v4833
  %v4835 = vrot.slane %v4530, 3
  %v4836 = vsel %vm689, %v4833, %v4835
  %v4837 = vrot.slane %v4531, 3
  %v4838 = vrot.slane %v4532, 3
  %v4839 = vsel %vm689, %v4837, %v4838
  %v4840 = vrot.slane %v4533, 3
  %v4841 = vsel %vm689, %v4838, %v4840
  %v4842 = vrot.slane %v4534, 3
  %v4843 = vrot.slane %v4535, 3
  %v4844 = vsel %vm689, %v4842, %v4843
  %v4845 = vrot.slane %v4536, 3
  %v4846 = vsel %vm689, %v4843, %v4845
  %v4847 = vrot.slane %v4537, 3
  %v4848 = vrot.slane %v4538, 3
  %v4849 = vsel %vm689, %v4847, %v4848
  %v4850 = vrot.slane %v4539, 3
  %v4851 = vsel %vm689, %v4848, %v4850
  %v4852 = vrot.slane %v4540, 3
  %v4853 = vrot.slane %v4541, 3
  %v4854 = vsel %vm689, %v4852, %v4853
  %v4855 = vrot.slane %v4542, 3
  %v4856 = vsel %vm689, %v4853, %v4855
  %v4857 = vrot.slane %v4543, 3
  %v4858 = vrot.slane %v4544, 3
  %v4859 = vsel %vm689, %v4857, %v4858
  %v4860 = vrot.slane %v4545, 3
  %v4861 = vsel %vm689, %v4858, %v4860
  %v4862 = vrot.slane %v4546, 3
  %v4863 = vrot.slane %v4547, 3
  %v4864 = vsel %vm689, %v4862, %v4863
  %v4865 = vrot.slane %v4548, 3
  %v4866 = vsel %vm689, %v4863, %v4865
  %v4867 = vrot.slane %v4549, 3
  %v4868 = vrot.slane %v4550, 3
  %v4869 = vsel %vm689, %v4867, %v4868
  %v4870 = vrot.slane %v4551, 3
  %v4871 = vsel %vm689, %v4868, %v4870
  %v4872 = vrot.slane %v4552, 3
  %v4873 = vrot.slane %v4553, 3
  %v4874 = vsel %vm689, %v4872, %v4873
  %v4875 = vrot.slane %v4554, 3
  %v4876 = vsel %vm689, %v4873, %v4875
  %v4877 = vrot.slane %v4555, 3
  %v4878 = vrot.slane %v4556, 3
  %v4879 = vsel %vm689, %v4877, %v4878
  %v4880 = vrot.slane %v4557, 3
  %v4881 = vsel %vm689, %v4878, %v4880
  %v4882 = vrot.slane %v4558, 3
  %v4883 = vrot.slane %v4559, 3
  %v4884 = vsel %vm689, %v4882, %v4883
  %v4885 = vrot.slane %v4560, 3
  %v4886 = vsel %vm689, %v4883, %v4885
  %v4887 = vrot.slane %v4561, 3
  %v4888 = vrot.slane %v4562, 3
  %v4889 = vsel %vm689, %v4887, %v4888
  %v4890 = vrot.slane %v4563, 3
  %v4891 = vsel %vm689, %v4888, %v4890
  %v4892 = vrot.slane %v4564, 3
  %v4893 = vrot.slane %v4565, 3
  %v4894 = vsel %vm689, %v4892, %v4893
  %v4895 = vrot.slane %v4566, 3
  %v4896 = vsel %vm689, %v4893, %v4895
  %v4897 = vrot.slane %v4567, 3
  %v4898 = vrot.slane %v4568, 3
  %v4899 = vsel %vm689, %v4897, %v4898
  %v4900 = vrot.slane %v4569, 3
  %v4901 = vsel %vm689, %v4898, %v4900
  %v4902 = vrot.slane %v4522, 4
  %v4903 = vrot.slane %v4523, 4
  %v4904 = vsel %vm770, %v4902, %v4903
  %v4905 = vrot.slane %v4524, 4
  %v4906 = vsel %vm770, %v4903, %v4905
  %v4907 = vrot.slane %v4525, 4
  %v4908 = vrot.slane %v4526, 4
  %v4909 = vsel %vm770, %v4907, %v4908
  %v4910 = vrot.slane %v4527, 4
  %v4911 = vsel %vm770, %v4908, %v4910
  %v4912 = vrot.slane %v4528, 4
  %v4913 = vrot.slane %v4529, 4
  %v4914 = vsel %vm770, %v4912, %v4913
  %v4915 = vrot.slane %v4530, 4
  %v4916 = vsel %vm770, %v4913, %v4915
  %v4917 = vrot.slane %v4531, 4
  %v4918 = vrot.slane %v4532, 4
  %v4919 = vsel %vm770, %v4917, %v4918
  %v4920 = vrot.slane %v4533, 4
  %v4921 = vsel %vm770, %v4918, %v4920
  %v4922 = vrot.slane %v4534, 4
  %v4923 = vrot.slane %v4535, 4
  %v4924 = vsel %vm770, %v4922, %v4923
  %v4925 = vrot.slane %v4536, 4
  %v4926 = vsel %vm770, %v4923, %v4925
  %v4927 = vrot.slane %v4537, 4
  %v4928 = vrot.slane %v4538, 4
  %v4929 = vsel %vm770, %v4927, %v4928
  %v4930 = vrot.slane %v4539, 4
  %v4931 = vsel %vm770, %v4928, %v4930
  %v4932 = vrot.slane %v4540, 4
  %v4933 = vrot.slane %v4541, 4
  %v4934 = vsel %vm770, %v4932, %v4933
  %v4935 = vrot.slane %v4542, 4
  %v4936 = vsel %vm770, %v4933, %v4935
  %v4937 = vrot.slane %v4543, 4
  %v4938 = vrot.slane %v4544, 4
  %v4939 = vsel %vm770, %v4937, %v4938
  %v4940 = vrot.slane %v4545, 4
  %v4941 = vsel %vm770, %v4938, %v4940
  %v4942 = vrot.slane %v4546, 4
  %v4943 = vrot.slane %v4547, 4
  %v4944 = vsel %vm770, %v4942, %v4943
  %v4945 = vrot.slane %v4548, 4
  %v4946 = vsel %vm770, %v4943, %v4945
  %v4947 = vrot.slane %v4549, 4
  %v4948 = vrot.slane %v4550, 4
  %v4949 = vsel %vm770, %v4947, %v4948
  %v4950 = vrot.slane %v4551, 4
  %v4951 = vsel %vm770, %v4948, %v4950
  %v4952 = vrot.slane %v4552, 4
  %v4953 = vrot.slane %v4553, 4
  %v4954 = vsel %vm770, %v4952, %v4953
  %v4955 = vrot.slane %v4554, 4
  %v4956 = vsel %vm770, %v4953, %v4955
  %v4957 = vrot.slane %v4555, 4
  %v4958 = vrot.slane %v4556, 4
  %v4959 = vsel %vm770, %v4957, %v4958
  %v4960 = vrot.slane %v4557, 4
  %v4961 = vsel %vm770, %v4958, %v4960
  %v4962 = vrot.slane %v4558, 4
  %v4963 = vrot.slane %v4559, 4
  %v4964 = vsel %vm770, %v4962, %v4963
  %v4965 = vrot.slane %v4560, 4
  %v4966 = vsel %vm770, %v4963, %v4965
  %v4967 = vrot.slane %v4561, 4
  %v4968 = vrot.slane %v4562, 4
  %v4969 = vsel %vm770, %v4967, %v4968
  %v4970 = vrot.slane %v4563, 4
  %v4971 = vsel %vm770, %v4968, %v4970
  %v4972 = vrot.slane %v4564, 4
  %v4973 = vrot.slane %v4565, 4
  %v4974 = vsel %vm770, %v4972, %v4973
  %v4975 = vrot.slane %v4566, 4
  %v4976 = vsel %vm770, %v4973, %v4975
  %v4977 = vrot.slane %v4567, 4
  %v4978 = vrot.slane %v4568, 4
  %v4979 = vsel %vm770, %v4977, %v4978
  %v4980 = vrot.slane %v4569, 4
  %v4981 = vsel %vm770, %v4978, %v4980
  %v5017 = vrot.slane %v4570, 1
  %v5018 = vrot.slane %v4571, 1
  %v5019 = vsel %vm527, %v5017, %v5018
  %v5020 = vrot.slane %v4572, 1
  %v5021 = vsel %vm527, %v5018, %v5020
  %v5054 = vrot.slane %v4570, 2
  %v5055 = vrot.slane %v4571, 2
  %v5056 = vsel %vm608, %v5054, %v5055
  %v5057 = vrot.slane %v4572, 2
  %v5058 = vsel %vm608, %v5055, %v5057
  %v5059 = vrot.slane %v4570, 3
  %v5060 = vrot.slane %v4571, 3
  %v5061 = vsel %vm689, %v5059, %v5060
  %v5062 = vrot.slane %v4572, 3
  %v5063 = vsel %vm689, %v5060, %v5062
  %v5096 = vrot.slane %v4570, 4
  %v5097 = vrot.slane %v4571, 4
  %v5098 = vsel %vm770, %v5096, %v5097
  %v5099 = vrot.slane %v4572, 4
  %v5100 = vsel %vm770, %v5097, %v5099
  %v5104 = vrot.slane %v4573, 1
  %v5105 = vrot.slane %v4574, 1
  %v5106 = vsel %vm527, %v5104, %v5105
  %v5107 = vrot.slane %v4575, 1
  %v5108 = vsel %vm527, %v5105, %v5107
  %v5109 = vrot.slane %v4573, 2
  %v5110 = vrot.slane %v4574, 2
  %v5111 = vsel %vm608, %v5109, %v5110
  %v5112 = vrot.slane %v4575, 2
  %v5113 = vsel %vm608, %v5110, %v5112
  %v5118 = vrot.slane %v4573, 3
  %v5119 = vrot.slane %v4574, 3
  %v5120 = vsel %vm689, %v5118, %v5119
  %v5121 = vrot.slane %v4575, 3
  %v5122 = vsel %vm689, %v5119, %v5121
  %v5123 = vrot.slane %v4573, 4
  %v5124 = vrot.slane %v4574, 4
  %v5125 = vsel %vm770, %v5123, %v5124
  %v5126 = vrot.slane %v4575, 4
  %v5127 = vsel %vm770, %v5124, %v5126
  %v5135 = vrot.slane %v4576, 1
  %v5136 = vrot.slane %v4577, 1
  %v5137 = vsel %vm527, %v5135, %v5136
  %v5138 = vrot.slane %v4578, 1
  %v5139 = vsel %vm527, %v5136, %v5138
  %v5144 = vrot.slane %v4576, 2
  %v5145 = vrot.slane %v4577, 2
  %v5146 = vsel %vm608, %v5144, %v5145
  %v5147 = vrot.slane %v4578, 2
  %v5148 = vsel %vm608, %v5145, %v5147
  %v5149 = vrot.slane %v4576, 3
  %v5150 = vrot.slane %v4577, 3
  %v5151 = vsel %vm689, %v5149, %v5150
  %v5152 = vrot.slane %v4578, 3
  %v5153 = vsel %vm689, %v5150, %v5152
  %v5158 = vrot.slane %v4576, 4
  %v5159 = vrot.slane %v4577, 4
  %v5160 = vsel %vm770, %v5158, %v5159
  %v5161 = vrot.slane %v4578, 4
  %v5162 = vsel %vm770, %v5159, %v5161
  %v5166 = vrot.slane %v4579, 1
  %v5167 = vrot.slane %v4580, 1
  %v5168 = vsel %vm527, %v5166, %v5167
  %v5169 = vrot.slane %v4581, 1
  %v5170 = vsel %vm527, %v5167, %v5169
  %v5171 = vrot.slane %v4579, 2
  %v5172 = vrot.slane %v4580, 2
  %v5173 = vsel %vm608, %v5171, %v5172
  %v5174 = vrot.slane %v4581, 2
  %v5175 = vsel %vm608, %v5172, %v5174
  %v5180 = vrot.slane %v4579, 3
  %v5181 = vrot.slane %v4580, 3
  %v5182 = vsel %vm689, %v5180, %v5181
  %v5183 = vrot.slane %v4581, 3
  %v5184 = vsel %vm689, %v5181, %v5183
  %v5185 = vrot.slane %v4579, 4
  %v5186 = vrot.slane %v4580, 4
  %v5187 = vsel %vm770, %v5185, %v5186
  %v5188 = vrot.slane %v4581, 4
  %v5189 = vsel %vm770, %v5186, %v5188
  %5194 = vrot.lane.b32.xlu0 %v4632, 64
  %v5195 = vpop.permute.xlu0 %5194
  %5196 = vrot.lane.b32.xlu0 %v4634, 64
  %v5197 = vpop.permute.xlu0 %5196
  %5198 = vrot.lane.b32.xlu0 %v4637, 64
  %v5199 = vpop.permute.xlu0 %5198
  %5200 = vrot.lane.b32.xlu0 %v4639, 64
  %v5201 = vpop.permute.xlu0 %5200
  %5202 = vrot.lane.b32.xlu0 %v4642, 64
  %v5203 = vpop.permute.xlu0 %5202
  %5204 = vrot.lane.b32.xlu0 %v4644, 64
  %v5205 = vpop.permute.xlu0 %5204
  %5206 = vrot.lane.b32.xlu0 %v4647, 64
  %v5207 = vpop.permute.xlu0 %5206
  %5208 = vrot.lane.b32.xlu0 %v4649, 64
  %v5209 = vpop.permute.xlu0 %5208
  %5210 = vrot.lane.b32.xlu0 %v4652, 64
  %v5211 = vpop.permute.xlu0 %5210
  %5212 = vrot.lane.b32.xlu0 %v4654, 64
  %v5213 = vpop.permute.xlu0 %5212
  %5214 = vrot.lane.b32.xlu0 %v4657, 64
  %v5215 = vpop.permute.xlu0 %5214
  %5216 = vrot.lane.b32.xlu0 %v4659, 64
  %v5217 = vpop.permute.xlu0 %5216
  %5218 = vrot.lane.b32.xlu0 %v4662, 64
  %v5219 = vpop.permute.xlu0 %5218
  %5220 = vrot.lane.b32.xlu0 %v4664, 64
  %v5221 = vpop.permute.xlu0 %5220
  %5222 = vrot.lane.b32.xlu0 %v4667, 64
  %v5223 = vpop.permute.xlu0 %5222
  %5224 = vrot.lane.b32.xlu0 %v4669, 64
  %v5225 = vpop.permute.xlu0 %5224
  %5226 = vrot.lane.b32.xlu0 %v4672, 64
  %v5227 = vpop.permute.xlu0 %5226
  %5228 = vrot.lane.b32.xlu0 %v4674, 64
  %v5229 = vpop.permute.xlu0 %5228
  %5230 = vrot.lane.b32.xlu0 %v4677, 64
  %v5231 = vpop.permute.xlu0 %5230
  %5232 = vrot.lane.b32.xlu0 %v4679, 64
  %v5233 = vpop.permute.xlu0 %5232
  %5234 = vrot.lane.b32.xlu0 %v4682, 64
  %v5235 = vpop.permute.xlu0 %5234
  %5236 = vrot.lane.b32.xlu0 %v4684, 64
  %v5237 = vpop.permute.xlu0 %5236
  %5238 = vrot.lane.b32.xlu0 %v4687, 64
  %v5239 = vpop.permute.xlu0 %5238
  %5240 = vrot.lane.b32.xlu0 %v4689, 64
  %v5241 = vpop.permute.xlu0 %5240
  %5242 = vrot.lane.b32.xlu0 %v4692, 64
  %v5243 = vpop.permute.xlu0 %5242
  %5244 = vrot.lane.b32.xlu0 %v4694, 64
  %v5245 = vpop.permute.xlu0 %5244
  %5246 = vrot.lane.b32.xlu0 %v4697, 64
  %v5247 = vpop.permute.xlu0 %5246
  %5248 = vrot.lane.b32.xlu0 %v4699, 64
  %v5249 = vpop.permute.xlu0 %5248
  %5250 = vrot.lane.b32.xlu0 %v4702, 64
  %v5251 = vpop.permute.xlu0 %5250
  %5252 = vrot.lane.b32.xlu0 %v4704, 64
  %v5253 = vpop.permute.xlu0 %5252
  %5254 = vrot.lane.b32.xlu0 %v4707, 64
  %v5255 = vpop.permute.xlu0 %5254
  %5256 = vrot.lane.b32.xlu0 %v4709, 64
  %v5257 = vpop.permute.xlu0 %5256
  %5290 = vrot.lane.b32.xlu0 %v4824, 64
  %v5291 = vpop.permute.xlu0 %5290
  %5292 = vrot.lane.b32.xlu0 %v4826, 64
  %v5293 = vpop.permute.xlu0 %5292
  %5294 = vrot.lane.b32.xlu0 %v4829, 64
  %v5295 = vpop.permute.xlu0 %5294
  %5296 = vrot.lane.b32.xlu0 %v4831, 64
  %v5297 = vpop.permute.xlu0 %5296
  %5298 = vrot.lane.b32.xlu0 %v4834, 64
  %v5299 = vpop.permute.xlu0 %5298
  %5300 = vrot.lane.b32.xlu0 %v4836, 64
  %v5301 = vpop.permute.xlu0 %5300
  %5302 = vrot.lane.b32.xlu0 %v4839, 64
  %v5303 = vpop.permute.xlu0 %5302
  %5304 = vrot.lane.b32.xlu0 %v4841, 64
  %v5305 = vpop.permute.xlu0 %5304
  %5306 = vrot.lane.b32.xlu0 %v4844, 64
  %v5307 = vpop.permute.xlu0 %5306
  %5308 = vrot.lane.b32.xlu0 %v4846, 64
  %v5309 = vpop.permute.xlu0 %5308
  %5310 = vrot.lane.b32.xlu0 %v4849, 64
  %v5311 = vpop.permute.xlu0 %5310
  %5312 = vrot.lane.b32.xlu0 %v4851, 64
  %v5313 = vpop.permute.xlu0 %5312
  %5314 = vrot.lane.b32.xlu0 %v4854, 64
  %v5315 = vpop.permute.xlu0 %5314
  %5316 = vrot.lane.b32.xlu0 %v4856, 64
  %v5317 = vpop.permute.xlu0 %5316
  %5318 = vrot.lane.b32.xlu0 %v4859, 64
  %v5319 = vpop.permute.xlu0 %5318
  %5320 = vrot.lane.b32.xlu0 %v4861, 64
  %v5321 = vpop.permute.xlu0 %5320
  %5322 = vrot.lane.b32.xlu0 %v4864, 64
  %v5323 = vpop.permute.xlu0 %5322
  %5324 = vrot.lane.b32.xlu0 %v4866, 64
  %v5325 = vpop.permute.xlu0 %5324
  %5326 = vrot.lane.b32.xlu0 %v4869, 64
  %v5327 = vpop.permute.xlu0 %5326
  %5328 = vrot.lane.b32.xlu0 %v4871, 64
  %v5329 = vpop.permute.xlu0 %5328
  %5330 = vrot.lane.b32.xlu0 %v4874, 64
  %v5331 = vpop.permute.xlu0 %5330
  %5332 = vrot.lane.b32.xlu0 %v4876, 64
  %v5333 = vpop.permute.xlu0 %5332
  %5334 = vrot.lane.b32.xlu0 %v4879, 64
  %v5335 = vpop.permute.xlu0 %5334
  %5336 = vrot.lane.b32.xlu0 %v4881, 64
  %v5337 = vpop.permute.xlu0 %5336
  %5338 = vrot.lane.b32.xlu0 %v4884, 64
  %v5339 = vpop.permute.xlu0 %5338
  %5340 = vrot.lane.b32.xlu0 %v4886, 64
  %v5341 = vpop.permute.xlu0 %5340
  %5342 = vrot.lane.b32.xlu0 %v4889, 64
  %v5343 = vpop.permute.xlu0 %5342
  %5344 = vrot.lane.b32.xlu0 %v4891, 64
  %v5345 = vpop.permute.xlu0 %5344
  %5346 = vrot.lane.b32.xlu0 %v4894, 64
  %v5347 = vpop.permute.xlu0 %5346
  %5348 = vrot.lane.b32.xlu0 %v4896, 64
  %v5349 = vpop.permute.xlu0 %5348
  %5350 = vrot.lane.b32.xlu0 %v4899, 64
  %v5351 = vpop.permute.xlu0 %5350
  %5352 = vrot.lane.b32.xlu0 %v4901, 64
  %v5353 = vpop.permute.xlu0 %5352
  %5386 = vrot.lane.b32.xlu0 %v4525, 64
  %v5387 = vpop.permute.xlu0 %5386
  %5388 = vrot.lane.b32.xlu0 %v4526, 64
  %v5389 = vpop.permute.xlu0 %5388
  %5390 = vrot.lane.b32.xlu0 %v4528, 64
  %v5391 = vpop.permute.xlu0 %5390
  %5392 = vrot.lane.b32.xlu0 %v4529, 64
  %v5393 = vpop.permute.xlu0 %5392
  %5394 = vrot.lane.b32.xlu0 %v4531, 64
  %v5395 = vpop.permute.xlu0 %5394
  %5396 = vrot.lane.b32.xlu0 %v4532, 64
  %v5397 = vpop.permute.xlu0 %5396
  %5398 = vrot.lane.b32.xlu0 %v4534, 64
  %v5399 = vpop.permute.xlu0 %5398
  %5400 = vrot.lane.b32.xlu0 %v4535, 64
  %v5401 = vpop.permute.xlu0 %5400
  %5402 = vrot.lane.b32.xlu0 %v4537, 64
  %v5403 = vpop.permute.xlu0 %5402
  %5404 = vrot.lane.b32.xlu0 %v4538, 64
  %v5405 = vpop.permute.xlu0 %5404
  %5406 = vrot.lane.b32.xlu0 %v4540, 64
  %v5407 = vpop.permute.xlu0 %5406
  %5408 = vrot.lane.b32.xlu0 %v4541, 64
  %v5409 = vpop.permute.xlu0 %5408
  %5410 = vrot.lane.b32.xlu0 %v4543, 64
  %v5411 = vpop.permute.xlu0 %5410
  %5412 = vrot.lane.b32.xlu0 %v4544, 64
  %v5413 = vpop.permute.xlu0 %5412
  %5414 = vrot.lane.b32.xlu0 %v4546, 64
  %v5415 = vpop.permute.xlu0 %5414
  %5416 = vrot.lane.b32.xlu0 %v4547, 64
  %v5417 = vpop.permute.xlu0 %5416
  %5418 = vrot.lane.b32.xlu0 %v4549, 64
  %v5419 = vpop.permute.xlu0 %5418
  %5420 = vrot.lane.b32.xlu0 %v4550, 64
  %v5421 = vpop.permute.xlu0 %5420
  %5422 = vrot.lane.b32.xlu0 %v4552, 64
  %v5423 = vpop.permute.xlu0 %5422
  %5424 = vrot.lane.b32.xlu0 %v4553, 64
  %v5425 = vpop.permute.xlu0 %5424
  %5426 = vrot.lane.b32.xlu0 %v4555, 64
  %v5427 = vpop.permute.xlu0 %5426
  %5428 = vrot.lane.b32.xlu0 %v4556, 64
  %v5429 = vpop.permute.xlu0 %5428
  %5430 = vrot.lane.b32.xlu0 %v4558, 64
  %v5431 = vpop.permute.xlu0 %5430
  %5432 = vrot.lane.b32.xlu0 %v4559, 64
  %v5433 = vpop.permute.xlu0 %5432
  %5434 = vrot.lane.b32.xlu0 %v4561, 64
  %v5435 = vpop.permute.xlu0 %5434
  %5436 = vrot.lane.b32.xlu0 %v4562, 64
  %v5437 = vpop.permute.xlu0 %5436
  %5438 = vrot.lane.b32.xlu0 %v4564, 64
  %v5439 = vpop.permute.xlu0 %5438
  %5440 = vrot.lane.b32.xlu0 %v4565, 64
  %v5441 = vpop.permute.xlu0 %5440
  %5442 = vrot.lane.b32.xlu0 %v4567, 64
  %v5443 = vpop.permute.xlu0 %5442
  %5444 = vrot.lane.b32.xlu0 %v4568, 64
  %v5445 = vpop.permute.xlu0 %5444
  %5446 = vrot.lane.b32.xlu0 %v4570, 64
  %v5447 = vpop.permute.xlu0 %5446
  %5448 = vrot.lane.b32.xlu0 %v4571, 64
  %v5449 = vpop.permute.xlu0 %5448
  %5482 = vrot.lane.b32.xlu0 %v4717, 64
  %v5483 = vpop.permute.xlu0 %5482
  %5484 = vrot.lane.b32.xlu0 %v4719, 64
  %v5485 = vpop.permute.xlu0 %5484
  %5486 = vrot.lane.b32.xlu0 %v4722, 64
  %v5487 = vpop.permute.xlu0 %5486
  %5488 = vrot.lane.b32.xlu0 %v4724, 64
  %v5489 = vpop.permute.xlu0 %5488
  %5490 = vrot.lane.b32.xlu0 %v4727, 64
  %v5491 = vpop.permute.xlu0 %5490
  %5492 = vrot.lane.b32.xlu0 %v4729, 64
  %v5493 = vpop.permute.xlu0 %5492
  %5494 = vrot.lane.b32.xlu0 %v4732, 64
  %v5495 = vpop.permute.xlu0 %5494
  %5496 = vrot.lane.b32.xlu0 %v4734, 64
  %v5497 = vpop.permute.xlu0 %5496
  %5498 = vrot.lane.b32.xlu0 %v4737, 64
  %v5499 = vpop.permute.xlu0 %5498
  %5500 = vrot.lane.b32.xlu0 %v4739, 64
  %v5501 = vpop.permute.xlu0 %5500
  %5502 = vrot.lane.b32.xlu0 %v4742, 64
  %v5503 = vpop.permute.xlu0 %5502
  %5504 = vrot.lane.b32.xlu0 %v4744, 64
  %v5505 = vpop.permute.xlu0 %5504
  %5506 = vrot.lane.b32.xlu0 %v4747, 64
  %v5507 = vpop.permute.xlu0 %5506
  %5508 = vrot.lane.b32.xlu0 %v4749, 64
  %v5509 = vpop.permute.xlu0 %5508
  %5510 = vrot.lane.b32.xlu0 %v4752, 64
  %v5511 = vpop.permute.xlu0 %5510
  %5512 = vrot.lane.b32.xlu0 %v4754, 64
  %v5513 = vpop.permute.xlu0 %5512
  %5514 = vrot.lane.b32.xlu0 %v4757, 64
  %v5515 = vpop.permute.xlu0 %5514
  %5516 = vrot.lane.b32.xlu0 %v4759, 64
  %v5517 = vpop.permute.xlu0 %5516
  %5518 = vrot.lane.b32.xlu0 %v4762, 64
  %v5519 = vpop.permute.xlu0 %5518
  %5520 = vrot.lane.b32.xlu0 %v4764, 64
  %v5521 = vpop.permute.xlu0 %5520
  %5522 = vrot.lane.b32.xlu0 %v4767, 64
  %v5523 = vpop.permute.xlu0 %5522
  %5524 = vrot.lane.b32.xlu0 %v4769, 64
  %v5525 = vpop.permute.xlu0 %5524
  %5526 = vrot.lane.b32.xlu0 %v4772, 64
  %v5527 = vpop.permute.xlu0 %5526
  %5528 = vrot.lane.b32.xlu0 %v4774, 64
  %v5529 = vpop.permute.xlu0 %5528
  %5530 = vrot.lane.b32.xlu0 %v4777, 64
  %v5531 = vpop.permute.xlu0 %5530
  %5532 = vrot.lane.b32.xlu0 %v4779, 64
  %v5533 = vpop.permute.xlu0 %5532
  %5534 = vrot.lane.b32.xlu0 %v4782, 64
  %v5535 = vpop.permute.xlu0 %5534
  %5536 = vrot.lane.b32.xlu0 %v4784, 64
  %v5537 = vpop.permute.xlu0 %5536
  %5538 = vrot.lane.b32.xlu0 %v4787, 64
  %v5539 = vpop.permute.xlu0 %5538
  %5540 = vrot.lane.b32.xlu0 %v4789, 64
  %v5541 = vpop.permute.xlu0 %5540
  %5542 = vrot.lane.b32.xlu0 %v5056, 64
  %v5543 = vpop.permute.xlu0 %5542
  %5544 = vrot.lane.b32.xlu0 %v5058, 64
  %v5545 = vpop.permute.xlu0 %5544
  %5578 = vrot.lane.b32.xlu0 %v4909, 64
  %v5579 = vpop.permute.xlu0 %5578
  %5580 = vrot.lane.b32.xlu0 %v4911, 64
  %v5581 = vpop.permute.xlu0 %5580
  %5582 = vrot.lane.b32.xlu0 %v4914, 64
  %v5583 = vpop.permute.xlu0 %5582
  %5584 = vrot.lane.b32.xlu0 %v4916, 64
  %v5585 = vpop.permute.xlu0 %5584
  %5586 = vrot.lane.b32.xlu0 %v4919, 64
  %v5587 = vpop.permute.xlu0 %5586
  %5588 = vrot.lane.b32.xlu0 %v4921, 64
  %v5589 = vpop.permute.xlu0 %5588
  %5590 = vrot.lane.b32.xlu0 %v4924, 64
  %v5591 = vpop.permute.xlu0 %5590
  %5592 = vrot.lane.b32.xlu0 %v4926, 64
  %v5593 = vpop.permute.xlu0 %5592
  %5594 = vrot.lane.b32.xlu0 %v4929, 64
  %v5595 = vpop.permute.xlu0 %5594
  %5596 = vrot.lane.b32.xlu0 %v4931, 64
  %v5597 = vpop.permute.xlu0 %5596
  %5598 = vrot.lane.b32.xlu0 %v4934, 64
  %v5599 = vpop.permute.xlu0 %5598
  %5600 = vrot.lane.b32.xlu0 %v4936, 64
  %v5601 = vpop.permute.xlu0 %5600
  %5602 = vrot.lane.b32.xlu0 %v4939, 64
  %v5603 = vpop.permute.xlu0 %5602
  %5604 = vrot.lane.b32.xlu0 %v4941, 64
  %v5605 = vpop.permute.xlu0 %5604
  %5606 = vrot.lane.b32.xlu0 %v4944, 64
  %v5607 = vpop.permute.xlu0 %5606
  %5608 = vrot.lane.b32.xlu0 %v4946, 64
  %v5609 = vpop.permute.xlu0 %5608
  %5610 = vrot.lane.b32.xlu0 %v4949, 64
  %v5611 = vpop.permute.xlu0 %5610
  %5612 = vrot.lane.b32.xlu0 %v4951, 64
  %v5613 = vpop.permute.xlu0 %5612
  %5614 = vrot.lane.b32.xlu0 %v4954, 64
  %v5615 = vpop.permute.xlu0 %5614
  %5616 = vrot.lane.b32.xlu0 %v4956, 64
  %v5617 = vpop.permute.xlu0 %5616
  %5618 = vrot.lane.b32.xlu0 %v4959, 64
  %v5619 = vpop.permute.xlu0 %5618
  %5620 = vrot.lane.b32.xlu0 %v4961, 64
  %v5621 = vpop.permute.xlu0 %5620
  %5622 = vrot.lane.b32.xlu0 %v4964, 64
  %v5623 = vpop.permute.xlu0 %5622
  %5624 = vrot.lane.b32.xlu0 %v4966, 64
  %v5625 = vpop.permute.xlu0 %5624
  %5626 = vrot.lane.b32.xlu0 %v4969, 64
  %v5627 = vpop.permute.xlu0 %5626
  %5628 = vrot.lane.b32.xlu0 %v4971, 64
  %v5629 = vpop.permute.xlu0 %5628
  %5630 = vrot.lane.b32.xlu0 %v4974, 64
  %v5631 = vpop.permute.xlu0 %5630
  %5632 = vrot.lane.b32.xlu0 %v4976, 64
  %v5633 = vpop.permute.xlu0 %5632
  %5634 = vrot.lane.b32.xlu0 %v4979, 64
  %v5635 = vpop.permute.xlu0 %5634
  %5636 = vrot.lane.b32.xlu0 %v4981, 64
  %v5637 = vpop.permute.xlu0 %5636
  %5638 = vrot.lane.b32.xlu0 %v5098, 64
  %v5639 = vpop.permute.xlu0 %5638
  %5640 = vrot.lane.b32.xlu0 %v5100, 64
  %v5641 = vpop.permute.xlu0 %5640
  %5674 = vrot.lane.b32.xlu0 %v5019, 64
  %v5675 = vpop.permute.xlu0 %5674
  %5676 = vrot.lane.b32.xlu0 %v5021, 64
  %v5677 = vpop.permute.xlu0 %5676
  %5678 = vrot.lane.b32.xlu0 %v5106, 64
  %v5679 = vpop.permute.xlu0 %5678
  %5680 = vrot.lane.b32.xlu0 %v5108, 64
  %v5681 = vpop.permute.xlu0 %5680
  %5686 = vrot.lane.b32.xlu0 %v5061, 64
  %v5687 = vpop.permute.xlu0 %5686
  %5688 = vrot.lane.b32.xlu0 %v5063, 64
  %v5689 = vpop.permute.xlu0 %5688
  %5690 = vrot.lane.b32.xlu0 %v5120, 64
  %v5691 = vpop.permute.xlu0 %5690
  %5692 = vrot.lane.b32.xlu0 %v5122, 64
  %v5693 = vpop.permute.xlu0 %5692
  %5698 = vrot.lane.b32.xlu0 %v4573, 64
  %v5699 = vpop.permute.xlu0 %5698
  %5700 = vrot.lane.b32.xlu0 %v4574, 64
  %v5701 = vpop.permute.xlu0 %5700
  %5702 = vrot.lane.b32.xlu0 %v4576, 64
  %v5703 = vpop.permute.xlu0 %5702
  %5704 = vrot.lane.b32.xlu0 %v4577, 64
  %v5705 = vpop.permute.xlu0 %5704
  %v5710 = vsel %vm4427, %v4522, %v5195
  %v5711 = vsel %vm4427, %v4523, %v5197
  %v5712 = vsel %vm4427, %v4525, %v5199
  %v5713 = vsel %vm4427, %v4526, %v5201
  %v5714 = vsel %vm4427, %v4528, %v5203
  %v5715 = vsel %vm4427, %v4529, %v5205
  %v5716 = vsel %vm4427, %v4531, %v5207
  %v5717 = vsel %vm4427, %v4532, %v5209
  %v5718 = vsel %vm4427, %v4534, %v5211
  %v5719 = vsel %vm4427, %v4535, %v5213
  %v5720 = vsel %vm4427, %v4537, %v5215
  %v5721 = vsel %vm4427, %v4538, %v5217
  %v5722 = vsel %vm4427, %v4540, %v5219
  %v5723 = vsel %vm4427, %v4541, %v5221
  %v5724 = vsel %vm4427, %v4543, %v5223
  %v5725 = vsel %vm4427, %v4544, %v5225
  %v5726 = vsel %vm4427, %v4546, %v5227
  %v5727 = vsel %vm4427, %v4547, %v5229
  %v5728 = vsel %vm4427, %v4549, %v5231
  %v5729 = vsel %vm4427, %v4550, %v5233
  %v5730 = vsel %vm4427, %v4552, %v5235
  %v5731 = vsel %vm4427, %v4553, %v5237
  %v5732 = vsel %vm4427, %v4555, %v5239
  %v5733 = vsel %vm4427, %v4556, %v5241
  %v5734 = vsel %vm4427, %v4558, %v5243
  %v5735 = vsel %vm4427, %v4559, %v5245
  %v5736 = vsel %vm4427, %v4561, %v5247
  %v5737 = vsel %vm4427, %v4562, %v5249
  %v5738 = vsel %vm4427, %v4564, %v5251
  %v5739 = vsel %vm4427, %v4565, %v5253
  %v5740 = vsel %vm4427, %v4567, %v5255
  %v5741 = vsel %vm4427, %v4568, %v5257
  %v5742 = vsel %vm4427, %v4712, %v5291
  %v5743 = vsel %vm4427, %v4714, %v5293
  %v5744 = vsel %vm4427, %v4717, %v5295
  %v5745 = vsel %vm4427, %v4719, %v5297
  %v5746 = vsel %vm4427, %v4722, %v5299
  %v5747 = vsel %vm4427, %v4724, %v5301
  %v5748 = vsel %vm4427, %v4727, %v5303
  %v5749 = vsel %vm4427, %v4729, %v5305
  %v5750 = vsel %vm4427, %v4732, %v5307
  %v5751 = vsel %vm4427, %v4734, %v5309
  %v5752 = vsel %vm4427, %v4737, %v5311
  %v5753 = vsel %vm4427, %v4739, %v5313
  %v5754 = vsel %vm4427, %v4742, %v5315
  %v5755 = vsel %vm4427, %v4744, %v5317
  %v5756 = vsel %vm4427, %v4747, %v5319
  %v5757 = vsel %vm4427, %v4749, %v5321
  %v5758 = vsel %vm4427, %v4752, %v5323
  %v5759 = vsel %vm4427, %v4754, %v5325
  %v5760 = vsel %vm4427, %v4757, %v5327
  %v5761 = vsel %vm4427, %v4759, %v5329
  %v5762 = vsel %vm4427, %v4762, %v5331
  %v5763 = vsel %vm4427, %v4764, %v5333
  %v5764 = vsel %vm4427, %v4767, %v5335
  %v5765 = vsel %vm4427, %v4769, %v5337
  %v5766 = vsel %vm4427, %v4772, %v5339
  %v5767 = vsel %vm4427, %v4774, %v5341
  %v5768 = vsel %vm4427, %v4777, %v5343
  %v5769 = vsel %vm4427, %v4779, %v5345
  %v5770 = vsel %vm4427, %v4782, %v5347
  %v5771 = vsel %vm4427, %v4784, %v5349
  %v5772 = vsel %vm4427, %v4787, %v5351
  %v5773 = vsel %vm4427, %v4789, %v5353
  %v5774 = vsel %vm4427, %v4904, %v5387
  %v5775 = vsel %vm4427, %v4906, %v5389
  %v5776 = vsel %vm4427, %v4909, %v5391
  %v5777 = vsel %vm4427, %v4911, %v5393
  %v5778 = vsel %vm4427, %v4914, %v5395
  %v5779 = vsel %vm4427, %v4916, %v5397
  %v5780 = vsel %vm4427, %v4919, %v5399
  %v5781 = vsel %vm4427, %v4921, %v5401
  %v5782 = vsel %vm4427, %v4924, %v5403
  %v5783 = vsel %vm4427, %v4926, %v5405
  %v5784 = vsel %vm4427, %v4929, %v5407
  %v5785 = vsel %vm4427, %v4931, %v5409
  %v5786 = vsel %vm4427, %v4934, %v5411
  %v5787 = vsel %vm4427, %v4936, %v5413
  %v5788 = vsel %vm4427, %v4939, %v5415
  %v5789 = vsel %vm4427, %v4941, %v5417
  %v5790 = vsel %vm4427, %v4944, %v5419
  %v5791 = vsel %vm4427, %v4946, %v5421
  %v5792 = vsel %vm4427, %v4949, %v5423
  %v5793 = vsel %vm4427, %v4951, %v5425
  %v5794 = vsel %vm4427, %v4954, %v5427
  %v5795 = vsel %vm4427, %v4956, %v5429
  %v5796 = vsel %vm4427, %v4959, %v5431
  %v5797 = vsel %vm4427, %v4961, %v5433
  %v5798 = vsel %vm4427, %v4964, %v5435
  %v5799 = vsel %vm4427, %v4966, %v5437
  %v5800 = vsel %vm4427, %v4969, %v5439
  %v5801 = vsel %vm4427, %v4971, %v5441
  %v5802 = vsel %vm4427, %v4974, %v5443
  %v5803 = vsel %vm4427, %v4976, %v5445
  %v5804 = vsel %vm4427, %v4979, %v5447
  %v5805 = vsel %vm4427, %v4981, %v5449
  %v5806 = vsel %vm4427, %v4637, %v5483
  %v5807 = vsel %vm4427, %v4639, %v5485
  %v5808 = vsel %vm4427, %v4642, %v5487
  %v5809 = vsel %vm4427, %v4644, %v5489
  %v5810 = vsel %vm4427, %v4647, %v5491
  %v5811 = vsel %vm4427, %v4649, %v5493
  %v5812 = vsel %vm4427, %v4652, %v5495
  %v5813 = vsel %vm4427, %v4654, %v5497
  %v5814 = vsel %vm4427, %v4657, %v5499
  %v5815 = vsel %vm4427, %v4659, %v5501
  %v5816 = vsel %vm4427, %v4662, %v5503
  %v5817 = vsel %vm4427, %v4664, %v5505
  %v5818 = vsel %vm4427, %v4667, %v5507
  %v5819 = vsel %vm4427, %v4669, %v5509
  %v5820 = vsel %vm4427, %v4672, %v5511
  %v5821 = vsel %vm4427, %v4674, %v5513
  %v5822 = vsel %vm4427, %v4677, %v5515
  %v5823 = vsel %vm4427, %v4679, %v5517
  %v5824 = vsel %vm4427, %v4682, %v5519
  %v5825 = vsel %vm4427, %v4684, %v5521
  %v5826 = vsel %vm4427, %v4687, %v5523
  %v5827 = vsel %vm4427, %v4689, %v5525
  %v5828 = vsel %vm4427, %v4692, %v5527
  %v5829 = vsel %vm4427, %v4694, %v5529
  %v5830 = vsel %vm4427, %v4697, %v5531
  %v5831 = vsel %vm4427, %v4699, %v5533
  %v5832 = vsel %vm4427, %v4702, %v5535
  %v5833 = vsel %vm4427, %v4704, %v5537
  %v5834 = vsel %vm4427, %v4707, %v5539
  %v5835 = vsel %vm4427, %v4709, %v5541
  %v5836 = vsel %vm4427, %v5019, %v5543
  %v5837 = vsel %vm4427, %v5021, %v5545
  %v5838 = vsel %vm4427, %v4829, %v5579
  %v5839 = vsel %vm4427, %v4831, %v5581
  %v5840 = vsel %vm4427, %v4834, %v5583
  %v5841 = vsel %vm4427, %v4836, %v5585
  %v5842 = vsel %vm4427, %v4839, %v5587
  %v5843 = vsel %vm4427, %v4841, %v5589
  %v5844 = vsel %vm4427, %v4844, %v5591
  %v5845 = vsel %vm4427, %v4846, %v5593
  %v5846 = vsel %vm4427, %v4849, %v5595
  %v5847 = vsel %vm4427, %v4851, %v5597
  %v5848 = vsel %vm4427, %v4854, %v5599
  %v5849 = vsel %vm4427, %v4856, %v5601
  %v5850 = vsel %vm4427, %v4859, %v5603
  %v5851 = vsel %vm4427, %v4861, %v5605
  %v5852 = vsel %vm4427, %v4864, %v5607
  %v5853 = vsel %vm4427, %v4866, %v5609
  %v5854 = vsel %vm4427, %v4869, %v5611
  %v5855 = vsel %vm4427, %v4871, %v5613
  %v5856 = vsel %vm4427, %v4874, %v5615
  %v5857 = vsel %vm4427, %v4876, %v5617
  %v5858 = vsel %vm4427, %v4879, %v5619
  %v5859 = vsel %vm4427, %v4881, %v5621
  %v5860 = vsel %vm4427, %v4884, %v5623
  %v5861 = vsel %vm4427, %v4886, %v5625
  %v5862 = vsel %vm4427, %v4889, %v5627
  %v5863 = vsel %vm4427, %v4891, %v5629
  %v5864 = vsel %vm4427, %v4894, %v5631
  %v5865 = vsel %vm4427, %v4896, %v5633
  %v5866 = vsel %vm4427, %v4899, %v5635
  %v5867 = vsel %vm4427, %v4901, %v5637
  %v5868 = vsel %vm4427, %v5061, %v5639
  %v5869 = vsel %vm4427, %v5063, %v5641
  %v5870 = vsel %vm4427, %v4570, %v5675
  %v5871 = vsel %vm4427, %v4571, %v5677
  %v5872 = vsel %vm4427, %v4573, %v5679
  %v5873 = vsel %vm4427, %v4574, %v5681
  %v5874 = vsel %vm4427, %v5056, %v5687
  %v5875 = vsel %vm4427, %v5058, %v5689
  %v5876 = vsel %vm4427, %v5111, %v5691
  %v5877 = vsel %vm4427, %v5113, %v5693
  %v5878 = vsel %vm4427, %v5098, %v5699
  %v5879 = vsel %vm4427, %v5100, %v5701
  %v5880 = vsel %vm4427, %v5125, %v5703
  %v5881 = vsel %vm4427, %v5127, %v5705
  %5882 = vrot.lane.b32.xlu0 %v5111, 64
  %v5883 = vpop.permute.xlu0 %5882
  %5884 = vrot.lane.b32.xlu0 %v5113, 64
  %v5885 = vpop.permute.xlu0 %5884
  %5886 = vrot.lane.b32.xlu0 %v5146, 64
  %v5887 = vpop.permute.xlu0 %5886
  %5888 = vrot.lane.b32.xlu0 %v5148, 64
  %v5889 = vpop.permute.xlu0 %5888
  %5894 = vrot.lane.b32.xlu0 %v5125, 64
  %v5895 = vpop.permute.xlu0 %5894
  %5896 = vrot.lane.b32.xlu0 %v5127, 64
  %v5897 = vpop.permute.xlu0 %5896
  %5898 = vrot.lane.b32.xlu0 %v5160, 64
  %v5899 = vpop.permute.xlu0 %5898
  %5900 = vrot.lane.b32.xlu0 %v5162, 64
  %v5901 = vpop.permute.xlu0 %5900
  %5906 = vrot.lane.b32.xlu0 %v5137, 64
  %v5907 = vpop.permute.xlu0 %5906
  %5908 = vrot.lane.b32.xlu0 %v5139, 64
  %v5909 = vpop.permute.xlu0 %5908
  %5910 = vrot.lane.b32.xlu0 %v5168, 64
  %v5911 = vpop.permute.xlu0 %5910
  %5912 = vrot.lane.b32.xlu0 %v5170, 64
  %v5913 = vpop.permute.xlu0 %5912
  %5918 = vrot.lane.b32.xlu0 %v5151, 64
  %v5919 = vpop.permute.xlu0 %5918
  %5920 = vrot.lane.b32.xlu0 %v5153, 64
  %v5921 = vpop.permute.xlu0 %5920
  %5922 = vrot.lane.b32.xlu0 %v5182, 64
  %v5923 = vpop.permute.xlu0 %5922
  %5924 = vrot.lane.b32.xlu0 %v5184, 64
  %v5925 = vpop.permute.xlu0 %5924
  %v5930 = vsel %vm4427, %v5106, %v5883
  %v5931 = vsel %vm4427, %v5108, %v5885
  %v5932 = vsel %vm4427, %v5137, %v5887
  %v5933 = vsel %vm4427, %v5139, %v5889
  %v5934 = vsel %vm4427, %v5120, %v5895
  %v5935 = vsel %vm4427, %v5122, %v5897
  %v5936 = vsel %vm4427, %v5151, %v5899
  %v5937 = vsel %vm4427, %v5153, %v5901
  %v5938 = vsel %vm4427, %v4576, %v5907
  %v5939 = vsel %vm4427, %v4577, %v5909
  %v5940 = vsel %vm4427, %v4579, %v5911
  %v5941 = vsel %vm4427, %v4580, %v5913
  %v5942 = vsel %vm4427, %v5146, %v5919
  %v5943 = vsel %vm4427, %v5148, %v5921
  %v5944 = vsel %vm4427, %v5173, %v5923
  %v5945 = vsel %vm4427, %v5175, %v5925
  %v5946 = vpack.c.bf16 %v5711, %v5710
  %v5947 = vpack.c.bf16 %v5743, %v5742
  %v5948 = vpack.c.bf16 %v5775, %v5774
  %v5949 = vpack.c.bf16 %v5807, %v5806
  %v5950 = vpack.c.bf16 %v5839, %v5838
  %v5951 = vpack.c.bf16 %v5715, %v5714
  %v5952 = vpack.c.bf16 %v5747, %v5746
  %v5953 = vpack.c.bf16 %v5779, %v5778
  %v5954 = vpack.c.bf16 %v5811, %v5810
  %v5955 = vpack.c.bf16 %v5843, %v5842
  %v5956 = vpack.c.bf16 %v5719, %v5718
  %v5957 = vpack.c.bf16 %v5751, %v5750
  %v5958 = vpack.c.bf16 %v4926, %v4924
  %v5959 = vpack.c.bf16 %v5713, %v5712
  %v5960 = vpack.c.bf16 %v5745, %v5744
  %v5961 = vpack.c.bf16 %v5777, %v5776
  %v5962 = vpack.c.bf16 %v5809, %v5808
  %v5963 = vpack.c.bf16 %v5841, %v5840
  %v5964 = vpack.c.bf16 %v5717, %v5716
  %v5965 = vpack.c.bf16 %v5749, %v5748
  %v5966 = vpack.c.bf16 %v5781, %v5780
  %v5967 = vpack.c.bf16 %v5813, %v5812
  %v5968 = vpack.c.bf16 %v5845, %v5844
  %v5969 = vpack.c.bf16 %v5721, %v5720
  %v5970 = vpack.c.bf16 %v5753, %v5752
  %v5971 = vpack.c.bf16 %v4931, %v4929
  %v5972 = vpack.c.bf16 %v5783, %v5782
  %v5973 = vpack.c.bf16 %v5815, %v5814
  %v5974 = vpack.c.bf16 %v5847, %v5846
  %v5975 = vpack.c.bf16 %v5723, %v5722
  %v5976 = vpack.c.bf16 %v5755, %v5754
  %v5977 = vpack.c.bf16 %v4936, %v4934
  %v5978 = vpack.c.bf16 %v5785, %v5784
  %v5979 = vpack.c.bf16 %v5817, %v5816
  %v5980 = vpack.c.bf16 %v5849, %v5848
  %v5981 = vpack.c.bf16 %v5725, %v5724
  %v5982 = vpack.c.bf16 %v5757, %v5756
  %v5983 = vpack.c.bf16 %v4941, %v4939
  %v5984 = vpack.c.bf16 %v5787, %v5786
  %v5985 = vpack.c.bf16 %v5819, %v5818
  %v5986 = vpack.c.bf16 %v5851, %v5850
  %v5987 = vpack.c.bf16 %v5727, %v5726
  %v5988 = vpack.c.bf16 %v5759, %v5758
  %v5989 = vpack.c.bf16 %v4946, %v4944
  %v5990 = vpack.c.bf16 %v5789, %v5788
  %v5991 = vpack.c.bf16 %v5821, %v5820
  %v5992 = vpack.c.bf16 %v5853, %v5852
  %v5993 = vpack.c.bf16 %v5729, %v5728
  %v5994 = vpack.c.bf16 %v5761, %v5760
  %v5995 = vpack.c.bf16 %v4951, %v4949
  %v5996 = vpack.c.bf16 %v5791, %v5790
  %v5997 = vpack.c.bf16 %v5823, %v5822
  %v5998 = vpack.c.bf16 %v5855, %v5854
  %v5999 = vpack.c.bf16 %v5731, %v5730
  %v6000 = vpack.c.bf16 %v5763, %v5762
  %v6001 = vpack.c.bf16 %v4956, %v4954
  %v6002 = vpack.c.bf16 %v5793, %v5792
  %v6003 = vpack.c.bf16 %v5825, %v5824
  %v6004 = vpack.c.bf16 %v5857, %v5856
  %v6005 = vpack.c.bf16 %v5733, %v5732
  %v6006 = vpack.c.bf16 %v5765, %v5764
  %v6007 = vpack.c.bf16 %v4961, %v4959
  %v6008 = vpack.c.bf16 %v5795, %v5794
  %v6009 = vpack.c.bf16 %v5827, %v5826
  %v6010 = vpack.c.bf16 %v5859, %v5858
  %v6011 = vpack.c.bf16 %v5735, %v5734
  %v6012 = vpack.c.bf16 %v5767, %v5766
  %v6013 = vpack.c.bf16 %v4966, %v4964
  %v6014 = vpack.c.bf16 %v5797, %v5796
  %v6015 = vpack.c.bf16 %v5829, %v5828
  %v6016 = vpack.c.bf16 %v5861, %v5860
  %v6017 = vpack.c.bf16 %v5737, %v5736
  %v6018 = vpack.c.bf16 %v5769, %v5768
  %v6019 = vpack.c.bf16 %v4971, %v4969
  %v6020 = vpack.c.bf16 %v5799, %v5798
  %v6021 = vpack.c.bf16 %v5831, %v5830
  %v6022 = vpack.c.bf16 %v5863, %v5862
  %v6023 = vpack.c.bf16 %v5739, %v5738
  %v6024 = vpack.c.bf16 %v5771, %v5770
  %v6025 = vpack.c.bf16 %v4976, %v4974
  %v6026 = vpack.c.bf16 %v5801, %v5800
  %v6027 = vpack.c.bf16 %v5833, %v5832
  %v6028 = vpack.c.bf16 %v5865, %v5864
  %v6029 = vpack.c.bf16 %v5741, %v5740
  %v6030 = vpack.c.bf16 %v5773, %v5772
  %v6031 = vpack.c.bf16 %v4981, %v4979
  %v6032 = vpack.c.bf16 %v5803, %v5802
  %v6033 = vpack.c.bf16 %v5835, %v5834
  %v6034 = vpack.c.bf16 %v5867, %v5866
  %v6035 = vpack.c.bf16 %v5871, %v5870
  %v6036 = vpack.c.bf16 %v5875, %v5874
  %v6037 = vpack.c.bf16 %v5100, %v5098
  %v6038 = vpack.c.bf16 %v5805, %v5804
  %v6039 = vpack.c.bf16 %v5837, %v5836
  %v6040 = vpack.c.bf16 %v5869, %v5868
  %v6041 = vpack.c.bf16 %v5873, %v5872
  %v6042 = vpack.c.bf16 %v5877, %v5876
  %v6043 = vpack.c.bf16 %v5127, %v5125
  %v6044 = vpack.c.bf16 %v5879, %v5878
  %v6045 = vpack.c.bf16 %v5931, %v5930
  %v6046 = vpack.c.bf16 %v5935, %v5934
  %v6047 = vpack.c.bf16 %v5939, %v5938
  %v6048 = vpack.c.bf16 %v5943, %v5942
  %v6049 = vpack.c.bf16 %v5162, %v5160
  %v6050 = vpack.c.bf16 %v5881, %v5880
  %v6051 = vpack.c.bf16 %v5933, %v5932
  %v6052 = vpack.c.bf16 %v5937, %v5936
  %v6053 = vpack.c.bf16 %v5941, %v5940
  %v6054 = vpack.c.bf16 %v5945, %v5944
  %v6055 = vpack.c.bf16 %v5189, %v5187
  %v6056 = vld [vmem:[%s4] sm:$0xf]
  %v6057 = vld [vmem:[%s4 + $0x4] sm:$0xf]
  %v6058 = vld [vmem:[%s4 + $0x8] sm:$0xf]
  %v6059 = vld [vmem:[%s4 + $0xc] sm:$0xf]
  %v6060 = vld [vmem:[%s4 + $0x10] sm:$0xf]
  %v6061 = vld [vmem:[%s4 + $0x14] sm:$0xf]
  %v6062 = vld [vmem:[%s4 + $0x18] sm:$0xf]
  %v6063 = vld [vmem:[%s4 + $0x1c] sm:$0xf]
  %v6064 = vld [vmem:[%s4 + $0x20] sm:$0xf]
  %v6065 = vld [vmem:[%s4 + $0x24] sm:$0xf]
  %v6066 = vld [vmem:[%s4 + $0x28] sm:$0xf]
  %v6067 = vld [vmem:[%s4 + $0x2c] sm:$0xf]
  %v6068 = vld [vmem:[%s4 + $0x30] sm:$0xf]
  %v6069 = vld [vmem:[%s4 + $0x34] sm:$0xf]
  %v6070 = vld [vmem:[%s4 + $0x38] sm:$0xf]
  %v6071 = vld [vmem:[%s4 + $0x3c] sm:$0xf]
  %v6072 = vld [vmem:[%s4 + $0x40] sm:$0xf]
  %v6073 = vld [vmem:[%s4 + $0x44] sm:$0xf]
  %v6074 = vld [vmem:[%s4 + $0x48] sm:$0xf]
  %v6075 = vld [vmem:[%s4 + $0x4c] sm:$0xf]
  %v6076 = vld [vmem:[%s4 + $0x50] sm:$0xf]
  %v6077 = vld [vmem:[%s4 + $0x54] sm:$0xf]
  %v6078 = vld [vmem:[%s4 + $0x58] sm:$0xf]
  %v6079 = vld [vmem:[%s4 + $0x5c] sm:$0xf]
  %v6080 = vld [vmem:[%s4 + $0x60] sm:$0xf]
  %v6081 = vld [vmem:[%s4 + $0x64] sm:$0xf]
  %v6082 = vld [vmem:[%s4 + $0x68] sm:$0xf]
  %v6083 = vld [vmem:[%s4 + $0x6c] sm:$0xf]
  %v6084 = vld [vmem:[%s4 + $0x70] sm:$0xf]
  %v6085 = vld [vmem:[%s4 + $0x74] sm:$0xf]
  %v6086 = vld [vmem:[%s4 + $0x78] sm:$0xf]
  %v6087 = vld [vmem:[%s4 + $0x7c] sm:$0xf]
  %v6088 = vld [vmem:[%s4 + $0x80] sm:$0xf]
  %v6089 = vld [vmem:[%s4 + $0x84] sm:$0xf]
  %v6090 = vld [vmem:[%s4 + $0x88] sm:$0xf]
  %v6091 = vld [vmem:[%s4 + $0x8c] sm:$0xf]
  %v6092 = vld [vmem:[%s4 + $0x90] sm:$0xf]
  %v6093 = vld [vmem:[%s4 + $0x94] sm:$0xf]
  %v6094 = vld [vmem:[%s4 + $0x98] sm:$0xf]
  %v6095 = vld [vmem:[%s4 + $0x9c] sm:$0xf]
  %v6096 = vld [vmem:[%s4 + $0xa0] sm:$0xf]
  %v6097 = vld [vmem:[%s4 + $0xa4] sm:$0xf]
  %v6098 = vld [vmem:[%s4 + $0xa8] sm:$0xf]
  %v6099 = vld [vmem:[%s4 + $0xac] sm:$0xf]
  %v6100 = vld [vmem:[%s4 + $0xb0] sm:$0xf]
  %v6101 = vld [vmem:[%s4 + $0xb4] sm:$0xf]
  %v6102 = vld [vmem:[%s4 + $0xb8] sm:$0xf]
  %v6103 = vld [vmem:[%s4 + $0xbc] sm:$0xf]
  %v6104 = vld [vmem:[%s4 + $0xc0] sm:$0xf]
  %v6105 = vld [vmem:[%s4 + $0xc4] sm:$0xf]
  %v6106 = vld [vmem:[%s4 + $0xc8] sm:$0xf]
  %v6107 = vld [vmem:[%s4 + $0xcc] sm:$0xf]
  %v6108 = vld [vmem:[%s4 + $0xd0] sm:$0xf]
  %v6109 = vld [vmem:[%s4 + $0xd4] sm:$0xf]
  %v6110 = vld [vmem:[%s4 + $0xd8] sm:$0xf]
  %v6111 = vld [vmem:[%s4 + $0xdc] sm:$0xf]
  %v6112 = vld [vmem:[%s4 + $0xe0] sm:$0xf]
  %v6113 = vld [vmem:[%s4 + $0xe4] sm:$0xf]
  %v6114 = vld [vmem:[%s4 + $0xe8] sm:$0xf]
  %v6115 = vld [vmem:[%s4 + $0xec] sm:$0xf]
  %v6116 = vld [vmem:[%s4 + $0xf0] sm:$0xf]
  %v6117 = vld [vmem:[%s4 + $0xf4] sm:$0xf]
  %v6118 = vld [vmem:[%s4 + $0xf8] sm:$0xf]
  %v6119 = vld [vmem:[%s4 + $0xfc] sm:$0xf]
  %v6120 = vld [vmem:[%s4 + $0x100] sm:$0xf]
  %v6121 = vld [vmem:[%s4 + $0x104] sm:$0xf]
  %v6122 = vld [vmem:[%s4 + $0x108] sm:$0xf]
  %v6123 = vld [vmem:[%s4 + $0x10c] sm:$0xf]
  %v6124 = vld [vmem:[%s4 + $0x110] sm:$0xf]
  %v6125 = vld [vmem:[%s4 + $0x114] sm:$0xf]
  %v6126 = vld [vmem:[%s4 + $0x118] sm:$0xf]
  %v6127 = vld [vmem:[%s4 + $0x11c] sm:$0xf]
  %v6128 = vld [vmem:[%s4 + $0x120] sm:$0xf]
  %v6129 = vld [vmem:[%s4 + $0x124] sm:$0xf]
  %v6130 = vld [vmem:[%s4 + $0x128] sm:$0xf]
  %v6131 = vld [vmem:[%s4 + $0x12c] sm:$0xf]
  %v6132 = vld [vmem:[%s4 + $0x130] sm:$0xf]
  %v6133 = vld [vmem:[%s4 + $0x134] sm:$0xf]
  %v6134 = vld [vmem:[%s4 + $0x138] sm:$0xf]
  %v6135 = vld [vmem:[%s4 + $0x13c] sm:$0xf]
  %v6136 = vld [vmem:[%s4 + $0x140] sm:$0xf]
  %v6137 = vld [vmem:[%s4 + $0x144] sm:$0xf]
  %v6138 = vld [vmem:[%s4 + $0x148] sm:$0xf]
  %v6139 = vld [vmem:[%s4 + $0x14c] sm:$0xf]
  %v6140 = vld [vmem:[%s4 + $0x150] sm:$0xf]
  %v6141 = vld [vmem:[%s4 + $0x154] sm:$0xf]
  %v6142 = vld [vmem:[%s4 + $0x158] sm:$0xf]
  %v6143 = vld [vmem:[%s4 + $0x15c] sm:$0xf]
  %v6144 = vld [vmem:[%s4 + $0x160] sm:$0xf]
  %v6145 = vld [vmem:[%s4 + $0x164] sm:$0xf]
  %v6146 = vld [vmem:[%s4 + $0x168] sm:$0xf]
  %v6147 = vld [vmem:[%s4 + $0x16c] sm:$0xf]
  %v6148 = vld [vmem:[%s4 + $0x170] sm:$0xf]
  %v6149 = vld [vmem:[%s4 + $0x174] sm:$0xf]
  %v6150 = vld [vmem:[%s4 + $0x178] sm:$0xf]
  %v6151 = vld [vmem:[%s4 + $0x17c] sm:$0xf]
  %v6152 = vld [vmem:[%s4 + $0x180] sm:$0xf]
  %v6153 = vld [vmem:[%s4 + $0x184] sm:$0xf]
  %v6154 = vld [vmem:[%s4 + $0x188] sm:$0xf]
  %v6155 = vld [vmem:[%s4 + $0x18c] sm:$0xf]
  %v6156 = vld [vmem:[%s4 + $0x190] sm:$0xf]
  %v6157 = vld [vmem:[%s4 + $0x194] sm:$0xf]
  %v6158 = vld [vmem:[%s4 + $0x198] sm:$0xf]
  %v6159 = vld [vmem:[%s4 + $0x19c] sm:$0xf]
  %v6160 = vld [vmem:[%s4 + $0x1a0] sm:$0xf]
  %v6161 = vld [vmem:[%s4 + $0x1a4] sm:$0xf]
  %v6162 = vld [vmem:[%s4 + $0x1a8] sm:$0xf]
  %v6163 = vld [vmem:[%s4 + $0x1ac] sm:$0xf]
  %v6164 = vld [vmem:[%s4 + $0x1b0] sm:$0xf]
  %v6165 = vld [vmem:[%s4 + $0x1b4] sm:$0xf]
  %v6166 = vld [vmem:[%s4 + $0x1b8] sm:$0xf]
  %v6167 = vld [vmem:[%s4 + $0x1bc] sm:$0xf]
  %v6168 = vld [vmem:[%s4 + $0x1c0] sm:$0xf]
  %v6169 = vld [vmem:[%s4 + $0x1c4] sm:$0xf]
  %v6170 = vld [vmem:[%s4 + $0x1c8] sm:$0xf]
  %v6171 = vld [vmem:[%s4 + $0x1cc] sm:$0xf]
  %v6172 = vld [vmem:[%s4 + $0x1d0] sm:$0xf]
  %v6173 = vld [vmem:[%s4 + $0x1d4] sm:$0xf]
  %v6174 = vld [vmem:[%s4 + $0x1d8] sm:$0xf]
  %v6175 = vld [vmem:[%s4 + $0x1dc] sm:$0xf]
  %v6176 = vld [vmem:[%s4 + $0x1e0] sm:$0xf]
  %v6177 = vld [vmem:[%s4 + $0x1e4] sm:$0xf]
  %v6178 = vld [vmem:[%s4 + $0x1e8] sm:$0xf]
  %v6179 = vld [vmem:[%s4 + $0x1ec] sm:$0xf]
  %v6180 = vld [vmem:[%s4 + $0x1f0] sm:$0xf]
  %v6181 = vld [vmem:[%s4 + $0x1f4] sm:$0xf]
  %v6182 = vld [vmem:[%s4 + $0x1f8] sm:$0xf]
  %v6183 = vld [vmem:[%s4 + $0x1fc] sm:$0xf]
  %v6184 = vld [vmem:[%s4 + $0x200] sm:$0xf]
  %v6185 = vld [vmem:[%s4 + $0x204] sm:$0xf]
  %v6186 = vld [vmem:[%s4 + $0x208] sm:$0xf]
  %v6187 = vld [vmem:[%s4 + $0x20c] sm:$0xf]
  %v6188 = vld [vmem:[%s4 + $0x210] sm:$0xf]
  %v6189 = vld [vmem:[%s4 + $0x214] sm:$0xf]
  %v6190 = vld [vmem:[%s4 + $0x218] sm:$0xf]
  %v6191 = vld [vmem:[%s4 + $0x21c] sm:$0xf]
  %v6192 = vld [vmem:[%s4 + $0x220] sm:$0xf]
  %v6193 = vld [vmem:[%s4 + $0x224] sm:$0xf]
  %v6194 = vld [vmem:[%s4 + $0x228] sm:$0xf]
  %v6195 = vld [vmem:[%s4 + $0x22c] sm:$0xf]
  %v6196 = vld [vmem:[%s4 + $0x230] sm:$0xf]
  %v6197 = vld [vmem:[%s4 + $0x234] sm:$0xf]
  %v6198 = vld [vmem:[%s4 + $0x238] sm:$0xf]
  %v6199 = vld [vmem:[%s4 + $0x23c] sm:$0xf]
  %v6200 = vld [vmem:[%s4 + $0x240] sm:$0xf]
  %v6201 = vld [vmem:[%s4 + $0x244] sm:$0xf]
  %v6202 = vld [vmem:[%s4 + $0x248] sm:$0xf]
  %v6203 = vld [vmem:[%s4 + $0x24c] sm:$0xf]
  %v6204 = vld [vmem:[%s4 + $0x250] sm:$0xf]
  %v6205 = vld [vmem:[%s4 + $0x254] sm:$0xf]
  %v6206 = vld [vmem:[%s4 + $0x258] sm:$0xf]
  %v6207 = vld [vmem:[%s4 + $0x25c] sm:$0xf]
  %v6208 = vld [vmem:[%s4 + $0x260] sm:$0xf]
  %v6209 = vld [vmem:[%s4 + $0x264] sm:$0xf]
  %v6210 = vld [vmem:[%s4 + $0x268] sm:$0xf]
  %v6211 = vld [vmem:[%s4 + $0x26c] sm:$0xf]
  %v6212 = vld [vmem:[%s4 + $0x270] sm:$0xf]
  %v6213 = vld [vmem:[%s4 + $0x274] sm:$0xf]
  %v6214 = vld [vmem:[%s4 + $0x278] sm:$0xf]
  %v6215 = vld [vmem:[%s4 + $0x27c] sm:$0xf]
  %v6216 = vld [vmem:[%s4 + $0x280] sm:$0xf]
  %v6217 = vld [vmem:[%s4 + $0x284] sm:$0xf]
  %v6218 = vld [vmem:[%s4 + $0x288] sm:$0xf]
  %v6219 = vld [vmem:[%s4 + $0x28c] sm:$0xf]
  %v6220 = vld [vmem:[%s4 + $0x290] sm:$0xf]
  %v6221 = vld [vmem:[%s4 + $0x294] sm:$0xf]
  %v6222 = vld [vmem:[%s4 + $0x298] sm:$0xf]
  %v6223 = vld [vmem:[%s4 + $0x29c] sm:$0xf]
  %v6224 = vld [vmem:[%s4 + $0x2a0] sm:$0xf]
  %v6225 = vld [vmem:[%s4 + $0x2a4] sm:$0xf]
  %v6226 = vld [vmem:[%s4 + $0x2a8] sm:$0xf]
  %v6227 = vld [vmem:[%s4 + $0x2ac] sm:$0xf]
  %v6228 = vld [vmem:[%s4 + $0x2b0] sm:$0xf]
  %v6229 = vld [vmem:[%s4 + $0x2b4] sm:$0xf]
  %v6230 = vld [vmem:[%s4 + $0x2b8] sm:$0xf]
  %v6231 = vld [vmem:[%s4 + $0x2bc] sm:$0xf]
  %v6232 = vld [vmem:[%s4 + $0x2c0] sm:$0xf]
  %v6233 = vld [vmem:[%s4 + $0x2c4] sm:$0xf]
  %v6234 = vld [vmem:[%s4 + $0x2c8] sm:$0xf]
  %v6235 = vld [vmem:[%s4 + $0x2cc] sm:$0xf]
  %v6236 = vld [vmem:[%s4 + $0x2d0] sm:$0xf]
  %v6237 = vld [vmem:[%s4 + $0x2d4] sm:$0xf]
  %v6238 = vld [vmem:[%s4 + $0x2d8] sm:$0xf]
  %v6239 = vld [vmem:[%s4 + $0x2dc] sm:$0xf]
  %v6240 = vld [vmem:[%s4 + $0x2e0] sm:$0xf]
  %v6241 = vld [vmem:[%s4 + $0x2e4] sm:$0xf]
  %v6242 = vld [vmem:[%s4 + $0x2e8] sm:$0xf]
  %v6243 = vld [vmem:[%s4 + $0x2ec] sm:$0xf]
  %v6244 = vld [vmem:[%s4 + $0x2f0] sm:$0xf]
  %v6245 = vld [vmem:[%s4 + $0x2f4] sm:$0xf]
  %v6246 = vld [vmem:[%s4 + $0x2f8] sm:$0xf]
  %v6247 = vld [vmem:[%s4 + $0x2fc] sm:$0xf]
  %v6248 = vld [vmem:[%s4 + $0x300] sm:$0xf]
  %v6249 = vld [vmem:[%s4 + $0x304] sm:$0xf]
  %v6250 = vld [vmem:[%s4 + $0x308] sm:$0xf]
  %v6251 = vld [vmem:[%s4 + $0x30c] sm:$0xf]
  %v6252 = vld [vmem:[%s4 + $0x310] sm:$0xf]
  %v6253 = vld [vmem:[%s4 + $0x314] sm:$0xf]
  %v6254 = vld [vmem:[%s4 + $0x318] sm:$0xf]
  %v6255 = vld [vmem:[%s4 + $0x31c] sm:$0xf]
  %v6256 = vld [vmem:[%s5] sm:$0x1]
  %v6258 = vlaneseq
  %v6259 = vshrl.u32 %v6258, 7
  %v6260 = vsub.s32 0, %v6259
  %v6261 = vrot.slane %v6256, %v6260
  %v6463 = vunpack.c.l.b16 %v6056
  %v6464 = vunpack.c.l.b16 %v6057
  %v6465 = vunpack.c.l.b16 %v6058
  %v6466 = vunpack.c.l.b16 %v6059
  %v6467 = vunpack.c.l.b16 %v6060
  %v6468 = vunpack.c.l.b16 %v6061
  %v6469 = vunpack.c.l.b16 %v6062
  %v6470 = vunpack.c.l.b16 %v6063
  %v6471 = vunpack.c.l.b16 %v6064
  %v6472 = vunpack.c.l.b16 %v6065
  %v6473 = vunpack.c.l.b16 %v6066
  %v6474 = vunpack.c.l.b16 %v6067
  %v6475 = vunpack.c.l.b16 %v6068
  %v6476 = vunpack.c.l.b16 %v6069
  %v6477 = vunpack.c.l.b16 %v6070
  %v6478 = vunpack.c.l.b16 %v6071
  %v6479 = vunpack.c.l.b16 %v6072
  %v6480 = vunpack.c.l.b16 %v6073
  %v6481 = vunpack.c.l.b16 %v6074
  %v6482 = vunpack.c.l.b16 %v6075
  %v6483 = vunpack.c.l.b16 %v6076
  %v6484 = vunpack.c.l.b16 %v6077
  %v6485 = vunpack.c.l.b16 %v6078
  %v6486 = vunpack.c.l.b16 %v6079
  %v6487 = vunpack.c.l.b16 %v6080
  %v6488 = vunpack.c.l.b16 %v6081
  %v6489 = vunpack.c.l.b16 %v6082
  %v6490 = vunpack.c.l.b16 %v6083
  %v6491 = vunpack.c.l.b16 %v6084
  %v6492 = vunpack.c.l.b16 %v6085
  %v6493 = vunpack.c.l.b16 %v6086
  %v6494 = vunpack.c.l.b16 %v6087
  %v6495 = vunpack.c.l.b16 %v6088
  %v6496 = vunpack.c.l.b16 %v6089
  %v6497 = vunpack.c.l.b16 %v6090
  %v6498 = vunpack.c.l.b16 %v6091
  %v6499 = vunpack.c.l.b16 %v6092
  %v6500 = vunpack.c.l.b16 %v6093
  %v6501 = vunpack.c.l.b16 %v6094
  %v6502 = vunpack.c.l.b16 %v6095
  %v6503 = vunpack.c.l.b16 %v6096
  %v6504 = vunpack.c.l.b16 %v6097
  %v6505 = vunpack.c.l.b16 %v6098
  %v6506 = vunpack.c.l.b16 %v6099
  %v6507 = vunpack.c.l.b16 %v6100
  %v6508 = vunpack.c.l.b16 %v6101
  %v6509 = vunpack.c.l.b16 %v6102
  %v6510 = vunpack.c.l.b16 %v6103
  %v6511 = vunpack.c.l.b16 %v6104
  %v6512 = vunpack.c.l.b16 %v6105
  %v6513 = vunpack.c.l.b16 %v6106
  %v6514 = vunpack.c.l.b16 %v6107
  %v6515 = vunpack.c.l.b16 %v6108
  %v6516 = vunpack.c.l.b16 %v6109
  %v6517 = vunpack.c.l.b16 %v6110
  %v6518 = vunpack.c.l.b16 %v6111
  %v6519 = vunpack.c.l.b16 %v6112
  %v6520 = vunpack.c.l.b16 %v6113
  %v6521 = vunpack.c.l.b16 %v6114
  %v6522 = vunpack.c.l.b16 %v6115
  %v6523 = vunpack.c.l.b16 %v6116
  %v6524 = vunpack.c.l.b16 %v6117
  %v6525 = vunpack.c.l.b16 %v6118
  %v6526 = vunpack.c.l.b16 %v6119
  %v6527 = vunpack.c.l.b16 %v6120
  %v6528 = vunpack.c.l.b16 %v6121
  %v6529 = vunpack.c.l.b16 %v6122
  %v6530 = vunpack.c.l.b16 %v6123
  %v6531 = vunpack.c.l.b16 %v6124
  %v6532 = vunpack.c.l.b16 %v6125
  %v6533 = vunpack.c.l.b16 %v6126
  %v6534 = vunpack.c.l.b16 %v6127
  %v6535 = vunpack.c.l.b16 %v6128
  %v6536 = vunpack.c.l.b16 %v6129
  %v6537 = vunpack.c.l.b16 %v6130
  %v6538 = vunpack.c.l.b16 %v6131
  %v6539 = vunpack.c.l.b16 %v6132
  %v6540 = vunpack.c.l.b16 %v6133
  %v6541 = vunpack.c.l.b16 %v6134
  %v6542 = vunpack.c.l.b16 %v6135
  %v6543 = vunpack.c.l.b16 %v6136
  %v6544 = vunpack.c.l.b16 %v6137
  %v6545 = vunpack.c.l.b16 %v6138
  %v6546 = vunpack.c.l.b16 %v6139
  %v6547 = vunpack.c.l.b16 %v6140
  %v6548 = vunpack.c.l.b16 %v6141
  %v6549 = vunpack.c.l.b16 %v6142
  %v6550 = vunpack.c.l.b16 %v6143
  %v6551 = vunpack.c.l.b16 %v6144
  %v6552 = vunpack.c.l.b16 %v6145
  %v6553 = vunpack.c.l.b16 %v6146
  %v6554 = vunpack.c.l.b16 %v6147
  %v6555 = vunpack.c.l.b16 %v6148
  %v6556 = vunpack.c.l.b16 %v6149
  %v6557 = vunpack.c.l.b16 %v6150
  %v6558 = vunpack.c.l.b16 %v6151
  %v6559 = vunpack.c.l.b16 %v6152
  %v6560 = vunpack.c.l.b16 %v6153
  %v6561 = vunpack.c.l.b16 %v6154
  %v6562 = vunpack.c.l.b16 %v6155
  %v6563 = vunpack.c.l.b16 %v6156
  %v6564 = vunpack.c.l.b16 %v6157
  %v6565 = vunpack.c.l.b16 %v6158
  %v6566 = vunpack.c.l.b16 %v6159
  %v6567 = vunpack.c.l.b16 %v6160
  %v6568 = vunpack.c.l.b16 %v6161
  %v6569 = vunpack.c.l.b16 %v6162
  %v6570 = vunpack.c.l.b16 %v6163
  %v6571 = vunpack.c.l.b16 %v6164
  %v6572 = vunpack.c.l.b16 %v6165
  %v6573 = vunpack.c.l.b16 %v6166
  %v6574 = vunpack.c.l.b16 %v6167
  %v6575 = vunpack.c.l.b16 %v6168
  %v6576 = vunpack.c.l.b16 %v6169
  %v6577 = vunpack.c.l.b16 %v6170
  %v6578 = vunpack.c.l.b16 %v6171
  %v6579 = vunpack.c.l.b16 %v6172
  %v6580 = vunpack.c.l.b16 %v6173
  %v6581 = vunpack.c.l.b16 %v6174
  %v6582 = vunpack.c.l.b16 %v6175
  %v6583 = vunpack.c.l.b16 %v6176
  %v6584 = vunpack.c.l.b16 %v6177
  %v6585 = vunpack.c.l.b16 %v6178
  %v6586 = vunpack.c.l.b16 %v6179
  %v6587 = vunpack.c.l.b16 %v6180
  %v6588 = vunpack.c.l.b16 %v6181
  %v6589 = vunpack.c.l.b16 %v6182
  %v6590 = vunpack.c.l.b16 %v6183
  %v6591 = vunpack.c.l.b16 %v6184
  %v6592 = vunpack.c.l.b16 %v6185
  %v6593 = vunpack.c.l.b16 %v6186
  %v6594 = vunpack.c.l.b16 %v6187
  %v6595 = vunpack.c.l.b16 %v6188
  %v6596 = vunpack.c.l.b16 %v6189
  %v6597 = vunpack.c.l.b16 %v6190
  %v6598 = vunpack.c.l.b16 %v6191
  %v6599 = vunpack.c.l.b16 %v6192
  %v6600 = vunpack.c.l.b16 %v6193
  %v6601 = vunpack.c.l.b16 %v6194
  %v6602 = vunpack.c.l.b16 %v6195
  %v6603 = vunpack.c.l.b16 %v6196
  %v6604 = vunpack.c.l.b16 %v6197
  %v6605 = vunpack.c.l.b16 %v6198
  %v6606 = vunpack.c.l.b16 %v6199
  %v6607 = vunpack.c.l.b16 %v6200
  %v6608 = vunpack.c.l.b16 %v6201
  %v6609 = vunpack.c.l.b16 %v6202
  %v6610 = vunpack.c.l.b16 %v6203
  %v6611 = vunpack.c.l.b16 %v6204
  %v6612 = vunpack.c.l.b16 %v6205
  %v6613 = vunpack.c.l.b16 %v6206
  %v6614 = vunpack.c.l.b16 %v6207
  %v6615 = vunpack.c.l.b16 %v6208
  %v6616 = vunpack.c.l.b16 %v6209
  %v6617 = vunpack.c.l.b16 %v6210
  %v6618 = vunpack.c.l.b16 %v6211
  %v6619 = vunpack.c.l.b16 %v6212
  %v6620 = vunpack.c.l.b16 %v6213
  %v6621 = vunpack.c.l.b16 %v6214
  %v6622 = vunpack.c.l.b16 %v6215
  %v6623 = vunpack.c.l.b16 %v6216
  %v6624 = vunpack.c.l.b16 %v6217
  %v6625 = vunpack.c.l.b16 %v6218
  %v6626 = vunpack.c.l.b16 %v6219
  %v6627 = vunpack.c.l.b16 %v6220
  %v6628 = vunpack.c.l.b16 %v6221
  %v6629 = vunpack.c.l.b16 %v6222
  %v6630 = vunpack.c.l.b16 %v6223
  %v6631 = vunpack.c.l.b16 %v6224
  %v6632 = vunpack.c.l.b16 %v6225
  %v6633 = vunpack.c.l.b16 %v6226
  %v6634 = vunpack.c.l.b16 %v6227
  %v6635 = vunpack.c.l.b16 %v6228
  %v6636 = vunpack.c.l.b16 %v6229
  %v6637 = vunpack.c.l.b16 %v6230
  %v6638 = vunpack.c.l.b16 %v6231
  %v6639 = vunpack.c.l.b16 %v6232
  %v6640 = vunpack.c.l.b16 %v6233
  %v6641 = vunpack.c.l.b16 %v6234
  %v6642 = vunpack.c.l.b16 %v6235
  %v6643 = vunpack.c.l.b16 %v6236
  %v6644 = vunpack.c.l.b16 %v6237
  %v6645 = vunpack.c.l.b16 %v6238
  %v6646 = vunpack.c.l.b16 %v6239
  %v6647 = vunpack.c.l.b16 %v6240
  %v6648 = vunpack.c.l.b16 %v6241
  %v6649 = vunpack.c.l.b16 %v6242
  %v6650 = vunpack.c.l.b16 %v6243
  %v6651 = vunpack.c.l.b16 %v6244
  %v6652 = vunpack.c.l.b16 %v6245
  %v6653 = vunpack.c.l.b16 %v6246
  %v6654 = vunpack.c.l.b16 %v6247
  %v6655 = vunpack.c.l.b16 %v6248
  %v6656 = vunpack.c.l.b16 %v6249
  %v6657 = vunpack.c.l.b16 %v6250
  %v6658 = vunpack.c.l.b16 %v6251
  %v6659 = vunpack.c.l.b16 %v6252
  %v6660 = vunpack.c.l.b16 %v6253
  %v6661 = vunpack.c.l.b16 %v6254
  %v6662 = vunpack.c.l.b16 %v6255
  %v6663 = vpack.c.b16 %v6464, %v6463
  %v6664 = vpack.c.b16 %v6466, %v6465
  %v6665 = vpack.c.b16 %v6468, %v6467
  %v6666 = vpack.c.b16 %v6470, %v6469
  %v6667 = vpack.c.b16 %v6472, %v6471
  %v6668 = vpack.c.b16 %v6474, %v6473
  %v6669 = vpack.c.b16 %v6476, %v6475
  %v6670 = vpack.c.b16 %v6478, %v6477
  %v6671 = vpack.c.b16 %v6480, %v6479
  %v6672 = vpack.c.b16 %v6482, %v6481
  %v6673 = vpack.c.b16 %v6484, %v6483
  %v6674 = vpack.c.b16 %v6486, %v6485
  %v6675 = vpack.c.b16 %v6488, %v6487
  %v6676 = vpack.c.b16 %v6490, %v6489
  %v6677 = vpack.c.b16 %v6492, %v6491
  %v6678 = vpack.c.b16 %v6494, %v6493
  %v6679 = vpack.c.b16 %v6496, %v6495
  %v6680 = vpack.c.b16 %v6498, %v6497
  %v6681 = vpack.c.b16 %v6500, %v6499
  %v6682 = vpack.c.b16 %v6502, %v6501
  %v6683 = vpack.c.b16 %v6504, %v6503
  %v6684 = vpack.c.b16 %v6506, %v6505
  %v6685 = vpack.c.b16 %v6508, %v6507
  %v6686 = vpack.c.b16 %v6510, %v6509
  %v6687 = vpack.c.b16 %v6512, %v6511
  %v6688 = vpack.c.b16 %v6514, %v6513
  %v6689 = vpack.c.b16 %v6516, %v6515
  %v6690 = vpack.c.b16 %v6518, %v6517
  %v6691 = vpack.c.b16 %v6520, %v6519
  %v6692 = vpack.c.b16 %v6522, %v6521
  %v6693 = vpack.c.b16 %v6524, %v6523
  %v6694 = vpack.c.b16 %v6526, %v6525
  %v6695 = vpack.c.b16 %v6528, %v6527
  %v6696 = vpack.c.b16 %v6530, %v6529
  %v6697 = vpack.c.b16 %v6532, %v6531
  %v6698 = vpack.c.b16 %v6534, %v6533
  %v6699 = vpack.c.b16 %v6536, %v6535
  %v6700 = vpack.c.b16 %v6538, %v6537
  %v6701 = vpack.c.b16 %v6540, %v6539
  %v6702 = vpack.c.b16 %v6542, %v6541
  %v6703 = vpack.c.b16 %v6544, %v6543
  %v6704 = vpack.c.b16 %v6546, %v6545
  %v6705 = vpack.c.b16 %v6548, %v6547
  %v6706 = vpack.c.b16 %v6550, %v6549
  %v6707 = vpack.c.b16 %v6552, %v6551
  %v6708 = vpack.c.b16 %v6554, %v6553
  %v6709 = vpack.c.b16 %v6556, %v6555
  %v6710 = vpack.c.b16 %v6558, %v6557
  %v6711 = vpack.c.b16 %v6560, %v6559
  %v6712 = vpack.c.b16 %v6562, %v6561
  %v6713 = vpack.c.b16 %v6564, %v6563
  %v6714 = vpack.c.b16 %v6566, %v6565
  %v6715 = vpack.c.b16 %v6568, %v6567
  %v6716 = vpack.c.b16 %v6570, %v6569
  %v6717 = vpack.c.b16 %v6572, %v6571
  %v6718 = vpack.c.b16 %v6574, %v6573
  %v6719 = vpack.c.b16 %v6576, %v6575
  %v6720 = vpack.c.b16 %v6578, %v6577
  %v6721 = vpack.c.b16 %v6580, %v6579
  %v6722 = vpack.c.b16 %v6582, %v6581
  %v6723 = vpack.c.b16 %v6584, %v6583
  %v6724 = vpack.c.b16 %v6586, %v6585
  %v6725 = vpack.c.b16 %v6588, %v6587
  %v6726 = vpack.c.b16 %v6590, %v6589
  %v6727 = vpack.c.b16 %v6592, %v6591
  %v6728 = vpack.c.b16 %v6594, %v6593
  %v6729 = vpack.c.b16 %v6596, %v6595
  %v6730 = vpack.c.b16 %v6598, %v6597
  %v6731 = vpack.c.b16 %v6600, %v6599
  %v6732 = vpack.c.b16 %v6602, %v6601
  %v6733 = vpack.c.b16 %v6604, %v6603
  %v6734 = vpack.c.b16 %v6606, %v6605
  %v6735 = vpack.c.b16 %v6608, %v6607
  %v6736 = vpack.c.b16 %v6610, %v6609
  %v6737 = vpack.c.b16 %v6612, %v6611
  %v6738 = vpack.c.b16 %v6614, %v6613
  %v6739 = vpack.c.b16 %v6616, %v6615
  %v6740 = vpack.c.b16 %v6618, %v6617
  %v6741 = vpack.c.b16 %v6620, %v6619
  %v6742 = vpack.c.b16 %v6622, %v6621
  %v6743 = vpack.c.b16 %v6624, %v6623
  %v6744 = vpack.c.b16 %v6626, %v6625
  %v6745 = vpack.c.b16 %v6628, %v6627
  %v6746 = vpack.c.b16 %v6630, %v6629
  %v6747 = vpack.c.b16 %v6632, %v6631
  %v6748 = vpack.c.b16 %v6634, %v6633
  %v6749 = vpack.c.b16 %v6636, %v6635
  %v6750 = vpack.c.b16 %v6638, %v6637
  %v6751 = vpack.c.b16 %v6640, %v6639
  %v6752 = vpack.c.b16 %v6642, %v6641
  %v6753 = vpack.c.b16 %v6644, %v6643
  %v6754 = vpack.c.b16 %v6646, %v6645
  %v6755 = vpack.c.b16 %v6648, %v6647
  %v6756 = vpack.c.b16 %v6650, %v6649
  %v6757 = vpack.c.b16 %v6652, %v6651
  %v6758 = vpack.c.b16 %v6654, %v6653
  %v6759 = vpack.c.b16 %v6656, %v6655
  %v6760 = vpack.c.b16 %v6658, %v6657
  %v6761 = vpack.c.b16 %v6660, %v6659
  %v6762 = vpack.c.b16 %v6662, %v6661
  %v6864 = vsel %vm4427, %v5958, 0
  %v6867 = vsel %vm4427, %v5971, 0
  %v6870 = vsel %vm4427, %v5977, 0
  %v6873 = vsel %vm4427, %v5983, 0
  %v6876 = vsel %vm4427, %v5989, 0
  %v6879 = vsel %vm4427, %v5995, 0
  %v6882 = vsel %vm4427, %v6001, 0
  %v6885 = vsel %vm4427, %v6007, 0
  %v6888 = vsel %vm4427, %v6013, 0
  %v6891 = vsel %vm4427, %v6019, 0
  %v6894 = vsel %vm4427, %v6025, 0
  %v6897 = vsel %vm4427, %v6031, 0
  %v6900 = vsel %vm4427, %v6037, 0
  %v6903 = vsel %vm4427, %v6043, 0
  %v6906 = vsel %vm4427, %v6049, 0
  %v6909 = vsel %vm4427, %v6055, 0
  %6911 = vmatprep.subr.bf16.mxu0 0
  %6912 = vmatpush1.bf16.msra.mxu0 %v6663
  %6913 = vmatprep.subr.bf16.mxu0 0
  %6914 = vmatpush1.bf16.msra.mxu0 %v6664
  %6915 = vmatprep.subr.bf16.mxu0 0
  %6916 = vmatpush1.bf16.msra.mxu0 %v6665
  %6917 = vmatprep.subr.bf16.mxu0 0
  %6918 = vmatpush1.bf16.msra.mxu0 %v6666
  %6919 = vmatprep.subr.bf16.mxu0 0
  %6920 = vmatpush1.bf16.msra.mxu0 %v6667
  %6921 = vmatprep.subr.bf16.mxu0 0
  %6922 = vmatpush1.bf16.msra.mxu0 %v6668
  %6923 = vmatprep.subr.bf16.mxu0 0
  %6924 = vmatpush1.bf16.msra.mxu0 %v6669
  %6925 = vmatprep.subr.bf16.mxu0 0
  %6926 = vmatpush1.bf16.msra.mxu0 %v6670
  %6927 = vmatprep.subr.bf16.mxu0 0
  %6928 = vmatpush1.bf16.msra.mxu0 %v6671
  %6929 = vmatprep.subr.bf16.mxu0 0
  %6930 = vmatpush1.bf16.msra.mxu0 %v6672
  %6931 = vmatprep.subr.bf16.mxu0 0
  %6932 = vmatpush1.bf16.msra.mxu0 %v6673
  %6933 = vmatprep.subr.bf16.mxu0 0
  %6934 = vmatpush1.bf16.msra.mxu0 %v6674
  %6935 = vmatprep.subr.bf16.mxu0 0
  %6936 = vmatpush1.bf16.msra.mxu0 %v6675
  %6937 = vmatprep.subr.bf16.mxu0 0
  %6938 = vmatpush1.bf16.msra.mxu0 %v6676
  %6939 = vmatprep.subr.bf16.mxu0 0
  %6940 = vmatpush1.bf16.msra.mxu0 %v6677
  %6941 = vmatprep.subr.bf16.mxu0 0
  %6942 = vmatpush1.bf16.msra.mxu0 %v6678
  %6943 = vmatprep.mubr.bf16.mxu0 %v5947
  %6944 = vmatmul.mubr.bf16.gmra.mrb[0].mxu0 %v5946
  %v6945 = vpop.f32.mrb[0].mxu0
  %v6946 = vadd.f32 %v6261, %v6945
  %v6947 = vpop.f32.mrb[0].mxu0
  %v6948 = vpop.f32.mrb[0].mxu0
  %v6949 = vadd.f32 %v6261, %v6948
  %v6950 = vpop.f32.mrb[0].mxu0
  %6951 = vmatprep.mubr.bf16.mxu0 %v5960
  %6952 = vmatmul.mubr.bf16.gmra.mrb[0].mxu0 %v5959
  %v6953 = vpop.f32.mrb[0].mxu0
  %v6954 = vadd.f32 %v6261, %v6953
  %v6955 = vpop.f32.mrb[0].mxu0
  %v6956 = vpop.f32.mrb[0].mxu0
  %v6957 = vadd.f32 %v6261, %v6956
  %v6958 = vpop.f32.mrb[0].mxu0
  %6959 = vmatprep.mubr.bf16.mxu0 %v5952
  %6960 = vmatmul.mubr.bf16.gmra.mrb[0].mxu0 %v5951
  %v6961 = vpop.f32.mrb[0].mxu0
  %v6962 = vadd.f32 %v6261, %v6961
  %v6963 = vpop.f32.mrb[0].mxu0
  %v6964 = vpop.f32.mrb[0].mxu0
  %v6965 = vadd.f32 %v6261, %v6964
  %v6966 = vpop.f32.mrb[0].mxu0
  %6967 = vmatprep.mubr.bf16.mxu0 %v5965
  %6968 = vmatmul.mubr.bf16.gmra.mrb[0].mxu0 %v5964
  %v6969 = vpop.f32.mrb[0].mxu0
  %v6970 = vadd.f32 %v6261, %v6969
  %v6971 = vpop.f32.mrb[0].mxu0
  %v6972 = vpop.f32.mrb[0].mxu0
  %v6973 = vadd.f32 %v6261, %v6972
  %v6974 = vpop.f32.mrb[0].mxu0
  %6975 = vmatprep.mubr.bf16.mxu0 %v5957
  %6976 = vmatmul.mubr.bf16.gmra.mrb[0].mxu0 %v5956
  %v6977 = vpop.f32.mrb[0].mxu0
  %v6978 = vadd.f32 %v6261, %v6977
  %v6979 = vpop.f32.mrb[0].mxu0
  %v6980 = vpop.f32.mrb[0].mxu0
  %v6981 = vadd.f32 %v6261, %v6980
  %v6982 = vpop.f32.mrb[0].mxu0
  %6983 = vmatprep.mubr.bf16.mxu0 %v5970
  %6984 = vmatmul.mubr.bf16.gmra.mrb[0].mxu0 %v5969
  %v6985 = vpop.f32.mrb[0].mxu0
  %v6986 = vadd.f32 %v6261, %v6985
  %v6987 = vpop.f32.mrb[0].mxu0
  %v6988 = vpop.f32.mrb[0].mxu0
  %v6989 = vadd.f32 %v6261, %v6988
  %v6990 = vpop.f32.mrb[0].mxu0
  %6991 = vmatprep.mubr.bf16.mxu0 %v5976
  %6992 = vmatmul.mubr.bf16.gmra.mrb[0].mxu0 %v5975
  %v6993 = vpop.f32.mrb[0].mxu0
  %v6994 = vadd.f32 %v6261, %v6993
  %v6995 = vpop.f32.mrb[0].mxu0
  %v6996 = vpop.f32.mrb[0].mxu0
  %v6997 = vadd.f32 %v6261, %v6996
  %v6998 = vpop.f32.mrb[0].mxu0
  %6999 = vmatprep.mubr.bf16.mxu0 %v5982
  %7000 = vmatmul.mubr.bf16.gmra.mrb[0].mxu0 %v5981
  %v7001 = vpop.f32.mrb[0].mxu0
  %v7002 = vadd.f32 %v6261, %v7001
  %v7003 = vpop.f32.mrb[0].mxu0
  %v7004 = vpop.f32.mrb[0].mxu0
  %v7005 = vadd.f32 %v6261, %v7004
  %v7006 = vpop.f32.mrb[0].mxu0
  %7007 = vmatprep.mubr.bf16.mxu0 %v5988
  %7008 = vmatmul.mubr.bf16.gmra.mrb[0].mxu0 %v5987
  %v7009 = vpop.f32.mrb[0].mxu0
  %v7010 = vadd.f32 %v6261, %v7009
  %v7011 = vpop.f32.mrb[0].mxu0
  %v7012 = vpop.f32.mrb[0].mxu0
  %v7013 = vadd.f32 %v6261, %v7012
  %v7014 = vpop.f32.mrb[0].mxu0
  %7015 = vmatprep.mubr.bf16.mxu0 %v5994
  %7016 = vmatmul.mubr.bf16.gmra.mrb[0].mxu0 %v5993
  %v7017 = vpop.f32.mrb[0].mxu0
  %v7018 = vadd.f32 %v6261, %v7017
  %v7019 = vpop.f32.mrb[0].mxu0
  %v7020 = vpop.f32.mrb[0].mxu0
  %v7021 = vadd.f32 %v6261, %v7020
  %v7022 = vpop.f32.mrb[0].mxu0
  %7023 = vmatprep.mubr.bf16.mxu0 %v6000
  %7024 = vmatmul.mubr.bf16.gmra.mrb[0].mxu0 %v5999
  %v7025 = vpop.f32.mrb[0].mxu0
  %v7026 = vadd.f32 %v6261, %v7025
  %v7027 = vpop.f32.mrb[0].mxu0
  %v7028 = vpop.f32.mrb[0].mxu0
  %v7029 = vadd.f32 %v6261, %v7028
  %v7030 = vpop.f32.mrb[0].mxu0
  %7031 = vmatprep.mubr.bf16.mxu0 %v6006
  %7032 = vmatmul.mubr.bf16.gmra.mrb[0].mxu0 %v6005
  %v7033 = vpop.f32.mrb[0].mxu0
  %v7034 = vadd.f32 %v6261, %v7033
  %v7035 = vpop.f32.mrb[0].mxu0
  %v7036 = vpop.f32.mrb[0].mxu0
  %v7037 = vadd.f32 %v6261, %v7036
  %v7038 = vpop.f32.mrb[0].mxu0
  %7039 = vmatprep.mubr.bf16.mxu0 %v6012
  %7040 = vmatmul.mubr.bf16.gmra.mrb[0].mxu0 %v6011
  %v7041 = vpop.f32.mrb[0].mxu0
  %v7042 = vadd.f32 %v6261, %v7041
  %v7043 = vpop.f32.mrb[0].mxu0
  %v7044 = vpop.f32.mrb[0].mxu0
  %v7045 = vadd.f32 %v6261, %v7044
  %v7046 = vpop.f32.mrb[0].mxu0
  %7047 = vmatprep.mubr.bf16.mxu0 %v6018
  %7048 = vmatmul.mubr.bf16.gmra.mrb[0].mxu0 %v6017
  %v7049 = vpop.f32.mrb[0].mxu0
  %v7050 = vadd.f32 %v6261, %v7049
  %v7051 = vpop.f32.mrb[0].mxu0
  %v7052 = vpop.f32.mrb[0].mxu0
  %v7053 = vadd.f32 %v6261, %v7052
  %v7054 = vpop.f32.mrb[0].mxu0
  %7055 = vmatprep.mubr.bf16.mxu0 %v6024
  %7056 = vmatmul.mubr.bf16.gmra.mrb[0].mxu0 %v6023
  %v7057 = vpop.f32.mrb[0].mxu0
  %v7058 = vadd.f32 %v6261, %v7057
  %v7059 = vpop.f32.mrb[0].mxu0
  %v7060 = vpop.f32.mrb[0].mxu0
  %v7061 = vadd.f32 %v6261, %v7060
  %v7062 = vpop.f32.mrb[0].mxu0
  %7063 = vmatprep.mubr.bf16.mxu0 %v6030
  %7064 = vmatmul.mubr.bf16.gmra.mrb[0].mxu0 %v6029
  %v7065 = vpop.f32.mrb[0].mxu0
  %v7066 = vadd.f32 %v6261, %v7065
  %v7067 = vpop.f32.mrb[0].mxu0
  %v7068 = vpop.f32.mrb[0].mxu0
  %v7069 = vadd.f32 %v6261, %v7068
  %v7070 = vpop.f32.mrb[0].mxu0
  %7071 = vdwg.mxu0
  %7072 = vmatprep.subr.bf16.mxu0 0
  %7073 = vmatpush1.bf16.msra.mxu0 %v6679
  %7074 = vmatprep.subr.bf16.mxu0 0
  %7075 = vmatpush1.bf16.msra.mxu0 %v6680
  %7076 = vmatprep.subr.bf16.mxu0 0
  %7077 = vmatpush1.bf16.msra.mxu0 %v6681
  %7078 = vmatprep.subr.bf16.mxu0 0
  %7079 = vmatpush1.bf16.msra.mxu0 %v6682
  %7080 = vmatprep.subr.bf16.mxu0 0
  %7081 = vmatpush1.bf16.msra.mxu0 %v6683
  %7082 = vmatprep.subr.bf16.mxu0 0
  %7083 = vmatpush1.bf16.msra.mxu0 %v6684
  %7084 = vmatprep.subr.bf16.mxu0 0
  %7085 = vmatpush1.bf16.msra.mxu0 %v6685
  %7086 = vmatprep.subr.bf16.mxu0 0
  %7087 = vmatpush1.bf16.msra.mxu0 %v6686
  %7088 = vmatprep.subr.bf16.mxu0 0
  %7089 = vmatpush1.bf16.msra.mxu0 %v6687
  %7090 = vmatprep.subr.bf16.mxu0 0
  %7091 = vmatpush1.bf16.msra.mxu0 %v6688
  %7092 = vmatprep.subr.bf16.mxu0 0
  %7093 = vmatpush1.bf16.msra.mxu0 %v6689
  %7094 = vmatprep.subr.bf16.mxu0 0
  %7095 = vmatpush1.bf16.msra.mxu0 %v6690
  %7096 = vmatprep.subr.bf16.mxu0 0
  %7097 = vmatpush1.bf16.msra.mxu0 %v6691
  %7098 = vmatprep.subr.bf16.mxu0 0
  %7099 = vmatpush1.bf16.msra.mxu0 %v6692
  %7100 = vmatprep.subr.bf16.mxu0 0
  %7101 = vmatpush1.bf16.msra.mxu0 %v6693
  %7102 = vmatprep.subr.bf16.mxu0 0
  %7103 = vmatpush1.bf16.msra.mxu0 %v6694
  %7104 = vmatprep.mubr.bf16.mxu0 %v5949
  %7105 = vmatmul.mubr.bf16.gmra.mrb[0].mxu0 %v5948
  %v7106 = vpop.f32.mrb[0].mxu0
  %v7107 = vadd.f32 %v6946, %v7106
  %v7108 = vpop.f32.mrb[0].mxu0
  %v7109 = vpop.f32.mrb[0].mxu0
  %v7110 = vadd.f32 %v6949, %v7109
  %v7111 = vpop.f32.mrb[0].mxu0
  %7112 = vmatprep.mubr.bf16.mxu0 %v5962
  %7113 = vmatmul.mubr.bf16.gmra.mrb[0].mxu0 %v5961
  %v7114 = vpop.f32.mrb[0].mxu0
  %v7115 = vadd.f32 %v6954, %v7114
  %v7116 = vpop.f32.mrb[0].mxu0
  %v7117 = vpop.f32.mrb[0].mxu0
  %v7118 = vadd.f32 %v6957, %v7117
  %v7119 = vpop.f32.mrb[0].mxu0
  %7120 = vmatprep.mubr.bf16.mxu0 %v5954
  %7121 = vmatmul.mubr.bf16.gmra.mrb[0].mxu0 %v5953
  %v7122 = vpop.f32.mrb[0].mxu0
  %v7123 = vadd.f32 %v6962, %v7122
  %v7124 = vpop.f32.mrb[0].mxu0
  %v7125 = vpop.f32.mrb[0].mxu0
  %v7126 = vadd.f32 %v6965, %v7125
  %v7127 = vpop.f32.mrb[0].mxu0
  %7128 = vmatprep.mubr.bf16.mxu0 %v5967
  %7129 = vmatmul.mubr.bf16.gmra.mrb[0].mxu0 %v5966
  %v7130 = vpop.f32.mrb[0].mxu0
  %v7131 = vadd.f32 %v6970, %v7130
  %v7132 = vpop.f32.mrb[0].mxu0
  %v7133 = vpop.f32.mrb[0].mxu0
  %v7134 = vadd.f32 %v6973, %v7133
  %v7135 = vpop.f32.mrb[0].mxu0
  %7136 = vmatprep.mubr.bf16.mxu0 %v5973
  %7137 = vmatmul.mubr.bf16.gmra.mrb[0].mxu0 %v5972
  %v7138 = vpop.f32.mrb[0].mxu0
  %v7139 = vadd.f32 %v6978, %v7138
  %v7140 = vpop.f32.mrb[0].mxu0
  %v7141 = vpop.f32.mrb[0].mxu0
  %v7142 = vadd.f32 %v6981, %v7141
  %v7143 = vpop.f32.mrb[0].mxu0
  %7144 = vmatprep.mubr.bf16.mxu0 %v5979
  %7145 = vmatmul.mubr.bf16.gmra.mrb[0].mxu0 %v5978
  %v7146 = vpop.f32.mrb[0].mxu0
  %v7147 = vadd.f32 %v6986, %v7146
  %v7148 = vpop.f32.mrb[0].mxu0
  %v7149 = vpop.f32.mrb[0].mxu0
  %v7150 = vadd.f32 %v6989, %v7149
  %v7151 = vpop.f32.mrb[0].mxu0
  %7152 = vmatprep.mubr.bf16.mxu0 %v5985
  %7153 = vmatmul.mubr.bf16.gmra.mrb[0].mxu0 %v5984
  %v7154 = vpop.f32.mrb[0].mxu0
  %v7155 = vadd.f32 %v6994, %v7154
  %v7156 = vpop.f32.mrb[0].mxu0
  %v7157 = vpop.f32.mrb[0].mxu0
  %v7158 = vadd.f32 %v6997, %v7157
  %v7159 = vpop.f32.mrb[0].mxu0
  %7160 = vmatprep.mubr.bf16.mxu0 %v5991
  %7161 = vmatmul.mubr.bf16.gmra.mrb[0].mxu0 %v5990
  %v7162 = vpop.f32.mrb[0].mxu0
  %v7163 = vadd.f32 %v7002, %v7162
  %v7164 = vpop.f32.mrb[0].mxu0
  %v7165 = vpop.f32.mrb[0].mxu0
  %v7166 = vadd.f32 %v7005, %v7165
  %v7167 = vpop.f32.mrb[0].mxu0
  %7168 = vmatprep.mubr.bf16.mxu0 %v5997
  %7169 = vmatmul.mubr.bf16.gmra.mrb[0].mxu0 %v5996
  %v7170 = vpop.f32.mrb[0].mxu0
  %v7171 = vadd.f32 %v7010, %v7170
  %v7172 = vpop.f32.mrb[0].mxu0
  %v7173 = vpop.f32.mrb[0].mxu0
  %v7174 = vadd.f32 %v7013, %v7173
  %v7175 = vpop.f32.mrb[0].mxu0
  %7176 = vmatprep.mubr.bf16.mxu0 %v6003
  %7177 = vmatmul.mubr.bf16.gmra.mrb[0].mxu0 %v6002
  %v7178 = vpop.f32.mrb[0].mxu0
  %v7179 = vadd.f32 %v7018, %v7178
  %v7180 = vpop.f32.mrb[0].mxu0
  %v7181 = vpop.f32.mrb[0].mxu0
  %v7182 = vadd.f32 %v7021, %v7181
  %v7183 = vpop.f32.mrb[0].mxu0
  %7184 = vmatprep.mubr.bf16.mxu0 %v6009
  %7185 = vmatmul.mubr.bf16.gmra.mrb[0].mxu0 %v6008
  %v7186 = vpop.f32.mrb[0].mxu0
  %v7187 = vadd.f32 %v7026, %v7186
  %v7188 = vpop.f32.mrb[0].mxu0
  %v7189 = vpop.f32.mrb[0].mxu0
  %v7190 = vadd.f32 %v7029, %v7189
  %v7191 = vpop.f32.mrb[0].mxu0
  %7192 = vmatprep.mubr.bf16.mxu0 %v6015
  %7193 = vmatmul.mubr.bf16.gmra.mrb[0].mxu0 %v6014
  %v7194 = vpop.f32.mrb[0].mxu0
  %v7195 = vadd.f32 %v7034, %v7194
  %v7196 = vpop.f32.mrb[0].mxu0
  %v7197 = vpop.f32.mrb[0].mxu0
  %v7198 = vadd.f32 %v7037, %v7197
  %v7199 = vpop.f32.mrb[0].mxu0
  %7200 = vmatprep.mubr.bf16.mxu0 %v6021
  %7201 = vmatmul.mubr.bf16.gmra.mrb[0].mxu0 %v6020
  %v7202 = vpop.f32.mrb[0].mxu0
  %v7203 = vadd.f32 %v7042, %v7202
  %v7204 = vpop.f32.mrb[0].mxu0
  %v7205 = vpop.f32.mrb[0].mxu0
  %v7206 = vadd.f32 %v7045, %v7205
  %v7207 = vpop.f32.mrb[0].mxu0
  %7208 = vmatprep.mubr.bf16.mxu0 %v6027
  %7209 = vmatmul.mubr.bf16.gmra.mrb[0].mxu0 %v6026
  %v7210 = vpop.f32.mrb[0].mxu0
  %v7211 = vadd.f32 %v7050, %v7210
  %v7212 = vpop.f32.mrb[0].mxu0
  %v7213 = vpop.f32.mrb[0].mxu0
  %v7214 = vadd.f32 %v7053, %v7213
  %v7215 = vpop.f32.mrb[0].mxu0
  %7216 = vmatprep.mubr.bf16.mxu0 %v6033
  %7217 = vmatmul.mubr.bf16.gmra.mrb[0].mxu0 %v6032
  %v7218 = vpop.f32.mrb[0].mxu0
  %v7219 = vadd.f32 %v7058, %v7218
  %v7220 = vpop.f32.mrb[0].mxu0
  %v7221 = vpop.f32.mrb[0].mxu0
  %v7222 = vadd.f32 %v7061, %v7221
  %v7223 = vpop.f32.mrb[0].mxu0
  %7224 = vmatprep.mubr.bf16.mxu0 %v6039
  %7225 = vmatmul.mubr.bf16.gmra.mrb[0].mxu0 %v6038
  %v7226 = vpop.f32.mrb[0].mxu0
  %v7227 = vadd.f32 %v7066, %v7226
  %v7228 = vpop.f32.mrb[0].mxu0
  %v7229 = vpop.f32.mrb[0].mxu0
  %v7230 = vadd.f32 %v7069, %v7229
  %v7231 = vpop.f32.mrb[0].mxu0
  %7232 = vdwg.mxu0
  %7233 = vmatprep.subr.bf16.mxu0 0
  %7234 = vmatpush1.bf16.msra.mxu0 %v6695
  %7235 = vmatprep.subr.bf16.mxu0 0
  %7236 = vmatpush1.bf16.msra.mxu0 %v6696
  %7237 = vmatprep.subr.bf16.mxu0 0
  %7238 = vmatpush1.bf16.msra.mxu0 %v6697
  %7239 = vmatprep.subr.bf16.mxu0 0
  %7240 = vmatpush1.bf16.msra.mxu0 %v6698
  %7241 = vmatprep.subr.bf16.mxu0 0
  %7242 = vmatpush1.bf16.msra.mxu0 %v6699
  %7243 = vmatprep.subr.bf16.mxu0 0
  %7244 = vmatpush1.bf16.msra.mxu0 %v6700
  %7245 = vmatprep.subr.bf16.mxu0 0
  %7246 = vmatpush1.bf16.msra.mxu0 %v6701
  %7247 = vmatprep.subr.bf16.mxu0 0
  %7248 = vmatpush1.bf16.msra.mxu0 %v6702
  %7249 = vmatprep.subr.bf16.mxu0 0
  %7250 = vmatpush1.bf16.msra.mxu0 %v6703
  %7251 = vmatprep.subr.bf16.mxu0 0
  %7252 = vmatpush1.bf16.msra.mxu0 %v6704
  %7253 = vmatprep.subr.bf16.mxu0 0
  %7254 = vmatpush1.bf16.msra.mxu0 %v6705
  %7255 = vmatprep.subr.bf16.mxu0 0
  %7256 = vmatpush1.bf16.msra.mxu0 %v6706
  %7257 = vmatprep.subr.bf16.mxu0 0
  %7258 = vmatpush1.bf16.msra.mxu0 %v6707
  %7259 = vmatprep.subr.bf16.mxu0 0
  %7260 = vmatpush1.bf16.msra.mxu0 %v6708
  %7261 = vmatprep.subr.bf16.mxu0 0
  %7262 = vmatpush1.bf16.msra.mxu0 %v6709
  %7263 = vmatprep.subr.bf16.mxu0 0
  %7264 = vmatpush1.bf16.msra.mxu0 %v6710
  %7265 = vmatprep.mubr.bf16.mxu0 %v5951
  %7266 = vmatmul.mubr.bf16.gmra.mrb[0].mxu0 %v5950
  %v7267 = vpop.f32.mrb[0].mxu0
  %v7268 = vadd.f32 %v7107, %v7267
  %v7269 = vpop.f32.mrb[0].mxu0
  %v7270 = vpop.f32.mrb[0].mxu0
  %v7271 = vadd.f32 %v7110, %v7270
  %v7272 = vpop.f32.mrb[0].mxu0
  %7273 = vmatprep.mubr.bf16.mxu0 %v5964
  %7274 = vmatmul.mubr.bf16.gmra.mrb[0].mxu0 %v5963
  %v7275 = vpop.f32.mrb[0].mxu0
  %v7276 = vadd.f32 %v7115, %v7275
  %v7277 = vpop.f32.mrb[0].mxu0
  %v7278 = vpop.f32.mrb[0].mxu0
  %v7279 = vadd.f32 %v7118, %v7278
  %v7280 = vpop.f32.mrb[0].mxu0
  %7281 = vmatprep.mubr.bf16.mxu0 %v5956
  %7282 = vmatmul.mubr.bf16.gmra.mrb[0].mxu0 %v5955
  %v7283 = vpop.f32.mrb[0].mxu0
  %v7284 = vadd.f32 %v7123, %v7283
  %v7285 = vpop.f32.mrb[0].mxu0
  %v7286 = vpop.f32.mrb[0].mxu0
  %v7287 = vadd.f32 %v7126, %v7286
  %v7288 = vpop.f32.mrb[0].mxu0
  %7289 = vmatprep.mubr.bf16.mxu0 %v5969
  %7290 = vmatmul.mubr.bf16.gmra.mrb[0].mxu0 %v5968
  %v7291 = vpop.f32.mrb[0].mxu0
  %v7292 = vadd.f32 %v7131, %v7291
  %v7293 = vpop.f32.mrb[0].mxu0
  %v7294 = vpop.f32.mrb[0].mxu0
  %v7295 = vadd.f32 %v7134, %v7294
  %v7296 = vpop.f32.mrb[0].mxu0
  %7297 = vmatprep.mubr.bf16.mxu0 %v5975
  %7298 = vmatmul.mubr.bf16.gmra.mrb[0].mxu0 %v5974
  %v7299 = vpop.f32.mrb[0].mxu0
  %v7300 = vadd.f32 %v7139, %v7299
  %v7301 = vpop.f32.mrb[0].mxu0
  %v7302 = vpop.f32.mrb[0].mxu0
  %v7303 = vadd.f32 %v7142, %v7302
  %v7304 = vpop.f32.mrb[0].mxu0
  %7305 = vmatprep.mubr.bf16.mxu0 %v5981
  %7306 = vmatmul.mubr.bf16.gmra.mrb[0].mxu0 %v5980
  %v7307 = vpop.f32.mrb[0].mxu0
  %v7308 = vadd.f32 %v7147, %v7307
  %v7309 = vpop.f32.mrb[0].mxu0
  %v7310 = vpop.f32.mrb[0].mxu0
  %v7311 = vadd.f32 %v7150, %v7310
  %v7312 = vpop.f32.mrb[0].mxu0
  %7313 = vmatprep.mubr.bf16.mxu0 %v5987
  %7314 = vmatmul.mubr.bf16.gmra.mrb[0].mxu0 %v5986
  %v7315 = vpop.f32.mrb[0].mxu0
  %v7316 = vadd.f32 %v7155, %v7315
  %v7317 = vpop.f32.mrb[0].mxu0
  %v7318 = vpop.f32.mrb[0].mxu0
  %v7319 = vadd.f32 %v7158, %v7318
  %v7320 = vpop.f32.mrb[0].mxu0
  %7321 = vmatprep.mubr.bf16.mxu0 %v5993
  %7322 = vmatmul.mubr.bf16.gmra.mrb[0].mxu0 %v5992
  %v7323 = vpop.f32.mrb[0].mxu0
  %v7324 = vadd.f32 %v7163, %v7323
  %v7325 = vpop.f32.mrb[0].mxu0
  %v7326 = vpop.f32.mrb[0].mxu0
  %v7327 = vadd.f32 %v7166, %v7326
  %v7328 = vpop.f32.mrb[0].mxu0
  %7329 = vmatprep.mubr.bf16.mxu0 %v5999
  %7330 = vmatmul.mubr.bf16.gmra.mrb[0].mxu0 %v5998
  %v7331 = vpop.f32.mrb[0].mxu0
  %v7332 = vadd.f32 %v7171, %v7331
  %v7333 = vpop.f32.mrb[0].mxu0
  %v7334 = vpop.f32.mrb[0].mxu0
  %v7335 = vadd.f32 %v7174, %v7334
  %v7336 = vpop.f32.mrb[0].mxu0
  %7337 = vmatprep.mubr.bf16.mxu0 %v6005
  %7338 = vmatmul.mubr.bf16.gmra.mrb[0].mxu0 %v6004
  %v7339 = vpop.f32.mrb[0].mxu0
  %v7340 = vadd.f32 %v7179, %v7339
  %v7341 = vpop.f32.mrb[0].mxu0
  %v7342 = vpop.f32.mrb[0].mxu0
  %v7343 = vadd.f32 %v7182, %v7342
  %v7344 = vpop.f32.mrb[0].mxu0
  %7345 = vmatprep.mubr.bf16.mxu0 %v6011
  %7346 = vmatmul.mubr.bf16.gmra.mrb[0].mxu0 %v6010
  %v7347 = vpop.f32.mrb[0].mxu0
  %v7348 = vadd.f32 %v7187, %v7347
  %v7349 = vpop.f32.mrb[0].mxu0
  %v7350 = vpop.f32.mrb[0].mxu0
  %v7351 = vadd.f32 %v7190, %v7350
  %v7352 = vpop.f32.mrb[0].mxu0
  %7353 = vmatprep.mubr.bf16.mxu0 %v6017
  %7354 = vmatmul.mubr.bf16.gmra.mrb[0].mxu0 %v6016
  %v7355 = vpop.f32.mrb[0].mxu0
  %v7356 = vadd.f32 %v7195, %v7355
  %v7357 = vpop.f32.mrb[0].mxu0
  %v7358 = vpop.f32.mrb[0].mxu0
  %v7359 = vadd.f32 %v7198, %v7358
  %v7360 = vpop.f32.mrb[0].mxu0
  %7361 = vmatprep.mubr.bf16.mxu0 %v6023
  %7362 = vmatmul.mubr.bf16.gmra.mrb[0].mxu0 %v6022
  %v7363 = vpop.f32.mrb[0].mxu0
  %v7364 = vadd.f32 %v7203, %v7363
  %v7365 = vpop.f32.mrb[0].mxu0
  %v7366 = vpop.f32.mrb[0].mxu0
  %v7367 = vadd.f32 %v7206, %v7366
  %v7368 = vpop.f32.mrb[0].mxu0
  %7369 = vmatprep.mubr.bf16.mxu0 %v6029
  %7370 = vmatmul.mubr.bf16.gmra.mrb[0].mxu0 %v6028
  %v7371 = vpop.f32.mrb[0].mxu0
  %v7372 = vadd.f32 %v7211, %v7371
  %v7373 = vpop.f32.mrb[0].mxu0
  %v7374 = vpop.f32.mrb[0].mxu0
  %v7375 = vadd.f32 %v7214, %v7374
  %v7376 = vpop.f32.mrb[0].mxu0
  %7377 = vmatprep.mubr.bf16.mxu0 %v6035
  %7378 = vmatmul.mubr.bf16.gmra.mrb[0].mxu0 %v6034
  %v7379 = vpop.f32.mrb[0].mxu0
  %v7380 = vadd.f32 %v7219, %v7379
  %v7381 = vpop.f32.mrb[0].mxu0
  %v7382 = vpop.f32.mrb[0].mxu0
  %v7383 = vadd.f32 %v7222, %v7382
  %v7384 = vpop.f32.mrb[0].mxu0
  %7385 = vmatprep.mubr.bf16.mxu0 %v6041
  %7386 = vmatmul.mubr.bf16.gmra.mrb[0].mxu0 %v6040
  %v7387 = vpop.f32.mrb[0].mxu0
  %v7388 = vadd.f32 %v7227, %v7387
  %v7389 = vpop.f32.mrb[0].mxu0
  %v7390 = vpop.f32.mrb[0].mxu0
  %v7391 = vadd.f32 %v7230, %v7390
  %v7392 = vpop.f32.mrb[0].mxu0
  %7393 = vdwg.mxu0
  %7394 = vmatprep.subr.bf16.mxu0 0
  %7395 = vmatpush1.bf16.msra.mxu0 %v6711
  %7396 = vmatprep.subr.bf16.mxu0 0
  %7397 = vmatpush1.bf16.msra.mxu0 %v6712
  %7398 = vmatprep.subr.bf16.mxu0 0
  %7399 = vmatpush1.bf16.msra.mxu0 %v6713
  %7400 = vmatprep.subr.bf16.mxu0 0
  %7401 = vmatpush1.bf16.msra.mxu0 %v6714
  %7402 = vmatprep.subr.bf16.mxu0 0
  %7403 = vmatpush1.bf16.msra.mxu0 %v6715
  %7404 = vmatprep.subr.bf16.mxu0 0
  %7405 = vmatpush1.bf16.msra.mxu0 %v6716
  %7406 = vmatprep.subr.bf16.mxu0 0
  %7407 = vmatpush1.bf16.msra.mxu0 %v6717
  %7408 = vmatprep.subr.bf16.mxu0 0
  %7409 = vmatpush1.bf16.msra.mxu0 %v6718
  %7410 = vmatprep.subr.bf16.mxu0 0
  %7411 = vmatpush1.bf16.msra.mxu0 %v6719
  %7412 = vmatprep.subr.bf16.mxu0 0
  %7413 = vmatpush1.bf16.msra.mxu0 %v6720
  %7414 = vmatprep.subr.bf16.mxu0 0
  %7415 = vmatpush1.bf16.msra.mxu0 %v6721
  %7416 = vmatprep.subr.bf16.mxu0 0
  %7417 = vmatpush1.bf16.msra.mxu0 %v6722
  %7418 = vmatprep.subr.bf16.mxu0 0
  %7419 = vmatpush1.bf16.msra.mxu0 %v6723
  %7420 = vmatprep.subr.bf16.mxu0 0
  %7421 = vmatpush1.bf16.msra.mxu0 %v6724
  %7422 = vmatprep.subr.bf16.mxu0 0
  %7423 = vmatpush1.bf16.msra.mxu0 %v6725
  %7424 = vmatprep.subr.bf16.mxu0 0
  %7425 = vmatpush1.bf16.msra.mxu0 %v6726
  %7426 = vmatprep.mubr.bf16.mxu0 %v5953
  %7427 = vmatmul.mubr.bf16.gmra.mrb[0].mxu0 %v5952
  %v7428 = vpop.f32.mrb[0].mxu0
  %v7429 = vadd.f32 %v7268, %v7428
  %v7430 = vpop.f32.mrb[0].mxu0
  %v7431 = vpop.f32.mrb[0].mxu0
  %v7432 = vadd.f32 %v7271, %v7431
  %v7433 = vpop.f32.mrb[0].mxu0
  %7434 = vmatprep.mubr.bf16.mxu0 %v5966
  %7435 = vmatmul.mubr.bf16.gmra.mrb[0].mxu0 %v5965
  %v7436 = vpop.f32.mrb[0].mxu0
  %v7437 = vadd.f32 %v7276, %v7436
  %v7438 = vpop.f32.mrb[0].mxu0
  %v7439 = vpop.f32.mrb[0].mxu0
  %v7440 = vadd.f32 %v7279, %v7439
  %v7441 = vpop.f32.mrb[0].mxu0
  %7442 = vmatprep.mubr.bf16.mxu0 %v5972
  %7443 = vmatmul.mubr.bf16.gmra.mrb[0].mxu0 %v5957
  %v7444 = vpop.f32.mrb[0].mxu0
  %v7445 = vadd.f32 %v7284, %v7444
  %v7446 = vpop.f32.mrb[0].mxu0
  %v7447 = vpop.f32.mrb[0].mxu0
  %v7448 = vadd.f32 %v7287, %v7447
  %v7449 = vpop.f32.mrb[0].mxu0
  %7450 = vmatprep.mubr.bf16.mxu0 %v5978
  %7451 = vmatmul.mubr.bf16.gmra.mrb[0].mxu0 %v5970
  %v7452 = vpop.f32.mrb[0].mxu0
  %v7453 = vadd.f32 %v7292, %v7452
  %v7454 = vpop.f32.mrb[0].mxu0
  %v7455 = vpop.f32.mrb[0].mxu0
  %v7456 = vadd.f32 %v7295, %v7455
  %v7457 = vpop.f32.mrb[0].mxu0
  %7458 = vmatprep.mubr.bf16.mxu0 %v5984
  %7459 = vmatmul.mubr.bf16.gmra.mrb[0].mxu0 %v5976
  %v7460 = vpop.f32.mrb[0].mxu0
  %v7461 = vadd.f32 %v7300, %v7460
  %v7462 = vpop.f32.mrb[0].mxu0
  %v7463 = vpop.f32.mrb[0].mxu0
  %v7464 = vadd.f32 %v7303, %v7463
  %v7465 = vpop.f32.mrb[0].mxu0
  %7466 = vmatprep.mubr.bf16.mxu0 %v5990
  %7467 = vmatmul.mubr.bf16.gmra.mrb[0].mxu0 %v5982
  %v7468 = vpop.f32.mrb[0].mxu0
  %v7469 = vadd.f32 %v7308, %v7468
  %v7470 = vpop.f32.mrb[0].mxu0
  %v7471 = vpop.f32.mrb[0].mxu0
  %v7472 = vadd.f32 %v7311, %v7471
  %v7473 = vpop.f32.mrb[0].mxu0
  %7474 = vmatprep.mubr.bf16.mxu0 %v5996
  %7475 = vmatmul.mubr.bf16.gmra.mrb[0].mxu0 %v5988
  %v7476 = vpop.f32.mrb[0].mxu0
  %v7477 = vadd.f32 %v7316, %v7476
  %v7478 = vpop.f32.mrb[0].mxu0
  %v7479 = vpop.f32.mrb[0].mxu0
  %v7480 = vadd.f32 %v7319, %v7479
  %v7481 = vpop.f32.mrb[0].mxu0
  %7482 = vmatprep.mubr.bf16.mxu0 %v6002
  %7483 = vmatmul.mubr.bf16.gmra.mrb[0].mxu0 %v5994
  %v7484 = vpop.f32.mrb[0].mxu0
  %v7485 = vadd.f32 %v7324, %v7484
  %v7486 = vpop.f32.mrb[0].mxu0
  %v7487 = vpop.f32.mrb[0].mxu0
  %v7488 = vadd.f32 %v7327, %v7487
  %v7489 = vpop.f32.mrb[0].mxu0
  %7490 = vmatprep.mubr.bf16.mxu0 %v6008
  %7491 = vmatmul.mubr.bf16.gmra.mrb[0].mxu0 %v6000
  %v7492 = vpop.f32.mrb[0].mxu0
  %v7493 = vadd.f32 %v7332, %v7492
  %v7494 = vpop.f32.mrb[0].mxu0
  %v7495 = vpop.f32.mrb[0].mxu0
  %v7496 = vadd.f32 %v7335, %v7495
  %v7497 = vpop.f32.mrb[0].mxu0
  %7498 = vmatprep.mubr.bf16.mxu0 %v6014
  %7499 = vmatmul.mubr.bf16.gmra.mrb[0].mxu0 %v6006
  %v7500 = vpop.f32.mrb[0].mxu0
  %v7501 = vadd.f32 %v7340, %v7500
  %v7502 = vpop.f32.mrb[0].mxu0
  %v7503 = vpop.f32.mrb[0].mxu0
  %v7504 = vadd.f32 %v7343, %v7503
  %v7505 = vpop.f32.mrb[0].mxu0
  %7506 = vmatprep.mubr.bf16.mxu0 %v6020
  %7507 = vmatmul.mubr.bf16.gmra.mrb[0].mxu0 %v6012
  %v7508 = vpop.f32.mrb[0].mxu0
  %v7509 = vadd.f32 %v7348, %v7508
  %v7510 = vpop.f32.mrb[0].mxu0
  %v7511 = vpop.f32.mrb[0].mxu0
  %v7512 = vadd.f32 %v7351, %v7511
  %v7513 = vpop.f32.mrb[0].mxu0
  %7514 = vmatprep.mubr.bf16.mxu0 %v6026
  %7515 = vmatmul.mubr.bf16.gmra.mrb[0].mxu0 %v6018
  %v7516 = vpop.f32.mrb[0].mxu0
  %v7517 = vadd.f32 %v7356, %v7516
  %v7518 = vpop.f32.mrb[0].mxu0
  %v7519 = vpop.f32.mrb[0].mxu0
  %v7520 = vadd.f32 %v7359, %v7519
  %v7521 = vpop.f32.mrb[0].mxu0
  %7522 = vmatprep.mubr.bf16.mxu0 %v6032
  %7523 = vmatmul.mubr.bf16.gmra.mrb[0].mxu0 %v6024
  %v7524 = vpop.f32.mrb[0].mxu0
  %v7525 = vadd.f32 %v7364, %v7524
  %v7526 = vpop.f32.mrb[0].mxu0
  %v7527 = vpop.f32.mrb[0].mxu0
  %v7528 = vadd.f32 %v7367, %v7527
  %v7529 = vpop.f32.mrb[0].mxu0
  %7530 = vmatprep.mubr.bf16.mxu0 %v6038
  %7531 = vmatmul.mubr.bf16.gmra.mrb[0].mxu0 %v6030
  %v7532 = vpop.f32.mrb[0].mxu0
  %v7533 = vadd.f32 %v7372, %v7532
  %v7534 = vpop.f32.mrb[0].mxu0
  %v7535 = vpop.f32.mrb[0].mxu0
  %v7536 = vadd.f32 %v7375, %v7535
  %v7537 = vpop.f32.mrb[0].mxu0
  %7538 = vmatprep.mubr.bf16.mxu0 %v6044
  %7539 = vmatmul.mubr.bf16.gmra.mrb[0].mxu0 %v6036
  %v7540 = vpop.f32.mrb[0].mxu0
  %v7541 = vadd.f32 %v7380, %v7540
  %v7542 = vpop.f32.mrb[0].mxu0
  %v7543 = vpop.f32.mrb[0].mxu0
  %v7544 = vadd.f32 %v7383, %v7543
  %v7545 = vpop.f32.mrb[0].mxu0
  %7546 = vmatprep.mubr.bf16.mxu0 %v6050
  %7547 = vmatmul.mubr.bf16.gmra.mrb[0].mxu0 %v6042
  %v7548 = vpop.f32.mrb[0].mxu0
  %v7549 = vadd.f32 %v7388, %v7548
  %v7550 = vpop.f32.mrb[0].mxu0
  %v7551 = vpop.f32.mrb[0].mxu0
  %v7552 = vadd.f32 %v7391, %v7551
  %v7553 = vpop.f32.mrb[0].mxu0
  %7554 = vdwg.mxu0
  %7555 = vmatprep.subr.bf16.mxu0 0
  %7556 = vmatpush1.bf16.msra.mxu0 %v6727
  %7557 = vmatprep.subr.bf16.mxu0 0
  %7558 = vmatpush1.bf16.msra.mxu0 %v6728
  %7559 = vmatprep.subr.bf16.mxu0 0
  %7560 = vmatpush1.bf16.msra.mxu0 %v6729
  %7561 = vmatprep.subr.bf16.mxu0 0
  %7562 = vmatpush1.bf16.msra.mxu0 %v6730
  %7563 = vmatprep.subr.bf16.mxu0 0
  %7564 = vmatpush1.bf16.msra.mxu0 %v6731
  %7565 = vmatprep.subr.bf16.mxu0 0
  %7566 = vmatpush1.bf16.msra.mxu0 %v6732
  %7567 = vmatprep.subr.bf16.mxu0 0
  %7568 = vmatpush1.bf16.msra.mxu0 %v6733
  %7569 = vmatprep.subr.bf16.mxu0 0
  %7570 = vmatpush1.bf16.msra.mxu0 %v6734
  %7571 = vmatprep.subr.bf16.mxu0 0
  %7572 = vmatpush1.bf16.msra.mxu0 %v6735
  %7573 = vmatprep.subr.bf16.mxu0 0
  %7574 = vmatpush1.bf16.msra.mxu0 %v6736
  %7575 = vmatprep.subr.bf16.mxu0 0
  %7576 = vmatpush1.bf16.msra.mxu0 %v6737
  %7577 = vmatprep.subr.bf16.mxu0 0
  %7578 = vmatpush1.bf16.msra.mxu0 %v6738
  %7579 = vmatprep.subr.bf16.mxu0 0
  %7580 = vmatpush1.bf16.msra.mxu0 %v6739
  %7581 = vmatprep.subr.bf16.mxu0 0
  %7582 = vmatpush1.bf16.msra.mxu0 %v6740
  %7583 = vmatprep.subr.bf16.mxu0 0
  %7584 = vmatpush1.bf16.msra.mxu0 %v6741
  %7585 = vmatprep.subr.bf16.mxu0 0
  %7586 = vmatpush1.bf16.msra.mxu0 %v6742
  %7587 = vmatprep.mubr.bf16.mxu0 %v5955
  %7588 = vmatmul.mubr.bf16.gmra.mrb[0].mxu0 %v5954
  %v7589 = vpop.f32.mrb[0].mxu0
  %v7590 = vadd.f32 %v7429, %v7589
  %v7591 = vpop.f32.mrb[0].mxu0
  %v7592 = vpop.f32.mrb[0].mxu0
  %v7593 = vadd.f32 %v7432, %v7592
  %v7594 = vpop.f32.mrb[0].mxu0
  %7595 = vmatprep.mubr.bf16.mxu0 %v5968
  %7596 = vmatmul.mubr.bf16.gmra.mrb[0].mxu0 %v5967
  %v7597 = vpop.f32.mrb[0].mxu0
  %v7598 = vadd.f32 %v7437, %v7597
  %v7599 = vpop.f32.mrb[0].mxu0
  %v7600 = vpop.f32.mrb[0].mxu0
  %v7601 = vadd.f32 %v7440, %v7600
  %v7602 = vpop.f32.mrb[0].mxu0
  %7603 = vmatprep.mubr.bf16.mxu0 %v5974
  %7604 = vmatmul.mubr.bf16.gmra.mrb[0].mxu0 %v5973
  %v7605 = vpop.f32.mrb[0].mxu0
  %v7606 = vadd.f32 %v7445, %v7605
  %v7607 = vpop.f32.mrb[0].mxu0
  %v7608 = vpop.f32.mrb[0].mxu0
  %v7609 = vadd.f32 %v7448, %v7608
  %v7610 = vpop.f32.mrb[0].mxu0
  %7611 = vmatprep.mubr.bf16.mxu0 %v5980
  %7612 = vmatmul.mubr.bf16.gmra.mrb[0].mxu0 %v5979
  %v7613 = vpop.f32.mrb[0].mxu0
  %v7614 = vadd.f32 %v7453, %v7613
  %v7615 = vpop.f32.mrb[0].mxu0
  %v7616 = vpop.f32.mrb[0].mxu0
  %v7617 = vadd.f32 %v7456, %v7616
  %v7618 = vpop.f32.mrb[0].mxu0
  %7619 = vmatprep.mubr.bf16.mxu0 %v5986
  %7620 = vmatmul.mubr.bf16.gmra.mrb[0].mxu0 %v5985
  %v7621 = vpop.f32.mrb[0].mxu0
  %v7622 = vadd.f32 %v7461, %v7621
  %v7623 = vpop.f32.mrb[0].mxu0
  %v7624 = vpop.f32.mrb[0].mxu0
  %v7625 = vadd.f32 %v7464, %v7624
  %v7626 = vpop.f32.mrb[0].mxu0
  %7627 = vmatprep.mubr.bf16.mxu0 %v5992
  %7628 = vmatmul.mubr.bf16.gmra.mrb[0].mxu0 %v5991
  %v7629 = vpop.f32.mrb[0].mxu0
  %v7630 = vadd.f32 %v7469, %v7629
  %v7631 = vpop.f32.mrb[0].mxu0
  %v7632 = vpop.f32.mrb[0].mxu0
  %v7633 = vadd.f32 %v7472, %v7632
  %v7634 = vpop.f32.mrb[0].mxu0
  %7635 = vmatprep.mubr.bf16.mxu0 %v5998
  %7636 = vmatmul.mubr.bf16.gmra.mrb[0].mxu0 %v5997
  %v7637 = vpop.f32.mrb[0].mxu0
  %v7638 = vadd.f32 %v7477, %v7637
  %v7639 = vpop.f32.mrb[0].mxu0
  %v7640 = vpop.f32.mrb[0].mxu0
  %v7641 = vadd.f32 %v7480, %v7640
  %v7642 = vpop.f32.mrb[0].mxu0
  %7643 = vmatprep.mubr.bf16.mxu0 %v6004
  %7644 = vmatmul.mubr.bf16.gmra.mrb[0].mxu0 %v6003
  %v7645 = vpop.f32.mrb[0].mxu0
  %v7646 = vadd.f32 %v7485, %v7645
  %v7647 = vpop.f32.mrb[0].mxu0
  %v7648 = vpop.f32.mrb[0].mxu0
  %v7649 = vadd.f32 %v7488, %v7648
  %v7650 = vpop.f32.mrb[0].mxu0
  %7651 = vmatprep.mubr.bf16.mxu0 %v6010
  %7652 = vmatmul.mubr.bf16.gmra.mrb[0].mxu0 %v6009
  %v7653 = vpop.f32.mrb[0].mxu0
  %v7654 = vadd.f32 %v7493, %v7653
  %v7655 = vpop.f32.mrb[0].mxu0
  %v7656 = vpop.f32.mrb[0].mxu0
  %v7657 = vadd.f32 %v7496, %v7656
  %v7658 = vpop.f32.mrb[0].mxu0
  %7659 = vmatprep.mubr.bf16.mxu0 %v6016
  %7660 = vmatmul.mubr.bf16.gmra.mrb[0].mxu0 %v6015
  %v7661 = vpop.f32.mrb[0].mxu0
  %v7662 = vadd.f32 %v7501, %v7661
  %v7663 = vpop.f32.mrb[0].mxu0
  %v7664 = vpop.f32.mrb[0].mxu0
  %v7665 = vadd.f32 %v7504, %v7664
  %v7666 = vpop.f32.mrb[0].mxu0
  %7667 = vmatprep.mubr.bf16.mxu0 %v6022
  %7668 = vmatmul.mubr.bf16.gmra.mrb[0].mxu0 %v6021
  %v7669 = vpop.f32.mrb[0].mxu0
  %v7670 = vadd.f32 %v7509, %v7669
  %v7671 = vpop.f32.mrb[0].mxu0
  %v7672 = vpop.f32.mrb[0].mxu0
  %v7673 = vadd.f32 %v7512, %v7672
  %v7674 = vpop.f32.mrb[0].mxu0
  %7675 = vmatprep.mubr.bf16.mxu0 %v6028
  %7676 = vmatmul.mubr.bf16.gmra.mrb[0].mxu0 %v6027
  %v7677 = vpop.f32.mrb[0].mxu0
  %v7678 = vadd.f32 %v7517, %v7677
  %v7679 = vpop.f32.mrb[0].mxu0
  %v7680 = vpop.f32.mrb[0].mxu0
  %v7681 = vadd.f32 %v7520, %v7680
  %v7682 = vpop.f32.mrb[0].mxu0
  %7683 = vmatprep.mubr.bf16.mxu0 %v6034
  %7684 = vmatmul.mubr.bf16.gmra.mrb[0].mxu0 %v6033
  %v7685 = vpop.f32.mrb[0].mxu0
  %v7686 = vadd.f32 %v7525, %v7685
  %v7687 = vpop.f32.mrb[0].mxu0
  %v7688 = vpop.f32.mrb[0].mxu0
  %v7689 = vadd.f32 %v7528, %v7688
  %v7690 = vpop.f32.mrb[0].mxu0
  %7691 = vmatprep.mubr.bf16.mxu0 %v6040
  %7692 = vmatmul.mubr.bf16.gmra.mrb[0].mxu0 %v6039
  %v7693 = vpop.f32.mrb[0].mxu0
  %v7694 = vadd.f32 %v7533, %v7693
  %v7695 = vpop.f32.mrb[0].mxu0
  %v7696 = vpop.f32.mrb[0].mxu0
  %v7697 = vadd.f32 %v7536, %v7696
  %v7698 = vpop.f32.mrb[0].mxu0
  %7699 = vmatprep.mubr.bf16.mxu0 %v6046
  %7700 = vmatmul.mubr.bf16.gmra.mrb[0].mxu0 %v6045
  %v7701 = vpop.f32.mrb[0].mxu0
  %v7702 = vadd.f32 %v7541, %v7701
  %v7703 = vpop.f32.mrb[0].mxu0
  %v7704 = vpop.f32.mrb[0].mxu0
  %v7705 = vadd.f32 %v7544, %v7704
  %v7706 = vpop.f32.mrb[0].mxu0
  %7707 = vmatprep.mubr.bf16.mxu0 %v6052
  %7708 = vmatmul.mubr.bf16.gmra.mrb[0].mxu0 %v6051
  %v7709 = vpop.f32.mrb[0].mxu0
  %v7710 = vadd.f32 %v7549, %v7709
  %v7711 = vpop.f32.mrb[0].mxu0
  %v7712 = vpop.f32.mrb[0].mxu0
  %v7713 = vadd.f32 %v7552, %v7712
  %v7714 = vpop.f32.mrb[0].mxu0
  %7715 = vdwg.mxu0
  %7716 = vmatprep.subr.bf16.mxu0 0
  %7717 = vmatpush1.bf16.msra.mxu0 %v6743
  %7718 = vmatprep.subr.bf16.mxu0 0
  %7719 = vmatpush1.bf16.msra.mxu0 %v6744
  %7720 = vmatprep.subr.bf16.mxu0 0
  %7721 = vmatpush1.bf16.msra.mxu0 %v6745
  %7722 = vmatprep.subr.bf16.mxu0 0
  %7723 = vmatpush1.bf16.msra.mxu0 %v6746
  %7724 = vmatprep.subr.bf16.mxu0 0
  %7725 = vmatpush1.bf16.msra.mxu0 %v6747
  %7726 = vmatprep.subr.bf16.mxu0 0
  %7727 = vmatpush1.bf16.msra.mxu0 %v6748
  %7728 = vmatprep.subr.bf16.mxu0 0
  %7729 = vmatpush1.bf16.msra.mxu0 %v6749
  %7730 = vmatprep.subr.bf16.mxu0 0
  %7731 = vmatpush1.bf16.msra.mxu0 %v6750
  %7732 = vmatprep.subr.bf16.mxu0 0
  %7733 = vmatpush1.bf16.msra.mxu0 %v6751
  %7734 = vmatprep.subr.bf16.mxu0 0
  %7735 = vmatpush1.bf16.msra.mxu0 %v6752
  %7736 = vmatprep.subr.bf16.mxu0 0
  %7737 = vmatpush1.bf16.msra.mxu0 %v6753
  %7738 = vmatprep.subr.bf16.mxu0 0
  %7739 = vmatpush1.bf16.msra.mxu0 %v6754
  %7740 = vmatprep.subr.bf16.mxu0 0
  %7741 = vmatpush1.bf16.msra.mxu0 %v6755
  %7742 = vmatprep.subr.bf16.mxu0 0
  %7743 = vmatpush1.bf16.msra.mxu0 %v6756
  %7744 = vmatprep.subr.bf16.mxu0 0
  %7745 = vmatpush1.bf16.msra.mxu0 %v6757
  %7746 = vmatprep.subr.bf16.mxu0 0
  %7747 = vmatpush1.bf16.msra.mxu0 %v6758
  %7748 = vmatprep.mubr.bf16.mxu0 %v5957
  %7749 = vmatmul.mubr.bf16.gmra.mrb[0].mxu0 %v5956
  %v7750 = vpop.f32.mrb[0].mxu0
  %v7751 = vadd.f32 %v7590, %v7750
  %v7752 = vpop.f32.mrb[0].mxu0
  %v7753 = vpop.f32.mrb[0].mxu0
  %v7754 = vadd.f32 %v7593, %v7753
  %v7755 = vpop.f32.mrb[0].mxu0
  %7756 = vmatprep.mubr.bf16.mxu0 %v5970
  %7757 = vmatmul.mubr.bf16.gmra.mrb[0].mxu0 %v5969
  %v7758 = vpop.f32.mrb[0].mxu0
  %v7759 = vadd.f32 %v7598, %v7758
  %v7760 = vpop.f32.mrb[0].mxu0
  %v7761 = vpop.f32.mrb[0].mxu0
  %v7762 = vadd.f32 %v7601, %v7761
  %v7763 = vpop.f32.mrb[0].mxu0
  %7764 = vmatprep.mubr.bf16.mxu0 %v5976
  %7765 = vmatmul.mubr.bf16.gmra.mrb[0].mxu0 %v5975
  %v7766 = vpop.f32.mrb[0].mxu0
  %v7767 = vadd.f32 %v7606, %v7766
  %v7768 = vpop.f32.mrb[0].mxu0
  %v7769 = vpop.f32.mrb[0].mxu0
  %v7770 = vadd.f32 %v7609, %v7769
  %v7771 = vpop.f32.mrb[0].mxu0
  %7772 = vmatprep.mubr.bf16.mxu0 %v5982
  %7773 = vmatmul.mubr.bf16.gmra.mrb[0].mxu0 %v5981
  %v7774 = vpop.f32.mrb[0].mxu0
  %v7775 = vadd.f32 %v7614, %v7774
  %v7776 = vpop.f32.mrb[0].mxu0
  %v7777 = vpop.f32.mrb[0].mxu0
  %v7778 = vadd.f32 %v7617, %v7777
  %v7779 = vpop.f32.mrb[0].mxu0
  %7780 = vmatprep.mubr.bf16.mxu0 %v5988
  %7781 = vmatmul.mubr.bf16.gmra.mrb[0].mxu0 %v5987
  %v7782 = vpop.f32.mrb[0].mxu0
  %v7783 = vadd.f32 %v7622, %v7782
  %v7784 = vpop.f32.mrb[0].mxu0
  %v7785 = vpop.f32.mrb[0].mxu0
  %v7786 = vadd.f32 %v7625, %v7785
  %v7787 = vpop.f32.mrb[0].mxu0
  %7788 = vmatprep.mubr.bf16.mxu0 %v5994
  %7789 = vmatmul.mubr.bf16.gmra.mrb[0].mxu0 %v5993
  %v7790 = vpop.f32.mrb[0].mxu0
  %v7791 = vadd.f32 %v7630, %v7790
  %v7792 = vpop.f32.mrb[0].mxu0
  %v7793 = vpop.f32.mrb[0].mxu0
  %v7794 = vadd.f32 %v7633, %v7793
  %v7795 = vpop.f32.mrb[0].mxu0
  %7796 = vmatprep.mubr.bf16.mxu0 %v6000
  %7797 = vmatmul.mubr.bf16.gmra.mrb[0].mxu0 %v5999
  %v7798 = vpop.f32.mrb[0].mxu0
  %v7799 = vadd.f32 %v7638, %v7798
  %v7800 = vpop.f32.mrb[0].mxu0
  %v7801 = vpop.f32.mrb[0].mxu0
  %v7802 = vadd.f32 %v7641, %v7801
  %v7803 = vpop.f32.mrb[0].mxu0
  %7804 = vmatprep.mubr.bf16.mxu0 %v6006
  %7805 = vmatmul.mubr.bf16.gmra.mrb[0].mxu0 %v6005
  %v7806 = vpop.f32.mrb[0].mxu0
  %v7807 = vadd.f32 %v7646, %v7806
  %v7808 = vpop.f32.mrb[0].mxu0
  %v7809 = vpop.f32.mrb[0].mxu0
  %v7810 = vadd.f32 %v7649, %v7809
  %v7811 = vpop.f32.mrb[0].mxu0
  %7812 = vmatprep.mubr.bf16.mxu0 %v6012
  %7813 = vmatmul.mubr.bf16.gmra.mrb[0].mxu0 %v6011
  %v7814 = vpop.f32.mrb[0].mxu0
  %v7815 = vadd.f32 %v7654, %v7814
  %v7816 = vpop.f32.mrb[0].mxu0
  %v7817 = vpop.f32.mrb[0].mxu0
  %v7818 = vadd.f32 %v7657, %v7817
  %v7819 = vpop.f32.mrb[0].mxu0
  %7820 = vmatprep.mubr.bf16.mxu0 %v6018
  %7821 = vmatmul.mubr.bf16.gmra.mrb[0].mxu0 %v6017
  %v7822 = vpop.f32.mrb[0].mxu0
  %v7823 = vadd.f32 %v7662, %v7822
  %v7824 = vpop.f32.mrb[0].mxu0
  %v7825 = vpop.f32.mrb[0].mxu0
  %v7826 = vadd.f32 %v7665, %v7825
  %v7827 = vpop.f32.mrb[0].mxu0
  %7828 = vmatprep.mubr.bf16.mxu0 %v6024
  %7829 = vmatmul.mubr.bf16.gmra.mrb[0].mxu0 %v6023
  %v7830 = vpop.f32.mrb[0].mxu0
  %v7831 = vadd.f32 %v7670, %v7830
  %v7832 = vpop.f32.mrb[0].mxu0
  %v7833 = vpop.f32.mrb[0].mxu0
  %v7834 = vadd.f32 %v7673, %v7833
  %v7835 = vpop.f32.mrb[0].mxu0
  %7836 = vmatprep.mubr.bf16.mxu0 %v6030
  %7837 = vmatmul.mubr.bf16.gmra.mrb[0].mxu0 %v6029
  %v7838 = vpop.f32.mrb[0].mxu0
  %v7839 = vadd.f32 %v7678, %v7838
  %v7840 = vpop.f32.mrb[0].mxu0
  %v7841 = vpop.f32.mrb[0].mxu0
  %v7842 = vadd.f32 %v7681, %v7841
  %v7843 = vpop.f32.mrb[0].mxu0
  %7844 = vmatprep.mubr.bf16.mxu0 %v6036
  %7845 = vmatmul.mubr.bf16.gmra.mrb[0].mxu0 %v6035
  %v7846 = vpop.f32.mrb[0].mxu0
  %v7847 = vadd.f32 %v7686, %v7846
  %v7848 = vpop.f32.mrb[0].mxu0
  %v7849 = vpop.f32.mrb[0].mxu0
  %v7850 = vadd.f32 %v7689, %v7849
  %v7851 = vpop.f32.mrb[0].mxu0
  %7852 = vmatprep.mubr.bf16.mxu0 %v6042
  %7853 = vmatmul.mubr.bf16.gmra.mrb[0].mxu0 %v6041
  %v7854 = vpop.f32.mrb[0].mxu0
  %v7855 = vadd.f32 %v7694, %v7854
  %v7856 = vpop.f32.mrb[0].mxu0
  %v7857 = vpop.f32.mrb[0].mxu0
  %v7858 = vadd.f32 %v7697, %v7857
  %v7859 = vpop.f32.mrb[0].mxu0
  %7860 = vmatprep.mubr.bf16.mxu0 %v6048
  %7861 = vmatmul.mubr.bf16.gmra.mrb[0].mxu0 %v6047
  %v7862 = vpop.f32.mrb[0].mxu0
  %v7863 = vadd.f32 %v7702, %v7862
  %v7864 = vpop.f32.mrb[0].mxu0
  %v7865 = vpop.f32.mrb[0].mxu0
  %v7866 = vadd.f32 %v7705, %v7865
  %v7867 = vpop.f32.mrb[0].mxu0
  %7868 = vmatprep.mubr.bf16.mxu0 %v6054
  %7869 = vmatmul.mubr.bf16.gmra.mrb[0].mxu0 %v6053
  %v7870 = vpop.f32.mrb[0].mxu0
  %v7871 = vadd.f32 %v7710, %v7870
  %v7872 = vpop.f32.mrb[0].mxu0
  %v7873 = vpop.f32.mrb[0].mxu0
  %v7874 = vadd.f32 %v7713, %v7873
  %v7875 = vpop.f32.mrb[0].mxu0
  %7876 = vdwg.mxu0
  %7877 = vmatprep.subr.bf16.mxu0 0
  %7878 = vmatpush1.bf16.msra.mxu0 %v6759
  %7879 = vmatprep.subr.bf16.mxu0 0
  %7880 = vmatpush1.bf16.msra.mxu0 %v6760
  %7881 = vmatprep.subr.bf16.mxu0 0
  %7882 = vmatpush1.bf16.msra.mxu0 %v6761
  %7883 = vmatprep.subr.bf16.mxu0 0
  %7884 = vmatpush1.bf16.msra.mxu0 %v6762
  %7885 = vmatprep.subr.bf16.mxu0 0
  %7886 = vmatpush1.bf16.msra.mxu0 0
  %7887 = vmatprep.subr.bf16.mxu0 0
  %7888 = vmatpush1.bf16.msra.mxu0 0
  %7889 = vmatprep.subr.bf16.mxu0 0
  %7890 = vmatpush1.bf16.msra.mxu0 0
  %7891 = vmatprep.subr.bf16.mxu0 0
  %7892 = vmatpush1.bf16.msra.mxu0 0
  %7893 = vmatprep.subr.bf16.mxu0 0
  %7894 = vmatpush1.bf16.msra.mxu0 0
  %7895 = vmatprep.subr.bf16.mxu0 0
  %7896 = vmatpush1.bf16.msra.mxu0 0
  %7897 = vmatprep.subr.bf16.mxu0 0
  %7898 = vmatpush1.bf16.msra.mxu0 0
  %7899 = vmatprep.subr.bf16.mxu0 0
  %7900 = vmatpush1.bf16.msra.mxu0 0
  %7901 = vmatprep.subr.bf16.mxu0 0
  %7902 = vmatpush1.bf16.msra.mxu0 0
  %7903 = vmatprep.subr.bf16.mxu0 0
  %7904 = vmatpush1.bf16.msra.mxu0 0
  %7905 = vmatprep.subr.bf16.mxu0 0
  %7906 = vmatpush1.bf16.msra.mxu0 0
  %7907 = vmatprep.subr.bf16.mxu0 0
  %7908 = vmatpush1.bf16.msra.mxu0 0
  %7909 = vmatprep.mubr.bf16.mxu0 0
  %7910 = vmatmul.mubr.bf16.gmra.mrb[0].mxu0 %v6864
  %v7911 = vpop.f32.mrb[0].mxu0
  %v7912 = vadd.f32 %v7751, %v7911
  %v7913 = vpop.f32.mrb[0].mxu0
  %v7914 = vpop.f32.mrb[0].mxu0
  %v7915 = vadd.f32 %v7754, %v7914
  %v7916 = vpop.f32.mrb[0].mxu0
  %7917 = vmatprep.mubr.bf16.mxu0 0
  %7918 = vmatmul.mubr.bf16.gmra.mrb[0].mxu0 %v6867
  %v7919 = vpop.f32.mrb[0].mxu0
  %v7920 = vadd.f32 %v7759, %v7919
  %v7921 = vpop.f32.mrb[0].mxu0
  %v7922 = vpop.f32.mrb[0].mxu0
  %v7923 = vadd.f32 %v7762, %v7922
  %v7924 = vpop.f32.mrb[0].mxu0
  %7925 = vmatprep.mubr.bf16.mxu0 0
  %7926 = vmatmul.mubr.bf16.gmra.mrb[0].mxu0 %v6870
  %v7927 = vpop.f32.mrb[0].mxu0
  %v7928 = vadd.f32 %v7767, %v7927
  %v7929 = vpop.f32.mrb[0].mxu0
  %v7930 = vpop.f32.mrb[0].mxu0
  %v7931 = vadd.f32 %v7770, %v7930
  %v7932 = vpop.f32.mrb[0].mxu0
  %7933 = vmatprep.mubr.bf16.mxu0 0
  %7934 = vmatmul.mubr.bf16.gmra.mrb[0].mxu0 %v6873
  %v7935 = vpop.f32.mrb[0].mxu0
  %v7936 = vadd.f32 %v7775, %v7935
  %v7937 = vpop.f32.mrb[0].mxu0
  %v7938 = vpop.f32.mrb[0].mxu0
  %v7939 = vadd.f32 %v7778, %v7938
  %v7940 = vpop.f32.mrb[0].mxu0
  %7941 = vmatprep.mubr.bf16.mxu0 0
  %7942 = vmatmul.mubr.bf16.gmra.mrb[0].mxu0 %v6876
  %v7943 = vpop.f32.mrb[0].mxu0
  %v7944 = vadd.f32 %v7783, %v7943
  %v7945 = vpop.f32.mrb[0].mxu0
  %v7946 = vpop.f32.mrb[0].mxu0
  %v7947 = vadd.f32 %v7786, %v7946
  %v7948 = vpop.f32.mrb[0].mxu0
  %7949 = vmatprep.mubr.bf16.mxu0 0
  %7950 = vmatmul.mubr.bf16.gmra.mrb[0].mxu0 %v6879
  %v7951 = vpop.f32.mrb[0].mxu0
  %v7952 = vadd.f32 %v7791, %v7951
  %v7953 = vpop.f32.mrb[0].mxu0
  %v7954 = vpop.f32.mrb[0].mxu0
  %v7955 = vadd.f32 %v7794, %v7954
  %v7956 = vpop.f32.mrb[0].mxu0
  %7957 = vmatprep.mubr.bf16.mxu0 0
  %7958 = vmatmul.mubr.bf16.gmra.mrb[0].mxu0 %v6882
  %v7959 = vpop.f32.mrb[0].mxu0
  %v7960 = vadd.f32 %v7799, %v7959
  %v7961 = vpop.f32.mrb[0].mxu0
  %v7962 = vpop.f32.mrb[0].mxu0
  %v7963 = vadd.f32 %v7802, %v7962
  %v7964 = vpop.f32.mrb[0].mxu0
  %7965 = vmatprep.mubr.bf16.mxu0 0
  %7966 = vmatmul.mubr.bf16.gmra.mrb[0].mxu0 %v6885
  %v7967 = vpop.f32.mrb[0].mxu0
  %v7968 = vadd.f32 %v7807, %v7967
  %v7969 = vpop.f32.mrb[0].mxu0
  %v7970 = vpop.f32.mrb[0].mxu0
  %v7971 = vadd.f32 %v7810, %v7970
  %v7972 = vpop.f32.mrb[0].mxu0
  %7973 = vmatprep.mubr.bf16.mxu0 0
  %7974 = vmatmul.mubr.bf16.gmra.mrb[0].mxu0 %v6888
  %v7975 = vpop.f32.mrb[0].mxu0
  %v7976 = vadd.f32 %v7815, %v7975
  %v7977 = vpop.f32.mrb[0].mxu0
  %v7978 = vpop.f32.mrb[0].mxu0
  %v7979 = vadd.f32 %v7818, %v7978
  %v7980 = vpop.f32.mrb[0].mxu0
  %7981 = vmatprep.mubr.bf16.mxu0 0
  %7982 = vmatmul.mubr.bf16.gmra.mrb[0].mxu0 %v6891
  %v7983 = vpop.f32.mrb[0].mxu0
  %v7984 = vadd.f32 %v7823, %v7983
  %v7985 = vpop.f32.mrb[0].mxu0
  %v7986 = vpop.f32.mrb[0].mxu0
  %v7987 = vadd.f32 %v7826, %v7986
  %v7988 = vpop.f32.mrb[0].mxu0
  %7989 = vmatprep.mubr.bf16.mxu0 0
  %7990 = vmatmul.mubr.bf16.gmra.mrb[0].mxu0 %v6894
  %v7991 = vpop.f32.mrb[0].mxu0
  %v7992 = vadd.f32 %v7831, %v7991
  %v7993 = vpop.f32.mrb[0].mxu0
  %v7994 = vpop.f32.mrb[0].mxu0
  %v7995 = vadd.f32 %v7834, %v7994
  %v7996 = vpop.f32.mrb[0].mxu0
  %7997 = vmatprep.mubr.bf16.mxu0 0
  %7998 = vmatmul.mubr.bf16.gmra.mrb[0].mxu0 %v6897
  %v7999 = vpop.f32.mrb[0].mxu0
  %v8000 = vadd.f32 %v7839, %v7999
  %v8001 = vpop.f32.mrb[0].mxu0
  %v8002 = vpop.f32.mrb[0].mxu0
  %v8003 = vadd.f32 %v7842, %v8002
  %v8004 = vpop.f32.mrb[0].mxu0
  %8005 = vmatprep.mubr.bf16.mxu0 0
  %8006 = vmatmul.mubr.bf16.gmra.mrb[0].mxu0 %v6900
  %v8007 = vpop.f32.mrb[0].mxu0
  %v8008 = vadd.f32 %v7847, %v8007
  %v8009 = vpop.f32.mrb[0].mxu0
  %v8010 = vpop.f32.mrb[0].mxu0
  %v8011 = vadd.f32 %v7850, %v8010
  %v8012 = vpop.f32.mrb[0].mxu0
  %8013 = vmatprep.mubr.bf16.mxu0 0
  %8014 = vmatmul.mubr.bf16.gmra.mrb[0].mxu0 %v6903
  %v8015 = vpop.f32.mrb[0].mxu0
  %v8016 = vadd.f32 %v7855, %v8015
  %v8017 = vpop.f32.mrb[0].mxu0
  %v8018 = vpop.f32.mrb[0].mxu0
  %v8019 = vadd.f32 %v7858, %v8018
  %v8020 = vpop.f32.mrb[0].mxu0
  %8021 = vmatprep.mubr.bf16.mxu0 0
  %8022 = vmatmul.mubr.bf16.gmra.mrb[0].mxu0 %v6906
  %v8023 = vpop.f32.mrb[0].mxu0
  %v8024 = vadd.f32 %v7863, %v8023
  %v8025 = vpop.f32.mrb[0].mxu0
  %v8026 = vpop.f32.mrb[0].mxu0
  %v8027 = vadd.f32 %v7866, %v8026
  %v8028 = vpop.f32.mrb[0].mxu0
  %8029 = vmatprep.mubr.bf16.mxu0 0
  %8030 = vmatmul.mubr.bf16.gmra.mrb[0].mxu0 %v6909
  %v8031 = vpop.f32.mrb[0].mxu0
  %v8032 = vadd.f32 %v7871, %v8031
  %v8033 = vpop.f32.mrb[0].mxu0
  %v8034 = vpop.f32.mrb[0].mxu0
  %v8035 = vadd.f32 %v7874, %v8034
  %v8036 = vpop.f32.mrb[0].mxu0
  %8037 = vdwg.mxu0
  %v8038 = vmax.f32 %v7912, 0.0
  %v8039 = vmax.f32 %v7915, 0.0
  %v8040 = vmax.f32 %v7920, 0.0
  %v8041 = vmax.f32 %v7923, 0.0
  %v8042 = vmax.f32 %v7928, 0.0
  %v8043 = vmax.f32 %v7931, 0.0
  %v8044 = vmax.f32 %v7936, 0.0
  %v8045 = vmax.f32 %v7939, 0.0
  %v8046 = vmax.f32 %v7944, 0.0
  %v8047 = vmax.f32 %v7947, 0.0
  %v8048 = vmax.f32 %v7952, 0.0
  %v8049 = vmax.f32 %v7955, 0.0
  %v8050 = vmax.f32 %v7960, 0.0
  %v8051 = vmax.f32 %v7963, 0.0
  %v8052 = vmax.f32 %v7968, 0.0
  %v8053 = vmax.f32 %v7971, 0.0
  %v8054 = vmax.f32 %v7976, 0.0
  %v8055 = vmax.f32 %v7979, 0.0
  %v8056 = vmax.f32 %v7984, 0.0
  %v8057 = vmax.f32 %v7987, 0.0
  %v8058 = vmax.f32 %v7992, 0.0
  %v8059 = vmax.f32 %v7995, 0.0
  %v8060 = vmax.f32 %v8000, 0.0
  %v8061 = vmax.f32 %v8003, 0.0
  %v8062 = vmax.f32 %v8008, 0.0
  %v8063 = vmax.f32 %v8011, 0.0
  %v8064 = vmax.f32 %v8016, 0.0
  %v8065 = vmax.f32 %v8019, 0.0
  %v8066 = vmax.f32 %v8024, 0.0
  %v8067 = vmax.f32 %v8027, 0.0
  %v8068 = vmax.f32 %v8032, 0.0
  %v8069 = vmax.f32 %v8035, 0.0
  %8070 = vst.msk [vmem:[#allocation4] sm:$0xff] %vm4427, 0.0
  %8071 = vst.msk [vmem:[#allocation4 + $0x8] sm:$0xff] %vm4427, 0.0
  %vm8072 = vcmask 517120
  %8073 = vst.msk [vmem:[#allocation4 + $0x10] sm:$0x3] %vm8072, 0.0
  %8074 = vst.msk [vmem:[#allocation4 + $0x18] sm:$0xff] %vm4427, 0.0
  %8075 = vst.msk [vmem:[#allocation4 + $0x20] sm:$0xff] %vm4427, 0.0
  %8076 = vst.msk [vmem:[#allocation4 + $0x28] sm:$0x3] %vm8072, 0.0
  %8077 = vst.msk [vmem:[#allocation4 + $0x30] sm:$0xff] %vm4427, 0.0
  %8078 = vst.msk [vmem:[#allocation4 + $0x38] sm:$0xff] %vm4427, 0.0
  %8079 = vst.msk [vmem:[#allocation4 + $0x40] sm:$0x3] %vm8072, 0.0
  %8080 = vst.msk [vmem:[#allocation4 + $0x48] sm:$0xff] %vm4427, 0.0
  %8081 = vst.msk [vmem:[#allocation4 + $0x50] sm:$0xff] %vm4427, 0.0
  %8082 = vst.msk [vmem:[#allocation4 + $0x58] sm:$0x3] %vm8072, 0.0
  %8083 = vst.msk [vmem:[#allocation4 + $0x60] sm:$0xff] %vm4427, 0.0
  %8084 = vst.msk [vmem:[#allocation4 + $0x68] sm:$0xff] %vm4427, 0.0
  %8085 = vst.msk [vmem:[#allocation4 + $0x70] sm:$0x3] %vm8072, 0.0
  %8086 = vst.msk [vmem:[#allocation4 + $0x78] sm:$0xff] %vm4427, 0.0
  %8087 = vst.msk [vmem:[#allocation4 + $0x80] sm:$0xff] %vm4427, 0.0
  %8088 = vst.msk [vmem:[#allocation4 + $0x88] sm:$0x3] %vm8072, 0.0
  %8089 = vst.msk [vmem:[#allocation4 + $0x90] sm:$0xff] %vm4427, 0.0
  %8090 = vst.msk [vmem:[#allocation4 + $0x98] sm:$0xff] %vm4427, 0.0
  %8091 = vst.msk [vmem:[#allocation4 + $0xa0] sm:$0x3] %vm8072, 0.0
  %8092 = vst.msk [vmem:[#allocation4 + $0xa8] sm:$0xff] %vm4427, 0.0
  %8093 = vst.msk [vmem:[#allocation4 + $0xb0] sm:$0xff] %vm4427, 0.0
  %8094 = vst.msk [vmem:[#allocation4 + $0xb8] sm:$0x3] %vm8072, 0.0
  %8095 = vst.msk [vmem:[#allocation4 + $0xc0] sm:$0xff] %vm4427, 0.0
  %8096 = vst.msk [vmem:[#allocation4 + $0xc8] sm:$0xff] %vm4427, 0.0
  %8097 = vst.msk [vmem:[#allocation4 + $0xd0] sm:$0x3] %vm8072, 0.0
  %8098 = vst.msk [vmem:[#allocation4 + $0xd8] sm:$0xff] %vm4427, 0.0
  %8099 = vst.msk [vmem:[#allocation4 + $0xe0] sm:$0xff] %vm4427, 0.0
  %8100 = vst.msk [vmem:[#allocation4 + $0xe8] sm:$0x3] %vm8072, 0.0
  %8101 = vst.msk [vmem:[#allocation4 + $0xf0] sm:$0xff] %vm4427, 0.0
  %8102 = vst.msk [vmem:[#allocation4 + $0xf8] sm:$0xff] %vm4427, 0.0
  %8103 = vst.msk [vmem:[#allocation4 + $0x100] sm:$0x3] %vm8072, 0.0
  %8104 = vst.msk [vmem:[#allocation4 + $0x108] sm:$0xff] %vm4427, 0.0
  %8105 = vst.msk [vmem:[#allocation4 + $0x110] sm:$0xff] %vm4427, 0.0
  %8106 = vst.msk [vmem:[#allocation4 + $0x118] sm:$0x3] %vm8072, 0.0
  %8107 = vst.msk [vmem:[#allocation4 + $0x120] sm:$0xff] %vm4427, 0.0
  %8108 = vst.msk [vmem:[#allocation4 + $0x128] sm:$0xff] %vm4427, 0.0
  %8109 = vst.msk [vmem:[#allocation4 + $0x130] sm:$0x3] %vm8072, 0.0
  %8110 = vst.msk [vmem:[#allocation4 + $0x138] sm:$0xff] %vm4427, 0.0
  %8111 = vst.msk [vmem:[#allocation4 + $0x140] sm:$0xff] %vm4427, 0.0
  %8112 = vst.msk [vmem:[#allocation4 + $0x148] sm:$0x3] %vm8072, 0.0
  %8113 = vst.msk [vmem:[#allocation4 + $0x150] sm:$0xff] %vm4427, 0.0
  %8114 = vst.msk [vmem:[#allocation4 + $0x158] sm:$0xff] %vm4427, 0.0
  %8115 = vst.msk [vmem:[#allocation4 + $0x160] sm:$0x3] %vm8072, 0.0
  %8116 = vst.msk [vmem:[#allocation4 + $0x168] sm:$0xff] %vm4427, 0.0
  %8117 = vst.msk [vmem:[#allocation4 + $0x170] sm:$0xff] %vm4427, 0.0
  %8118 = vst.msk [vmem:[#allocation4 + $0x178] sm:$0x3] %vm8072, 0.0
  %8119 = vst.msk [vmem:[#allocation4 + $0x180] sm:$0xff] %vm4427, 0.0
  %8120 = vst.msk [vmem:[#allocation4 + $0x188] sm:$0xff] %vm4427, 0.0
  %8121 = vst.msk [vmem:[#allocation4 + $0x190] sm:$0x3] %vm8072, 0.0
  %8122 = vst.msk [vmem:[#allocation4 + $0x198] sm:$0xff] %vm4427, 0.0
  %8123 = vst.msk [vmem:[#allocation4 + $0x1a0] sm:$0xff] %vm4427, 0.0
  %8124 = vst.msk [vmem:[#allocation4 + $0x1a8] sm:$0x3] %vm8072, 0.0
  %s8125 = scalar_lea.vmem [#allocation4], 24
  %8126 = vst.msk [vmem:[%s8125 + $0x1] sm:$0xff] %vm4427, %v8038
  %8127 = vst.msk [vmem:[%s8125 + $0x9] sm:$0xff] %vm4427, %v8039
  %8128 = vst.msk [vmem:[%s8125 + $0x19] sm:$0xff] %vm4427, %v8040
  %8129 = vst.msk [vmem:[%s8125 + $0x21] sm:$0xff] %vm4427, %v8041
  %8130 = vst.msk [vmem:[%s8125 + $0x31] sm:$0xff] %vm4427, %v8042
  %8131 = vst.msk [vmem:[%s8125 + $0x39] sm:$0xff] %vm4427, %v8043
  %8132 = vst.msk [vmem:[%s8125 + $0x49] sm:$0xff] %vm4427, %v8044
  %8133 = vst.msk [vmem:[%s8125 + $0x51] sm:$0xff] %vm4427, %v8045
  %8134 = vst.msk [vmem:[%s8125 + $0x61] sm:$0xff] %vm4427, %v8046
  %8135 = vst.msk [vmem:[%s8125 + $0x69] sm:$0xff] %vm4427, %v8047
  %8136 = vst.msk [vmem:[%s8125 + $0x79] sm:$0xff] %vm4427, %v8048
  %8137 = vst.msk [vmem:[%s8125 + $0x81] sm:$0xff] %vm4427, %v8049
  %8138 = vst.msk [vmem:[%s8125 + $0x91] sm:$0xff] %vm4427, %v8050
  %8139 = vst.msk [vmem:[%s8125 + $0x99] sm:$0xff] %vm4427, %v8051
  %8140 = vst.msk [vmem:[%s8125 + $0xa9] sm:$0xff] %vm4427, %v8052
  %8141 = vst.msk [vmem:[%s8125 + $0xb1] sm:$0xff] %vm4427, %v8053
  %8142 = vst.msk [vmem:[%s8125 + $0xc1] sm:$0xff] %vm4427, %v8054
  %8143 = vst.msk [vmem:[%s8125 + $0xc9] sm:$0xff] %vm4427, %v8055
  %8144 = vst.msk [vmem:[%s8125 + $0xd9] sm:$0xff] %vm4427, %v8056
  %8145 = vst.msk [vmem:[%s8125 + $0xe1] sm:$0xff] %vm4427, %v8057
  %8146 = vst.msk [vmem:[%s8125 + $0xf1] sm:$0xff] %vm4427, %v8058
  %8147 = vst.msk [vmem:[%s8125 + $0xf9] sm:$0xff] %vm4427, %v8059
  %8148 = vst.msk [vmem:[%s8125 + $0x109] sm:$0xff] %vm4427, %v8060
  %8149 = vst.msk [vmem:[%s8125 + $0x111] sm:$0xff] %vm4427, %v8061
  %8150 = vst.msk [vmem:[%s8125 + $0x121] sm:$0xff] %vm4427, %v8062
  %8151 = vst.msk [vmem:[%s8125 + $0x129] sm:$0xff] %vm4427, %v8063
  %8152 = vst.msk [vmem:[%s8125 + $0x139] sm:$0xff] %vm4427, %v8064
  %8153 = vst.msk [vmem:[%s8125 + $0x141] sm:$0xff] %vm4427, %v8065
  %8154 = vst.msk [vmem:[%s8125 + $0x151] sm:$0xff] %vm4427, %v8066
  %8155 = vst.msk [vmem:[%s8125 + $0x159] sm:$0xff] %vm4427, %v8067
  %8156 = vst.msk [vmem:[%s8125 + $0x169] sm:$0xff] %vm4427, %v8068
  %8157 = vst.msk [vmem:[%s8125 + $0x171] sm:$0xff] %vm4427, %v8069
  %v8158 = vld [vmem:[#allocation4] sm:$0xff]
  %v8159 = vld [vmem:[#allocation4 + $0x8] sm:$0xff]
  %v8160 = vld [vmem:[#allocation4 + $0x10] sm:$0x3]
  %v8161 = vld [vmem:[#allocation4 + $0x18] sm:$0xff]
  %v8162 = vld [vmem:[#allocation4 + $0x20] sm:$0xff]
  %v8163 = vld [vmem:[#allocation4 + $0x28] sm:$0x3]
  %v8164 = vld [vmem:[#allocation4 + $0x30] sm:$0xff]
  %v8165 = vld [vmem:[#allocation4 + $0x38] sm:$0xff]
  %v8166 = vld [vmem:[#allocation4 + $0x40] sm:$0x3]
  %v8167 = vld [vmem:[#allocation4 + $0x48] sm:$0xff]
  %v8168 = vld [vmem:[#allocation4 + $0x50] sm:$0xff]
  %v8169 = vld [vmem:[#allocation4 + $0x58] sm:$0x3]
  %v8170 = vld [vmem:[#allocation4 + $0x60] sm:$0xff]
  %v8171 = vld [vmem:[#allocation4 + $0x68] sm:$0xff]
  %v8172 = vld [vmem:[#allocation4 + $0x70] sm:$0x3]
  %v8173 = vld [vmem:[#allocation4 + $0x78] sm:$0xff]
  %v8174 = vld [vmem:[#allocation4 + $0x80] sm:$0xff]
  %v8175 = vld [vmem:[#allocation4 + $0x88] sm:$0x3]
  %v8176 = vld [vmem:[#allocation4 + $0x90] sm:$0xff]
  %v8177 = vld [vmem:[#allocation4 + $0x98] sm:$0xff]
  %v8178 = vld [vmem:[#allocation4 + $0xa0] sm:$0x3]
  %v8179 = vld [vmem:[#allocation4 + $0xa8] sm:$0xff]
  %v8180 = vld [vmem:[#allocation4 + $0xb0] sm:$0xff]
  %v8181 = vld [vmem:[#allocation4 + $0xb8] sm:$0x3]
  %v8182 = vld [vmem:[#allocation4 + $0xc0] sm:$0xff]
  %v8183 = vld [vmem:[#allocation4 + $0xc8] sm:$0xff]
  %v8184 = vld [vmem:[#allocation4 + $0xd0] sm:$0x3]
  %v8185 = vld [vmem:[#allocation4 + $0xd8] sm:$0xff]
  %v8186 = vld [vmem:[#allocation4 + $0xe0] sm:$0xff]
  %v8187 = vld [vmem:[#allocation4 + $0xe8] sm:$0x3]
  %v8188 = vld [vmem:[#allocation4 + $0xf0] sm:$0xff]
  %v8189 = vld [vmem:[#allocation4 + $0xf8] sm:$0xff]
  %v8190 = vld [vmem:[#allocation4 + $0x100] sm:$0x3]
  %v8191 = vld [vmem:[#allocation4 + $0x108] sm:$0xff]
  %v8192 = vld [vmem:[#allocation4 + $0x110] sm:$0xff]
  %v8193 = vld [vmem:[#allocation4 + $0x118] sm:$0x3]
  %v8194 = vld [vmem:[#allocation4 + $0x120] sm:$0xff]
  %v8195 = vld [vmem:[#allocation4 + $0x128] sm:$0xff]
  %v8196 = vld [vmem:[#allocation4 + $0x130] sm:$0x3]
  %v8197 = vld [vmem:[#allocation4 + $0x138] sm:$0xff]
  %v8198 = vld [vmem:[#allocation4 + $0x140] sm:$0xff]
  %v8199 = vld [vmem:[#allocation4 + $0x148] sm:$0x3]
  %v8200 = vld [vmem:[#allocation4 + $0x150] sm:$0xff]
  %v8201 = vld [vmem:[#allocation4 + $0x158] sm:$0xff]
  %v8202 = vld [vmem:[#allocation4 + $0x160] sm:$0x3]
  %v8203 = vld [vmem:[#allocation4 + $0x168] sm:$0xff]
  %v8204 = vld [vmem:[#allocation4 + $0x170] sm:$0xff]
  %v8205 = vld [vmem:[#allocation4 + $0x178] sm:$0x3]
  %v8206 = vld [vmem:[#allocation4 + $0x180] sm:$0xff]
  %v8207 = vld [vmem:[#allocation4 + $0x188] sm:$0xff]
  %v8208 = vld [vmem:[#allocation4 + $0x190] sm:$0x3]
  %v8209 = vld [vmem:[#allocation4 + $0x198] sm:$0xff]
  %v8210 = vld [vmem:[#allocation4 + $0x1a0] sm:$0xff]
  %v8211 = vld [vmem:[#allocation4 + $0x1a8] sm:$0x3]
  %v8260 = vrot.slane %v8158, 1
  %v8261 = vrot.slane %v8159, 1
  %v8262 = vsel %vm527, %v8260, %v8261
  %v8263 = vrot.slane %v8160, 1
  %v8264 = vsel %vm527, %v8261, %v8263
  %v8265 = vrot.slane %v8161, 1
  %v8266 = vrot.slane %v8162, 1
  %v8267 = vsel %vm527, %v8265, %v8266
  %v8268 = vrot.slane %v8163, 1
  %v8269 = vsel %vm527, %v8266, %v8268
  %v8270 = vrot.slane %v8164, 1
  %v8271 = vrot.slane %v8165, 1
  %v8272 = vsel %vm527, %v8270, %v8271
  %v8273 = vrot.slane %v8166, 1
  %v8274 = vsel %vm527, %v8271, %v8273
  %v8275 = vrot.slane %v8167, 1
  %v8276 = vrot.slane %v8168, 1
  %v8277 = vsel %vm527, %v8275, %v8276
  %v8278 = vrot.slane %v8169, 1
  %v8279 = vsel %vm527, %v8276, %v8278
  %v8280 = vrot.slane %v8170, 1
  %v8281 = vrot.slane %v8171, 1
  %v8282 = vsel %vm527, %v8280, %v8281
  %v8283 = vrot.slane %v8172, 1
  %v8284 = vsel %vm527, %v8281, %v8283
  %v8285 = vrot.slane %v8173, 1
  %v8286 = vrot.slane %v8174, 1
  %v8287 = vsel %vm527, %v8285, %v8286
  %v8288 = vrot.slane %v8175, 1
  %v8289 = vsel %vm527, %v8286, %v8288
  %v8290 = vrot.slane %v8176, 1
  %v8291 = vrot.slane %v8177, 1
  %v8292 = vsel %vm527, %v8290, %v8291
  %v8293 = vrot.slane %v8178, 1
  %v8294 = vsel %vm527, %v8291, %v8293
  %v8295 = vrot.slane %v8179, 1
  %v8296 = vrot.slane %v8180, 1
  %v8297 = vsel %vm527, %v8295, %v8296
  %v8298 = vrot.slane %v8181, 1
  %v8299 = vsel %vm527, %v8296, %v8298
  %v8300 = vrot.slane %v8182, 1
  %v8301 = vrot.slane %v8183, 1
  %v8302 = vsel %vm527, %v8300, %v8301
  %v8303 = vrot.slane %v8184, 1
  %v8304 = vsel %vm527, %v8301, %v8303
  %v8305 = vrot.slane %v8185, 1
  %v8306 = vrot.slane %v8186, 1
  %v8307 = vsel %vm527, %v8305, %v8306
  %v8308 = vrot.slane %v8187, 1
  %v8309 = vsel %vm527, %v8306, %v8308
  %v8310 = vrot.slane %v8188, 1
  %v8311 = vrot.slane %v8189, 1
  %v8312 = vsel %vm527, %v8310, %v8311
  %v8313 = vrot.slane %v8190, 1
  %v8314 = vsel %vm527, %v8311, %v8313
  %v8315 = vrot.slane %v8191, 1
  %v8316 = vrot.slane %v8192, 1
  %v8317 = vsel %vm527, %v8315, %v8316
  %v8318 = vrot.slane %v8193, 1
  %v8319 = vsel %vm527, %v8316, %v8318
  %v8320 = vrot.slane %v8194, 1
  %v8321 = vrot.slane %v8195, 1
  %v8322 = vsel %vm527, %v8320, %v8321
  %v8323 = vrot.slane %v8196, 1
  %v8324 = vsel %vm527, %v8321, %v8323
  %v8325 = vrot.slane %v8197, 1
  %v8326 = vrot.slane %v8198, 1
  %v8327 = vsel %vm527, %v8325, %v8326
  %v8328 = vrot.slane %v8199, 1
  %v8329 = vsel %vm527, %v8326, %v8328
  %v8330 = vrot.slane %v8200, 1
  %v8331 = vrot.slane %v8201, 1
  %v8332 = vsel %vm527, %v8330, %v8331
  %v8333 = vrot.slane %v8202, 1
  %v8334 = vsel %vm527, %v8331, %v8333
  %v8335 = vrot.slane %v8203, 1
  %v8336 = vrot.slane %v8204, 1
  %v8337 = vsel %vm527, %v8335, %v8336
  %v8338 = vrot.slane %v8205, 1
  %v8339 = vsel %vm527, %v8336, %v8338
  %v8340 = vrot.slane %v8158, 2
  %v8341 = vrot.slane %v8159, 2
  %v8342 = vsel %vm608, %v8340, %v8341
  %v8343 = vrot.slane %v8160, 2
  %v8344 = vsel %vm608, %v8341, %v8343
  %v8345 = vrot.slane %v8161, 2
  %v8346 = vrot.slane %v8162, 2
  %v8347 = vsel %vm608, %v8345, %v8346
  %v8348 = vrot.slane %v8163, 2
  %v8349 = vsel %vm608, %v8346, %v8348
  %v8350 = vrot.slane %v8164, 2
  %v8351 = vrot.slane %v8165, 2
  %v8352 = vsel %vm608, %v8350, %v8351
  %v8353 = vrot.slane %v8166, 2
  %v8354 = vsel %vm608, %v8351, %v8353
  %v8355 = vrot.slane %v8167, 2
  %v8356 = vrot.slane %v8168, 2
  %v8357 = vsel %vm608, %v8355, %v8356
  %v8358 = vrot.slane %v8169, 2
  %v8359 = vsel %vm608, %v8356, %v8358
  %v8360 = vrot.slane %v8170, 2
  %v8361 = vrot.slane %v8171, 2
  %v8362 = vsel %vm608, %v8360, %v8361
  %v8363 = vrot.slane %v8172, 2
  %v8364 = vsel %vm608, %v8361, %v8363
  %v8365 = vrot.slane %v8173, 2
  %v8366 = vrot.slane %v8174, 2
  %v8367 = vsel %vm608, %v8365, %v8366
  %v8368 = vrot.slane %v8175, 2
  %v8369 = vsel %vm608, %v8366, %v8368
  %v8370 = vrot.slane %v8176, 2
  %v8371 = vrot.slane %v8177, 2
  %v8372 = vsel %vm608, %v8370, %v8371
  %v8373 = vrot.slane %v8178, 2
  %v8374 = vsel %vm608, %v8371, %v8373
  %v8375 = vrot.slane %v8179, 2
  %v8376 = vrot.slane %v8180, 2
  %v8377 = vsel %vm608, %v8375, %v8376
  %v8378 = vrot.slane %v8181, 2
  %v8379 = vsel %vm608, %v8376, %v8378
  %v8380 = vrot.slane %v8182, 2
  %v8381 = vrot.slane %v8183, 2
  %v8382 = vsel %vm608, %v8380, %v8381
  %v8383 = vrot.slane %v8184, 2
  %v8384 = vsel %vm608, %v8381, %v8383
  %v8385 = vrot.slane %v8185, 2
  %v8386 = vrot.slane %v8186, 2
  %v8387 = vsel %vm608, %v8385, %v8386
  %v8388 = vrot.slane %v8187, 2
  %v8389 = vsel %vm608, %v8386, %v8388
  %v8390 = vrot.slane %v8188, 2
  %v8391 = vrot.slane %v8189, 2
  %v8392 = vsel %vm608, %v8390, %v8391
  %v8393 = vrot.slane %v8190, 2
  %v8394 = vsel %vm608, %v8391, %v8393
  %v8395 = vrot.slane %v8191, 2
  %v8396 = vrot.slane %v8192, 2
  %v8397 = vsel %vm608, %v8395, %v8396
  %v8398 = vrot.slane %v8193, 2
  %v8399 = vsel %vm608, %v8396, %v8398
  %v8400 = vrot.slane %v8194, 2
  %v8401 = vrot.slane %v8195, 2
  %v8402 = vsel %vm608, %v8400, %v8401
  %v8403 = vrot.slane %v8196, 2
  %v8404 = vsel %vm608, %v8401, %v8403
  %v8405 = vrot.slane %v8197, 2
  %v8406 = vrot.slane %v8198, 2
  %v8407 = vsel %vm608, %v8405, %v8406
  %v8408 = vrot.slane %v8199, 2
  %v8409 = vsel %vm608, %v8406, %v8408
  %v8410 = vrot.slane %v8200, 2
  %v8411 = vrot.slane %v8201, 2
  %v8412 = vsel %vm608, %v8410, %v8411
  %v8413 = vrot.slane %v8202, 2
  %v8414 = vsel %vm608, %v8411, %v8413
  %v8415 = vrot.slane %v8203, 2
  %v8416 = vrot.slane %v8204, 2
  %v8417 = vsel %vm608, %v8415, %v8416
  %v8418 = vrot.slane %v8205, 2
  %v8419 = vsel %vm608, %v8416, %v8418
  %v8455 = vrot.slane %v8206, 1
  %v8456 = vrot.slane %v8207, 1
  %v8457 = vsel %vm527, %v8455, %v8456
  %v8458 = vrot.slane %v8208, 1
  %v8459 = vsel %vm527, %v8456, %v8458
  %v8492 = vrot.slane %v8206, 2
  %v8493 = vrot.slane %v8207, 2
  %v8494 = vsel %vm608, %v8492, %v8493
  %v8495 = vrot.slane %v8208, 2
  %v8496 = vsel %vm608, %v8493, %v8495
  %v8500 = vrot.slane %v8209, 1
  %v8501 = vrot.slane %v8210, 1
  %v8502 = vsel %vm527, %v8500, %v8501
  %v8503 = vrot.slane %v8211, 1
  %v8504 = vsel %vm527, %v8501, %v8503
  %v8505 = vrot.slane %v8209, 2
  %v8506 = vrot.slane %v8210, 2
  %v8507 = vsel %vm608, %v8505, %v8506
  %v8508 = vrot.slane %v8211, 2
  %v8509 = vsel %vm608, %v8506, %v8508
  %8514 = vrot.lane.b32.xlu0 %v8262, 64
  %v8515 = vpop.permute.xlu0 %8514
  %8516 = vrot.lane.b32.xlu0 %v8264, 64
  %v8517 = vpop.permute.xlu0 %8516
  %8518 = vrot.lane.b32.xlu0 %v8267, 64
  %v8519 = vpop.permute.xlu0 %8518
  %8520 = vrot.lane.b32.xlu0 %v8269, 64
  %v8521 = vpop.permute.xlu0 %8520
  %8522 = vrot.lane.b32.xlu0 %v8272, 64
  %v8523 = vpop.permute.xlu0 %8522
  %8524 = vrot.lane.b32.xlu0 %v8274, 64
  %v8525 = vpop.permute.xlu0 %8524
  %8526 = vrot.lane.b32.xlu0 %v8277, 64
  %v8527 = vpop.permute.xlu0 %8526
  %8528 = vrot.lane.b32.xlu0 %v8279, 64
  %v8529 = vpop.permute.xlu0 %8528
  %8530 = vrot.lane.b32.xlu0 %v8282, 64
  %v8531 = vpop.permute.xlu0 %8530
  %8532 = vrot.lane.b32.xlu0 %v8284, 64
  %v8533 = vpop.permute.xlu0 %8532
  %8534 = vrot.lane.b32.xlu0 %v8287, 64
  %v8535 = vpop.permute.xlu0 %8534
  %8536 = vrot.lane.b32.xlu0 %v8289, 64
  %v8537 = vpop.permute.xlu0 %8536
  %8538 = vrot.lane.b32.xlu0 %v8292, 64
  %v8539 = vpop.permute.xlu0 %8538
  %8540 = vrot.lane.b32.xlu0 %v8294, 64
  %v8541 = vpop.permute.xlu0 %8540
  %8542 = vrot.lane.b32.xlu0 %v8297, 64
  %v8543 = vpop.permute.xlu0 %8542
  %8544 = vrot.lane.b32.xlu0 %v8299, 64
  %v8545 = vpop.permute.xlu0 %8544
  %8546 = vrot.lane.b32.xlu0 %v8302, 64
  %v8547 = vpop.permute.xlu0 %8546
  %8548 = vrot.lane.b32.xlu0 %v8304, 64
  %v8549 = vpop.permute.xlu0 %8548
  %8550 = vrot.lane.b32.xlu0 %v8307, 64
  %v8551 = vpop.permute.xlu0 %8550
  %8552 = vrot.lane.b32.xlu0 %v8309, 64
  %v8553 = vpop.permute.xlu0 %8552
  %8554 = vrot.lane.b32.xlu0 %v8312, 64
  %v8555 = vpop.permute.xlu0 %8554
  %8556 = vrot.lane.b32.xlu0 %v8314, 64
  %v8557 = vpop.permute.xlu0 %8556
  %8558 = vrot.lane.b32.xlu0 %v8317, 64
  %v8559 = vpop.permute.xlu0 %8558
  %8560 = vrot.lane.b32.xlu0 %v8319, 64
  %v8561 = vpop.permute.xlu0 %8560
  %8562 = vrot.lane.b32.xlu0 %v8322, 64
  %v8563 = vpop.permute.xlu0 %8562
  %8564 = vrot.lane.b32.xlu0 %v8324, 64
  %v8565 = vpop.permute.xlu0 %8564
  %8566 = vrot.lane.b32.xlu0 %v8327, 64
  %v8567 = vpop.permute.xlu0 %8566
  %8568 = vrot.lane.b32.xlu0 %v8329, 64
  %v8569 = vpop.permute.xlu0 %8568
  %8570 = vrot.lane.b32.xlu0 %v8332, 64
  %v8571 = vpop.permute.xlu0 %8570
  %8572 = vrot.lane.b32.xlu0 %v8334, 64
  %v8573 = vpop.permute.xlu0 %8572
  %8574 = vrot.lane.b32.xlu0 %v8337, 64
  %v8575 = vpop.permute.xlu0 %8574
  %8576 = vrot.lane.b32.xlu0 %v8339, 64
  %v8577 = vpop.permute.xlu0 %8576
  %8610 = vrot.lane.b32.xlu0 %v8161, 64
  %v8611 = vpop.permute.xlu0 %8610
  %8612 = vrot.lane.b32.xlu0 %v8162, 64
  %v8613 = vpop.permute.xlu0 %8612
  %8614 = vrot.lane.b32.xlu0 %v8164, 64
  %v8615 = vpop.permute.xlu0 %8614
  %8616 = vrot.lane.b32.xlu0 %v8165, 64
  %v8617 = vpop.permute.xlu0 %8616
  %8618 = vrot.lane.b32.xlu0 %v8167, 64
  %v8619 = vpop.permute.xlu0 %8618
  %8620 = vrot.lane.b32.xlu0 %v8168, 64
  %v8621 = vpop.permute.xlu0 %8620
  %8622 = vrot.lane.b32.xlu0 %v8170, 64
  %v8623 = vpop.permute.xlu0 %8622
  %8624 = vrot.lane.b32.xlu0 %v8171, 64
  %v8625 = vpop.permute.xlu0 %8624
  %8626 = vrot.lane.b32.xlu0 %v8173, 64
  %v8627 = vpop.permute.xlu0 %8626
  %8628 = vrot.lane.b32.xlu0 %v8174, 64
  %v8629 = vpop.permute.xlu0 %8628
  %8630 = vrot.lane.b32.xlu0 %v8176, 64
  %v8631 = vpop.permute.xlu0 %8630
  %8632 = vrot.lane.b32.xlu0 %v8177, 64
  %v8633 = vpop.permute.xlu0 %8632
  %8634 = vrot.lane.b32.xlu0 %v8179, 64
  %v8635 = vpop.permute.xlu0 %8634
  %8636 = vrot.lane.b32.xlu0 %v8180, 64
  %v8637 = vpop.permute.xlu0 %8636
  %8638 = vrot.lane.b32.xlu0 %v8182, 64
  %v8639 = vpop.permute.xlu0 %8638
  %8640 = vrot.lane.b32.xlu0 %v8183, 64
  %v8641 = vpop.permute.xlu0 %8640
  %8642 = vrot.lane.b32.xlu0 %v8185, 64
  %v8643 = vpop.permute.xlu0 %8642
  %8644 = vrot.lane.b32.xlu0 %v8186, 64
  %v8645 = vpop.permute.xlu0 %8644
  %8646 = vrot.lane.b32.xlu0 %v8188, 64
  %v8647 = vpop.permute.xlu0 %8646
  %8648 = vrot.lane.b32.xlu0 %v8189, 64
  %v8649 = vpop.permute.xlu0 %8648
  %8650 = vrot.lane.b32.xlu0 %v8191, 64
  %v8651 = vpop.permute.xlu0 %8650
  %8652 = vrot.lane.b32.xlu0 %v8192, 64
  %v8653 = vpop.permute.xlu0 %8652
  %8654 = vrot.lane.b32.xlu0 %v8194, 64
  %v8655 = vpop.permute.xlu0 %8654
  %8656 = vrot.lane.b32.xlu0 %v8195, 64
  %v8657 = vpop.permute.xlu0 %8656
  %8658 = vrot.lane.b32.xlu0 %v8197, 64
  %v8659 = vpop.permute.xlu0 %8658
  %8660 = vrot.lane.b32.xlu0 %v8198, 64
  %v8661 = vpop.permute.xlu0 %8660
  %8662 = vrot.lane.b32.xlu0 %v8200, 64
  %v8663 = vpop.permute.xlu0 %8662
  %8664 = vrot.lane.b32.xlu0 %v8201, 64
  %v8665 = vpop.permute.xlu0 %8664
  %8666 = vrot.lane.b32.xlu0 %v8203, 64
  %v8667 = vpop.permute.xlu0 %8666
  %8668 = vrot.lane.b32.xlu0 %v8204, 64
  %v8669 = vpop.permute.xlu0 %8668
  %8670 = vrot.lane.b32.xlu0 %v8206, 64
  %v8671 = vpop.permute.xlu0 %8670
  %8672 = vrot.lane.b32.xlu0 %v8207, 64
  %v8673 = vpop.permute.xlu0 %8672
  %8706 = vrot.lane.b32.xlu0 %v8347, 64
  %v8707 = vpop.permute.xlu0 %8706
  %8708 = vrot.lane.b32.xlu0 %v8349, 64
  %v8709 = vpop.permute.xlu0 %8708
  %8710 = vrot.lane.b32.xlu0 %v8352, 64
  %v8711 = vpop.permute.xlu0 %8710
  %8712 = vrot.lane.b32.xlu0 %v8354, 64
  %v8713 = vpop.permute.xlu0 %8712
  %8714 = vrot.lane.b32.xlu0 %v8357, 64
  %v8715 = vpop.permute.xlu0 %8714
  %8716 = vrot.lane.b32.xlu0 %v8359, 64
  %v8717 = vpop.permute.xlu0 %8716
  %8718 = vrot.lane.b32.xlu0 %v8362, 64
  %v8719 = vpop.permute.xlu0 %8718
  %8720 = vrot.lane.b32.xlu0 %v8364, 64
  %v8721 = vpop.permute.xlu0 %8720
  %8722 = vrot.lane.b32.xlu0 %v8367, 64
  %v8723 = vpop.permute.xlu0 %8722
  %8724 = vrot.lane.b32.xlu0 %v8369, 64
  %v8725 = vpop.permute.xlu0 %8724
  %8726 = vrot.lane.b32.xlu0 %v8372, 64
  %v8727 = vpop.permute.xlu0 %8726
  %8728 = vrot.lane.b32.xlu0 %v8374, 64
  %v8729 = vpop.permute.xlu0 %8728
  %8730 = vrot.lane.b32.xlu0 %v8377, 64
  %v8731 = vpop.permute.xlu0 %8730
  %8732 = vrot.lane.b32.xlu0 %v8379, 64
  %v8733 = vpop.permute.xlu0 %8732
  %8734 = vrot.lane.b32.xlu0 %v8382, 64
  %v8735 = vpop.permute.xlu0 %8734
  %8736 = vrot.lane.b32.xlu0 %v8384, 64
  %v8737 = vpop.permute.xlu0 %8736
  %8738 = vrot.lane.b32.xlu0 %v8387, 64
  %v8739 = vpop.permute.xlu0 %8738
  %8740 = vrot.lane.b32.xlu0 %v8389, 64
  %v8741 = vpop.permute.xlu0 %8740
  %8742 = vrot.lane.b32.xlu0 %v8392, 64
  %v8743 = vpop.permute.xlu0 %8742
  %8744 = vrot.lane.b32.xlu0 %v8394, 64
  %v8745 = vpop.permute.xlu0 %8744
  %8746 = vrot.lane.b32.xlu0 %v8397, 64
  %v8747 = vpop.permute.xlu0 %8746
  %8748 = vrot.lane.b32.xlu0 %v8399, 64
  %v8749 = vpop.permute.xlu0 %8748
  %8750 = vrot.lane.b32.xlu0 %v8402, 64
  %v8751 = vpop.permute.xlu0 %8750
  %8752 = vrot.lane.b32.xlu0 %v8404, 64
  %v8753 = vpop.permute.xlu0 %8752
  %8754 = vrot.lane.b32.xlu0 %v8407, 64
  %v8755 = vpop.permute.xlu0 %8754
  %8756 = vrot.lane.b32.xlu0 %v8409, 64
  %v8757 = vpop.permute.xlu0 %8756
  %8758 = vrot.lane.b32.xlu0 %v8412, 64
  %v8759 = vpop.permute.xlu0 %8758
  %8760 = vrot.lane.b32.xlu0 %v8414, 64
  %v8761 = vpop.permute.xlu0 %8760
  %8762 = vrot.lane.b32.xlu0 %v8417, 64
  %v8763 = vpop.permute.xlu0 %8762
  %8764 = vrot.lane.b32.xlu0 %v8419, 64
  %v8765 = vpop.permute.xlu0 %8764
  %8766 = vrot.lane.b32.xlu0 %v8494, 64
  %v8767 = vpop.permute.xlu0 %8766
  %8768 = vrot.lane.b32.xlu0 %v8496, 64
  %v8769 = vpop.permute.xlu0 %8768
  %8802 = vrot.lane.b32.xlu0 %v8457, 64
  %v8803 = vpop.permute.xlu0 %8802
  %8804 = vrot.lane.b32.xlu0 %v8459, 64
  %v8805 = vpop.permute.xlu0 %8804
  %8806 = vrot.lane.b32.xlu0 %v8502, 64
  %v8807 = vpop.permute.xlu0 %8806
  %8808 = vrot.lane.b32.xlu0 %v8504, 64
  %v8809 = vpop.permute.xlu0 %8808
  %v8814 = vsel %vm4427, %v8158, %v8515
  %v8815 = vsel %vm4427, %v8159, %v8517
  %v8816 = vsel %vm4427, %v8161, %v8519
  %v8817 = vsel %vm4427, %v8162, %v8521
  %v8818 = vsel %vm4427, %v8164, %v8523
  %v8819 = vsel %vm4427, %v8165, %v8525
  %v8820 = vsel %vm4427, %v8167, %v8527
  %v8821 = vsel %vm4427, %v8168, %v8529
  %v8822 = vsel %vm4427, %v8170, %v8531
  %v8823 = vsel %vm4427, %v8171, %v8533
  %v8824 = vsel %vm4427, %v8173, %v8535
  %v8825 = vsel %vm4427, %v8174, %v8537
  %v8826 = vsel %vm4427, %v8176, %v8539
  %v8827 = vsel %vm4427, %v8177, %v8541
  %v8828 = vsel %vm4427, %v8179, %v8543
  %v8829 = vsel %vm4427, %v8180, %v8545
  %v8830 = vsel %vm4427, %v8182, %v8547
  %v8831 = vsel %vm4427, %v8183, %v8549
  %v8832 = vsel %vm4427, %v8185, %v8551
  %v8833 = vsel %vm4427, %v8186, %v8553
  %v8834 = vsel %vm4427, %v8188, %v8555
  %v8835 = vsel %vm4427, %v8189, %v8557
  %v8836 = vsel %vm4427, %v8191, %v8559
  %v8837 = vsel %vm4427, %v8192, %v8561
  %v8838 = vsel %vm4427, %v8194, %v8563
  %v8839 = vsel %vm4427, %v8195, %v8565
  %v8840 = vsel %vm4427, %v8197, %v8567
  %v8841 = vsel %vm4427, %v8198, %v8569
  %v8842 = vsel %vm4427, %v8200, %v8571
  %v8843 = vsel %vm4427, %v8201, %v8573
  %v8844 = vsel %vm4427, %v8203, %v8575
  %v8845 = vsel %vm4427, %v8204, %v8577
  %v8846 = vsel %vm4427, %v8342, %v8611
  %v8847 = vsel %vm4427, %v8344, %v8613
  %v8848 = vsel %vm4427, %v8347, %v8615
  %v8849 = vsel %vm4427, %v8349, %v8617
  %v8850 = vsel %vm4427, %v8352, %v8619
  %v8851 = vsel %vm4427, %v8354, %v8621
  %v8852 = vsel %vm4427, %v8357, %v8623
  %v8853 = vsel %vm4427, %v8359, %v8625
  %v8854 = vsel %vm4427, %v8362, %v8627
  %v8855 = vsel %vm4427, %v8364, %v8629
  %v8856 = vsel %vm4427, %v8367, %v8631
  %v8857 = vsel %vm4427, %v8369, %v8633
  %v8858 = vsel %vm4427, %v8372, %v8635
  %v8859 = vsel %vm4427, %v8374, %v8637
  %v8860 = vsel %vm4427, %v8377, %v8639
  %v8861 = vsel %vm4427, %v8379, %v8641
  %v8862 = vsel %vm4427, %v8382, %v8643
  %v8863 = vsel %vm4427, %v8384, %v8645
  %v8864 = vsel %vm4427, %v8387, %v8647
  %v8865 = vsel %vm4427, %v8389, %v8649
  %v8866 = vsel %vm4427, %v8392, %v8651
  %v8867 = vsel %vm4427, %v8394, %v8653
  %v8868 = vsel %vm4427, %v8397, %v8655
  %v8869 = vsel %vm4427, %v8399, %v8657
  %v8870 = vsel %vm4427, %v8402, %v8659
  %v8871 = vsel %vm4427, %v8404, %v8661
  %v8872 = vsel %vm4427, %v8407, %v8663
  %v8873 = vsel %vm4427, %v8409, %v8665
  %v8874 = vsel %vm4427, %v8412, %v8667
  %v8875 = vsel %vm4427, %v8414, %v8669
  %v8876 = vsel %vm4427, %v8417, %v8671
  %v8877 = vsel %vm4427, %v8419, %v8673
  %v8878 = vsel %vm4427, %v8267, %v8707
  %v8879 = vsel %vm4427, %v8269, %v8709
  %v8880 = vsel %vm4427, %v8272, %v8711
  %v8881 = vsel %vm4427, %v8274, %v8713
  %v8882 = vsel %vm4427, %v8277, %v8715
  %v8883 = vsel %vm4427, %v8279, %v8717
  %v8884 = vsel %vm4427, %v8282, %v8719
  %v8885 = vsel %vm4427, %v8284, %v8721
  %v8886 = vsel %vm4427, %v8287, %v8723
  %v8887 = vsel %vm4427, %v8289, %v8725
  %v8888 = vsel %vm4427, %v8292, %v8727
  %v8889 = vsel %vm4427, %v8294, %v8729
  %v8890 = vsel %vm4427, %v8297, %v8731
  %v8891 = vsel %vm4427, %v8299, %v8733
  %v8892 = vsel %vm4427, %v8302, %v8735
  %v8893 = vsel %vm4427, %v8304, %v8737
  %v8894 = vsel %vm4427, %v8307, %v8739
  %v8895 = vsel %vm4427, %v8309, %v8741
  %v8896 = vsel %vm4427, %v8312, %v8743
  %v8897 = vsel %vm4427, %v8314, %v8745
  %v8898 = vsel %vm4427, %v8317, %v8747
  %v8899 = vsel %vm4427, %v8319, %v8749
  %v8900 = vsel %vm4427, %v8322, %v8751
  %v8901 = vsel %vm4427, %v8324, %v8753
  %v8902 = vsel %vm4427, %v8327, %v8755
  %v8903 = vsel %vm4427, %v8329, %v8757
  %v8904 = vsel %vm4427, %v8332, %v8759
  %v8905 = vsel %vm4427, %v8334, %v8761
  %v8906 = vsel %vm4427, %v8337, %v8763
  %v8907 = vsel %vm4427, %v8339, %v8765
  %v8908 = vsel %vm4427, %v8457, %v8767
  %v8909 = vsel %vm4427, %v8459, %v8769
  %v8910 = vsel %vm4427, %v8206, %v8803
  %v8911 = vsel %vm4427, %v8207, %v8805
  %v8912 = vsel %vm4427, %v8209, %v8807
  %v8913 = vsel %vm4427, %v8210, %v8809
  %v8914 = vpack.c.bf16 %v8815, %v8814
  %v8915 = vpack.c.bf16 %v8847, %v8846
  %v8916 = vpack.c.bf16 %v8879, %v8878
  %v8917 = vpack.c.bf16 %v8819, %v8818
  %v8918 = vpack.c.bf16 %v8354, %v8352
  %v8919 = vpack.c.bf16 %v8817, %v8816
  %v8920 = vpack.c.bf16 %v8849, %v8848
  %v8921 = vpack.c.bf16 %v8881, %v8880
  %v8922 = vpack.c.bf16 %v8821, %v8820
  %v8923 = vpack.c.bf16 %v8359, %v8357
  %v8924 = vpack.c.bf16 %v8851, %v8850
  %v8925 = vpack.c.bf16 %v8883, %v8882
  %v8926 = vpack.c.bf16 %v8823, %v8822
  %v8927 = vpack.c.bf16 %v8364, %v8362
  %v8928 = vpack.c.bf16 %v8853, %v8852
  %v8929 = vpack.c.bf16 %v8885, %v8884
  %v8930 = vpack.c.bf16 %v8825, %v8824
  %v8931 = vpack.c.bf16 %v8369, %v8367
  %v8932 = vpack.c.bf16 %v8855, %v8854
  %v8933 = vpack.c.bf16 %v8887, %v8886
  %v8934 = vpack.c.bf16 %v8827, %v8826
  %v8935 = vpack.c.bf16 %v8374, %v8372
  %v8936 = vpack.c.bf16 %v8857, %v8856
  %v8937 = vpack.c.bf16 %v8889, %v8888
  %v8938 = vpack.c.bf16 %v8829, %v8828
  %v8939 = vpack.c.bf16 %v8379, %v8377
  %v8940 = vpack.c.bf16 %v8859, %v8858
  %v8941 = vpack.c.bf16 %v8891, %v8890
  %v8942 = vpack.c.bf16 %v8831, %v8830
  %v8943 = vpack.c.bf16 %v8384, %v8382
  %v8944 = vpack.c.bf16 %v8861, %v8860
  %v8945 = vpack.c.bf16 %v8893, %v8892
  %v8946 = vpack.c.bf16 %v8833, %v8832
  %v8947 = vpack.c.bf16 %v8389, %v8387
  %v8948 = vpack.c.bf16 %v8863, %v8862
  %v8949 = vpack.c.bf16 %v8895, %v8894
  %v8950 = vpack.c.bf16 %v8835, %v8834
  %v8951 = vpack.c.bf16 %v8394, %v8392
  %v8952 = vpack.c.bf16 %v8865, %v8864
  %v8953 = vpack.c.bf16 %v8897, %v8896
  %v8954 = vpack.c.bf16 %v8837, %v8836
  %v8955 = vpack.c.bf16 %v8399, %v8397
  %v8956 = vpack.c.bf16 %v8867, %v8866
  %v8957 = vpack.c.bf16 %v8899, %v8898
  %v8958 = vpack.c.bf16 %v8839, %v8838
  %v8959 = vpack.c.bf16 %v8404, %v8402
  %v8960 = vpack.c.bf16 %v8869, %v8868
  %v8961 = vpack.c.bf16 %v8901, %v8900
  %v8962 = vpack.c.bf16 %v8841, %v8840
  %v8963 = vpack.c.bf16 %v8409, %v8407
  %v8964 = vpack.c.bf16 %v8871, %v8870
  %v8965 = vpack.c.bf16 %v8903, %v8902
  %v8966 = vpack.c.bf16 %v8843, %v8842
  %v8967 = vpack.c.bf16 %v8414, %v8412
  %v8968 = vpack.c.bf16 %v8873, %v8872
  %v8969 = vpack.c.bf16 %v8905, %v8904
  %v8970 = vpack.c.bf16 %v8845, %v8844
  %v8971 = vpack.c.bf16 %v8419, %v8417
  %v8972 = vpack.c.bf16 %v8875, %v8874
  %v8973 = vpack.c.bf16 %v8907, %v8906
  %v8974 = vpack.c.bf16 %v8911, %v8910
  %v8975 = vpack.c.bf16 %v8496, %v8494
  %v8976 = vpack.c.bf16 %v8877, %v8876
  %v8977 = vpack.c.bf16 %v8909, %v8908
  %v8978 = vpack.c.bf16 %v8913, %v8912
  %v8979 = vpack.c.bf16 %v8509, %v8507
  %v8980 = vld [vmem:[%s6] sm:$0xf]
  %v8981 = vld [vmem:[%s6 + $0x4] sm:$0xf]
  %v8982 = vld [vmem:[%s6 + $0x8] sm:$0xf]
  %v8983 = vld [vmem:[%s6 + $0xc] sm:$0xf]
  %v8984 = vld [vmem:[%s6 + $0x10] sm:$0xf]
  %v8985 = vld [vmem:[%s6 + $0x14] sm:$0xf]
  %v8986 = vld [vmem:[%s6 + $0x18] sm:$0xf]
  %v8987 = vld [vmem:[%s6 + $0x1c] sm:$0xf]
  %v8988 = vld [vmem:[%s6 + $0x20] sm:$0xf]
  %v8989 = vld [vmem:[%s6 + $0x24] sm:$0xf]
  %v8990 = vld [vmem:[%s6 + $0x28] sm:$0xf]
  %v8991 = vld [vmem:[%s6 + $0x2c] sm:$0xf]
  %v8992 = vld [vmem:[%s6 + $0x30] sm:$0xf]
  %v8993 = vld [vmem:[%s6 + $0x34] sm:$0xf]
  %v8994 = vld [vmem:[%s6 + $0x38] sm:$0xf]
  %v8995 = vld [vmem:[%s6 + $0x3c] sm:$0xf]
  %v8996 = vld [vmem:[%s6 + $0x40] sm:$0xf]
  %v8997 = vld [vmem:[%s6 + $0x44] sm:$0xf]
  %v8998 = vld [vmem:[%s6 + $0x48] sm:$0xf]
  %v8999 = vld [vmem:[%s6 + $0x4c] sm:$0xf]
  %v9000 = vld [vmem:[%s6 + $0x50] sm:$0xf]
  %v9001 = vld [vmem:[%s6 + $0x54] sm:$0xf]
  %v9002 = vld [vmem:[%s6 + $0x58] sm:$0xf]
  %v9003 = vld [vmem:[%s6 + $0x5c] sm:$0xf]
  %v9004 = vld [vmem:[%s6 + $0x60] sm:$0xf]
  %v9005 = vld [vmem:[%s6 + $0x64] sm:$0xf]
  %v9006 = vld [vmem:[%s6 + $0x68] sm:$0xf]
  %v9007 = vld [vmem:[%s6 + $0x6c] sm:$0xf]
  %v9008 = vld [vmem:[%s6 + $0x70] sm:$0xf]
  %v9009 = vld [vmem:[%s6 + $0x74] sm:$0xf]
  %v9010 = vld [vmem:[%s6 + $0x78] sm:$0xf]
  %v9011 = vld [vmem:[%s6 + $0x7c] sm:$0xf]
  %v9012 = vld [vmem:[%s6 + $0x80] sm:$0xf]
  %v9013 = vld [vmem:[%s6 + $0x84] sm:$0xf]
  %v9014 = vld [vmem:[%s6 + $0x88] sm:$0xf]
  %v9015 = vld [vmem:[%s6 + $0x8c] sm:$0xf]
  %v9016 = vld [vmem:[%s6 + $0x90] sm:$0xf]
  %v9017 = vld [vmem:[%s6 + $0x94] sm:$0xf]
  %v9018 = vld [vmem:[%s6 + $0x98] sm:$0xf]
  %v9019 = vld [vmem:[%s6 + $0x9c] sm:$0xf]
  %v9020 = vld [vmem:[%s6 + $0xa0] sm:$0xf]
  %v9021 = vld [vmem:[%s6 + $0xa4] sm:$0xf]
  %v9022 = vld [vmem:[%s6 + $0xa8] sm:$0xf]
  %v9023 = vld [vmem:[%s6 + $0xac] sm:$0xf]
  %v9024 = vld [vmem:[%s6 + $0xb0] sm:$0xf]
  %v9025 = vld [vmem:[%s6 + $0xb4] sm:$0xf]
  %v9026 = vld [vmem:[%s6 + $0xb8] sm:$0xf]
  %v9027 = vld [vmem:[%s6 + $0xbc] sm:$0xf]
  %v9028 = vld [vmem:[%s6 + $0xc0] sm:$0xf]
  %v9029 = vld [vmem:[%s6 + $0xc4] sm:$0xf]
  %v9030 = vld [vmem:[%s6 + $0xc8] sm:$0xf]
  %v9031 = vld [vmem:[%s6 + $0xcc] sm:$0xf]
  %v9032 = vld [vmem:[%s6 + $0xd0] sm:$0xf]
  %v9033 = vld [vmem:[%s6 + $0xd4] sm:$0xf]
  %v9034 = vld [vmem:[%s6 + $0xd8] sm:$0xf]
  %v9035 = vld [vmem:[%s6 + $0xdc] sm:$0xf]
  %v9036 = vld [vmem:[%s6 + $0xe0] sm:$0xf]
  %v9037 = vld [vmem:[%s6 + $0xe4] sm:$0xf]
  %v9038 = vld [vmem:[%s6 + $0xe8] sm:$0xf]
  %v9039 = vld [vmem:[%s6 + $0xec] sm:$0xf]
  %v9040 = vld [vmem:[%s6 + $0xf0] sm:$0xf]
  %v9041 = vld [vmem:[%s6 + $0xf4] sm:$0xf]
  %v9042 = vld [vmem:[%s6 + $0xf8] sm:$0xf]
  %v9043 = vld [vmem:[%s6 + $0xfc] sm:$0xf]
  %v9044 = vld [vmem:[%s6 + $0x100] sm:$0xf]
  %v9045 = vld [vmem:[%s6 + $0x104] sm:$0xf]
  %v9046 = vld [vmem:[%s6 + $0x108] sm:$0xf]
  %v9047 = vld [vmem:[%s6 + $0x10c] sm:$0xf]
  %v9048 = vld [vmem:[%s6 + $0x110] sm:$0xf]
  %v9049 = vld [vmem:[%s6 + $0x114] sm:$0xf]
  %v9050 = vld [vmem:[%s6 + $0x118] sm:$0xf]
  %v9051 = vld [vmem:[%s6 + $0x11c] sm:$0xf]
  %v9052 = vld [vmem:[%s7] sm:$0x1]
  %v9054 = vlaneseq
  %v9055 = vshrl.u32 %v9054, 7
  %v9056 = vsub.s32 0, %v9055
  %v9057 = vrot.slane %v9052, %v9056
  %v9131 = vunpack.c.l.b16 %v8980
  %v9132 = vunpack.c.l.b16 %v8981
  %v9133 = vunpack.c.l.b16 %v8982
  %v9134 = vunpack.c.l.b16 %v8983
  %v9135 = vunpack.c.l.b16 %v8984
  %v9136 = vunpack.c.l.b16 %v8985
  %v9137 = vunpack.c.l.b16 %v8986
  %v9138 = vunpack.c.l.b16 %v8987
  %v9139 = vunpack.c.l.b16 %v8988
  %v9140 = vunpack.c.l.b16 %v8989
  %v9141 = vunpack.c.l.b16 %v8990
  %v9142 = vunpack.c.l.b16 %v8991
  %v9143 = vunpack.c.l.b16 %v8992
  %v9144 = vunpack.c.l.b16 %v8993
  %v9145 = vunpack.c.l.b16 %v8994
  %v9146 = vunpack.c.l.b16 %v8995
  %v9147 = vunpack.c.l.b16 %v8996
  %v9148 = vunpack.c.l.b16 %v8997
  %v9149 = vunpack.c.l.b16 %v8998
  %v9150 = vunpack.c.l.b16 %v8999
  %v9151 = vunpack.c.l.b16 %v9000
  %v9152 = vunpack.c.l.b16 %v9001
  %v9153 = vunpack.c.l.b16 %v9002
  %v9154 = vunpack.c.l.b16 %v9003
  %v9155 = vunpack.c.l.b16 %v9004
  %v9156 = vunpack.c.l.b16 %v9005
  %v9157 = vunpack.c.l.b16 %v9006
  %v9158 = vunpack.c.l.b16 %v9007
  %v9159 = vunpack.c.l.b16 %v9008
  %v9160 = vunpack.c.l.b16 %v9009
  %v9161 = vunpack.c.l.b16 %v9010
  %v9162 = vunpack.c.l.b16 %v9011
  %v9163 = vunpack.c.l.b16 %v9012
  %v9164 = vunpack.c.l.b16 %v9013
  %v9165 = vunpack.c.l.b16 %v9014
  %v9166 = vunpack.c.l.b16 %v9015
  %v9167 = vunpack.c.l.b16 %v9016
  %v9168 = vunpack.c.l.b16 %v9017
  %v9169 = vunpack.c.l.b16 %v9018
  %v9170 = vunpack.c.l.b16 %v9019
  %v9171 = vunpack.c.l.b16 %v9020
  %v9172 = vunpack.c.l.b16 %v9021
  %v9173 = vunpack.c.l.b16 %v9022
  %v9174 = vunpack.c.l.b16 %v9023
  %v9175 = vunpack.c.l.b16 %v9024
  %v9176 = vunpack.c.l.b16 %v9025
  %v9177 = vunpack.c.l.b16 %v9026
  %v9178 = vunpack.c.l.b16 %v9027
  %v9179 = vunpack.c.l.b16 %v9028
  %v9180 = vunpack.c.l.b16 %v9029
  %v9181 = vunpack.c.l.b16 %v9030
  %v9182 = vunpack.c.l.b16 %v9031
  %v9183 = vunpack.c.l.b16 %v9032
  %v9184 = vunpack.c.l.b16 %v9033
  %v9185 = vunpack.c.l.b16 %v9034
  %v9186 = vunpack.c.l.b16 %v9035
  %v9187 = vunpack.c.l.b16 %v9036
  %v9188 = vunpack.c.l.b16 %v9037
  %v9189 = vunpack.c.l.b16 %v9038
  %v9190 = vunpack.c.l.b16 %v9039
  %v9191 = vunpack.c.l.b16 %v9040
  %v9192 = vunpack.c.l.b16 %v9041
  %v9193 = vunpack.c.l.b16 %v9042
  %v9194 = vunpack.c.l.b16 %v9043
  %v9195 = vunpack.c.l.b16 %v9044
  %v9196 = vunpack.c.l.b16 %v9045
  %v9197 = vunpack.c.l.b16 %v9046
  %v9198 = vunpack.c.l.b16 %v9047
  %v9199 = vunpack.c.l.b16 %v9048
  %v9200 = vunpack.c.l.b16 %v9049
  %v9201 = vunpack.c.l.b16 %v9050
  %v9202 = vunpack.c.l.b16 %v9051
  %v9203 = vpack.c.b16 %v9132, %v9131
  %v9204 = vpack.c.b16 %v9134, %v9133
  %v9205 = vpack.c.b16 %v9136, %v9135
  %v9206 = vpack.c.b16 %v9138, %v9137
  %v9207 = vpack.c.b16 %v9140, %v9139
  %v9208 = vpack.c.b16 %v9142, %v9141
  %v9209 = vpack.c.b16 %v9144, %v9143
  %v9210 = vpack.c.b16 %v9146, %v9145
  %v9211 = vpack.c.b16 %v9148, %v9147
  %v9212 = vpack.c.b16 %v9150, %v9149
  %v9213 = vpack.c.b16 %v9152, %v9151
  %v9214 = vpack.c.b16 %v9154, %v9153
  %v9215 = vpack.c.b16 %v9156, %v9155
  %v9216 = vpack.c.b16 %v9158, %v9157
  %v9217 = vpack.c.b16 %v9160, %v9159
  %v9218 = vpack.c.b16 %v9162, %v9161
  %v9219 = vpack.c.b16 %v9164, %v9163
  %v9220 = vpack.c.b16 %v9166, %v9165
  %v9221 = vpack.c.b16 %v9168, %v9167
  %v9222 = vpack.c.b16 %v9170, %v9169
  %v9223 = vpack.c.b16 %v9172, %v9171
  %v9224 = vpack.c.b16 %v9174, %v9173
  %v9225 = vpack.c.b16 %v9176, %v9175
  %v9226 = vpack.c.b16 %v9178, %v9177
  %v9227 = vpack.c.b16 %v9180, %v9179
  %v9228 = vpack.c.b16 %v9182, %v9181
  %v9229 = vpack.c.b16 %v9184, %v9183
  %v9230 = vpack.c.b16 %v9186, %v9185
  %v9231 = vpack.c.b16 %v9188, %v9187
  %v9232 = vpack.c.b16 %v9190, %v9189
  %v9233 = vpack.c.b16 %v9192, %v9191
  %v9234 = vpack.c.b16 %v9194, %v9193
  %v9235 = vpack.c.b16 %v9196, %v9195
  %v9236 = vpack.c.b16 %v9198, %v9197
  %v9237 = vpack.c.b16 %v9200, %v9199
  %v9238 = vpack.c.b16 %v9202, %v9201
  %v9276 = vsel %vm4427, %v8918, 0
  %v9279 = vsel %vm4427, %v8923, 0
  %v9282 = vsel %vm4427, %v8927, 0
  %v9285 = vsel %vm4427, %v8931, 0
  %v9288 = vsel %vm4427, %v8935, 0
  %v9291 = vsel %vm4427, %v8939, 0
  %v9294 = vsel %vm4427, %v8943, 0
  %v9297 = vsel %vm4427, %v8947, 0
  %v9300 = vsel %vm4427, %v8951, 0
  %v9303 = vsel %vm4427, %v8955, 0
  %v9306 = vsel %vm4427, %v8959, 0
  %v9309 = vsel %vm4427, %v8963, 0
  %v9312 = vsel %vm4427, %v8967, 0
  %v9315 = vsel %vm4427, %v8971, 0
  %v9318 = vsel %vm4427, %v8975, 0
  %v9321 = vsel %vm4427, %v8979, 0
  %9323 = vmatprep.subr.bf16.mxu0 0
  %9324 = vmatpush1.bf16.msra.mxu0 %v9203
  %9325 = vmatprep.subr.bf16.mxu0 0
  %9326 = vmatpush1.bf16.msra.mxu0 %v9204
  %9327 = vmatprep.subr.bf16.mxu0 0
  %9328 = vmatpush1.bf16.msra.mxu0 %v9205
  %9329 = vmatprep.subr.bf16.mxu0 0
  %9330 = vmatpush1.bf16.msra.mxu0 %v9206
  %9331 = vmatprep.subr.bf16.mxu0 0
  %9332 = vmatpush1.bf16.msra.mxu0 %v9207
  %9333 = vmatprep.subr.bf16.mxu0 0
  %9334 = vmatpush1.bf16.msra.mxu0 %v9208
  %9335 = vmatprep.subr.bf16.mxu0 0
  %9336 = vmatpush1.bf16.msra.mxu0 %v9209
  %9337 = vmatprep.subr.bf16.mxu0 0
  %9338 = vmatpush1.bf16.msra.mxu0 %v9210
  %9339 = vmatprep.subr.bf16.mxu0 0
  %9340 = vmatpush1.bf16.msra.mxu0 %v9211
  %9341 = vmatprep.subr.bf16.mxu0 0
  %9342 = vmatpush1.bf16.msra.mxu0 %v9212
  %9343 = vmatprep.subr.bf16.mxu0 0
  %9344 = vmatpush1.bf16.msra.mxu0 %v9213
  %9345 = vmatprep.subr.bf16.mxu0 0
  %9346 = vmatpush1.bf16.msra.mxu0 %v9214
  %9347 = vmatprep.subr.bf16.mxu0 0
  %9348 = vmatpush1.bf16.msra.mxu0 %v9215
  %9349 = vmatprep.subr.bf16.mxu0 0
  %9350 = vmatpush1.bf16.msra.mxu0 %v9216
  %9351 = vmatprep.subr.bf16.mxu0 0
  %9352 = vmatpush1.bf16.msra.mxu0 %v9217
  %9353 = vmatprep.subr.bf16.mxu0 0
  %9354 = vmatpush1.bf16.msra.mxu0 %v9218
  %9355 = vmatprep.mubr.bf16.mxu0 %v8915
  %9356 = vmatmul.mubr.bf16.gmra.mrb[0].mxu0 %v8914
  %v9357 = vpop.f32.mrb[0].mxu0
  %v9358 = vadd.f32 %v9057, %v9357
  %v9359 = vpop.f32.mrb[0].mxu0
  %v9360 = vpop.f32.mrb[0].mxu0
  %v9361 = vadd.f32 %v9057, %v9360
  %v9362 = vpop.f32.mrb[0].mxu0
  %9363 = vmatprep.mubr.bf16.mxu0 %v8920
  %9364 = vmatmul.mubr.bf16.gmra.mrb[0].mxu0 %v8919
  %v9365 = vpop.f32.mrb[0].mxu0
  %v9366 = vadd.f32 %v9057, %v9365
  %v9367 = vpop.f32.mrb[0].mxu0
  %v9368 = vpop.f32.mrb[0].mxu0
  %v9369 = vadd.f32 %v9057, %v9368
  %v9370 = vpop.f32.mrb[0].mxu0
  %9371 = vmatprep.mubr.bf16.mxu0 %v8924
  %9372 = vmatmul.mubr.bf16.gmra.mrb[0].mxu0 %v8917
  %v9373 = vpop.f32.mrb[0].mxu0
  %v9374 = vadd.f32 %v9057, %v9373
  %v9375 = vpop.f32.mrb[0].mxu0
  %v9376 = vpop.f32.mrb[0].mxu0
  %v9377 = vadd.f32 %v9057, %v9376
  %v9378 = vpop.f32.mrb[0].mxu0
  %9379 = vmatprep.mubr.bf16.mxu0 %v8928
  %9380 = vmatmul.mubr.bf16.gmra.mrb[0].mxu0 %v8922
  %v9381 = vpop.f32.mrb[0].mxu0
  %v9382 = vadd.f32 %v9057, %v9381
  %v9383 = vpop.f32.mrb[0].mxu0
  %v9384 = vpop.f32.mrb[0].mxu0
  %v9385 = vadd.f32 %v9057, %v9384
  %v9386 = vpop.f32.mrb[0].mxu0
  %9387 = vmatprep.mubr.bf16.mxu0 %v8932
  %9388 = vmatmul.mubr.bf16.gmra.mrb[0].mxu0 %v8926
  %v9389 = vpop.f32.mrb[0].mxu0
  %v9390 = vadd.f32 %v9057, %v9389
  %v9391 = vpop.f32.mrb[0].mxu0
  %v9392 = vpop.f32.mrb[0].mxu0
  %v9393 = vadd.f32 %v9057, %v9392
  %v9394 = vpop.f32.mrb[0].mxu0
  %9395 = vmatprep.mubr.bf16.mxu0 %v8936
  %9396 = vmatmul.mubr.bf16.gmra.mrb[0].mxu0 %v8930
  %v9397 = vpop.f32.mrb[0].mxu0
  %v9398 = vadd.f32 %v9057, %v9397
  %v9399 = vpop.f32.mrb[0].mxu0
  %v9400 = vpop.f32.mrb[0].mxu0
  %v9401 = vadd.f32 %v9057, %v9400
  %v9402 = vpop.f32.mrb[0].mxu0
  %9403 = vmatprep.mubr.bf16.mxu0 %v8940
  %9404 = vmatmul.mubr.bf16.gmra.mrb[0].mxu0 %v8934
  %v9405 = vpop.f32.mrb[0].mxu0
  %v9406 = vadd.f32 %v9057, %v9405
  %v9407 = vpop.f32.mrb[0].mxu0
  %v9408 = vpop.f32.mrb[0].mxu0
  %v9409 = vadd.f32 %v9057, %v9408
  %v9410 = vpop.f32.mrb[0].mxu0
  %9411 = vmatprep.mubr.bf16.mxu0 %v8944
  %9412 = vmatmul.mubr.bf16.gmra.mrb[0].mxu0 %v8938
  %v9413 = vpop.f32.mrb[0].mxu0
  %v9414 = vadd.f32 %v9057, %v9413
  %v9415 = vpop.f32.mrb[0].mxu0
  %v9416 = vpop.f32.mrb[0].mxu0
  %v9417 = vadd.f32 %v9057, %v9416
  %v9418 = vpop.f32.mrb[0].mxu0
  %9419 = vmatprep.mubr.bf16.mxu0 %v8948
  %9420 = vmatmul.mubr.bf16.gmra.mrb[0].mxu0 %v8942
  %v9421 = vpop.f32.mrb[0].mxu0
  %v9422 = vadd.f32 %v9057, %v9421
  %v9423 = vpop.f32.mrb[0].mxu0
  %v9424 = vpop.f32.mrb[0].mxu0
  %v9425 = vadd.f32 %v9057, %v9424
  %v9426 = vpop.f32.mrb[0].mxu0
  %9427 = vmatprep.mubr.bf16.mxu0 %v8952
  %9428 = vmatmul.mubr.bf16.gmra.mrb[0].mxu0 %v8946
  %v9429 = vpop.f32.mrb[0].mxu0
  %v9430 = vadd.f32 %v9057, %v9429
  %v9431 = vpop.f32.mrb[0].mxu0
  %v9432 = vpop.f32.mrb[0].mxu0
  %v9433 = vadd.f32 %v9057, %v9432
  %v9434 = vpop.f32.mrb[0].mxu0
  %9435 = vmatprep.mubr.bf16.mxu0 %v8956
  %9436 = vmatmul.mubr.bf16.gmra.mrb[0].mxu0 %v8950
  %v9437 = vpop.f32.mrb[0].mxu0
  %v9438 = vadd.f32 %v9057, %v9437
  %v9439 = vpop.f32.mrb[0].mxu0
  %v9440 = vpop.f32.mrb[0].mxu0
  %v9441 = vadd.f32 %v9057, %v9440
  %v9442 = vpop.f32.mrb[0].mxu0
  %9443 = vmatprep.mubr.bf16.mxu0 %v8960
  %9444 = vmatmul.mubr.bf16.gmra.mrb[0].mxu0 %v8954
  %v9445 = vpop.f32.mrb[0].mxu0
  %v9446 = vadd.f32 %v9057, %v9445
  %v9447 = vpop.f32.mrb[0].mxu0
  %v9448 = vpop.f32.mrb[0].mxu0
  %v9449 = vadd.f32 %v9057, %v9448
  %v9450 = vpop.f32.mrb[0].mxu0
  %9451 = vmatprep.mubr.bf16.mxu0 %v8964
  %9452 = vmatmul.mubr.bf16.gmra.mrb[0].mxu0 %v8958
  %v9453 = vpop.f32.mrb[0].mxu0
  %v9454 = vadd.f32 %v9057, %v9453
  %v9455 = vpop.f32.mrb[0].mxu0
  %v9456 = vpop.f32.mrb[0].mxu0
  %v9457 = vadd.f32 %v9057, %v9456
  %v9458 = vpop.f32.mrb[0].mxu0
  %9459 = vmatprep.mubr.bf16.mxu0 %v8968
  %9460 = vmatmul.mubr.bf16.gmra.mrb[0].mxu0 %v8962
  %v9461 = vpop.f32.mrb[0].mxu0
  %v9462 = vadd.f32 %v9057, %v9461
  %v9463 = vpop.f32.mrb[0].mxu0
  %v9464 = vpop.f32.mrb[0].mxu0
  %v9465 = vadd.f32 %v9057, %v9464
  %v9466 = vpop.f32.mrb[0].mxu0
  %9467 = vmatprep.mubr.bf16.mxu0 %v8972
  %9468 = vmatmul.mubr.bf16.gmra.mrb[0].mxu0 %v8966
  %v9469 = vpop.f32.mrb[0].mxu0
  %v9470 = vadd.f32 %v9057, %v9469
  %v9471 = vpop.f32.mrb[0].mxu0
  %v9472 = vpop.f32.mrb[0].mxu0
  %v9473 = vadd.f32 %v9057, %v9472
  %v9474 = vpop.f32.mrb[0].mxu0
  %9475 = vmatprep.mubr.bf16.mxu0 %v8976
  %9476 = vmatmul.mubr.bf16.gmra.mrb[0].mxu0 %v8970
  %v9477 = vpop.f32.mrb[0].mxu0
  %v9478 = vadd.f32 %v9057, %v9477
  %v9479 = vpop.f32.mrb[0].mxu0
  %v9480 = vpop.f32.mrb[0].mxu0
  %v9481 = vadd.f32 %v9057, %v9480
  %v9482 = vpop.f32.mrb[0].mxu0
  %9483 = vdwg.mxu0
  %9484 = vmatprep.subr.bf16.mxu0 0
  %9485 = vmatpush1.bf16.msra.mxu0 %v9219
  %9486 = vmatprep.subr.bf16.mxu0 0
  %9487 = vmatpush1.bf16.msra.mxu0 %v9220
  %9488 = vmatprep.subr.bf16.mxu0 0
  %9489 = vmatpush1.bf16.msra.mxu0 %v9221
  %9490 = vmatprep.subr.bf16.mxu0 0
  %9491 = vmatpush1.bf16.msra.mxu0 %v9222
  %9492 = vmatprep.subr.bf16.mxu0 0
  %9493 = vmatpush1.bf16.msra.mxu0 %v9223
  %9494 = vmatprep.subr.bf16.mxu0 0
  %9495 = vmatpush1.bf16.msra.mxu0 %v9224
  %9496 = vmatprep.subr.bf16.mxu0 0
  %9497 = vmatpush1.bf16.msra.mxu0 %v9225
  %9498 = vmatprep.subr.bf16.mxu0 0
  %9499 = vmatpush1.bf16.msra.mxu0 %v9226
  %9500 = vmatprep.subr.bf16.mxu0 0
  %9501 = vmatpush1.bf16.msra.mxu0 %v9227
  %9502 = vmatprep.subr.bf16.mxu0 0
  %9503 = vmatpush1.bf16.msra.mxu0 %v9228
  %9504 = vmatprep.subr.bf16.mxu0 0
  %9505 = vmatpush1.bf16.msra.mxu0 %v9229
  %9506 = vmatprep.subr.bf16.mxu0 0
  %9507 = vmatpush1.bf16.msra.mxu0 %v9230
  %9508 = vmatprep.subr.bf16.mxu0 0
  %9509 = vmatpush1.bf16.msra.mxu0 %v9231
  %9510 = vmatprep.subr.bf16.mxu0 0
  %9511 = vmatpush1.bf16.msra.mxu0 %v9232
  %9512 = vmatprep.subr.bf16.mxu0 0
  %9513 = vmatpush1.bf16.msra.mxu0 %v9233
  %9514 = vmatprep.subr.bf16.mxu0 0
  %9515 = vmatpush1.bf16.msra.mxu0 %v9234
  %9516 = vmatprep.mubr.bf16.mxu0 %v8917
  %9517 = vmatmul.mubr.bf16.gmra.mrb[0].mxu0 %v8916
  %v9518 = vpop.f32.mrb[0].mxu0
  %v9519 = vadd.f32 %v9358, %v9518
  %v9520 = vpop.f32.mrb[0].mxu0
  %v9521 = vpop.f32.mrb[0].mxu0
  %v9522 = vadd.f32 %v9361, %v9521
  %v9523 = vpop.f32.mrb[0].mxu0
  %9524 = vmatprep.mubr.bf16.mxu0 %v8922
  %9525 = vmatmul.mubr.bf16.gmra.mrb[0].mxu0 %v8921
  %v9526 = vpop.f32.mrb[0].mxu0
  %v9527 = vadd.f32 %v9366, %v9526
  %v9528 = vpop.f32.mrb[0].mxu0
  %v9529 = vpop.f32.mrb[0].mxu0
  %v9530 = vadd.f32 %v9369, %v9529
  %v9531 = vpop.f32.mrb[0].mxu0
  %9532 = vmatprep.mubr.bf16.mxu0 %v8926
  %9533 = vmatmul.mubr.bf16.gmra.mrb[0].mxu0 %v8925
  %v9534 = vpop.f32.mrb[0].mxu0
  %v9535 = vadd.f32 %v9374, %v9534
  %v9536 = vpop.f32.mrb[0].mxu0
  %v9537 = vpop.f32.mrb[0].mxu0
  %v9538 = vadd.f32 %v9377, %v9537
  %v9539 = vpop.f32.mrb[0].mxu0
  %9540 = vmatprep.mubr.bf16.mxu0 %v8930
  %9541 = vmatmul.mubr.bf16.gmra.mrb[0].mxu0 %v8929
  %v9542 = vpop.f32.mrb[0].mxu0
  %v9543 = vadd.f32 %v9382, %v9542
  %v9544 = vpop.f32.mrb[0].mxu0
  %v9545 = vpop.f32.mrb[0].mxu0
  %v9546 = vadd.f32 %v9385, %v9545
  %v9547 = vpop.f32.mrb[0].mxu0
  %9548 = vmatprep.mubr.bf16.mxu0 %v8934
  %9549 = vmatmul.mubr.bf16.gmra.mrb[0].mxu0 %v8933
  %v9550 = vpop.f32.mrb[0].mxu0
  %v9551 = vadd.f32 %v9390, %v9550
  %v9552 = vpop.f32.mrb[0].mxu0
  %v9553 = vpop.f32.mrb[0].mxu0
  %v9554 = vadd.f32 %v9393, %v9553
  %v9555 = vpop.f32.mrb[0].mxu0
  %9556 = vmatprep.mubr.bf16.mxu0 %v8938
  %9557 = vmatmul.mubr.bf16.gmra.mrb[0].mxu0 %v8937
  %v9558 = vpop.f32.mrb[0].mxu0
  %v9559 = vadd.f32 %v9398, %v9558
  %v9560 = vpop.f32.mrb[0].mxu0
  %v9561 = vpop.f32.mrb[0].mxu0
  %v9562 = vadd.f32 %v9401, %v9561
  %v9563 = vpop.f32.mrb[0].mxu0
  %9564 = vmatprep.mubr.bf16.mxu0 %v8942
  %9565 = vmatmul.mubr.bf16.gmra.mrb[0].mxu0 %v8941
  %v9566 = vpop.f32.mrb[0].mxu0
  %v9567 = vadd.f32 %v9406, %v9566
  %v9568 = vpop.f32.mrb[0].mxu0
  %v9569 = vpop.f32.mrb[0].mxu0
  %v9570 = vadd.f32 %v9409, %v9569
  %v9571 = vpop.f32.mrb[0].mxu0
  %9572 = vmatprep.mubr.bf16.mxu0 %v8946
  %9573 = vmatmul.mubr.bf16.gmra.mrb[0].mxu0 %v8945
  %v9574 = vpop.f32.mrb[0].mxu0
  %v9575 = vadd.f32 %v9414, %v9574
  %v9576 = vpop.f32.mrb[0].mxu0
  %v9577 = vpop.f32.mrb[0].mxu0
  %v9578 = vadd.f32 %v9417, %v9577
  %v9579 = vpop.f32.mrb[0].mxu0
  %9580 = vmatprep.mubr.bf16.mxu0 %v8950
  %9581 = vmatmul.mubr.bf16.gmra.mrb[0].mxu0 %v8949
  %v9582 = vpop.f32.mrb[0].mxu0
  %v9583 = vadd.f32 %v9422, %v9582
  %v9584 = vpop.f32.mrb[0].mxu0
  %v9585 = vpop.f32.mrb[0].mxu0
  %v9586 = vadd.f32 %v9425, %v9585
  %v9587 = vpop.f32.mrb[0].mxu0
  %9588 = vmatprep.mubr.bf16.mxu0 %v8954
  %9589 = vmatmul.mubr.bf16.gmra.mrb[0].mxu0 %v8953
  %v9590 = vpop.f32.mrb[0].mxu0
  %v9591 = vadd.f32 %v9430, %v9590
  %v9592 = vpop.f32.mrb[0].mxu0
  %v9593 = vpop.f32.mrb[0].mxu0
  %v9594 = vadd.f32 %v9433, %v9593
  %v9595 = vpop.f32.mrb[0].mxu0
  %9596 = vmatprep.mubr.bf16.mxu0 %v8958
  %9597 = vmatmul.mubr.bf16.gmra.mrb[0].mxu0 %v8957
  %v9598 = vpop.f32.mrb[0].mxu0
  %v9599 = vadd.f32 %v9438, %v9598
  %v9600 = vpop.f32.mrb[0].mxu0
  %v9601 = vpop.f32.mrb[0].mxu0
  %v9602 = vadd.f32 %v9441, %v9601
  %v9603 = vpop.f32.mrb[0].mxu0
  %9604 = vmatprep.mubr.bf16.mxu0 %v8962
  %9605 = vmatmul.mubr.bf16.gmra.mrb[0].mxu0 %v8961
  %v9606 = vpop.f32.mrb[0].mxu0
  %v9607 = vadd.f32 %v9446, %v9606
  %v9608 = vpop.f32.mrb[0].mxu0
  %v9609 = vpop.f32.mrb[0].mxu0
  %v9610 = vadd.f32 %v9449, %v9609
  %v9611 = vpop.f32.mrb[0].mxu0
  %9612 = vmatprep.mubr.bf16.mxu0 %v8966
  %9613 = vmatmul.mubr.bf16.gmra.mrb[0].mxu0 %v8965
  %v9614 = vpop.f32.mrb[0].mxu0
  %v9615 = vadd.f32 %v9454, %v9614
  %v9616 = vpop.f32.mrb[0].mxu0
  %v9617 = vpop.f32.mrb[0].mxu0
  %v9618 = vadd.f32 %v9457, %v9617
  %v9619 = vpop.f32.mrb[0].mxu0
  %9620 = vmatprep.mubr.bf16.mxu0 %v8970
  %9621 = vmatmul.mubr.bf16.gmra.mrb[0].mxu0 %v8969
  %v9622 = vpop.f32.mrb[0].mxu0
  %v9623 = vadd.f32 %v9462, %v9622
  %v9624 = vpop.f32.mrb[0].mxu0
  %v9625 = vpop.f32.mrb[0].mxu0
  %v9626 = vadd.f32 %v9465, %v9625
  %v9627 = vpop.f32.mrb[0].mxu0
  %9628 = vmatprep.mubr.bf16.mxu0 %v8974
  %9629 = vmatmul.mubr.bf16.gmra.mrb[0].mxu0 %v8973
  %v9630 = vpop.f32.mrb[0].mxu0
  %v9631 = vadd.f32 %v9470, %v9630
  %v9632 = vpop.f32.mrb[0].mxu0
  %v9633 = vpop.f32.mrb[0].mxu0
  %v9634 = vadd.f32 %v9473, %v9633
  %v9635 = vpop.f32.mrb[0].mxu0
  %9636 = vmatprep.mubr.bf16.mxu0 %v8978
  %9637 = vmatmul.mubr.bf16.gmra.mrb[0].mxu0 %v8977
  %v9638 = vpop.f32.mrb[0].mxu0
  %v9639 = vadd.f32 %v9478, %v9638
  %v9640 = vpop.f32.mrb[0].mxu0
  %v9641 = vpop.f32.mrb[0].mxu0
  %v9642 = vadd.f32 %v9481, %v9641
  %v9643 = vpop.f32.mrb[0].mxu0
  %9644 = vdwg.mxu0
  %9645 = vmatprep.subr.bf16.mxu0 0
  %9646 = vmatpush1.bf16.msra.mxu0 %v9235
  %9647 = vmatprep.subr.bf16.mxu0 0
  %9648 = vmatpush1.bf16.msra.mxu0 %v9236
  %9649 = vmatprep.subr.bf16.mxu0 0
  %9650 = vmatpush1.bf16.msra.mxu0 %v9237
  %9651 = vmatprep.subr.bf16.mxu0 0
  %9652 = vmatpush1.bf16.msra.mxu0 %v9238
  %9653 = vmatprep.subr.bf16.mxu0 0
  %9654 = vmatpush1.bf16.msra.mxu0 0
  %9655 = vmatprep.subr.bf16.mxu0 0
  %9656 = vmatpush1.bf16.msra.mxu0 0
  %9657 = vmatprep.subr.bf16.mxu0 0
  %9658 = vmatpush1.bf16.msra.mxu0 0
  %9659 = vmatprep.subr.bf16.mxu0 0
  %9660 = vmatpush1.bf16.msra.mxu0 0
  %9661 = vmatprep.subr.bf16.mxu0 0
  %9662 = vmatpush1.bf16.msra.mxu0 0
  %9663 = vmatprep.subr.bf16.mxu0 0
  %9664 = vmatpush1.bf16.msra.mxu0 0
  %9665 = vmatprep.subr.bf16.mxu0 0
  %9666 = vmatpush1.bf16.msra.mxu0 0
  %9667 = vmatprep.subr.bf16.mxu0 0
  %9668 = vmatpush1.bf16.msra.mxu0 0
  %9669 = vmatprep.subr.bf16.mxu0 0
  %9670 = vmatpush1.bf16.msra.mxu0 0
  %9671 = vmatprep.subr.bf16.mxu0 0
  %9672 = vmatpush1.bf16.msra.mxu0 0
  %9673 = vmatprep.subr.bf16.mxu0 0
  %9674 = vmatpush1.bf16.msra.mxu0 0
  %9675 = vmatprep.subr.bf16.mxu0 0
  %9676 = vmatpush1.bf16.msra.mxu0 0
  %9677 = vmatprep.mubr.bf16.mxu0 0
  %9678 = vmatmul.mubr.bf16.gmra.mrb[0].mxu0 %v9276
  %v9679 = vpop.f32.mrb[0].mxu0
  %v9680 = vadd.f32 %v9519, %v9679
  %v9681 = vpop.f32.mrb[0].mxu0
  %v9682 = vpop.f32.mrb[0].mxu0
  %v9683 = vadd.f32 %v9522, %v9682
  %v9684 = vpop.f32.mrb[0].mxu0
  %9685 = vmatprep.mubr.bf16.mxu0 0
  %9686 = vmatmul.mubr.bf16.gmra.mrb[0].mxu0 %v9279
  %v9687 = vpop.f32.mrb[0].mxu0
  %v9688 = vadd.f32 %v9527, %v9687
  %v9689 = vpop.f32.mrb[0].mxu0
  %v9690 = vpop.f32.mrb[0].mxu0
  %v9691 = vadd.f32 %v9530, %v9690
  %v9692 = vpop.f32.mrb[0].mxu0
  %9693 = vmatprep.mubr.bf16.mxu0 0
  %9694 = vmatmul.mubr.bf16.gmra.mrb[0].mxu0 %v9282
  %v9695 = vpop.f32.mrb[0].mxu0
  %v9696 = vadd.f32 %v9535, %v9695
  %v9697 = vpop.f32.mrb[0].mxu0
  %v9698 = vpop.f32.mrb[0].mxu0
  %v9699 = vadd.f32 %v9538, %v9698
  %v9700 = vpop.f32.mrb[0].mxu0
  %9701 = vmatprep.mubr.bf16.mxu0 0
  %9702 = vmatmul.mubr.bf16.gmra.mrb[0].mxu0 %v9285
  %v9703 = vpop.f32.mrb[0].mxu0
  %v9704 = vadd.f32 %v9543, %v9703
  %v9705 = vpop.f32.mrb[0].mxu0
  %v9706 = vpop.f32.mrb[0].mxu0
  %v9707 = vadd.f32 %v9546, %v9706
  %v9708 = vpop.f32.mrb[0].mxu0
  %9709 = vmatprep.mubr.bf16.mxu0 0
  %9710 = vmatmul.mubr.bf16.gmra.mrb[0].mxu0 %v9288
  %v9711 = vpop.f32.mrb[0].mxu0
  %v9712 = vadd.f32 %v9551, %v9711
  %v9713 = vpop.f32.mrb[0].mxu0
  %v9714 = vpop.f32.mrb[0].mxu0
  %v9715 = vadd.f32 %v9554, %v9714
  %v9716 = vpop.f32.mrb[0].mxu0
  %9717 = vmatprep.mubr.bf16.mxu0 0
  %9718 = vmatmul.mubr.bf16.gmra.mrb[0].mxu0 %v9291
  %v9719 = vpop.f32.mrb[0].mxu0
  %v9720 = vadd.f32 %v9559, %v9719
  %v9721 = vpop.f32.mrb[0].mxu0
  %v9722 = vpop.f32.mrb[0].mxu0
  %v9723 = vadd.f32 %v9562, %v9722
  %v9724 = vpop.f32.mrb[0].mxu0
  %9725 = vmatprep.mubr.bf16.mxu0 0
  %9726 = vmatmul.mubr.bf16.gmra.mrb[0].mxu0 %v9294
  %v9727 = vpop.f32.mrb[0].mxu0
  %v9728 = vadd.f32 %v9567, %v9727
  %v9729 = vpop.f32.mrb[0].mxu0
  %v9730 = vpop.f32.mrb[0].mxu0
  %v9731 = vadd.f32 %v9570, %v9730
  %v9732 = vpop.f32.mrb[0].mxu0
  %9733 = vmatprep.mubr.bf16.mxu0 0
  %9734 = vmatmul.mubr.bf16.gmra.mrb[0].mxu0 %v9297
  %v9735 = vpop.f32.mrb[0].mxu0
  %v9736 = vadd.f32 %v9575, %v9735
  %v9737 = vpop.f32.mrb[0].mxu0
  %v9738 = vpop.f32.mrb[0].mxu0
  %v9739 = vadd.f32 %v9578, %v9738
  %v9740 = vpop.f32.mrb[0].mxu0
  %9741 = vmatprep.mubr.bf16.mxu0 0
  %9742 = vmatmul.mubr.bf16.gmra.mrb[0].mxu0 %v9300
  %v9743 = vpop.f32.mrb[0].mxu0
  %v9744 = vadd.f32 %v9583, %v9743
  %v9745 = vpop.f32.mrb[0].mxu0
  %v9746 = vpop.f32.mrb[0].mxu0
  %v9747 = vadd.f32 %v9586, %v9746
  %v9748 = vpop.f32.mrb[0].mxu0
  %9749 = vmatprep.mubr.bf16.mxu0 0
  %9750 = vmatmul.mubr.bf16.gmra.mrb[0].mxu0 %v9303
  %v9751 = vpop.f32.mrb[0].mxu0
  %v9752 = vadd.f32 %v9591, %v9751
  %v9753 = vpop.f32.mrb[0].mxu0
  %v9754 = vpop.f32.mrb[0].mxu0
  %v9755 = vadd.f32 %v9594, %v9754
  %v9756 = vpop.f32.mrb[0].mxu0
  %9757 = vmatprep.mubr.bf16.mxu0 0
  %9758 = vmatmul.mubr.bf16.gmra.mrb[0].mxu0 %v9306
  %v9759 = vpop.f32.mrb[0].mxu0
  %v9760 = vadd.f32 %v9599, %v9759
  %v9761 = vpop.f32.mrb[0].mxu0
  %v9762 = vpop.f32.mrb[0].mxu0
  %v9763 = vadd.f32 %v9602, %v9762
  %v9764 = vpop.f32.mrb[0].mxu0
  %9765 = vmatprep.mubr.bf16.mxu0 0
  %9766 = vmatmul.mubr.bf16.gmra.mrb[0].mxu0 %v9309
  %v9767 = vpop.f32.mrb[0].mxu0
  %v9768 = vadd.f32 %v9607, %v9767
  %v9769 = vpop.f32.mrb[0].mxu0
  %v9770 = vpop.f32.mrb[0].mxu0
  %v9771 = vadd.f32 %v9610, %v9770
  %v9772 = vpop.f32.mrb[0].mxu0
  %9773 = vmatprep.mubr.bf16.mxu0 0
  %9774 = vmatmul.mubr.bf16.gmra.mrb[0].mxu0 %v9312
  %v9775 = vpop.f32.mrb[0].mxu0
  %v9776 = vadd.f32 %v9615, %v9775
  %v9777 = vpop.f32.mrb[0].mxu0
  %v9778 = vpop.f32.mrb[0].mxu0
  %v9779 = vadd.f32 %v9618, %v9778
  %v9780 = vpop.f32.mrb[0].mxu0
  %9781 = vmatprep.mubr.bf16.mxu0 0
  %9782 = vmatmul.mubr.bf16.gmra.mrb[0].mxu0 %v9315
  %v9783 = vpop.f32.mrb[0].mxu0
  %v9784 = vadd.f32 %v9623, %v9783
  %v9785 = vpop.f32.mrb[0].mxu0
  %v9786 = vpop.f32.mrb[0].mxu0
  %v9787 = vadd.f32 %v9626, %v9786
  %v9788 = vpop.f32.mrb[0].mxu0
  %9789 = vmatprep.mubr.bf16.mxu0 0
  %9790 = vmatmul.mubr.bf16.gmra.mrb[0].mxu0 %v9318
  %v9791 = vpop.f32.mrb[0].mxu0
  %v9792 = vadd.f32 %v9631, %v9791
  %v9793 = vpop.f32.mrb[0].mxu0
  %v9794 = vpop.f32.mrb[0].mxu0
  %v9795 = vadd.f32 %v9634, %v9794
  %v9796 = vpop.f32.mrb[0].mxu0
  %9797 = vmatprep.mubr.bf16.mxu0 0
  %9798 = vmatmul.mubr.bf16.gmra.mrb[0].mxu0 %v9321
  %v9799 = vpop.f32.mrb[0].mxu0
  %v9800 = vadd.f32 %v9639, %v9799
  %v9801 = vpop.f32.mrb[0].mxu0
  %v9802 = vpop.f32.mrb[0].mxu0
  %v9803 = vadd.f32 %v9642, %v9802
  %v9804 = vpop.f32.mrb[0].mxu0
  %9805 = vdwg.mxu0
  %v9806 = vmax.f32 %v9680, 0.0
  %v9807 = vmax.f32 %v9683, 0.0
  %v9808 = vmax.f32 %v9688, 0.0
  %v9809 = vmax.f32 %v9691, 0.0
  %v9810 = vmax.f32 %v9696, 0.0
  %v9811 = vmax.f32 %v9699, 0.0
  %v9812 = vmax.f32 %v9704, 0.0
  %v9813 = vmax.f32 %v9707, 0.0
  %v9814 = vmax.f32 %v9712, 0.0
  %v9815 = vmax.f32 %v9715, 0.0
  %v9816 = vmax.f32 %v9720, 0.0
  %v9817 = vmax.f32 %v9723, 0.0
  %v9818 = vmax.f32 %v9728, 0.0
  %v9819 = vmax.f32 %v9731, 0.0
  %v9820 = vmax.f32 %v9736, 0.0
  %v9821 = vmax.f32 %v9739, 0.0
  %v9822 = vmax.f32 %v9744, 0.0
  %v9823 = vmax.f32 %v9747, 0.0
  %v9824 = vmax.f32 %v9752, 0.0
  %v9825 = vmax.f32 %v9755, 0.0
  %v9826 = vmax.f32 %v9760, 0.0
  %v9827 = vmax.f32 %v9763, 0.0
  %v9828 = vmax.f32 %v9768, 0.0
  %v9829 = vmax.f32 %v9771, 0.0
  %v9830 = vmax.f32 %v9776, 0.0
  %v9831 = vmax.f32 %v9779, 0.0
  %v9832 = vmax.f32 %v9784, 0.0
  %v9833 = vmax.f32 %v9787, 0.0
  %v9834 = vmax.f32 %v9792, 0.0
  %v9835 = vmax.f32 %v9795, 0.0
  %v9836 = vmax.f32 %v9800, 0.0
  %v9837 = vmax.f32 %v9803, 0.0
  %vm9838 = vcmask 261120
  %9839 = vst.msk [vmem:[#allocation5] sm:$0xff] %vm9838, 0.0
  %9840 = vst.msk [vmem:[#allocation5 + $0x8] sm:$0xff] %vm9838, 0.0
  %vm9841 = vcmask 254976
  %9842 = vst.msk [vmem:[#allocation5 + $0x10] sm:$0x3] %vm9841, 0.0
  %9843 = vst.msk [vmem:[#allocation5 + $0x18] sm:$0xff] %vm9838, 0.0
  %9844 = vst.msk [vmem:[#allocation5 + $0x20] sm:$0xff] %vm9838, 0.0
  %9845 = vst.msk [vmem:[#allocation5 + $0x28] sm:$0x3] %vm9841, 0.0
  %9846 = vst.msk [vmem:[#allocation5 + $0x30] sm:$0xff] %vm9838, 0.0
  %9847 = vst.msk [vmem:[#allocation5 + $0x38] sm:$0xff] %vm9838, 0.0
  %9848 = vst.msk [vmem:[#allocation5 + $0x40] sm:$0x3] %vm9841, 0.0
  %9849 = vst.msk [vmem:[#allocation5 + $0x48] sm:$0xff] %vm9838, 0.0
  %9850 = vst.msk [vmem:[#allocation5 + $0x50] sm:$0xff] %vm9838, 0.0
  %9851 = vst.msk [vmem:[#allocation5 + $0x58] sm:$0x3] %vm9841, 0.0
  %9852 = vst.msk [vmem:[#allocation5 + $0x60] sm:$0xff] %vm9838, 0.0
  %9853 = vst.msk [vmem:[#allocation5 + $0x68] sm:$0xff] %vm9838, 0.0
  %9854 = vst.msk [vmem:[#allocation5 + $0x70] sm:$0x3] %vm9841, 0.0
  %9855 = vst.msk [vmem:[#allocation5 + $0x78] sm:$0xff] %vm9838, 0.0
  %9856 = vst.msk [vmem:[#allocation5 + $0x80] sm:$0xff] %vm9838, 0.0
  %9857 = vst.msk [vmem:[#allocation5 + $0x88] sm:$0x3] %vm9841, 0.0
  %9858 = vst.msk [vmem:[#allocation5 + $0x90] sm:$0xff] %vm9838, 0.0
  %9859 = vst.msk [vmem:[#allocation5 + $0x98] sm:$0xff] %vm9838, 0.0
  %9860 = vst.msk [vmem:[#allocation5 + $0xa0] sm:$0x3] %vm9841, 0.0
  %9861 = vst.msk [vmem:[#allocation5 + $0xa8] sm:$0xff] %vm9838, 0.0
  %9862 = vst.msk [vmem:[#allocation5 + $0xb0] sm:$0xff] %vm9838, 0.0
  %9863 = vst.msk [vmem:[#allocation5 + $0xb8] sm:$0x3] %vm9841, 0.0
  %9864 = vst.msk [vmem:[#allocation5 + $0xc0] sm:$0xff] %vm9838, 0.0
  %9865 = vst.msk [vmem:[#allocation5 + $0xc8] sm:$0xff] %vm9838, 0.0
  %9866 = vst.msk [vmem:[#allocation5 + $0xd0] sm:$0x3] %vm9841, 0.0
  %9867 = vst.msk [vmem:[#allocation5 + $0xd8] sm:$0xff] %vm9838, 0.0
  %9868 = vst.msk [vmem:[#allocation5 + $0xe0] sm:$0xff] %vm9838, 0.0
  %9869 = vst.msk [vmem:[#allocation5 + $0xe8] sm:$0x3] %vm9841, 0.0
  %9870 = vst.msk [vmem:[#allocation5 + $0xf0] sm:$0xff] %vm9838, 0.0
  %9871 = vst.msk [vmem:[#allocation5 + $0xf8] sm:$0xff] %vm9838, 0.0
  %9872 = vst.msk [vmem:[#allocation5 + $0x100] sm:$0x3] %vm9841, 0.0
  %9873 = vst.msk [vmem:[#allocation5 + $0x108] sm:$0xff] %vm9838, 0.0
  %9874 = vst.msk [vmem:[#allocation5 + $0x110] sm:$0xff] %vm9838, 0.0
  %9875 = vst.msk [vmem:[#allocation5 + $0x118] sm:$0x3] %vm9841, 0.0
  %9876 = vst.msk [vmem:[#allocation5 + $0x120] sm:$0xff] %vm9838, 0.0
  %9877 = vst.msk [vmem:[#allocation5 + $0x128] sm:$0xff] %vm9838, 0.0
  %9878 = vst.msk [vmem:[#allocation5 + $0x130] sm:$0x3] %vm9841, 0.0
  %9879 = vst.msk [vmem:[#allocation5 + $0x138] sm:$0xff] %vm9838, 0.0
  %9880 = vst.msk [vmem:[#allocation5 + $0x140] sm:$0xff] %vm9838, 0.0
  %9881 = vst.msk [vmem:[#allocation5 + $0x148] sm:$0x3] %vm9841, 0.0
  %9882 = vst.msk [vmem:[#allocation5 + $0x150] sm:$0xff] %vm9838, 0.0
  %9883 = vst.msk [vmem:[#allocation5 + $0x158] sm:$0xff] %vm9838, 0.0
  %9884 = vst.msk [vmem:[#allocation5 + $0x160] sm:$0x3] %vm9841, 0.0
  %9885 = vst.msk [vmem:[#allocation5 + $0x168] sm:$0xff] %vm9838, 0.0
  %9886 = vst.msk [vmem:[#allocation5 + $0x170] sm:$0xff] %vm9838, 0.0
  %9887 = vst.msk [vmem:[#allocation5 + $0x178] sm:$0x3] %vm9841, 0.0
  %9888 = vst.msk [vmem:[#allocation5 + $0x180] sm:$0xff] %vm9838, 0.0
  %9889 = vst.msk [vmem:[#allocation5 + $0x188] sm:$0xff] %vm9838, 0.0
  %9890 = vst.msk [vmem:[#allocation5 + $0x190] sm:$0x3] %vm9841, 0.0
  %9891 = vst.msk [vmem:[#allocation5 + $0x198] sm:$0xff] %vm9838, 0.0
  %9892 = vst.msk [vmem:[#allocation5 + $0x1a0] sm:$0xff] %vm9838, 0.0
  %9893 = vst.msk [vmem:[#allocation5 + $0x1a8] sm:$0x3] %vm9841, 0.0
  %s9894 = scalar_lea.vmem [#allocation5], 24
  %9895 = vst.msk [vmem:[%s9894 + $0x1] sm:$0xff] %vm9838, %v9806
  %9896 = vst.msk [vmem:[%s9894 + $0x9] sm:$0xff] %vm9838, %v9807
  %9897 = vst.msk [vmem:[%s9894 + $0x19] sm:$0xff] %vm9838, %v9808
  %9898 = vst.msk [vmem:[%s9894 + $0x21] sm:$0xff] %vm9838, %v9809
  %9899 = vst.msk [vmem:[%s9894 + $0x31] sm:$0xff] %vm9838, %v9810
  %9900 = vst.msk [vmem:[%s9894 + $0x39] sm:$0xff] %vm9838, %v9811
  %9901 = vst.msk [vmem:[%s9894 + $0x49] sm:$0xff] %vm9838, %v9812
  %9902 = vst.msk [vmem:[%s9894 + $0x51] sm:$0xff] %vm9838, %v9813
  %9903 = vst.msk [vmem:[%s9894 + $0x61] sm:$0xff] %vm9838, %v9814
  %9904 = vst.msk [vmem:[%s9894 + $0x69] sm:$0xff] %vm9838, %v9815
  %9905 = vst.msk [vmem:[%s9894 + $0x79] sm:$0xff] %vm9838, %v9816
  %9906 = vst.msk [vmem:[%s9894 + $0x81] sm:$0xff] %vm9838, %v9817
  %9907 = vst.msk [vmem:[%s9894 + $0x91] sm:$0xff] %vm9838, %v9818
  %9908 = vst.msk [vmem:[%s9894 + $0x99] sm:$0xff] %vm9838, %v9819
  %9909 = vst.msk [vmem:[%s9894 + $0xa9] sm:$0xff] %vm9838, %v9820
  %9910 = vst.msk [vmem:[%s9894 + $0xb1] sm:$0xff] %vm9838, %v9821
  %9911 = vst.msk [vmem:[%s9894 + $0xc1] sm:$0xff] %vm9838, %v9822
  %9912 = vst.msk [vmem:[%s9894 + $0xc9] sm:$0xff] %vm9838, %v9823
  %9913 = vst.msk [vmem:[%s9894 + $0xd9] sm:$0xff] %vm9838, %v9824
  %9914 = vst.msk [vmem:[%s9894 + $0xe1] sm:$0xff] %vm9838, %v9825
  %9915 = vst.msk [vmem:[%s9894 + $0xf1] sm:$0xff] %vm9838, %v9826
  %9916 = vst.msk [vmem:[%s9894 + $0xf9] sm:$0xff] %vm9838, %v9827
  %9917 = vst.msk [vmem:[%s9894 + $0x109] sm:$0xff] %vm9838, %v9828
  %9918 = vst.msk [vmem:[%s9894 + $0x111] sm:$0xff] %vm9838, %v9829
  %9919 = vst.msk [vmem:[%s9894 + $0x121] sm:$0xff] %vm9838, %v9830
  %9920 = vst.msk [vmem:[%s9894 + $0x129] sm:$0xff] %vm9838, %v9831
  %9921 = vst.msk [vmem:[%s9894 + $0x139] sm:$0xff] %vm9838, %v9832
  %9922 = vst.msk [vmem:[%s9894 + $0x141] sm:$0xff] %vm9838, %v9833
  %9923 = vst.msk [vmem:[%s9894 + $0x151] sm:$0xff] %vm9838, %v9834
  %9924 = vst.msk [vmem:[%s9894 + $0x159] sm:$0xff] %vm9838, %v9835
  %9925 = vst.msk [vmem:[%s9894 + $0x169] sm:$0xff] %vm9838, %v9836
  %9926 = vst.msk [vmem:[%s9894 + $0x171] sm:$0xff] %vm9838, %v9837
  %v9927 = vld [vmem:[#allocation5] sm:$0xff]
  %v9928 = vld [vmem:[#allocation5 + $0x8] sm:$0xff]
  %v9929 = vld [vmem:[#allocation5 + $0x10] sm:$0x3]
  %v9930 = vld [vmem:[#allocation5 + $0x18] sm:$0xff]
  %v9931 = vld [vmem:[#allocation5 + $0x20] sm:$0xff]
  %v9932 = vld [vmem:[#allocation5 + $0x28] sm:$0x3]
  %v9933 = vld [vmem:[#allocation5 + $0x30] sm:$0xff]
  %v9934 = vld [vmem:[#allocation5 + $0x38] sm:$0xff]
  %v9935 = vld [vmem:[#allocation5 + $0x40] sm:$0x3]
  %v9936 = vld [vmem:[#allocation5 + $0x48] sm:$0xff]
  %v9937 = vld [vmem:[#allocation5 + $0x50] sm:$0xff]
  %v9938 = vld [vmem:[#allocation5 + $0x58] sm:$0x3]
  %v9939 = vld [vmem:[#allocation5 + $0x60] sm:$0xff]
  %v9940 = vld [vmem:[#allocation5 + $0x68] sm:$0xff]
  %v9941 = vld [vmem:[#allocation5 + $0x70] sm:$0x3]
  %v9942 = vld [vmem:[#allocation5 + $0x78] sm:$0xff]
  %v9943 = vld [vmem:[#allocation5 + $0x80] sm:$0xff]
  %v9944 = vld [vmem:[#allocation5 + $0x88] sm:$0x3]
  %v9945 = vld [vmem:[#allocation5 + $0x90] sm:$0xff]
  %v9946 = vld [vmem:[#allocation5 + $0x98] sm:$0xff]
  %v9947 = vld [vmem:[#allocation5 + $0xa0] sm:$0x3]
  %v9948 = vld [vmem:[#allocation5 + $0xa8] sm:$0xff]
  %v9949 = vld [vmem:[#allocation5 + $0xb0] sm:$0xff]
  %v9950 = vld [vmem:[#allocation5 + $0xb8] sm:$0x3]
  %v9951 = vld [vmem:[#allocation5 + $0xc0] sm:$0xff]
  %v9952 = vld [vmem:[#allocation5 + $0xc8] sm:$0xff]
  %v9953 = vld [vmem:[#allocation5 + $0xd0] sm:$0x3]
  %v9954 = vld [vmem:[#allocation5 + $0xd8] sm:$0xff]
  %v9955 = vld [vmem:[#allocation5 + $0xe0] sm:$0xff]
  %v9956 = vld [vmem:[#allocation5 + $0xe8] sm:$0x3]
  %v9957 = vld [vmem:[#allocation5 + $0xf0] sm:$0xff]
  %v9958 = vld [vmem:[#allocation5 + $0xf8] sm:$0xff]
  %v9959 = vld [vmem:[#allocation5 + $0x100] sm:$0x3]
  %v9960 = vld [vmem:[#allocation5 + $0x108] sm:$0xff]
  %v9961 = vld [vmem:[#allocation5 + $0x110] sm:$0xff]
  %v9962 = vld [vmem:[#allocation5 + $0x118] sm:$0x3]
  %v9963 = vld [vmem:[#allocation5 + $0x120] sm:$0xff]
  %v9964 = vld [vmem:[#allocation5 + $0x128] sm:$0xff]
  %v9965 = vld [vmem:[#allocation5 + $0x130] sm:$0x3]
  %v9966 = vld [vmem:[#allocation5 + $0x138] sm:$0xff]
  %v9967 = vld [vmem:[#allocation5 + $0x140] sm:$0xff]
  %v9968 = vld [vmem:[#allocation5 + $0x148] sm:$0x3]
  %v9969 = vld [vmem:[#allocation5 + $0x150] sm:$0xff]
  %v9970 = vld [vmem:[#allocation5 + $0x158] sm:$0xff]
  %v9971 = vld [vmem:[#allocation5 + $0x160] sm:$0x3]
  %v9972 = vld [vmem:[#allocation5 + $0x168] sm:$0xff]
  %v9973 = vld [vmem:[#allocation5 + $0x170] sm:$0xff]
  %v9974 = vld [vmem:[#allocation5 + $0x178] sm:$0x3]
  %v9975 = vld [vmem:[#allocation5 + $0x180] sm:$0xff]
  %v9976 = vld [vmem:[#allocation5 + $0x188] sm:$0xff]
  %v9977 = vld [vmem:[#allocation5 + $0x190] sm:$0x3]
  %v9978 = vld [vmem:[#allocation5 + $0x198] sm:$0xff]
  %v9979 = vld [vmem:[#allocation5 + $0x1a0] sm:$0xff]
  %v9980 = vld [vmem:[#allocation5 + $0x1a8] sm:$0x3]
  %v10029 = vrot.slane %v9927, 1
  %v10030 = vrot.slane %v9928, 1
  %v10031 = vsel %vm527, %v10029, %v10030
  %v10032 = vrot.slane %v9929, 1
  %v10033 = vsel %vm527, %v10030, %v10032
  %v10034 = vrot.slane %v9930, 1
  %v10035 = vrot.slane %v9931, 1
  %v10036 = vsel %vm527, %v10034, %v10035
  %v10037 = vrot.slane %v9932, 1
  %v10038 = vsel %vm527, %v10035, %v10037
  %v10039 = vrot.slane %v9933, 1
  %v10040 = vrot.slane %v9934, 1
  %v10041 = vsel %vm527, %v10039, %v10040
  %v10042 = vrot.slane %v9935, 1
  %v10043 = vsel %vm527, %v10040, %v10042
  %v10044 = vrot.slane %v9936, 1
  %v10045 = vrot.slane %v9937, 1
  %v10046 = vsel %vm527, %v10044, %v10045
  %v10047 = vrot.slane %v9938, 1
  %v10048 = vsel %vm527, %v10045, %v10047
  %v10049 = vrot.slane %v9939, 1
  %v10050 = vrot.slane %v9940, 1
  %v10051 = vsel %vm527, %v10049, %v10050
  %v10052 = vrot.slane %v9941, 1
  %v10053 = vsel %vm527, %v10050, %v10052
  %v10054 = vrot.slane %v9942, 1
  %v10055 = vrot.slane %v9943, 1
  %v10056 = vsel %vm527, %v10054, %v10055
  %v10057 = vrot.slane %v9944, 1
  %v10058 = vsel %vm527, %v10055, %v10057
  %v10059 = vrot.slane %v9945, 1
  %v10060 = vrot.slane %v9946, 1
  %v10061 = vsel %vm527, %v10059, %v10060
  %v10062 = vrot.slane %v9947, 1
  %v10063 = vsel %vm527, %v10060, %v10062
  %v10064 = vrot.slane %v9948, 1
  %v10065 = vrot.slane %v9949, 1
  %v10066 = vsel %vm527, %v10064, %v10065
  %v10067 = vrot.slane %v9950, 1
  %v10068 = vsel %vm527, %v10065, %v10067
  %v10069 = vrot.slane %v9951, 1
  %v10070 = vrot.slane %v9952, 1
  %v10071 = vsel %vm527, %v10069, %v10070
  %v10072 = vrot.slane %v9953, 1
  %v10073 = vsel %vm527, %v10070, %v10072
  %v10074 = vrot.slane %v9954, 1
  %v10075 = vrot.slane %v9955, 1
  %v10076 = vsel %vm527, %v10074, %v10075
  %v10077 = vrot.slane %v9956, 1
  %v10078 = vsel %vm527, %v10075, %v10077
  %v10079 = vrot.slane %v9957, 1
  %v10080 = vrot.slane %v9958, 1
  %v10081 = vsel %vm527, %v10079, %v10080
  %v10082 = vrot.slane %v9959, 1
  %v10083 = vsel %vm527, %v10080, %v10082
  %v10084 = vrot.slane %v9960, 1
  %v10085 = vrot.slane %v9961, 1
  %v10086 = vsel %vm527, %v10084, %v10085
  %v10087 = vrot.slane %v9962, 1
  %v10088 = vsel %vm527, %v10085, %v10087
  %v10089 = vrot.slane %v9963, 1
  %v10090 = vrot.slane %v9964, 1
  %v10091 = vsel %vm527, %v10089, %v10090
  %v10092 = vrot.slane %v9965, 1
  %v10093 = vsel %vm527, %v10090, %v10092
  %v10094 = vrot.slane %v9966, 1
  %v10095 = vrot.slane %v9967, 1
  %v10096 = vsel %vm527, %v10094, %v10095
  %v10097 = vrot.slane %v9968, 1
  %v10098 = vsel %vm527, %v10095, %v10097
  %v10099 = vrot.slane %v9969, 1
  %v10100 = vrot.slane %v9970, 1
  %v10101 = vsel %vm527, %v10099, %v10100
  %v10102 = vrot.slane %v9971, 1
  %v10103 = vsel %vm527, %v10100, %v10102
  %v10104 = vrot.slane %v9972, 1
  %v10105 = vrot.slane %v9973, 1
  %v10106 = vsel %vm527, %v10104, %v10105
  %v10107 = vrot.slane %v9974, 1
  %v10108 = vsel %vm527, %v10105, %v10107
  %v10109 = vrot.slane %v9927, 2
  %v10110 = vrot.slane %v9928, 2
  %v10111 = vsel %vm608, %v10109, %v10110
  %v10112 = vrot.slane %v9929, 2
  %v10113 = vsel %vm608, %v10110, %v10112
  %v10114 = vrot.slane %v9930, 2
  %v10115 = vrot.slane %v9931, 2
  %v10116 = vsel %vm608, %v10114, %v10115
  %v10117 = vrot.slane %v9932, 2
  %v10118 = vsel %vm608, %v10115, %v10117
  %v10119 = vrot.slane %v9933, 2
  %v10120 = vrot.slane %v9934, 2
  %v10121 = vsel %vm608, %v10119, %v10120
  %v10122 = vrot.slane %v9935, 2
  %v10123 = vsel %vm608, %v10120, %v10122
  %v10124 = vrot.slane %v9936, 2
  %v10125 = vrot.slane %v9937, 2
  %v10126 = vsel %vm608, %v10124, %v10125
  %v10127 = vrot.slane %v9938, 2
  %v10128 = vsel %vm608, %v10125, %v10127
  %v10129 = vrot.slane %v9939, 2
  %v10130 = vrot.slane %v9940, 2
  %v10131 = vsel %vm608, %v10129, %v10130
  %v10132 = vrot.slane %v9941, 2
  %v10133 = vsel %vm608, %v10130, %v10132
  %v10134 = vrot.slane %v9942, 2
  %v10135 = vrot.slane %v9943, 2
  %v10136 = vsel %vm608, %v10134, %v10135
  %v10137 = vrot.slane %v9944, 2
  %v10138 = vsel %vm608, %v10135, %v10137
  %v10139 = vrot.slane %v9945, 2
  %v10140 = vrot.slane %v9946, 2
  %v10141 = vsel %vm608, %v10139, %v10140
  %v10142 = vrot.slane %v9947, 2
  %v10143 = vsel %vm608, %v10140, %v10142
  %v10144 = vrot.slane %v9948, 2
  %v10145 = vrot.slane %v9949, 2
  %v10146 = vsel %vm608, %v10144, %v10145
  %v10147 = vrot.slane %v9950, 2
  %v10148 = vsel %vm608, %v10145, %v10147
  %v10149 = vrot.slane %v9951, 2
  %v10150 = vrot.slane %v9952, 2
  %v10151 = vsel %vm608, %v10149, %v10150
  %v10152 = vrot.slane %v9953, 2
  %v10153 = vsel %vm608, %v10150, %v10152
  %v10154 = vrot.slane %v9954, 2
  %v10155 = vrot.slane %v9955, 2
  %v10156 = vsel %vm608, %v10154, %v10155
  %v10157 = vrot.slane %v9956, 2
  %v10158 = vsel %vm608, %v10155, %v10157
  %v10159 = vrot.slane %v9957, 2
  %v10160 = vrot.slane %v9958, 2
  %v10161 = vsel %vm608, %v10159, %v10160
  %v10162 = vrot.slane %v9959, 2
  %v10163 = vsel %vm608, %v10160, %v10162
  %v10164 = vrot.slane %v9960, 2
  %v10165 = vrot.slane %v9961, 2
  %v10166 = vsel %vm608, %v10164, %v10165
  %v10167 = vrot.slane %v9962, 2
  %v10168 = vsel %vm608, %v10165, %v10167
  %v10169 = vrot.slane %v9963, 2
  %v10170 = vrot.slane %v9964, 2
  %v10171 = vsel %vm608, %v10169, %v10170
  %v10172 = vrot.slane %v9965, 2
  %v10173 = vsel %vm608, %v10170, %v10172
  %v10174 = vrot.slane %v9966, 2
  %v10175 = vrot.slane %v9967, 2
  %v10176 = vsel %vm608, %v10174, %v10175
  %v10177 = vrot.slane %v9968, 2
  %v10178 = vsel %vm608, %v10175, %v10177
  %v10179 = vrot.slane %v9969, 2
  %v10180 = vrot.slane %v9970, 2
  %v10181 = vsel %vm608, %v10179, %v10180
  %v10182 = vrot.slane %v9971, 2
  %v10183 = vsel %vm608, %v10180, %v10182
  %v10184 = vrot.slane %v9972, 2
  %v10185 = vrot.slane %v9973, 2
  %v10186 = vsel %vm608, %v10184, %v10185
  %v10187 = vrot.slane %v9974, 2
  %v10188 = vsel %vm608, %v10185, %v10187
  %v10192 = vrot.slane %v9975, 1
  %v10193 = vrot.slane %v9976, 1
  %v10194 = vsel %vm527, %v10192, %v10193
  %v10195 = vrot.slane %v9977, 1
  %v10196 = vsel %vm527, %v10193, %v10195
  %v10229 = vrot.slane %v9975, 2
  %v10230 = vrot.slane %v9976, 2
  %v10231 = vsel %vm608, %v10229, %v10230
  %v10232 = vrot.slane %v9977, 2
  %v10233 = vsel %vm608, %v10230, %v10232
  %v10237 = vrot.slane %v9978, 1
  %v10238 = vrot.slane %v9979, 1
  %v10239 = vsel %vm527, %v10237, %v10238
  %v10240 = vrot.slane %v9980, 1
  %v10241 = vsel %vm527, %v10238, %v10240
  %v10242 = vrot.slane %v9978, 2
  %v10243 = vrot.slane %v9979, 2
  %v10244 = vsel %vm608, %v10242, %v10243
  %v10245 = vrot.slane %v9980, 2
  %v10246 = vsel %vm608, %v10243, %v10245
  %10279 = vrot.lane.b32.xlu0 %v10031, 32
  %v10280 = vpop.permute.xlu0 %10279
  %10281 = vrot.lane.b32.xlu0 %v10033, 32
  %v10282 = vpop.permute.xlu0 %10281
  %10283 = vrot.lane.b32.xlu0 %v10036, 32
  %v10284 = vpop.permute.xlu0 %10283
  %10285 = vrot.lane.b32.xlu0 %v10038, 32
  %v10286 = vpop.permute.xlu0 %10285
  %10287 = vrot.lane.b32.xlu0 %v10041, 32
  %v10288 = vpop.permute.xlu0 %10287
  %10289 = vrot.lane.b32.xlu0 %v10043, 32
  %v10290 = vpop.permute.xlu0 %10289
  %10291 = vrot.lane.b32.xlu0 %v10046, 32
  %v10292 = vpop.permute.xlu0 %10291
  %10293 = vrot.lane.b32.xlu0 %v10048, 32
  %v10294 = vpop.permute.xlu0 %10293
  %10295 = vrot.lane.b32.xlu0 %v10051, 32
  %v10296 = vpop.permute.xlu0 %10295
  %10297 = vrot.lane.b32.xlu0 %v10053, 32
  %v10298 = vpop.permute.xlu0 %10297
  %10299 = vrot.lane.b32.xlu0 %v10056, 32
  %v10300 = vpop.permute.xlu0 %10299
  %10301 = vrot.lane.b32.xlu0 %v10058, 32
  %v10302 = vpop.permute.xlu0 %10301
  %10303 = vrot.lane.b32.xlu0 %v10061, 32
  %v10304 = vpop.permute.xlu0 %10303
  %10305 = vrot.lane.b32.xlu0 %v10063, 32
  %v10306 = vpop.permute.xlu0 %10305
  %10307 = vrot.lane.b32.xlu0 %v10066, 32
  %v10308 = vpop.permute.xlu0 %10307
  %10309 = vrot.lane.b32.xlu0 %v10068, 32
  %v10310 = vpop.permute.xlu0 %10309
  %10311 = vrot.lane.b32.xlu0 %v10071, 32
  %v10312 = vpop.permute.xlu0 %10311
  %10313 = vrot.lane.b32.xlu0 %v10073, 32
  %v10314 = vpop.permute.xlu0 %10313
  %10315 = vrot.lane.b32.xlu0 %v10076, 32
  %v10316 = vpop.permute.xlu0 %10315
  %10317 = vrot.lane.b32.xlu0 %v10078, 32
  %v10318 = vpop.permute.xlu0 %10317
  %10319 = vrot.lane.b32.xlu0 %v10081, 32
  %v10320 = vpop.permute.xlu0 %10319
  %10321 = vrot.lane.b32.xlu0 %v10083, 32
  %v10322 = vpop.permute.xlu0 %10321
  %10323 = vrot.lane.b32.xlu0 %v10086, 32
  %v10324 = vpop.permute.xlu0 %10323
  %10325 = vrot.lane.b32.xlu0 %v10088, 32
  %v10326 = vpop.permute.xlu0 %10325
  %10327 = vrot.lane.b32.xlu0 %v10091, 32
  %v10328 = vpop.permute.xlu0 %10327
  %10329 = vrot.lane.b32.xlu0 %v10093, 32
  %v10330 = vpop.permute.xlu0 %10329
  %10331 = vrot.lane.b32.xlu0 %v10096, 32
  %v10332 = vpop.permute.xlu0 %10331
  %10333 = vrot.lane.b32.xlu0 %v10098, 32
  %v10334 = vpop.permute.xlu0 %10333
  %10335 = vrot.lane.b32.xlu0 %v10101, 32
  %v10336 = vpop.permute.xlu0 %10335
  %10337 = vrot.lane.b32.xlu0 %v10103, 32
  %v10338 = vpop.permute.xlu0 %10337
  %10339 = vrot.lane.b32.xlu0 %v10106, 32
  %v10340 = vpop.permute.xlu0 %10339
  %10341 = vrot.lane.b32.xlu0 %v10108, 32
  %v10342 = vpop.permute.xlu0 %10341
  %10375 = vrot.lane.b32.xlu0 %v10111, 64
  %v10376 = vpop.permute.xlu0 %10375
  %10377 = vrot.lane.b32.xlu0 %v10113, 64
  %v10378 = vpop.permute.xlu0 %10377
  %10379 = vrot.lane.b32.xlu0 %v10116, 64
  %v10380 = vpop.permute.xlu0 %10379
  %10381 = vrot.lane.b32.xlu0 %v10118, 64
  %v10382 = vpop.permute.xlu0 %10381
  %10383 = vrot.lane.b32.xlu0 %v10121, 64
  %v10384 = vpop.permute.xlu0 %10383
  %10385 = vrot.lane.b32.xlu0 %v10123, 64
  %v10386 = vpop.permute.xlu0 %10385
  %10387 = vrot.lane.b32.xlu0 %v10126, 64
  %v10388 = vpop.permute.xlu0 %10387
  %10389 = vrot.lane.b32.xlu0 %v10128, 64
  %v10390 = vpop.permute.xlu0 %10389
  %10391 = vrot.lane.b32.xlu0 %v10131, 64
  %v10392 = vpop.permute.xlu0 %10391
  %10393 = vrot.lane.b32.xlu0 %v10133, 64
  %v10394 = vpop.permute.xlu0 %10393
  %10395 = vrot.lane.b32.xlu0 %v10136, 64
  %v10396 = vpop.permute.xlu0 %10395
  %10397 = vrot.lane.b32.xlu0 %v10138, 64
  %v10398 = vpop.permute.xlu0 %10397
  %10399 = vrot.lane.b32.xlu0 %v10141, 64
  %v10400 = vpop.permute.xlu0 %10399
  %10401 = vrot.lane.b32.xlu0 %v10143, 64
  %v10402 = vpop.permute.xlu0 %10401
  %10403 = vrot.lane.b32.xlu0 %v10146, 64
  %v10404 = vpop.permute.xlu0 %10403
  %10405 = vrot.lane.b32.xlu0 %v10148, 64
  %v10406 = vpop.permute.xlu0 %10405
  %10407 = vrot.lane.b32.xlu0 %v10151, 64
  %v10408 = vpop.permute.xlu0 %10407
  %10409 = vrot.lane.b32.xlu0 %v10153, 64
  %v10410 = vpop.permute.xlu0 %10409
  %10411 = vrot.lane.b32.xlu0 %v10156, 64
  %v10412 = vpop.permute.xlu0 %10411
  %10413 = vrot.lane.b32.xlu0 %v10158, 64
  %v10414 = vpop.permute.xlu0 %10413
  %10415 = vrot.lane.b32.xlu0 %v10161, 64
  %v10416 = vpop.permute.xlu0 %10415
  %10417 = vrot.lane.b32.xlu0 %v10163, 64
  %v10418 = vpop.permute.xlu0 %10417
  %10419 = vrot.lane.b32.xlu0 %v10166, 64
  %v10420 = vpop.permute.xlu0 %10419
  %10421 = vrot.lane.b32.xlu0 %v10168, 64
  %v10422 = vpop.permute.xlu0 %10421
  %10423 = vrot.lane.b32.xlu0 %v10171, 64
  %v10424 = vpop.permute.xlu0 %10423
  %10425 = vrot.lane.b32.xlu0 %v10173, 64
  %v10426 = vpop.permute.xlu0 %10425
  %10427 = vrot.lane.b32.xlu0 %v10176, 64
  %v10428 = vpop.permute.xlu0 %10427
  %10429 = vrot.lane.b32.xlu0 %v10178, 64
  %v10430 = vpop.permute.xlu0 %10429
  %10431 = vrot.lane.b32.xlu0 %v10181, 64
  %v10432 = vpop.permute.xlu0 %10431
  %10433 = vrot.lane.b32.xlu0 %v10183, 64
  %v10434 = vpop.permute.xlu0 %10433
  %10435 = vrot.lane.b32.xlu0 %v10186, 64
  %v10436 = vpop.permute.xlu0 %10435
  %10437 = vrot.lane.b32.xlu0 %v10188, 64
  %v10438 = vpop.permute.xlu0 %10437
  %10471 = vrot.lane.b32.xlu0 %v9930, 96
  %v10472 = vpop.permute.xlu0 %10471
  %10473 = vrot.lane.b32.xlu0 %v9931, 96
  %v10474 = vpop.permute.xlu0 %10473
  %10475 = vrot.lane.b32.xlu0 %v9933, 96
  %v10476 = vpop.permute.xlu0 %10475
  %10477 = vrot.lane.b32.xlu0 %v9934, 96
  %v10478 = vpop.permute.xlu0 %10477
  %10479 = vrot.lane.b32.xlu0 %v9936, 96
  %v10480 = vpop.permute.xlu0 %10479
  %10481 = vrot.lane.b32.xlu0 %v9937, 96
  %v10482 = vpop.permute.xlu0 %10481
  %10483 = vrot.lane.b32.xlu0 %v9939, 96
  %v10484 = vpop.permute.xlu0 %10483
  %10485 = vrot.lane.b32.xlu0 %v9940, 96
  %v10486 = vpop.permute.xlu0 %10485
  %10487 = vrot.lane.b32.xlu0 %v9942, 96
  %v10488 = vpop.permute.xlu0 %10487
  %10489 = vrot.lane.b32.xlu0 %v9943, 96
  %v10490 = vpop.permute.xlu0 %10489
  %10491 = vrot.lane.b32.xlu0 %v9945, 96
  %v10492 = vpop.permute.xlu0 %10491
  %10493 = vrot.lane.b32.xlu0 %v9946, 96
  %v10494 = vpop.permute.xlu0 %10493
  %10495 = vrot.lane.b32.xlu0 %v9948, 96
  %v10496 = vpop.permute.xlu0 %10495
  %10497 = vrot.lane.b32.xlu0 %v9949, 96
  %v10498 = vpop.permute.xlu0 %10497
  %10499 = vrot.lane.b32.xlu0 %v9951, 96
  %v10500 = vpop.permute.xlu0 %10499
  %10501 = vrot.lane.b32.xlu0 %v9952, 96
  %v10502 = vpop.permute.xlu0 %10501
  %10503 = vrot.lane.b32.xlu0 %v9954, 96
  %v10504 = vpop.permute.xlu0 %10503
  %10505 = vrot.lane.b32.xlu0 %v9955, 96
  %v10506 = vpop.permute.xlu0 %10505
  %10507 = vrot.lane.b32.xlu0 %v9957, 96
  %v10508 = vpop.permute.xlu0 %10507
  %10509 = vrot.lane.b32.xlu0 %v9958, 96
  %v10510 = vpop.permute.xlu0 %10509
  %10511 = vrot.lane.b32.xlu0 %v9960, 96
  %v10512 = vpop.permute.xlu0 %10511
  %10513 = vrot.lane.b32.xlu0 %v9961, 96
  %v10514 = vpop.permute.xlu0 %10513
  %10515 = vrot.lane.b32.xlu0 %v9963, 96
  %v10516 = vpop.permute.xlu0 %10515
  %10517 = vrot.lane.b32.xlu0 %v9964, 96
  %v10518 = vpop.permute.xlu0 %10517
  %10519 = vrot.lane.b32.xlu0 %v9966, 96
  %v10520 = vpop.permute.xlu0 %10519
  %10521 = vrot.lane.b32.xlu0 %v9967, 96
  %v10522 = vpop.permute.xlu0 %10521
  %10523 = vrot.lane.b32.xlu0 %v9969, 96
  %v10524 = vpop.permute.xlu0 %10523
  %10525 = vrot.lane.b32.xlu0 %v9970, 96
  %v10526 = vpop.permute.xlu0 %10525
  %10527 = vrot.lane.b32.xlu0 %v9972, 96
  %v10528 = vpop.permute.xlu0 %10527
  %10529 = vrot.lane.b32.xlu0 %v9973, 96
  %v10530 = vpop.permute.xlu0 %10529
  %10531 = vrot.lane.b32.xlu0 %v9975, 96
  %v10532 = vpop.permute.xlu0 %10531
  %10533 = vrot.lane.b32.xlu0 %v9976, 96
  %v10534 = vpop.permute.xlu0 %10533
  %10567 = vrot.lane.b32.xlu0 %v10116, 32
  %v10568 = vpop.permute.xlu0 %10567
  %10569 = vrot.lane.b32.xlu0 %v10118, 32
  %v10570 = vpop.permute.xlu0 %10569
  %10571 = vrot.lane.b32.xlu0 %v10121, 32
  %v10572 = vpop.permute.xlu0 %10571
  %10573 = vrot.lane.b32.xlu0 %v10123, 32
  %v10574 = vpop.permute.xlu0 %10573
  %10575 = vrot.lane.b32.xlu0 %v10126, 32
  %v10576 = vpop.permute.xlu0 %10575
  %10577 = vrot.lane.b32.xlu0 %v10128, 32
  %v10578 = vpop.permute.xlu0 %10577
  %10579 = vrot.lane.b32.xlu0 %v10131, 32
  %v10580 = vpop.permute.xlu0 %10579
  %10581 = vrot.lane.b32.xlu0 %v10133, 32
  %v10582 = vpop.permute.xlu0 %10581
  %10583 = vrot.lane.b32.xlu0 %v10136, 32
  %v10584 = vpop.permute.xlu0 %10583
  %10585 = vrot.lane.b32.xlu0 %v10138, 32
  %v10586 = vpop.permute.xlu0 %10585
  %10587 = vrot.lane.b32.xlu0 %v10141, 32
  %v10588 = vpop.permute.xlu0 %10587
  %10589 = vrot.lane.b32.xlu0 %v10143, 32
  %v10590 = vpop.permute.xlu0 %10589
  %10591 = vrot.lane.b32.xlu0 %v10146, 32
  %v10592 = vpop.permute.xlu0 %10591
  %10593 = vrot.lane.b32.xlu0 %v10148, 32
  %v10594 = vpop.permute.xlu0 %10593
  %10595 = vrot.lane.b32.xlu0 %v10151, 32
  %v10596 = vpop.permute.xlu0 %10595
  %10597 = vrot.lane.b32.xlu0 %v10153, 32
  %v10598 = vpop.permute.xlu0 %10597
  %10599 = vrot.lane.b32.xlu0 %v10156, 32
  %v10600 = vpop.permute.xlu0 %10599
  %10601 = vrot.lane.b32.xlu0 %v10158, 32
  %v10602 = vpop.permute.xlu0 %10601
  %10603 = vrot.lane.b32.xlu0 %v10161, 32
  %v10604 = vpop.permute.xlu0 %10603
  %10605 = vrot.lane.b32.xlu0 %v10163, 32
  %v10606 = vpop.permute.xlu0 %10605
  %10607 = vrot.lane.b32.xlu0 %v10166, 32
  %v10608 = vpop.permute.xlu0 %10607
  %10609 = vrot.lane.b32.xlu0 %v10168, 32
  %v10610 = vpop.permute.xlu0 %10609
  %10611 = vrot.lane.b32.xlu0 %v10171, 32
  %v10612 = vpop.permute.xlu0 %10611
  %10613 = vrot.lane.b32.xlu0 %v10173, 32
  %v10614 = vpop.permute.xlu0 %10613
  %10615 = vrot.lane.b32.xlu0 %v10176, 32
  %v10616 = vpop.permute.xlu0 %10615
  %10617 = vrot.lane.b32.xlu0 %v10178, 32
  %v10618 = vpop.permute.xlu0 %10617
  %10619 = vrot.lane.b32.xlu0 %v10181, 32
  %v10620 = vpop.permute.xlu0 %10619
  %10621 = vrot.lane.b32.xlu0 %v10183, 32
  %v10622 = vpop.permute.xlu0 %10621
  %10623 = vrot.lane.b32.xlu0 %v10186, 32
  %v10624 = vpop.permute.xlu0 %10623
  %10625 = vrot.lane.b32.xlu0 %v10188, 32
  %v10626 = vpop.permute.xlu0 %10625
  %10627 = vrot.lane.b32.xlu0 %v10231, 32
  %v10628 = vpop.permute.xlu0 %10627
  %10629 = vrot.lane.b32.xlu0 %v10233, 32
  %v10630 = vpop.permute.xlu0 %10629
  %10663 = vrot.lane.b32.xlu0 %v9933, 64
  %v10664 = vpop.permute.xlu0 %10663
  %10665 = vrot.lane.b32.xlu0 %v9934, 64
  %v10666 = vpop.permute.xlu0 %10665
  %10667 = vrot.lane.b32.xlu0 %v9936, 64
  %v10668 = vpop.permute.xlu0 %10667
  %10669 = vrot.lane.b32.xlu0 %v9937, 64
  %v10670 = vpop.permute.xlu0 %10669
  %10671 = vrot.lane.b32.xlu0 %v9939, 64
  %v10672 = vpop.permute.xlu0 %10671
  %10673 = vrot.lane.b32.xlu0 %v9940, 64
  %v10674 = vpop.permute.xlu0 %10673
  %10675 = vrot.lane.b32.xlu0 %v9942, 64
  %v10676 = vpop.permute.xlu0 %10675
  %10677 = vrot.lane.b32.xlu0 %v9943, 64
  %v10678 = vpop.permute.xlu0 %10677
  %10679 = vrot.lane.b32.xlu0 %v9945, 64
  %v10680 = vpop.permute.xlu0 %10679
  %10681 = vrot.lane.b32.xlu0 %v9946, 64
  %v10682 = vpop.permute.xlu0 %10681
  %10683 = vrot.lane.b32.xlu0 %v9948, 64
  %v10684 = vpop.permute.xlu0 %10683
  %10685 = vrot.lane.b32.xlu0 %v9949, 64
  %v10686 = vpop.permute.xlu0 %10685
  %10687 = vrot.lane.b32.xlu0 %v9951, 64
  %v10688 = vpop.permute.xlu0 %10687
  %10689 = vrot.lane.b32.xlu0 %v9952, 64
  %v10690 = vpop.permute.xlu0 %10689
  %10691 = vrot.lane.b32.xlu0 %v9954, 64
  %v10692 = vpop.permute.xlu0 %10691
  %10693 = vrot.lane.b32.xlu0 %v9955, 64
  %v10694 = vpop.permute.xlu0 %10693
  %10695 = vrot.lane.b32.xlu0 %v9957, 64
  %v10696 = vpop.permute.xlu0 %10695
  %10697 = vrot.lane.b32.xlu0 %v9958, 64
  %v10698 = vpop.permute.xlu0 %10697
  %10699 = vrot.lane.b32.xlu0 %v9960, 64
  %v10700 = vpop.permute.xlu0 %10699
  %10701 = vrot.lane.b32.xlu0 %v9961, 64
  %v10702 = vpop.permute.xlu0 %10701
  %10703 = vrot.lane.b32.xlu0 %v9963, 64
  %v10704 = vpop.permute.xlu0 %10703
  %10705 = vrot.lane.b32.xlu0 %v9964, 64
  %v10706 = vpop.permute.xlu0 %10705
  %10707 = vrot.lane.b32.xlu0 %v9966, 64
  %v10708 = vpop.permute.xlu0 %10707
  %10709 = vrot.lane.b32.xlu0 %v9967, 64
  %v10710 = vpop.permute.xlu0 %10709
  %10711 = vrot.lane.b32.xlu0 %v9969, 64
  %v10712 = vpop.permute.xlu0 %10711
  %10713 = vrot.lane.b32.xlu0 %v9970, 64
  %v10714 = vpop.permute.xlu0 %10713
  %10715 = vrot.lane.b32.xlu0 %v9972, 64
  %v10716 = vpop.permute.xlu0 %10715
  %10717 = vrot.lane.b32.xlu0 %v9973, 64
  %v10718 = vpop.permute.xlu0 %10717
  %10719 = vrot.lane.b32.xlu0 %v9975, 64
  %v10720 = vpop.permute.xlu0 %10719
  %10721 = vrot.lane.b32.xlu0 %v9976, 64
  %v10722 = vpop.permute.xlu0 %10721
  %10723 = vrot.lane.b32.xlu0 %v9978, 64
  %v10724 = vpop.permute.xlu0 %10723
  %10725 = vrot.lane.b32.xlu0 %v9979, 64
  %v10726 = vpop.permute.xlu0 %10725
  %10759 = vrot.lane.b32.xlu0 %v10041, 96
  %v10760 = vpop.permute.xlu0 %10759
  %10761 = vrot.lane.b32.xlu0 %v10043, 96
  %v10762 = vpop.permute.xlu0 %10761
  %10763 = vrot.lane.b32.xlu0 %v10046, 96
  %v10764 = vpop.permute.xlu0 %10763
  %10765 = vrot.lane.b32.xlu0 %v10048, 96
  %v10766 = vpop.permute.xlu0 %10765
  %10767 = vrot.lane.b32.xlu0 %v10051, 96
  %v10768 = vpop.permute.xlu0 %10767
  %10769 = vrot.lane.b32.xlu0 %v10053, 96
  %v10770 = vpop.permute.xlu0 %10769
  %10771 = vrot.lane.b32.xlu0 %v10056, 96
  %v10772 = vpop.permute.xlu0 %10771
  %10773 = vrot.lane.b32.xlu0 %v10058, 96
  %v10774 = vpop.permute.xlu0 %10773
  %10775 = vrot.lane.b32.xlu0 %v10061, 96
  %v10776 = vpop.permute.xlu0 %10775
  %10777 = vrot.lane.b32.xlu0 %v10063, 96
  %v10778 = vpop.permute.xlu0 %10777
  %10779 = vrot.lane.b32.xlu0 %v10066, 96
  %v10780 = vpop.permute.xlu0 %10779
  %10781 = vrot.lane.b32.xlu0 %v10068, 96
  %v10782 = vpop.permute.xlu0 %10781
  %10783 = vrot.lane.b32.xlu0 %v10071, 96
  %v10784 = vpop.permute.xlu0 %10783
  %10785 = vrot.lane.b32.xlu0 %v10073, 96
  %v10786 = vpop.permute.xlu0 %10785
  %10787 = vrot.lane.b32.xlu0 %v10076, 96
  %v10788 = vpop.permute.xlu0 %10787
  %10789 = vrot.lane.b32.xlu0 %v10078, 96
  %v10790 = vpop.permute.xlu0 %10789
  %10791 = vrot.lane.b32.xlu0 %v10081, 96
  %v10792 = vpop.permute.xlu0 %10791
  %10793 = vrot.lane.b32.xlu0 %v10083, 96
  %v10794 = vpop.permute.xlu0 %10793
  %10795 = vrot.lane.b32.xlu0 %v10086, 96
  %v10796 = vpop.permute.xlu0 %10795
  %10797 = vrot.lane.b32.xlu0 %v10088, 96
  %v10798 = vpop.permute.xlu0 %10797
  %10799 = vrot.lane.b32.xlu0 %v10091, 96
  %v10800 = vpop.permute.xlu0 %10799
  %10801 = vrot.lane.b32.xlu0 %v10093, 96
  %v10802 = vpop.permute.xlu0 %10801
  %10803 = vrot.lane.b32.xlu0 %v10096, 96
  %v10804 = vpop.permute.xlu0 %10803
  %10805 = vrot.lane.b32.xlu0 %v10098, 96
  %v10806 = vpop.permute.xlu0 %10805
  %10807 = vrot.lane.b32.xlu0 %v10101, 96
  %v10808 = vpop.permute.xlu0 %10807
  %10809 = vrot.lane.b32.xlu0 %v10103, 96
  %v10810 = vpop.permute.xlu0 %10809
  %10811 = vrot.lane.b32.xlu0 %v10106, 96
  %v10812 = vpop.permute.xlu0 %10811
  %10813 = vrot.lane.b32.xlu0 %v10108, 96
  %v10814 = vpop.permute.xlu0 %10813
  %10815 = vrot.lane.b32.xlu0 %v10194, 96
  %v10816 = vpop.permute.xlu0 %10815
  %10817 = vrot.lane.b32.xlu0 %v10196, 96
  %v10818 = vpop.permute.xlu0 %10817
  %10819 = vrot.lane.b32.xlu0 %v10239, 96
  %v10820 = vpop.permute.xlu0 %10819
  %10821 = vrot.lane.b32.xlu0 %v10241, 96
  %v10822 = vpop.permute.xlu0 %10821
  %v10855 = vsel %vm9838, %v9927, %v10280
  %v10856 = vsel %vm9838, %v9928, %v10282
  %v10857 = vsel %vm9838, %v9930, %v10284
  %v10858 = vsel %vm9838, %v9931, %v10286
  %v10859 = vsel %vm9838, %v9933, %v10288
  %v10860 = vsel %vm9838, %v9934, %v10290
  %v10861 = vsel %vm9838, %v9936, %v10292
  %v10862 = vsel %vm9838, %v9937, %v10294
  %v10863 = vsel %vm9838, %v9939, %v10296
  %v10864 = vsel %vm9838, %v9940, %v10298
  %v10865 = vsel %vm9838, %v9942, %v10300
  %v10866 = vsel %vm9838, %v9943, %v10302
  %v10867 = vsel %vm9838, %v9945, %v10304
  %v10868 = vsel %vm9838, %v9946, %v10306
  %v10869 = vsel %vm9838, %v9948, %v10308
  %v10870 = vsel %vm9838, %v9949, %v10310
  %v10871 = vsel %vm9838, %v9951, %v10312
  %v10872 = vsel %vm9838, %v9952, %v10314
  %v10873 = vsel %vm9838, %v9954, %v10316
  %v10874 = vsel %vm9838, %v9955, %v10318
  %v10875 = vsel %vm9838, %v9957, %v10320
  %v10876 = vsel %vm9838, %v9958, %v10322
  %v10877 = vsel %vm9838, %v9960, %v10324
  %v10878 = vsel %vm9838, %v9961, %v10326
  %v10879 = vsel %vm9838, %v9963, %v10328
  %v10880 = vsel %vm9838, %v9964, %v10330
  %v10881 = vsel %vm9838, %v9966, %v10332
  %v10882 = vsel %vm9838, %v9967, %v10334
  %v10883 = vsel %vm9838, %v9969, %v10336
  %v10884 = vsel %vm9838, %v9970, %v10338
  %v10885 = vsel %vm9838, %v9972, %v10340
  %v10886 = vsel %vm9838, %v9973, %v10342
  %v10887 = vsel %vm4427, %v10855, %v10376
  %v10888 = vsel %vm4427, %v10856, %v10378
  %v10889 = vsel %vm4427, %v10857, %v10380
  %v10890 = vsel %vm4427, %v10858, %v10382
  %v10891 = vsel %vm4427, %v10859, %v10384
  %v10892 = vsel %vm4427, %v10860, %v10386
  %v10893 = vsel %vm4427, %v10861, %v10388
  %v10894 = vsel %vm4427, %v10862, %v10390
  %v10895 = vsel %vm4427, %v10863, %v10392
  %v10896 = vsel %vm4427, %v10864, %v10394
  %v10897 = vsel %vm4427, %v10865, %v10396
  %v10898 = vsel %vm4427, %v10866, %v10398
  %v10899 = vsel %vm4427, %v10867, %v10400
  %v10900 = vsel %vm4427, %v10868, %v10402
  %v10901 = vsel %vm4427, %v10869, %v10404
  %v10902 = vsel %vm4427, %v10870, %v10406
  %v10903 = vsel %vm4427, %v10871, %v10408
  %v10904 = vsel %vm4427, %v10872, %v10410
  %v10905 = vsel %vm4427, %v10873, %v10412
  %v10906 = vsel %vm4427, %v10874, %v10414
  %v10907 = vsel %vm4427, %v10875, %v10416
  %v10908 = vsel %vm4427, %v10876, %v10418
  %v10909 = vsel %vm4427, %v10877, %v10420
  %v10910 = vsel %vm4427, %v10878, %v10422
  %v10911 = vsel %vm4427, %v10879, %v10424
  %v10912 = vsel %vm4427, %v10880, %v10426
  %v10913 = vsel %vm4427, %v10881, %v10428
  %v10914 = vsel %vm4427, %v10882, %v10430
  %v10915 = vsel %vm4427, %v10883, %v10432
  %v10916 = vsel %vm4427, %v10884, %v10434
  %v10917 = vsel %vm4427, %v10885, %v10436
  %v10918 = vsel %vm4427, %v10886, %v10438
  %vm10919 = vcmask 785408
  %v10920 = vsel %vm10919, %v10887, %v10472
  %v10921 = vsel %vm10919, %v10888, %v10474
  %v10922 = vsel %vm10919, %v10889, %v10476
  %v10923 = vsel %vm10919, %v10890, %v10478
  %v10924 = vsel %vm10919, %v10891, %v10480
  %v10925 = vsel %vm10919, %v10892, %v10482
  %v10926 = vsel %vm10919, %v10893, %v10484
  %v10927 = vsel %vm10919, %v10894, %v10486
  %v10928 = vsel %vm10919, %v10895, %v10488
  %v10929 = vsel %vm10919, %v10896, %v10490
  %v10930 = vsel %vm10919, %v10897, %v10492
  %v10931 = vsel %vm10919, %v10898, %v10494
  %v10932 = vsel %vm10919, %v10899, %v10496
  %v10933 = vsel %vm10919, %v10900, %v10498
  %v10934 = vsel %vm10919, %v10901, %v10500
  %v10935 = vsel %vm10919, %v10902, %v10502
  %v10936 = vsel %vm10919, %v10903, %v10504
  %v10937 = vsel %vm10919, %v10904, %v10506
  %v10938 = vsel %vm10919, %v10905, %v10508
  %v10939 = vsel %vm10919, %v10906, %v10510
  %v10940 = vsel %vm10919, %v10907, %v10512
  %v10941 = vsel %vm10919, %v10908, %v10514
  %v10942 = vsel %vm10919, %v10909, %v10516
  %v10943 = vsel %vm10919, %v10910, %v10518
  %v10944 = vsel %vm10919, %v10911, %v10520
  %v10945 = vsel %vm10919, %v10912, %v10522
  %v10946 = vsel %vm10919, %v10913, %v10524
  %v10947 = vsel %vm10919, %v10914, %v10526
  %v10948 = vsel %vm10919, %v10915, %v10528
  %v10949 = vsel %vm10919, %v10916, %v10530
  %v10950 = vsel %vm10919, %v10917, %v10532
  %v10951 = vsel %vm10919, %v10918, %v10534
  %v10952 = vsel %vm9838, %v10036, %v10568
  %v10953 = vsel %vm9838, %v10038, %v10570
  %v10954 = vsel %vm9838, %v10041, %v10572
  %v10955 = vsel %vm9838, %v10043, %v10574
  %v10956 = vsel %vm9838, %v10046, %v10576
  %v10957 = vsel %vm9838, %v10048, %v10578
  %v10958 = vsel %vm9838, %v10051, %v10580
  %v10959 = vsel %vm9838, %v10053, %v10582
  %v10960 = vsel %vm9838, %v10056, %v10584
  %v10961 = vsel %vm9838, %v10058, %v10586
  %v10962 = vsel %vm9838, %v10061, %v10588
  %v10963 = vsel %vm9838, %v10063, %v10590
  %v10964 = vsel %vm9838, %v10066, %v10592
  %v10965 = vsel %vm9838, %v10068, %v10594
  %v10966 = vsel %vm9838, %v10071, %v10596
  %v10967 = vsel %vm9838, %v10073, %v10598
  %v10968 = vsel %vm9838, %v10076, %v10600
  %v10969 = vsel %vm9838, %v10078, %v10602
  %v10970 = vsel %vm9838, %v10081, %v10604
  %v10971 = vsel %vm9838, %v10083, %v10606
  %v10972 = vsel %vm9838, %v10086, %v10608
  %v10973 = vsel %vm9838, %v10088, %v10610
  %v10974 = vsel %vm9838, %v10091, %v10612
  %v10975 = vsel %vm9838, %v10093, %v10614
  %v10976 = vsel %vm9838, %v10096, %v10616
  %v10977 = vsel %vm9838, %v10098, %v10618
  %v10978 = vsel %vm9838, %v10101, %v10620
  %v10979 = vsel %vm9838, %v10103, %v10622
  %v10980 = vsel %vm9838, %v10106, %v10624
  %v10981 = vsel %vm9838, %v10108, %v10626
  %v10982 = vsel %vm9838, %v10194, %v10628
  %v10983 = vsel %vm9838, %v10196, %v10630
  %v10984 = vsel %vm4427, %v10952, %v10664
  %v10985 = vsel %vm4427, %v10953, %v10666
  %v10986 = vsel %vm4427, %v10954, %v10668
  %v10987 = vsel %vm4427, %v10955, %v10670
  %v10988 = vsel %vm4427, %v10956, %v10672
  %v10989 = vsel %vm4427, %v10957, %v10674
  %v10990 = vsel %vm4427, %v10958, %v10676
  %v10991 = vsel %vm4427, %v10959, %v10678
  %v10992 = vsel %vm4427, %v10960, %v10680
  %v10993 = vsel %vm4427, %v10961, %v10682
  %v10994 = vsel %vm4427, %v10962, %v10684
  %v10995 = vsel %vm4427, %v10963, %v10686
  %v10996 = vsel %vm4427, %v10964, %v10688
  %v10997 = vsel %vm4427, %v10965, %v10690
  %v10998 = vsel %vm4427, %v10966, %v10692
  %v10999 = vsel %vm4427, %v10967, %v10694
  %v11000 = vsel %vm4427, %v10968, %v10696
  %v11001 = vsel %vm4427, %v10969, %v10698
  %v11002 = vsel %vm4427, %v10970, %v10700
  %v11003 = vsel %vm4427, %v10971, %v10702
  %v11004 = vsel %vm4427, %v10972, %v10704
  %v11005 = vsel %vm4427, %v10973, %v10706
  %v11006 = vsel %vm4427, %v10974, %v10708
  %v11007 = vsel %vm4427, %v10975, %v10710
  %v11008 = vsel %vm4427, %v10976, %v10712
  %v11009 = vsel %vm4427, %v10977, %v10714
  %v11010 = vsel %vm4427, %v10978, %v10716
  %v11011 = vsel %vm4427, %v10979, %v10718
  %v11012 = vsel %vm4427, %v10980, %v10720
  %v11013 = vsel %vm4427, %v10981, %v10722
  %v11014 = vsel %vm4427, %v10982, %v10724
  %v11015 = vsel %vm4427, %v10983, %v10726
  %v11016 = vsel %vm10919, %v10984, %v10760
  %v11017 = vsel %vm10919, %v10985, %v10762
  %v11018 = vsel %vm10919, %v10986, %v10764
  %v11019 = vsel %vm10919, %v10987, %v10766
  %v11020 = vsel %vm10919, %v10988, %v10768
  %v11021 = vsel %vm10919, %v10989, %v10770
  %v11022 = vsel %vm10919, %v10990, %v10772
  %v11023 = vsel %vm10919, %v10991, %v10774
  %v11024 = vsel %vm10919, %v10992, %v10776
  %v11025 = vsel %vm10919, %v10993, %v10778
  %v11026 = vsel %vm10919, %v10994, %v10780
  %v11027 = vsel %vm10919, %v10995, %v10782
  %v11028 = vsel %vm10919, %v10996, %v10784
  %v11029 = vsel %vm10919, %v10997, %v10786
  %v11030 = vsel %vm10919, %v10998, %v10788
  %v11031 = vsel %vm10919, %v10999, %v10790
  %v11032 = vsel %vm10919, %v11000, %v10792
  %v11033 = vsel %vm10919, %v11001, %v10794
  %v11034 = vsel %vm10919, %v11002, %v10796
  %v11035 = vsel %vm10919, %v11003, %v10798
  %v11036 = vsel %vm10919, %v11004, %v10800
  %v11037 = vsel %vm10919, %v11005, %v10802
  %v11038 = vsel %vm10919, %v11006, %v10804
  %v11039 = vsel %vm10919, %v11007, %v10806
  %v11040 = vsel %vm10919, %v11008, %v10808
  %v11041 = vsel %vm10919, %v11009, %v10810
  %v11042 = vsel %vm10919, %v11010, %v10812
  %v11043 = vsel %vm10919, %v11011, %v10814
  %v11044 = vsel %vm10919, %v11012, %v10816
  %v11045 = vsel %vm10919, %v11013, %v10818
  %v11046 = vsel %vm10919, %v11014, %v10820
  %v11047 = vsel %vm10919, %v11015, %v10822
  %v11048 = vpack.c.bf16 %v10921, %v10920
  %v11049 = vpack.c.bf16 %v11017, %v11016
  %v11050 = vpack.c.bf16 %v10123, %v10121
  %v11051 = vpack.c.bf16 %v10923, %v10922
  %v11052 = vpack.c.bf16 %v11019, %v11018
  %v11053 = vpack.c.bf16 %v10128, %v10126
  %v11054 = vpack.c.bf16 %v10925, %v10924
  %v11055 = vpack.c.bf16 %v11021, %v11020
  %v11056 = vpack.c.bf16 %v10133, %v10131
  %v11057 = vpack.c.bf16 %v10927, %v10926
  %v11058 = vpack.c.bf16 %v11023, %v11022
  %v11059 = vpack.c.bf16 %v10138, %v10136
  %v11060 = vpack.c.bf16 %v10929, %v10928
  %v11061 = vpack.c.bf16 %v11025, %v11024
  %v11062 = vpack.c.bf16 %v10143, %v10141
  %v11063 = vpack.c.bf16 %v10931, %v10930
  %v11064 = vpack.c.bf16 %v11027, %v11026
  %v11065 = vpack.c.bf16 %v10148, %v10146
  %v11066 = vpack.c.bf16 %v10933, %v10932
  %v11067 = vpack.c.bf16 %v11029, %v11028
  %v11068 = vpack.c.bf16 %v10153, %v10151
  %v11069 = vpack.c.bf16 %v10935, %v10934
  %v11070 = vpack.c.bf16 %v11031, %v11030
  %v11071 = vpack.c.bf16 %v10158, %v10156
  %v11072 = vpack.c.bf16 %v10937, %v10936
  %v11073 = vpack.c.bf16 %v11033, %v11032
  %v11074 = vpack.c.bf16 %v10163, %v10161
  %v11075 = vpack.c.bf16 %v10939, %v10938
  %v11076 = vpack.c.bf16 %v11035, %v11034
  %v11077 = vpack.c.bf16 %v10168, %v10166
  %v11078 = vpack.c.bf16 %v10941, %v10940
  %v11079 = vpack.c.bf16 %v11037, %v11036
  %v11080 = vpack.c.bf16 %v10173, %v10171
  %v11081 = vpack.c.bf16 %v10943, %v10942
  %v11082 = vpack.c.bf16 %v11039, %v11038
  %v11083 = vpack.c.bf16 %v10178, %v10176
  %v11084 = vpack.c.bf16 %v10945, %v10944
  %v11085 = vpack.c.bf16 %v11041, %v11040
  %v11086 = vpack.c.bf16 %v10183, %v10181
  %v11087 = vpack.c.bf16 %v10947, %v10946
  %v11088 = vpack.c.bf16 %v11043, %v11042
  %v11089 = vpack.c.bf16 %v10188, %v10186
  %v11090 = vpack.c.bf16 %v10949, %v10948
  %v11091 = vpack.c.bf16 %v11045, %v11044
  %v11092 = vpack.c.bf16 %v10233, %v10231
  %v11093 = vpack.c.bf16 %v10951, %v10950
  %v11094 = vpack.c.bf16 %v11047, %v11046
  %v11095 = vpack.c.bf16 %v10246, %v10244
  %v11096 = vld [vmem:[%s8] sm:$0xf]
  %v11097 = vld [vmem:[%s8 + $0x4] sm:$0xf]
  %v11098 = vld [vmem:[%s8 + $0x8] sm:$0xf]
  %v11099 = vld [vmem:[%s8 + $0xc] sm:$0xf]
  %v11100 = vld [vmem:[%s8 + $0x10] sm:$0xf]
  %v11101 = vld [vmem:[%s8 + $0x14] sm:$0xf]
  %v11102 = vld [vmem:[%s8 + $0x18] sm:$0xf]
  %v11103 = vld [vmem:[%s8 + $0x1c] sm:$0xf]
  %v11104 = vld [vmem:[%s8 + $0x20] sm:$0xf]
  %v11105 = vld [vmem:[%s8 + $0x24] sm:$0xf]
  %v11106 = vld [vmem:[%s8 + $0x28] sm:$0xf]
  %v11107 = vld [vmem:[%s8 + $0x2c] sm:$0xf]
  %v11108 = vld [vmem:[%s8 + $0x30] sm:$0xf]
  %v11109 = vld [vmem:[%s8 + $0x34] sm:$0xf]
  %v11110 = vld [vmem:[%s8 + $0x38] sm:$0xf]
  %v11111 = vld [vmem:[%s8 + $0x3c] sm:$0xf]
  %v11112 = vld [vmem:[%s8 + $0x40] sm:$0xf]
  %v11113 = vld [vmem:[%s8 + $0x44] sm:$0xf]
  %v11114 = vld [vmem:[%s8 + $0x48] sm:$0xf]
  %v11115 = vld [vmem:[%s8 + $0x4c] sm:$0xf]
  %v11116 = vld [vmem:[%s8 + $0x50] sm:$0xf]
  %v11117 = vld [vmem:[%s8 + $0x54] sm:$0xf]
  %v11118 = vld [vmem:[%s8 + $0x58] sm:$0xf]
  %v11119 = vld [vmem:[%s8 + $0x5c] sm:$0xf]
  %v11120 = vld [vmem:[%s8 + $0x60] sm:$0xf]
  %v11121 = vld [vmem:[%s8 + $0x64] sm:$0xf]
  %v11122 = vld [vmem:[%s8 + $0x68] sm:$0xf]
  %v11123 = vld [vmem:[%s8 + $0x6c] sm:$0xf]
  %v11124 = vld [vmem:[%s8 + $0x70] sm:$0xf]
  %v11125 = vld [vmem:[%s8 + $0x74] sm:$0xf]
  %v11126 = vld [vmem:[%s8 + $0x78] sm:$0xf]
  %v11127 = vld [vmem:[%s8 + $0x7c] sm:$0xf]
  %v11128 = vld [vmem:[%s8 + $0x80] sm:$0xf]
  %v11129 = vld [vmem:[%s8 + $0x84] sm:$0xf]
  %v11130 = vld [vmem:[%s8 + $0x88] sm:$0xf]
  %v11131 = vld [vmem:[%s8 + $0x8c] sm:$0xf]
  %v11132 = vld [vmem:[%s9] sm:$0x1]
  %v11134 = vlaneseq
  %v11135 = vshrl.u32 %v11134, 7
  %v11136 = vsub.s32 0, %v11135
  %v11137 = vrot.slane %v11132, %v11136
  %v11175 = vunpack.c.l.b16 %v11096
  %v11176 = vunpack.c.l.b16 %v11097
  %v11177 = vunpack.c.l.b16 %v11098
  %v11178 = vunpack.c.l.b16 %v11099
  %v11179 = vunpack.c.l.b16 %v11100
  %v11180 = vunpack.c.l.b16 %v11101
  %v11181 = vunpack.c.l.b16 %v11102
  %v11182 = vunpack.c.l.b16 %v11103
  %v11183 = vunpack.c.l.b16 %v11104
  %v11184 = vunpack.c.l.b16 %v11105
  %v11185 = vunpack.c.l.b16 %v11106
  %v11186 = vunpack.c.l.b16 %v11107
  %v11187 = vunpack.c.l.b16 %v11108
  %v11188 = vunpack.c.l.b16 %v11109
  %v11189 = vunpack.c.l.b16 %v11110
  %v11190 = vunpack.c.l.b16 %v11111
  %v11191 = vunpack.c.l.b16 %v11112
  %v11192 = vunpack.c.l.b16 %v11113
  %v11193 = vunpack.c.l.b16 %v11114
  %v11194 = vunpack.c.l.b16 %v11115
  %v11195 = vunpack.c.l.b16 %v11116
  %v11196 = vunpack.c.l.b16 %v11117
  %v11197 = vunpack.c.l.b16 %v11118
  %v11198 = vunpack.c.l.b16 %v11119
  %v11199 = vunpack.c.l.b16 %v11120
  %v11200 = vunpack.c.l.b16 %v11121
  %v11201 = vunpack.c.l.b16 %v11122
  %v11202 = vunpack.c.l.b16 %v11123
  %v11203 = vunpack.c.l.b16 %v11124
  %v11204 = vunpack.c.l.b16 %v11125
  %v11205 = vunpack.c.l.b16 %v11126
  %v11206 = vunpack.c.l.b16 %v11127
  %v11207 = vunpack.c.l.b16 %v11128
  %v11208 = vunpack.c.l.b16 %v11129
  %v11209 = vunpack.c.l.b16 %v11130
  %v11210 = vunpack.c.l.b16 %v11131
  %v11211 = vpack.c.b16 %v11176, %v11175
  %v11212 = vpack.c.b16 %v11178, %v11177
  %v11213 = vpack.c.b16 %v11180, %v11179
  %v11214 = vpack.c.b16 %v11182, %v11181
  %v11215 = vpack.c.b16 %v11184, %v11183
  %v11216 = vpack.c.b16 %v11186, %v11185
  %v11217 = vpack.c.b16 %v11188, %v11187
  %v11218 = vpack.c.b16 %v11190, %v11189
  %v11219 = vpack.c.b16 %v11192, %v11191
  %v11220 = vpack.c.b16 %v11194, %v11193
  %v11221 = vpack.c.b16 %v11196, %v11195
  %v11222 = vpack.c.b16 %v11198, %v11197
  %v11223 = vpack.c.b16 %v11200, %v11199
  %v11224 = vpack.c.b16 %v11202, %v11201
  %v11225 = vpack.c.b16 %v11204, %v11203
  %v11226 = vpack.c.b16 %v11206, %v11205
  %v11227 = vpack.c.b16 %v11208, %v11207
  %v11228 = vpack.c.b16 %v11210, %v11209
  %v11248 = vsel %vm9838, %v11050, 0
  %v11251 = vsel %vm9838, %v11053, 0
  %v11254 = vsel %vm9838, %v11056, 0
  %v11257 = vsel %vm9838, %v11059, 0
  %v11260 = vsel %vm9838, %v11062, 0
  %v11263 = vsel %vm9838, %v11065, 0
  %v11266 = vsel %vm9838, %v11068, 0
  %v11269 = vsel %vm9838, %v11071, 0
  %v11272 = vsel %vm9838, %v11074, 0
  %v11275 = vsel %vm9838, %v11077, 0
  %v11278 = vsel %vm9838, %v11080, 0
  %v11281 = vsel %vm9838, %v11083, 0
  %v11284 = vsel %vm9838, %v11086, 0
  %v11287 = vsel %vm9838, %v11089, 0
  %v11290 = vsel %vm9838, %v11092, 0
  %v11293 = vsel %vm9838, %v11095, 0
  %11295 = vmatprep.subr.bf16.mxu0 0
  %11296 = vmatpush1.bf16.msra.mxu0 %v11211
  %11297 = vmatprep.subr.bf16.mxu0 0
  %11298 = vmatpush1.bf16.msra.mxu0 %v11212
  %11299 = vmatprep.subr.bf16.mxu0 0
  %11300 = vmatpush1.bf16.msra.mxu0 %v11213
  %11301 = vmatprep.subr.bf16.mxu0 0
  %11302 = vmatpush1.bf16.msra.mxu0 %v11214
  %11303 = vmatprep.subr.bf16.mxu0 0
  %11304 = vmatpush1.bf16.msra.mxu0 %v11215
  %11305 = vmatprep.subr.bf16.mxu0 0
  %11306 = vmatpush1.bf16.msra.mxu0 %v11216
  %11307 = vmatprep.subr.bf16.mxu0 0
  %11308 = vmatpush1.bf16.msra.mxu0 %v11217
  %11309 = vmatprep.subr.bf16.mxu0 0
  %11310 = vmatpush1.bf16.msra.mxu0 %v11218
  %11311 = vmatprep.subr.bf16.mxu0 0
  %11312 = vmatpush1.bf16.msra.mxu0 %v11219
  %11313 = vmatprep.subr.bf16.mxu0 0
  %11314 = vmatpush1.bf16.msra.mxu0 %v11220
  %11315 = vmatprep.subr.bf16.mxu0 0
  %11316 = vmatpush1.bf16.msra.mxu0 %v11221
  %11317 = vmatprep.subr.bf16.mxu0 0
  %11318 = vmatpush1.bf16.msra.mxu0 %v11222
  %11319 = vmatprep.subr.bf16.mxu0 0
  %11320 = vmatpush1.bf16.msra.mxu0 %v11223
  %11321 = vmatprep.subr.bf16.mxu0 0
  %11322 = vmatpush1.bf16.msra.mxu0 %v11224
  %11323 = vmatprep.subr.bf16.mxu0 0
  %11324 = vmatpush1.bf16.msra.mxu0 %v11225
  %11325 = vmatprep.subr.bf16.mxu0 0
  %11326 = vmatpush1.bf16.msra.mxu0 %v11226
  %11327 = vmatprep.mubr.bf16.mxu0 %v11049
  %11328 = vmatmul.mubr.bf16.gmra.mrb[0].mxu0 %v11048
  %v11329 = vpop.f32.mrb[0].mxu0
  %v11330 = vadd.f32 %v11137, %v11329
  %v11331 = vpop.f32.mrb[0].mxu0
  %v11332 = vpop.f32.mrb[0].mxu0
  %v11333 = vadd.f32 %v11137, %v11332
  %v11334 = vpop.f32.mrb[0].mxu0
  %11335 = vmatprep.mubr.bf16.mxu0 %v11052
  %11336 = vmatmul.mubr.bf16.gmra.mrb[0].mxu0 %v11051
  %v11337 = vpop.f32.mrb[0].mxu0
  %v11338 = vadd.f32 %v11137, %v11337
  %v11339 = vpop.f32.mrb[0].mxu0
  %v11340 = vpop.f32.mrb[0].mxu0
  %v11341 = vadd.f32 %v11137, %v11340
  %v11342 = vpop.f32.mrb[0].mxu0
  %11343 = vmatprep.mubr.bf16.mxu0 %v11055
  %11344 = vmatmul.mubr.bf16.gmra.mrb[0].mxu0 %v11054
  %v11345 = vpop.f32.mrb[0].mxu0
  %v11346 = vadd.f32 %v11137, %v11345
  %v11347 = vpop.f32.mrb[0].mxu0
  %v11348 = vpop.f32.mrb[0].mxu0
  %v11349 = vadd.f32 %v11137, %v11348
  %v11350 = vpop.f32.mrb[0].mxu0
  %11351 = vmatprep.mubr.bf16.mxu0 %v11058
  %11352 = vmatmul.mubr.bf16.gmra.mrb[0].mxu0 %v11057
  %v11353 = vpop.f32.mrb[0].mxu0
  %v11354 = vadd.f32 %v11137, %v11353
  %v11355 = vpop.f32.mrb[0].mxu0
  %v11356 = vpop.f32.mrb[0].mxu0
  %v11357 = vadd.f32 %v11137, %v11356
  %v11358 = vpop.f32.mrb[0].mxu0
  %11359 = vmatprep.mubr.bf16.mxu0 %v11061
  %11360 = vmatmul.mubr.bf16.gmra.mrb[0].mxu0 %v11060
  %v11361 = vpop.f32.mrb[0].mxu0
  %v11362 = vadd.f32 %v11137, %v11361
  %v11363 = vpop.f32.mrb[0].mxu0
  %v11364 = vpop.f32.mrb[0].mxu0
  %v11365 = vadd.f32 %v11137, %v11364
  %v11366 = vpop.f32.mrb[0].mxu0
  %11367 = vmatprep.mubr.bf16.mxu0 %v11064
  %11368 = vmatmul.mubr.bf16.gmra.mrb[0].mxu0 %v11063
  %v11369 = vpop.f32.mrb[0].mxu0
  %v11370 = vadd.f32 %v11137, %v11369
  %v11371 = vpop.f32.mrb[0].mxu0
  %v11372 = vpop.f32.mrb[0].mxu0
  %v11373 = vadd.f32 %v11137, %v11372
  %v11374 = vpop.f32.mrb[0].mxu0
  %11375 = vmatprep.mubr.bf16.mxu0 %v11067
  %11376 = vmatmul.mubr.bf16.gmra.mrb[0].mxu0 %v11066
  %v11377 = vpop.f32.mrb[0].mxu0
  %v11378 = vadd.f32 %v11137, %v11377
  %v11379 = vpop.f32.mrb[0].mxu0
  %v11380 = vpop.f32.mrb[0].mxu0
  %v11381 = vadd.f32 %v11137, %v11380
  %v11382 = vpop.f32.mrb[0].mxu0
  %11383 = vmatprep.mubr.bf16.mxu0 %v11070
  %11384 = vmatmul.mubr.bf16.gmra.mrb[0].mxu0 %v11069
  %v11385 = vpop.f32.mrb[0].mxu0
  %v11386 = vadd.f32 %v11137, %v11385
  %v11387 = vpop.f32.mrb[0].mxu0
  %v11388 = vpop.f32.mrb[0].mxu0
  %v11389 = vadd.f32 %v11137, %v11388
  %v11390 = vpop.f32.mrb[0].mxu0
  %11391 = vmatprep.mubr.bf16.mxu0 %v11073
  %11392 = vmatmul.mubr.bf16.gmra.mrb[0].mxu0 %v11072
  %v11393 = vpop.f32.mrb[0].mxu0
  %v11394 = vadd.f32 %v11137, %v11393
  %v11395 = vpop.f32.mrb[0].mxu0
  %v11396 = vpop.f32.mrb[0].mxu0
  %v11397 = vadd.f32 %v11137, %v11396
  %v11398 = vpop.f32.mrb[0].mxu0
  %11399 = vmatprep.mubr.bf16.mxu0 %v11076
  %11400 = vmatmul.mubr.bf16.gmra.mrb[0].mxu0 %v11075
  %v11401 = vpop.f32.mrb[0].mxu0
  %v11402 = vadd.f32 %v11137, %v11401
  %v11403 = vpop.f32.mrb[0].mxu0
  %v11404 = vpop.f32.mrb[0].mxu0
  %v11405 = vadd.f32 %v11137, %v11404
  %v11406 = vpop.f32.mrb[0].mxu0
  %11407 = vmatprep.mubr.bf16.mxu0 %v11079
  %11408 = vmatmul.mubr.bf16.gmra.mrb[0].mxu0 %v11078
  %v11409 = vpop.f32.mrb[0].mxu0
  %v11410 = vadd.f32 %v11137, %v11409
  %v11411 = vpop.f32.mrb[0].mxu0
  %v11412 = vpop.f32.mrb[0].mxu0
  %v11413 = vadd.f32 %v11137, %v11412
  %v11414 = vpop.f32.mrb[0].mxu0
  %11415 = vmatprep.mubr.bf16.mxu0 %v11082
  %11416 = vmatmul.mubr.bf16.gmra.mrb[0].mxu0 %v11081
  %v11417 = vpop.f32.mrb[0].mxu0
  %v11418 = vadd.f32 %v11137, %v11417
  %v11419 = vpop.f32.mrb[0].mxu0
  %v11420 = vpop.f32.mrb[0].mxu0
  %v11421 = vadd.f32 %v11137, %v11420
  %v11422 = vpop.f32.mrb[0].mxu0
  %11423 = vmatprep.mubr.bf16.mxu0 %v11085
  %11424 = vmatmul.mubr.bf16.gmra.mrb[0].mxu0 %v11084
  %v11425 = vpop.f32.mrb[0].mxu0
  %v11426 = vadd.f32 %v11137, %v11425
  %v11427 = vpop.f32.mrb[0].mxu0
  %v11428 = vpop.f32.mrb[0].mxu0
  %v11429 = vadd.f32 %v11137, %v11428
  %v11430 = vpop.f32.mrb[0].mxu0
  %11431 = vmatprep.mubr.bf16.mxu0 %v11088
  %11432 = vmatmul.mubr.bf16.gmra.mrb[0].mxu0 %v11087
  %v11433 = vpop.f32.mrb[0].mxu0
  %v11434 = vadd.f32 %v11137, %v11433
  %v11435 = vpop.f32.mrb[0].mxu0
  %v11436 = vpop.f32.mrb[0].mxu0
  %v11437 = vadd.f32 %v11137, %v11436
  %v11438 = vpop.f32.mrb[0].mxu0
  %11439 = vmatprep.mubr.bf16.mxu0 %v11091
  %11440 = vmatmul.mubr.bf16.gmra.mrb[0].mxu0 %v11090
  %v11441 = vpop.f32.mrb[0].mxu0
  %v11442 = vadd.f32 %v11137, %v11441
  %v11443 = vpop.f32.mrb[0].mxu0
  %v11444 = vpop.f32.mrb[0].mxu0
  %v11445 = vadd.f32 %v11137, %v11444
  %v11446 = vpop.f32.mrb[0].mxu0
  %11447 = vmatprep.mubr.bf16.mxu0 %v11094
  %11448 = vmatmul.mubr.bf16.gmra.mrb[0].mxu0 %v11093
  %v11449 = vpop.f32.mrb[0].mxu0
  %v11450 = vadd.f32 %v11137, %v11449
  %v11451 = vpop.f32.mrb[0].mxu0
  %v11452 = vpop.f32.mrb[0].mxu0
  %v11453 = vadd.f32 %v11137, %v11452
  %v11454 = vpop.f32.mrb[0].mxu0
  %11455 = vdwg.mxu0
  %11456 = vmatprep.subr.bf16.mxu0 0
  %11457 = vmatpush1.bf16.msra.mxu0 %v11227
  %11458 = vmatprep.subr.bf16.mxu0 0
  %11459 = vmatpush1.bf16.msra.mxu0 %v11228
  %11460 = vmatprep.subr.bf16.mxu0 0
  %11461 = vmatpush1.bf16.msra.mxu0 0
  %11462 = vmatprep.subr.bf16.mxu0 0
  %11463 = vmatpush1.bf16.msra.mxu0 0
  %11464 = vmatprep.subr.bf16.mxu0 0
  %11465 = vmatpush1.bf16.msra.mxu0 0
  %11466 = vmatprep.subr.bf16.mxu0 0
  %11467 = vmatpush1.bf16.msra.mxu0 0
  %11468 = vmatprep.subr.bf16.mxu0 0
  %11469 = vmatpush1.bf16.msra.mxu0 0
  %11470 = vmatprep.subr.bf16.mxu0 0
  %11471 = vmatpush1.bf16.msra.mxu0 0
  %11472 = vmatprep.subr.bf16.mxu0 0
  %11473 = vmatpush1.bf16.msra.mxu0 0
  %11474 = vmatprep.subr.bf16.mxu0 0
  %11475 = vmatpush1.bf16.msra.mxu0 0
  %11476 = vmatprep.subr.bf16.mxu0 0
  %11477 = vmatpush1.bf16.msra.mxu0 0
  %11478 = vmatprep.subr.bf16.mxu0 0
  %11479 = vmatpush1.bf16.msra.mxu0 0
  %11480 = vmatprep.subr.bf16.mxu0 0
  %11481 = vmatpush1.bf16.msra.mxu0 0
  %11482 = vmatprep.subr.bf16.mxu0 0
  %11483 = vmatpush1.bf16.msra.mxu0 0
  %11484 = vmatprep.subr.bf16.mxu0 0
  %11485 = vmatpush1.bf16.msra.mxu0 0
  %11486 = vmatprep.subr.bf16.mxu0 0
  %11487 = vmatpush1.bf16.msra.mxu0 0
  %11488 = vmatprep.mubr.bf16.mxu0 0
  %11489 = vmatmul.mubr.bf16.gmra.mrb[0].mxu0 %v11248
  %v11490 = vpop.f32.mrb[0].mxu0
  %v11491 = vadd.f32 %v11330, %v11490
  %v11492 = vpop.f32.mrb[0].mxu0
  %v11493 = vpop.f32.mrb[0].mxu0
  %v11494 = vadd.f32 %v11333, %v11493
  %v11495 = vpop.f32.mrb[0].mxu0
  %11496 = vmatprep.mubr.bf16.mxu0 0
  %11497 = vmatmul.mubr.bf16.gmra.mrb[0].mxu0 %v11251
  %v11498 = vpop.f32.mrb[0].mxu0
  %v11499 = vadd.f32 %v11338, %v11498
  %v11500 = vpop.f32.mrb[0].mxu0
  %v11501 = vpop.f32.mrb[0].mxu0
  %v11502 = vadd.f32 %v11341, %v11501
  %v11503 = vpop.f32.mrb[0].mxu0
  %11504 = vmatprep.mubr.bf16.mxu0 0
  %11505 = vmatmul.mubr.bf16.gmra.mrb[0].mxu0 %v11254
  %v11506 = vpop.f32.mrb[0].mxu0
  %v11507 = vadd.f32 %v11346, %v11506
  %v11508 = vpop.f32.mrb[0].mxu0
  %v11509 = vpop.f32.mrb[0].mxu0
  %v11510 = vadd.f32 %v11349, %v11509
  %v11511 = vpop.f32.mrb[0].mxu0
  %11512 = vmatprep.mubr.bf16.mxu0 0
  %11513 = vmatmul.mubr.bf16.gmra.mrb[0].mxu0 %v11257
  %v11514 = vpop.f32.mrb[0].mxu0
  %v11515 = vadd.f32 %v11354, %v11514
  %v11516 = vpop.f32.mrb[0].mxu0
  %v11517 = vpop.f32.mrb[0].mxu0
  %v11518 = vadd.f32 %v11357, %v11517
  %v11519 = vpop.f32.mrb[0].mxu0
  %11520 = vmatprep.mubr.bf16.mxu0 0
  %11521 = vmatmul.mubr.bf16.gmra.mrb[0].mxu0 %v11260
  %v11522 = vpop.f32.mrb[0].mxu0
  %v11523 = vadd.f32 %v11362, %v11522
  %v11524 = vpop.f32.mrb[0].mxu0
  %v11525 = vpop.f32.mrb[0].mxu0
  %v11526 = vadd.f32 %v11365, %v11525
  %v11527 = vpop.f32.mrb[0].mxu0
  %11528 = vmatprep.mubr.bf16.mxu0 0
  %11529 = vmatmul.mubr.bf16.gmra.mrb[0].mxu0 %v11263
  %v11530 = vpop.f32.mrb[0].mxu0
  %v11531 = vadd.f32 %v11370, %v11530
  %v11532 = vpop.f32.mrb[0].mxu0
  %v11533 = vpop.f32.mrb[0].mxu0
  %v11534 = vadd.f32 %v11373, %v11533
  %v11535 = vpop.f32.mrb[0].mxu0
  %11536 = vmatprep.mubr.bf16.mxu0 0
  %11537 = vmatmul.mubr.bf16.gmra.mrb[0].mxu0 %v11266
  %v11538 = vpop.f32.mrb[0].mxu0
  %v11539 = vadd.f32 %v11378, %v11538
  %v11540 = vpop.f32.mrb[0].mxu0
  %v11541 = vpop.f32.mrb[0].mxu0
  %v11542 = vadd.f32 %v11381, %v11541
  %v11543 = vpop.f32.mrb[0].mxu0
  %11544 = vmatprep.mubr.bf16.mxu0 0
  %11545 = vmatmul.mubr.bf16.gmra.mrb[0].mxu0 %v11269
  %v11546 = vpop.f32.mrb[0].mxu0
  %v11547 = vadd.f32 %v11386, %v11546
  %v11548 = vpop.f32.mrb[0].mxu0
  %v11549 = vpop.f32.mrb[0].mxu0
  %v11550 = vadd.f32 %v11389, %v11549
  %v11551 = vpop.f32.mrb[0].mxu0
  %11552 = vmatprep.mubr.bf16.mxu0 0
  %11553 = vmatmul.mubr.bf16.gmra.mrb[0].mxu0 %v11272
  %v11554 = vpop.f32.mrb[0].mxu0
  %v11555 = vadd.f32 %v11394, %v11554
  %v11556 = vpop.f32.mrb[0].mxu0
  %v11557 = vpop.f32.mrb[0].mxu0
  %v11558 = vadd.f32 %v11397, %v11557
  %v11559 = vpop.f32.mrb[0].mxu0
  %11560 = vmatprep.mubr.bf16.mxu0 0
  %11561 = vmatmul.mubr.bf16.gmra.mrb[0].mxu0 %v11275
  %v11562 = vpop.f32.mrb[0].mxu0
  %v11563 = vadd.f32 %v11402, %v11562
  %v11564 = vpop.f32.mrb[0].mxu0
  %v11565 = vpop.f32.mrb[0].mxu0
  %v11566 = vadd.f32 %v11405, %v11565
  %v11567 = vpop.f32.mrb[0].mxu0
  %11568 = vmatprep.mubr.bf16.mxu0 0
  %11569 = vmatmul.mubr.bf16.gmra.mrb[0].mxu0 %v11278
  %v11570 = vpop.f32.mrb[0].mxu0
  %v11571 = vadd.f32 %v11410, %v11570
  %v11572 = vpop.f32.mrb[0].mxu0
  %v11573 = vpop.f32.mrb[0].mxu0
  %v11574 = vadd.f32 %v11413, %v11573
  %v11575 = vpop.f32.mrb[0].mxu0
  %11576 = vmatprep.mubr.bf16.mxu0 0
  %11577 = vmatmul.mubr.bf16.gmra.mrb[0].mxu0 %v11281
  %v11578 = vpop.f32.mrb[0].mxu0
  %v11579 = vadd.f32 %v11418, %v11578
  %v11580 = vpop.f32.mrb[0].mxu0
  %v11581 = vpop.f32.mrb[0].mxu0
  %v11582 = vadd.f32 %v11421, %v11581
  %v11583 = vpop.f32.mrb[0].mxu0
  %11584 = vmatprep.mubr.bf16.mxu0 0
  %11585 = vmatmul.mubr.bf16.gmra.mrb[0].mxu0 %v11284
  %v11586 = vpop.f32.mrb[0].mxu0
  %v11587 = vadd.f32 %v11426, %v11586
  %v11588 = vpop.f32.mrb[0].mxu0
  %v11589 = vpop.f32.mrb[0].mxu0
  %v11590 = vadd.f32 %v11429, %v11589
  %v11591 = vpop.f32.mrb[0].mxu0
  %11592 = vmatprep.mubr.bf16.mxu0 0
  %11593 = vmatmul.mubr.bf16.gmra.mrb[0].mxu0 %v11287
  %v11594 = vpop.f32.mrb[0].mxu0
  %v11595 = vadd.f32 %v11434, %v11594
  %v11596 = vpop.f32.mrb[0].mxu0
  %v11597 = vpop.f32.mrb[0].mxu0
  %v11598 = vadd.f32 %v11437, %v11597
  %v11599 = vpop.f32.mrb[0].mxu0
  %11600 = vmatprep.mubr.bf16.mxu0 0
  %11601 = vmatmul.mubr.bf16.gmra.mrb[0].mxu0 %v11290
  %v11602 = vpop.f32.mrb[0].mxu0
  %v11603 = vadd.f32 %v11442, %v11602
  %v11604 = vpop.f32.mrb[0].mxu0
  %v11605 = vpop.f32.mrb[0].mxu0
  %v11606 = vadd.f32 %v11445, %v11605
  %v11607 = vpop.f32.mrb[0].mxu0
  %11608 = vmatprep.mubr.bf16.mxu0 0
  %11609 = vmatmul.mubr.bf16.gmra.mrb[0].mxu0 %v11293
  %v11610 = vpop.f32.mrb[0].mxu0
  %v11611 = vadd.f32 %v11450, %v11610
  %v11612 = vpop.f32.mrb[0].mxu0
  %v11613 = vpop.f32.mrb[0].mxu0
  %v11614 = vadd.f32 %v11453, %v11613
  %v11615 = vpop.f32.mrb[0].mxu0
  %11616 = vdwg.mxu0
  %v11617 = vadd.f32 %v11491, 1.0
  %v11618 = vadd.f32 %v11494, 1.0
  %v11619 = vadd.f32 %v11499, 1.0
  %v11620 = vadd.f32 %v11502, 1.0
  %v11621 = vadd.f32 %v11507, 1.0
  %v11622 = vadd.f32 %v11510, 1.0
  %v11623 = vadd.f32 %v11515, 1.0
  %v11624 = vadd.f32 %v11518, 1.0
  %v11625 = vadd.f32 %v11523, 1.0
  %v11626 = vadd.f32 %v11526, 1.0
  %v11627 = vadd.f32 %v11531, 1.0
  %v11628 = vadd.f32 %v11534, 1.0
  %v11629 = vadd.f32 %v11539, 1.0
  %v11630 = vadd.f32 %v11542, 1.0
  %v11631 = vadd.f32 %v11547, 1.0
  %v11632 = vadd.f32 %v11550, 1.0
  %v11633 = vadd.f32 %v11555, 1.0
  %v11634 = vadd.f32 %v11558, 1.0
  %v11635 = vadd.f32 %v11563, 1.0
  %v11636 = vadd.f32 %v11566, 1.0
  %v11637 = vadd.f32 %v11571, 1.0
  %v11638 = vadd.f32 %v11574, 1.0
  %v11639 = vadd.f32 %v11579, 1.0
  %v11640 = vadd.f32 %v11582, 1.0
  %v11641 = vadd.f32 %v11587, 1.0
  %v11642 = vadd.f32 %v11590, 1.0
  %v11643 = vadd.f32 %v11595, 1.0
  %v11644 = vadd.f32 %v11598, 1.0
  %v11645 = vadd.f32 %v11603, 1.0
  %v11646 = vadd.f32 %v11606, 1.0
  %v11647 = vadd.f32 %v11611, 1.0
  %v11648 = vadd.f32 %v11614, 1.0
  %v11649 = vmul.f32 %v11617, %v11617
  %v11650 = vmul.f32 %v11618, %v11618
  %v11651 = vmul.f32 %v11619, %v11619
  %v11652 = vmul.f32 %v11620, %v11620
  %v11653 = vmul.f32 %v11621, %v11621
  %v11654 = vmul.f32 %v11622, %v11622
  %v11655 = vmul.f32 %v11623, %v11623
  %v11656 = vmul.f32 %v11624, %v11624
  %v11657 = vmul.f32 %v11625, %v11625
  %v11658 = vmul.f32 %v11626, %v11626
  %v11659 = vmul.f32 %v11627, %v11627
  %v11660 = vmul.f32 %v11628, %v11628
  %v11661 = vmul.f32 %v11629, %v11629
  %v11662 = vmul.f32 %v11630, %v11630
  %v11663 = vmul.f32 %v11631, %v11631
  %v11664 = vmul.f32 %v11632, %v11632
  %v11665 = vmul.f32 %v11633, %v11633
  %v11666 = vmul.f32 %v11634, %v11634
  %v11667 = vmul.f32 %v11635, %v11635
  %v11668 = vmul.f32 %v11636, %v11636
  %v11669 = vmul.f32 %v11637, %v11637
  %v11670 = vmul.f32 %v11638, %v11638
  %v11671 = vmul.f32 %v11639, %v11639
  %v11672 = vmul.f32 %v11640, %v11640
  %v11673 = vmul.f32 %v11641, %v11641
  %v11674 = vmul.f32 %v11642, %v11642
  %v11675 = vmul.f32 %v11643, %v11643
  %v11676 = vmul.f32 %v11644, %v11644
  %v11677 = vmul.f32 %v11645, %v11645
  %v11678 = vmul.f32 %v11646, %v11646
  %v11679 = vmul.f32 %v11647, %v11647
  %v11680 = vmul.f32 %v11648, %v11648
  %vm11681 = vcmask 15360
  %11682 = vst.msk [vmem:[%s10] sm:$0xff] %vm11681, %v11649
  %11683 = vst.msk [vmem:[%s10 + $0x8] sm:$0xff] %vm11681, %v11650
  %11684 = vst.msk [vmem:[%s10 + $0x10] sm:$0xff] %vm11681, %v11651
  %11685 = vst.msk [vmem:[%s10 + $0x18] sm:$0xff] %vm11681, %v11652
  %11686 = vst.msk [vmem:[%s10 + $0x20] sm:$0xff] %vm11681, %v11653
  %11687 = vst.msk [vmem:[%s10 + $0x28] sm:$0xff] %vm11681, %v11654
  %11688 = vst.msk [vmem:[%s10 + $0x30] sm:$0xff] %vm11681, %v11655
  %11689 = vst.msk [vmem:[%s10 + $0x38] sm:$0xff] %vm11681, %v11656
  %11690 = vst.msk [vmem:[%s10 + $0x40] sm:$0xff] %vm11681, %v11657
  %11691 = vst.msk [vmem:[%s10 + $0x48] sm:$0xff] %vm11681, %v11658
  %11692 = vst.msk [vmem:[%s10 + $0x50] sm:$0xff] %vm11681, %v11659
  %11693 = vst.msk [vmem:[%s10 + $0x58] sm:$0xff] %vm11681, %v11660
  %11694 = vst.msk [vmem:[%s10 + $0x60] sm:$0xff] %vm11681, %v11661
  %11695 = vst.msk [vmem:[%s10 + $0x68] sm:$0xff] %vm11681, %v11662
  %11696 = vst.msk [vmem:[%s10 + $0x70] sm:$0xff] %vm11681, %v11663
  %11697 = vst.msk [vmem:[%s10 + $0x78] sm:$0xff] %vm11681, %v11664
  %11698 = vst.msk [vmem:[%s10 + $0x80] sm:$0xff] %vm11681, %v11665
  %11699 = vst.msk [vmem:[%s10 + $0x88] sm:$0xff] %vm11681, %v11666
  %11700 = vst.msk [vmem:[%s10 + $0x90] sm:$0xff] %vm11681, %v11667
  %11701 = vst.msk [vmem:[%s10 + $0x98] sm:$0xff] %vm11681, %v11668
  %11702 = vst.msk [vmem:[%s10 + $0xa0] sm:$0xff] %vm11681, %v11669
  %11703 = vst.msk [vmem:[%s10 + $0xa8] sm:$0xff] %vm11681, %v11670
  %11704 = vst.msk [vmem:[%s10 + $0xb0] sm:$0xff] %vm11681, %v11671
  %11705 = vst.msk [vmem:[%s10 + $0xb8] sm:$0xff] %vm11681, %v11672
  %11706 = vst.msk [vmem:[%s10 + $0xc0] sm:$0xff] %vm11681, %v11673
  %11707 = vst.msk [vmem:[%s10 + $0xc8] sm:$0xff] %vm11681, %v11674
  %11708 = vst.msk [vmem:[%s10 + $0xd0] sm:$0xff] %vm11681, %v11675
  %11709 = vst.msk [vmem:[%s10 + $0xd8] sm:$0xff] %vm11681, %v11676
  %11710 = vst.msk [vmem:[%s10 + $0xe0] sm:$0xff] %vm11681, %v11677
  %11711 = vst.msk [vmem:[%s10 + $0xe8] sm:$0xff] %vm11681, %v11678
  %11712 = vst.msk [vmem:[%s10 + $0xf0] sm:$0xff] %vm11681, %v11679
  %11713 = vst.msk [vmem:[%s10 + $0xf8] sm:$0xff] %vm11681, %v11680
  // Predicated region
  $region42: #{nb_forward.1} parent=0 // pred_check
    _
  $region43: #{nb_forward.1} parent=0 // pred_check_branch
    %11715 = sbr.rel (0) target = $region45
  $region44: #{nb_forward.1} parent=0 // pred_region
    _
  $region45: #{nb_forward.1} parent=0 // pred_fallthru
    _
  // Predicated region
  $region46: #{nb_forward.1} parent=0 // pred_check
    _
  $region47: #{nb_forward.1} parent=0 // pred_check_branch
    %11717 = sbr.rel (0) target = $region49
  $region48: #{nb_forward.1} parent=0 // pred_region
    _
  $region49: #{nb_forward.1} parent=0 // pred_fallthru
    _

</llo_original>
